<compile_context>
chip_gen: v5e
topology: v5e:2x2
jax: 0.10.0
libtpu: 0.0.40
codegen_flags: <defaults>
</compile_context>

<pallas_src>
import functools

import numpy as np
import jax
import jax.numpy as jnp
from jax.experimental import pallas as pl
from jax.experimental.pallas import tpu as pltpu

# ----------------------------- config (consistent with the module) ------------------------
B = 2
IN_CH = 32
OUT_CH = 32
TEMB_CH = 32
GROUPS = 8                 # resnet_groups
HEADS = 2                  # num_attention_heads -> head_dim = 32 / 2 = 16
CROSS_DIM = 32             # cross_attention_dim
H = W = 16
HW = H * W
SEQ = 8                    # encoder_hidden_states sequence length
NUM_LAYERS = 1
RESNET_EPS = 1e-6
GN_ATTN_EPS = 1e-6
LN_EPS = 1e-5
OUTPUT_SCALE_FACTOR = 1.0
Q_CHUNK = 128              # token-axis tiling for self-attn scores and GEGLU FF

# vecpack column indices (all length-C vectors packed into one (C, 20) array)
_V_GN1_G, _V_GN1_B, _V_CONV1_B = 0, 1, 2
_V_GN2_G, _V_GN2_B, _V_CONV2_B = 3, 4, 5
_V_DOWN_B = 6
_V_AGN_G, _V_AGN_B, _V_PIN_B = 7, 8, 9
_V_LN1_G, _V_LN1_B, _V_BO1 = 10, 11, 12
_V_LN2_G, _V_LN2_B, _V_BO2 = 13, 14, 15
_V_LN3_G, _V_LN3_B, _V_FFB2, _V_POUT_B = 16, 17, 18, 19
_N_VEC = 20

# attnpack 32-column block indices
_A_PIN, _A_WQ1, _A_WK1, _A_WV1, _A_WO1, _A_WQ2, _A_WK2, _A_WV2, _A_WO2, _A_POUT = range(10)

# ----------------------------- in-kernel math helpers --------------------------------------


def _sigmoid(x):
    return 1.0 / (1.0 + jnp.exp(-x))


def _silu(x):
    return x * _sigmoid(x)


def _erf(x):
    # Abramowitz & Stegun 7.1.26 (|err| < 1.5e-7): exact-gelu without relying on erf lowering.
    a1, a2, a3, a4, a5 = 0.254829592, -0.284496736, 1.421413741, -1.453152027, 1.061405429
    p = 0.3275911
    sgn = jnp.where(x >= 0.0, 1.0, -1.0)
    ax = jnp.abs(x)
    t = 1.0 / (1.0 + p * ax)
    poly = ((((a5 * t + a4) * t + a3) * t + a2) * t + a1) * t
    return sgn * (1.0 - poly * jnp.exp(-ax * ax))


def _gelu(x):
    return 0.5 * x * (1.0 + _erf(x * 0.7071067811865476))


# ----------------------------- fused layer kernel ------------------------------------------


def _fused_layer_kernel(x_ref, tproj_ref, ctx_ref,
                        gsum_ref, mask9_ref, subsel_ref,
                        vec_ref, convw_ref, attnw_ref,
                        ffw1_ref, ffb1_ref, ffw2_ref,
                        o_pre_ref, o_down_ref,
                        *, groups, heads, rn_eps, gn_eps, ln_eps, hw, w_sp):
    C = x_ref.shape[1]
    cin9 = 9 * C
    inv_cnt = 1.0 / float((C // groups) * hw)
    gsum = gsum_ref[...]                                   # (C, C) block-diag 0/1 (f32)

    def vcol(i):                                           # (C, 1) packed vector column
        return vec_ref[:, i:i + 1]

    def amat(i):                                           # (C, C) bf16 weight block
        return attnw_ref[:, i * C:(i + 1) * C]

    def group_norm(v, gidx, bidx, eps):
        s1 = jnp.sum(v, axis=1, keepdims=True)             # (C, 1) per-channel sums
        mean = jnp.dot(gsum, s1, preferred_element_type=jnp.float32) * inv_cnt
        d = v - mean
        s2 = jnp.sum(d * d, axis=1, keepdims=True)
        var = jnp.dot(gsum, s2, preferred_element_type=jnp.float32) * inv_cnt
        return d * jax.lax.rsqrt(var + eps) * vcol(gidx) + vcol(bidx)

    def layer_norm(v, gidx, bidx):
        mean = jnp.mean(v, axis=0, keepdims=True)
        d = v - mean
        var = jnp.mean(d * d, axis=0, keepdims=True)
        return d * jax.lax.rsqrt(var + ln_eps) * vcol(gidx) + vcol(bidx)

    def conv3x3(v, w):
        # v: (Cin, HW) f32 ; w: (Cout, 9*Cin) bf16.
        # im2col slab via lane rolls (XLU) + precomputed edge masks -> single K=288 matmul.
        taps = []
        for kh in range(3):
            for kw in range(3):
                t = kh * 3 + kw
                off = (kh - 1) * w_sp + (kw - 1)
                shifted = v if off == 0 else pltpu.roll(v, shift=(-off) % hw, axis=1)
                taps.append((shifted * mask9_ref[t]).astype(jnp.bfloat16))
        slab = jnp.concatenate(taps, axis=0)               # (9*Cin, HW) bf16
        return jnp.dot(w, slab, preferred_element_type=jnp.float32)

    def attention(q, k, v, wo, q_chunk):
        # Scores in (Sk, Sq) orientation (softmax over keys = sublane axis); the softmax
        # normalizer is applied to the small (d, qc) head output; per-head outputs are
        # folded directly into the wo projection (no concatenate). 1/sqrt(d) is already
        # folded into wq at prepare time.
        c, sq = q.shape
        d = c // heads
        qb, kb, vb = (q.astype(jnp.bfloat16), k.astype(jnp.bfloat16),
                      v.astype(jnp.bfloat16))
        chunks = []
        for c0 in range(0, sq, q_chunk):
            acc = None
            for hd in range(heads):
                qh = qb[hd * d:(hd + 1) * d, c0:c0 + q_chunk]      # (d, qc)
                kh_ = kb[hd * d:(hd + 1) * d, :]                    # (d, Sk)
                vh = vb[hd * d:(hd + 1) * d, :]                     # (d, Sk)
                s = jax.lax.dot_general(kh_, qh, (((0,), (0,)), ((), ())),
                                        preferred_element_type=jnp.float32)   # (Sk, qc)
                m = jnp.max(s, axis=0, keepdims=True)
                p = jnp.exp(s - m)
                l = jnp.sum(p, axis=0, keepdims=True)               # (1, qc)
                oh = jnp.dot(vh, p.astype(jnp.bfloat16),
                             preferred_element_type=jnp.float32) / l           # (d, qc)
                contrib = jnp.dot(wo[:, hd * d:(hd + 1) * d], oh.astype(jnp.bfloat16),
                                  preferred_element_type=jnp.float32)          # (C, qc)
                acc = contrib if acc is None else acc + contrib
            chunks.append(acc)
        return chunks[0] if len(chunks) == 1 else jnp.concatenate(chunks, axis=1)

    x = x_ref[0]                                                    # (C, HW) f32

    # ---------------- ResnetBlock2D ----------------
    h = _silu(group_norm(x, _V_GN1_G, _V_GN1_B, rn_eps))
    h = conv3x3(h, convw_ref[:, 0:cin9]) + vcol(_V_CONV1_B)
    h = h + tproj_ref[0]                                            # precomputed temb proj
    h = _silu(group_norm(h, _V_GN2_G, _V_GN2_B, rn_eps))
    # dropout p=0.0 -> identity
    h = conv3x3(h, convw_ref[:, cin9:2 * cin9]) + vcol(_V_CONV2_B)
    # in_channels == out_channels -> no conv_shortcut
    x = x + h
    if OUTPUT_SCALE_FACTOR != 1.0:
        x = x * (1.0 / OUTPUT_SCALE_FACTOR)

    # ---------------- Transformer2DModel ----------------
    resid = x
    h = group_norm(x, _V_AGN_G, _V_AGN_B, gn_eps)
    h = jnp.dot(amat(_A_PIN), h.astype(jnp.bfloat16),
                preferred_element_type=jnp.float32) + vcol(_V_PIN_B)   # proj_in (1x1 conv)

    # ---- self attention ----
    n = layer_norm(h, _V_LN1_G, _V_LN1_B)
    nb = n.astype(jnp.bfloat16)
    q = jnp.dot(amat(_A_WQ1), nb, preferred_element_type=jnp.float32)
    k = jnp.dot(amat(_A_WK1), nb, preferred_element_type=jnp.float32)
    v = jnp.dot(amat(_A_WV1), nb, preferred_element_type=jnp.float32)
    h = attention(q, k, v, amat(_A_WO1), Q_CHUNK) + vcol(_V_BO1) + h

    # ---- cross attention (Sk = SEQ, small) ----
    n = layer_norm(h, _V_LN2_G, _V_LN2_B)
    nb = n.astype(jnp.bfloat16)
    ctx = ctx_ref[0].astype(jnp.bfloat16)                           # (Sk, CROSS_DIM)
    q = jnp.dot(amat(_A_WQ2), nb, preferred_element_type=jnp.float32)
    k = jax.lax.dot_general(amat(_A_WK2), ctx, (((1,), (1,)), ((), ())),
                            preferred_element_type=jnp.float32)     # (C, Sk)
    v = jax.lax.dot_general(amat(_A_WV2), ctx, (((1,), (1,)), ((), ())),
                            preferred_element_type=jnp.float32)
    h = attention(q, k, v, amat(_A_WO2), hw) + vcol(_V_BO2) + h

    # ---- GEGLU feed-forward (token-chunked) ----
    n = layer_norm(h, _V_LN3_G, _V_LN3_B)
    nb = n.astype(jnp.bfloat16)
    ffw1 = ffw1_ref[...]                                            # (2*inner, C) bf16
    ffb1 = ffb1_ref[...]                                            # (2*inner, 1) f32
    ffw2 = ffw2_ref[...]                                            # (C, inner) bf16
    inner = ffw2.shape[1]
    ff_chunks = []
    for c0 in range(0, hw, Q_CHUNK):
        ffc = jnp.dot(ffw1, nb[:, c0:c0 + Q_CHUNK],
                      preferred_element_type=jnp.float32) + ffb1
        g = ffc[:inner, :] * _gelu(ffc[inner:, :])
        ff_chunks.append(jnp.dot(ffw2, g.astype(jnp.bfloat16),
                                 preferred_element_type=jnp.float32))
    h = jnp.concatenate(ff_chunks, axis=1) + vcol(_V_FFB2) + h

    # ---- proj_out + spatial residual ----
    h = jnp.dot(amat(_A_POUT), h.astype(jnp.bfloat16),
                preferred_element_type=jnp.float32) + vcol(_V_POUT_B) + resid
    o_pre_ref[0] = h

    # ---------------- Downsample2D (3x3 stride-2 conv, padding=1) ----------------
    y = conv3x3(h, convw_ref[:, 2 * cin9:3 * cin9])                 # stride-1 full-res conv
    o_down_ref[0] = jnp.dot(y, subsel_ref[...],
                            preferred_element_type=jnp.float32) + vcol(_V_DOWN_B)


# ----------------------------- pallas_call wrapper ------------------------------------------


def _bcast_spec(a):
    zeros = (0,) * a.ndim
    return pl.BlockSpec(a.shape, lambda b: zeros)


def _batch_spec(shape):
    blk = (1,) + tuple(shape[1:])
    trailing = (0,) * (len(shape) - 1)
    return pl.BlockSpec(blk, lambda b: (b,) + trailing)


def fused_layer(x, tproj, ctx, const, lp):
    Bn, C, N = x.shape
    n_down = ((H + 2 - 3) // 2 + 1) * ((W + 2 - 3) // 2 + 1)
    args = (x, tproj, ctx, const["gsum"], const["mask9"], const["subsel"],
            lp["vecpack"], lp["convpack"], lp["attnpack"],
            lp["ff_w1"], lp["ff_b1"], lp["ff_w2"])
    in_specs = [_batch_spec(x.shape), _batch_spec(tproj.shape), _batch_spec(ctx.shape)] + \
               [_bcast_spec(a) for a in args[3:]]
    kern = functools.partial(
        _fused_layer_kernel, groups=GROUPS, heads=HEADS,
        rn_eps=RESNET_EPS, gn_eps=GN_ATTN_EPS, ln_eps=LN_EPS, hw=N, w_sp=W)
    return pl.pallas_call(
        kern,
        out_shape=(jax.ShapeDtypeStruct((Bn, C, N), jnp.float32),
                   jax.ShapeDtypeStruct((Bn, C, n_down), jnp.float32)),
        grid=(Bn,),
        in_specs=in_specs,
        out_specs=(_batch_spec((Bn, C, N)), _batch_spec((Bn, C, n_down))),
        compiler_params=pltpu.CompilerParams(dimension_semantics=("parallel",)),
    )(*args)


# ----------------------------- forward (mirrors CrossAttnDownBlock2D.forward) --------------


@jax.jit
def cross_attn_down_block_forward(hidden_states, temb, encoder_hidden_states, kp):
    """Eval-mode forward; masks / cross_attention_kwargs / additional_residuals are None."""
    Bn, C, Hh, Ww = hidden_states.shape
    x = hidden_states.reshape(Bn, C, Hh * Ww)               # NCHW -> (B, C, HW)
    output_states = ()
    # NUM_LAYERS == 1 in this config: resnet -> transformer -> downsample is ONE fused kernel.
    # TODO(synk): NUM_LAYERS > 1 needs a fused variant without the downsample tail for
    # the non-final layers.
    lp = kp["layers"][0]
    tproj = (jax.nn.silu(temb) @ lp["temb_w"].T + lp["temb_b"]).reshape(Bn, -1, 1)
    pre, down = fused_layer(x, tproj, encoder_hidden_states, kp["const"], lp)
    output_states = output_states + (pre.reshape(Bn, OUT_CH, Hh, Ww),)
    Ho = (Hh + 2 - 3) // 2 + 1
    Wo = (Ww + 2 - 3) // 2 + 1
    y = down.reshape(Bn, OUT_CH, Ho, Wo)
    output_states = output_states + (y,)
    return y, output_states


# ----------------------------- constant tables ---------------------------------------------


def build_group_sum(c, groups):
    cpg = c // groups
    m = np.zeros((c, c), np.float32)
    for g in range(groups):
        m[g * cpg:(g + 1) * cpg, g * cpg:(g + 1) * cpg] = 1.0
    return m


def build_conv_masks(h, w):
    """(9, 1, H*W) validity mask: tap t is 1 where the shifted neighbour is in-bounds."""
    m = np.zeros((9, 1, h * w), np.float32)
    for kh in range(3):
        for kw in range(3):
            t = kh * 3 + kw
            dh, dw = kh - 1, kw - 1
            for oh in range(h):
                for ow in range(w):
                    if 0 <= oh + dh < h and 0 <= ow + dw < w:
                        m[t, 0, oh * w + ow] = 1.0
    return m


def build_downsample_selector(h, w, stride=2):
    """(H*W, Ho*Wo) one-hot column selector picking the stride-2 output positions."""
    ho = (h + 2 - 3) // stride + 1
    wo = (w + 2 - 3) // stride + 1
    sel = np.zeros((h * w, ho * wo), np.float32)
    for oh in range(ho):
        for ow in range(wo):
            sel[(oh * stride) * w + ow * stride, oh * wo + ow] = 1.0
    return sel


# ----------------------------- deterministic parameter init --------------------------------


class KeyGen:
    def __init__(self, seed):
        self.key = jax.random.PRNGKey(seed)

    def __call__(self):
        self.key, sub = jax.random.split(self.key)
        return sub


def _w(kg, shape, scale=0.05):
    return scale * jax.random.normal(kg(), shape, dtype=jnp.float32)


def init_params(kg):
    """PyTorch-layout parameters (as they would come from a state_dict)."""
    def resnet_params(cin, cout):
        return dict(
            gn1_g=jnp.ones((cin,), jnp.float32), gn1_b=jnp.zeros((cin,), jnp.float32),
            conv1_w=_w(kg, (cout, cin, 3, 3)), conv1_b=_w(kg, (cout,)),
            temb_w=_w(kg, (cout, TEMB_CH)), temb_b=_w(kg, (cout,)),
            gn2_g=jnp.ones((cout,), jnp.float32), gn2_b=jnp.zeros((cout,), jnp.float32),
            conv2_w=_w(kg, (cout, cout, 3, 3)), conv2_b=_w(kg, (cout,)),
        )

    def attn_params(q_dim, kv_dim, inner):
        return dict(
            wq=_w(kg, (inner, q_dim)),
            wk=_w(kg, (inner, kv_dim)),
            wv=_w(kg, (inner, kv_dim)),
            wo=_w(kg, (q_dim, inner)), bo=_w(kg, (q_dim,)),
        )

    def transformer_params(c):
        ff_inner = 4 * c
        return dict(
            gn_g=jnp.ones((c,), jnp.float32), gn_b=jnp.zeros((c,), jnp.float32),
            proj_in_w=_w(kg, (c, c, 1, 1)), proj_in_b=_w(kg, (c,)),
            block=dict(
                ln1_g=jnp.ones((c,), jnp.float32), ln1_b=jnp.zeros((c,), jnp.float32),
                attn1=attn_params(c, c, c),
                ln2_g=jnp.ones((c,), jnp.float32), ln2_b=jnp.zeros((c,), jnp.float32),
                attn2=attn_params(c, CROSS_DIM, c),
                ln3_g=jnp.ones((c,), jnp.float32), ln3_b=jnp.zeros((c,), jnp.float32),
                ff=dict(w1=_w(kg, (2 * ff_inner, c)), b1=_w(kg, (2 * ff_inner,)),
                        w2=_w(kg, (c, ff_inner)), b2=_w(kg, (c,))),
            ),
            proj_out_w=_w(kg, (c, c, 1, 1)), proj_out_b=_w(kg, (c,)),
        )

    resnets, attentions = [], []
    for i in range(NUM_LAYERS):
        cin = IN_CH if i == 0 else OUT_CH
        resnets.append(resnet_params(cin, OUT_CH))
        attentions.append(transformer_params(OUT_CH))
    return dict(
        resnets=resnets,
        attentions=attentions,
        down_w=_w(kg, (OUT_CH, OUT_CH, 3, 3)), down_b=_w(kg, (OUT_CH,)),
    )


def _conv9_flat(w):
    """(Cout, Cin, 3, 3) -> (Cout, 9*Cin), columns ordered tap-major (t = kh*3+kw)."""
    co = w.shape[0]
    return w.transpose(0, 2, 3, 1).reshape(co, -1)


def prepare_params(params):
    """One-time conversion: PyTorch layouts -> packed, bf16-pre-cast kernel layouts."""
    const = dict(
        gsum=jnp.asarray(build_group_sum(OUT_CH, GROUPS)),
        mask9=jnp.asarray(build_conv_masks(H, W)),
        subsel=jnp.asarray(build_downsample_selector(H, W)),
    )
    scale = float(OUT_CH // HEADS) ** -0.5
    layers = []
    for i in range(NUM_LAYERS):
        rp, ap = params["resnets"][i], params["attentions"][i]
        blk = ap["block"]
        vec_cols = [
            rp["gn1_g"], rp["gn1_b"], rp["conv1_b"],
            rp["gn2_g"], rp["gn2_b"], rp["conv2_b"],
            params["down_b"],
            ap["gn_g"], ap["gn_b"], ap["proj_in_b"],
            blk["ln1_g"], blk["ln1_b"], blk["attn1"]["bo"],
            blk["ln2_g"], blk["ln2_b"], blk["attn2"]["bo"],
            blk["ln3_g"], blk["ln3_b"], blk["ff"]["b2"], ap["proj_out_b"],
        ]
        assert len(vec_cols) == _N_VEC
        vecpack = jnp.stack(vec_cols, axis=1).astype(jnp.float32)          # (C, 20)
        convpack = jnp.concatenate(
            [_conv9_flat(rp["conv1_w"]), _conv9_flat(rp["conv2_w"]),
             _conv9_flat(params["down_w"])], axis=1).astype(jnp.bfloat16)  # (C, 3*9*C)
        attnpack = jnp.concatenate(
            [ap["proj_in_w"].reshape(OUT_CH, OUT_CH),
             blk["attn1"]["wq"] * scale, blk["attn1"]["wk"], blk["attn1"]["wv"],
             blk["attn1"]["wo"],
             blk["attn2"]["wq"] * scale, blk["attn2"]["wk"], blk["attn2"]["wv"],
             blk["attn2"]["wo"],
             ap["proj_out_w"].reshape(OUT_CH, OUT_CH)],
            axis=1).astype(jnp.bfloat16)                                   # (C, 10*C)
        layers.append(dict(
            temb_w=rp["temb_w"], temb_b=rp["temb_b"],          # used on the host side
            vecpack=vecpack, convpack=convpack, attnpack=attnpack,
            ff_w1=blk["ff"]["w1"].astype(jnp.bfloat16),
            ff_b1=blk["ff"]["b1"].reshape(-1, 1).astype(jnp.float32),
            ff_w2=blk["ff"]["w2"].astype(jnp.bfloat16),
        ))
    return dict(const=const, layers=layers)


# TODO(synk): gradient-checkpointing branch, attention_mask / encoder_attention_mask /
# cross_attention_kwargs / additional_residuals / context_tokens handling are omitted
# (all None / identity in this eval path); dropout p=0.0 is an identity.

if __name__ == "__main__":
    kg = KeyGen(0)
    params = init_params(kg)
    kparams = prepare_params(params)

    key = jax.random.PRNGKey(0)
    key1, key2, key3 = jax.random.split(key, 3)
    hidden_states = jax.random.normal(key1, (B, IN_CH, H, W), dtype=jnp.float32)
    temb = jax.random.normal(key2, (B, TEMB_CH), dtype=jnp.float32)
    encoder_hidden_states = jax.random.normal(key3, (B, SEQ, CROSS_DIM), dtype=jnp.float32)

    out, output_states = cross_attn_down_block_forward(
        hidden_states, temb, encoder_hidden_states, kparams)
    out = jax.block_until_ready(out)
    for s in output_states:
        jax.block_until_ready(s)

    assert out.shape == (B, OUT_CH, H // 2, W // 2)
    assert output_states[0].shape == (B, OUT_CH, H, W)
    assert output_states[-1].shape == (B, OUT_CH, H // 2, W // 2)
    assert bool(jnp.all(jnp.isfinite(out)))
    assert bool(jnp.all(jnp.isfinite(output_states[0])))
    print("KERNEL_OK")
</pallas_src>

<mosaic_0001>
module attributes {stable_mosaic.version = 11 : i64} {
  func.func @_fused_layer_kernel(%arg0: i32, %arg1: memref<1x32x256xf32, #tpu.memory_space<vmem>>, %arg2: memref<1x32x1xf32, #tpu.memory_space<vmem>>, %arg3: memref<1x8x32xf32, #tpu.memory_space<vmem>>, %arg4: memref<32x32xf32, #tpu.memory_space<vmem>>, %arg5: memref<9x1x256xf32, #tpu.memory_space<vmem>>, %arg6: memref<256x64xf32, #tpu.memory_space<vmem>>, %arg7: memref<32x20xf32, #tpu.memory_space<vmem>>, %arg8: memref<32x864xbf16, #tpu.memory_space<vmem>>, %arg9: memref<32x320xbf16, #tpu.memory_space<vmem>>, %arg10: memref<256x32xbf16, #tpu.memory_space<vmem>>, %arg11: memref<256x1xf32, #tpu.memory_space<vmem>>, %arg12: memref<32x128xbf16, #tpu.memory_space<vmem>>, %arg13: memref<1x32x256xf32, #tpu.memory_space<vmem>>, %arg14: memref<1x32x64xf32, #tpu.memory_space<vmem>>) attributes {dimension_semantics = [#tpu.dimension_semantics<parallel>], iteration_bounds = array<i64: 2>, scalar_prefetch = 0 : i64, scratch_operands = 0 : i64, tpu.core_type = #tpu.core_type<tc>, window_params = [{transform_indices = @transform_0, window_bounds = array<i64: 1, 32, 256>}, {transform_indices = @transform_1, window_bounds = array<i64: 1, 32, 1>}, {transform_indices = @transform_2, window_bounds = array<i64: 1, 8, 32>}, {pipeline_mode = #tpu.pipeline_mode<synchronous>, transform_indices = @transform_3, window_bounds = array<i64: 32, 32>}, {pipeline_mode = #tpu.pipeline_mode<synchronous>, transform_indices = @transform_4, window_bounds = array<i64: 9, 1, 256>}, {pipeline_mode = #tpu.pipeline_mode<synchronous>, transform_indices = @transform_5, window_bounds = array<i64: 256, 64>}, {pipeline_mode = #tpu.pipeline_mode<synchronous>, transform_indices = @transform_6, window_bounds = array<i64: 32, 20>}, {pipeline_mode = #tpu.pipeline_mode<synchronous>, transform_indices = @transform_7, window_bounds = array<i64: 32, 864>}, {pipeline_mode = #tpu.pipeline_mode<synchronous>, transform_indices = @transform_8, window_bounds = array<i64: 32, 320>}, {pipeline_mode = #tpu.pipeline_mode<synchronous>, transform_indices = @transform_9, window_bounds = array<i64: 256, 32>}, {pipeline_mode = #tpu.pipeline_mode<synchronous>, transform_indices = @transform_10, window_bounds = array<i64: 256, 1>}, {pipeline_mode = #tpu.pipeline_mode<synchronous>, transform_indices = @transform_11, window_bounds = array<i64: 32, 128>}, {transform_indices = @transform_12, window_bounds = array<i64: 1, 32, 256>}, {transform_indices = @transform_13, window_bounds = array<i64: 1, 32, 64>}]} {
    %c0 = arith.constant 0 : index
    %c0_0 = arith.constant 0 : index
    %0 = vector.load %arg4[%c0, %c0_0] : memref<32x32xf32, #tpu.memory_space<vmem>>, vector<32x32xf32>
    %c0_1 = arith.constant 0 : index
    %c0_2 = arith.constant 0 : index
    %c0_3 = arith.constant 0 : index
    %1 = vector.load %arg1[%c0_1, %c0_2, %c0_3] : memref<1x32x256xf32, #tpu.memory_space<vmem>>, vector<1x32x256xf32>
    %2 = vector.shape_cast %1 : vector<1x32x256xf32> to vector<32x256xf32>
    %cst = arith.constant dense<0.000000e+00> : vector<32xf32>
    %3 = vector.multi_reduction <add>, %2, %cst [1] : vector<32x256xf32> to vector<32xf32>
    %4 = vector.shape_cast %3 : vector<32xf32> to vector<32x1xf32>
    %cst_4 = arith.constant dense<0.000000e+00> : vector<32x1xf32>
    %5 = tpu.matmul %0, %4, %cst_4 {dimension_numbers = #tpu.dot_dimension_numbers<[1], [0], [0], [1], [0, 0, 1, 1], [], []>} : vector<32x32xf32>, vector<32x1xf32>, vector<32x1xf32> -> vector<32x1xf32>
    %cst_5 = arith.constant 9.765625E-4 : f32
    %6 = vector.broadcast %cst_5 : f32 to vector<32x1xf32>
    %7 = arith.mulf %5, %6 : vector<32x1xf32>
    %8 = vector.broadcast %7 : vector<32x1xf32> to vector<32x256xf32>
    %9 = arith.subf %2, %8 : vector<32x256xf32>
    %10 = arith.mulf %9, %9 : vector<32x256xf32>
    %cst_6 = arith.constant dense<0.000000e+00> : vector<32xf32>
    %11 = vector.multi_reduction <add>, %10, %cst_6 [1] : vector<32x256xf32> to vector<32xf32>
    %12 = vector.shape_cast %11 : vector<32xf32> to vector<32x1xf32>
    %cst_7 = arith.constant dense<0.000000e+00> : vector<32x1xf32>
    %13 = tpu.matmul %0, %12, %cst_7 {dimension_numbers = #tpu.dot_dimension_numbers<[1], [0], [0], [1], [0, 0, 1, 1], [], []>} : vector<32x32xf32>, vector<32x1xf32>, vector<32x1xf32> -> vector<32x1xf32>
    %cst_8 = arith.constant 9.765625E-4 : f32
    %14 = vector.broadcast %cst_8 : f32 to vector<32x1xf32>
    %15 = arith.mulf %13, %14 : vector<32x1xf32>
    %cst_9 = arith.constant 9.99999997E-7 : f32
    %16 = vector.broadcast %cst_9 : f32 to vector<32x1xf32>
    %17 = arith.addf %15, %16 : vector<32x1xf32>
    %18 = math.rsqrt %17 : vector<32x1xf32>
    %19 = vector.broadcast %18 : vector<32x1xf32> to vector<32x256xf32>
    %20 = arith.mulf %9, %19 : vector<32x256xf32>
    %c0_10 = arith.constant 0 : index
    %c0_11 = arith.constant 0 : index
    %21 = vector.load %arg7[%c0_10, %c0_11] : memref<32x20xf32, #tpu.memory_space<vmem>>, vector<32x1xf32>
    %22 = vector.broadcast %21 : vector<32x1xf32> to vector<32x256xf32>
    %23 = arith.mulf %20, %22 : vector<32x256xf32>
    %c0_12 = arith.constant 0 : index
    %c1 = arith.constant 1 : index
    %24 = vector.load %arg7[%c0_12, %c1] : memref<32x20xf32, #tpu.memory_space<vmem>>, vector<32x1xf32>
    %25 = vector.broadcast %24 : vector<32x1xf32> to vector<32x256xf32>
    %26 = arith.addf %23, %25 : vector<32x256xf32>
    %cst_13 = arith.constant 0.000000e+00 : f32
    %27 = vector.broadcast %cst_13 : f32 to vector<32x256xf32>
    %28 = arith.subf %27, %26 : vector<32x256xf32>
    %29 = math.exp %28 : vector<32x256xf32>
    %cst_14 = arith.constant 1.000000e+00 : f32
    %30 = vector.broadcast %cst_14 : f32 to vector<32x256xf32>
    %31 = arith.addf %30, %29 : vector<32x256xf32>
    %cst_15 = arith.constant 1.000000e+00 : f32
    %32 = vector.broadcast %cst_15 : f32 to vector<32x256xf32>
    %33 = arith.divf %32, %31 : vector<32x256xf32>
    %34 = arith.mulf %26, %33 : vector<32x256xf32>
    %c0_16 = arith.constant 0 : index
    %c0_17 = arith.constant 0 : index
    %35 = vector.load %arg8[%c0_16, %c0_17] : memref<32x864xbf16, #tpu.memory_space<vmem>>, vector<32x288xbf16>
    %c17_i32 = arith.constant 17 : i32
    %36 = tpu.dynamic_rotate %34 by %c17_i32 dim 1 : vector<32x256xf32>, i32 -> vector<32x256xf32>
    %c0_18 = arith.constant 0 : index
    %c0_19 = arith.constant 0 : index
    %c0_20 = arith.constant 0 : index
    %37 = vector.load %arg5[%c0_18, %c0_19, %c0_20] : memref<9x1x256xf32, #tpu.memory_space<vmem>>, vector<1x1x256xf32>
    %38 = vector.shape_cast %37 : vector<1x1x256xf32> to vector<1x256xf32>
    %39 = vector.broadcast %38 : vector<1x256xf32> to vector<32x256xf32>
    %40 = arith.mulf %36, %39 : vector<32x256xf32>
    %41 = arith.truncf %40 : vector<32x256xf32> to vector<32x256xbf16>
    %c16_i32 = arith.constant 16 : i32
    %42 = tpu.dynamic_rotate %34 by %c16_i32 dim 1 : vector<32x256xf32>, i32 -> vector<32x256xf32>
    %c1_21 = arith.constant 1 : index
    %c0_22 = arith.constant 0 : index
    %c0_23 = arith.constant 0 : index
    %43 = vector.load %arg5[%c1_21, %c0_22, %c0_23] : memref<9x1x256xf32, #tpu.memory_space<vmem>>, vector<1x1x256xf32>
    %44 = vector.shape_cast %43 : vector<1x1x256xf32> to vector<1x256xf32>
    %45 = vector.broadcast %44 : vector<1x256xf32> to vector<32x256xf32>
    %46 = arith.mulf %42, %45 : vector<32x256xf32>
    %47 = arith.truncf %46 : vector<32x256xf32> to vector<32x256xbf16>
    %c15_i32 = arith.constant 15 : i32
    %48 = tpu.dynamic_rotate %34 by %c15_i32 dim 1 : vector<32x256xf32>, i32 -> vector<32x256xf32>
    %c2 = arith.constant 2 : index
    %c0_24 = arith.constant 0 : index
    %c0_25 = arith.constant 0 : index
    %49 = vector.load %arg5[%c2, %c0_24, %c0_25] : memref<9x1x256xf32, #tpu.memory_space<vmem>>, vector<1x1x256xf32>
    %50 = vector.shape_cast %49 : vector<1x1x256xf32> to vector<1x256xf32>
    %51 = vector.broadcast %50 : vector<1x256xf32> to vector<32x256xf32>
    %52 = arith.mulf %48, %51 : vector<32x256xf32>
    %53 = arith.truncf %52 : vector<32x256xf32> to vector<32x256xbf16>
    %c1_i32 = arith.constant 1 : i32
    %54 = tpu.dynamic_rotate %34 by %c1_i32 dim 1 : vector<32x256xf32>, i32 -> vector<32x256xf32>
    %c3 = arith.constant 3 : index
    %c0_26 = arith.constant 0 : index
    %c0_27 = arith.constant 0 : index
    %55 = vector.load %arg5[%c3, %c0_26, %c0_27] : memref<9x1x256xf32, #tpu.memory_space<vmem>>, vector<1x1x256xf32>
    %56 = vector.shape_cast %55 : vector<1x1x256xf32> to vector<1x256xf32>
    %57 = vector.broadcast %56 : vector<1x256xf32> to vector<32x256xf32>
    %58 = arith.mulf %54, %57 : vector<32x256xf32>
    %59 = arith.truncf %58 : vector<32x256xf32> to vector<32x256xbf16>
    %c4 = arith.constant 4 : index
    %c0_28 = arith.constant 0 : index
    %c0_29 = arith.constant 0 : index
    %60 = vector.load %arg5[%c4, %c0_28, %c0_29] : memref<9x1x256xf32, #tpu.memory_space<vmem>>, vector<1x1x256xf32>
    %61 = vector.shape_cast %60 : vector<1x1x256xf32> to vector<1x256xf32>
    %62 = vector.broadcast %61 : vector<1x256xf32> to vector<32x256xf32>
    %63 = arith.mulf %34, %62 : vector<32x256xf32>
    %64 = arith.truncf %63 : vector<32x256xf32> to vector<32x256xbf16>
    %c255_i32 = arith.constant 255 : i32
    %65 = tpu.dynamic_rotate %34 by %c255_i32 dim 1 : vector<32x256xf32>, i32 -> vector<32x256xf32>
    %c5 = arith.constant 5 : index
    %c0_30 = arith.constant 0 : index
    %c0_31 = arith.constant 0 : index
    %66 = vector.load %arg5[%c5, %c0_30, %c0_31] : memref<9x1x256xf32, #tpu.memory_space<vmem>>, vector<1x1x256xf32>
    %67 = vector.shape_cast %66 : vector<1x1x256xf32> to vector<1x256xf32>
    %68 = vector.broadcast %67 : vector<1x256xf32> to vector<32x256xf32>
    %69 = arith.mulf %65, %68 : vector<32x256xf32>
    %70 = arith.truncf %69 : vector<32x256xf32> to vector<32x256xbf16>
    %c241_i32 = arith.constant 241 : i32
    %71 = tpu.dynamic_rotate %34 by %c241_i32 dim 1 : vector<32x256xf32>, i32 -> vector<32x256xf32>
    %c6 = arith.constant 6 : index
    %c0_32 = arith.constant 0 : index
    %c0_33 = arith.constant 0 : index
    %72 = vector.load %arg5[%c6, %c0_32, %c0_33] : memref<9x1x256xf32, #tpu.memory_space<vmem>>, vector<1x1x256xf32>
    %73 = vector.shape_cast %72 : vector<1x1x256xf32> to vector<1x256xf32>
    %74 = vector.broadcast %73 : vector<1x256xf32> to vector<32x256xf32>
    %75 = arith.mulf %71, %74 : vector<32x256xf32>
    %76 = arith.truncf %75 : vector<32x256xf32> to vector<32x256xbf16>
    %c240_i32 = arith.constant 240 : i32
    %77 = tpu.dynamic_rotate %34 by %c240_i32 dim 1 : vector<32x256xf32>, i32 -> vector<32x256xf32>
    %c7 = arith.constant 7 : index
    %c0_34 = arith.constant 0 : index
    %c0_35 = arith.constant 0 : index
    %78 = vector.load %arg5[%c7, %c0_34, %c0_35] : memref<9x1x256xf32, #tpu.memory_space<vmem>>, vector<1x1x256xf32>
    %79 = vector.shape_cast %78 : vector<1x1x256xf32> to vector<1x256xf32>
    %80 = vector.broadcast %79 : vector<1x256xf32> to vector<32x256xf32>
    %81 = arith.mulf %77, %80 : vector<32x256xf32>
    %82 = arith.truncf %81 : vector<32x256xf32> to vector<32x256xbf16>
    %c239_i32 = arith.constant 239 : i32
    %83 = tpu.dynamic_rotate %34 by %c239_i32 dim 1 : vector<32x256xf32>, i32 -> vector<32x256xf32>
    %c8 = arith.constant 8 : index
    %c0_36 = arith.constant 0 : index
    %c0_37 = arith.constant 0 : index
    %84 = vector.load %arg5[%c8, %c0_36, %c0_37] : memref<9x1x256xf32, #tpu.memory_space<vmem>>, vector<1x1x256xf32>
    %85 = vector.shape_cast %84 : vector<1x1x256xf32> to vector<1x256xf32>
    %86 = vector.broadcast %85 : vector<1x256xf32> to vector<32x256xf32>
    %87 = arith.mulf %83, %86 : vector<32x256xf32>
    %88 = arith.truncf %87 : vector<32x256xf32> to vector<32x256xbf16>
    %89 = tpu.concatenate %41, %47, %53, %59, %64, %70, %76, %82, %88 in 0 : vector<32x256xbf16>, vector<32x256xbf16>, vector<32x256xbf16>, vector<32x256xbf16>, vector<32x256xbf16>, vector<32x256xbf16>, vector<32x256xbf16>, vector<32x256xbf16>, vector<32x256xbf16> -> vector<288x256xbf16>
    %cst_38 = arith.constant dense<0.000000e+00> : vector<32x256xf32>
    %90 = tpu.matmul %35, %89, %cst_38 {dimension_numbers = #tpu.dot_dimension_numbers<[1], [0], [0], [1], [0, 0, 1, 1], [], []>} : vector<32x288xbf16>, vector<288x256xbf16>, vector<32x256xf32> -> vector<32x256xf32>
    %c0_39 = arith.constant 0 : index
    %c2_40 = arith.constant 2 : index
    %91 = vector.load %arg7[%c0_39, %c2_40] : memref<32x20xf32, #tpu.memory_space<vmem>>, vector<32x1xf32>
    %92 = vector.broadcast %91 : vector<32x1xf32> to vector<32x256xf32>
    %93 = arith.addf %90, %92 : vector<32x256xf32>
    %c0_41 = arith.constant 0 : index
    %c0_42 = arith.constant 0 : index
    %c0_43 = arith.constant 0 : index
    %94 = vector.load %arg2[%c0_41, %c0_42, %c0_43] : memref<1x32x1xf32, #tpu.memory_space<vmem>>, vector<1x32x1xf32>
    %95 = vector.shape_cast %94 : vector<1x32x1xf32> to vector<32x1xf32>
    %96 = vector.broadcast %95 : vector<32x1xf32> to vector<32x256xf32>
    %97 = arith.addf %93, %96 : vector<32x256xf32>
    %cst_44 = arith.constant dense<0.000000e+00> : vector<32xf32>
    %98 = vector.multi_reduction <add>, %97, %cst_44 [1] : vector<32x256xf32> to vector<32xf32>
    %99 = vector.shape_cast %98 : vector<32xf32> to vector<32x1xf32>
    %cst_45 = arith.constant dense<0.000000e+00> : vector<32x1xf32>
    %100 = tpu.matmul %0, %99, %cst_45 {dimension_numbers = #tpu.dot_dimension_numbers<[1], [0], [0], [1], [0, 0, 1, 1], [], []>} : vector<32x32xf32>, vector<32x1xf32>, vector<32x1xf32> -> vector<32x1xf32>
    %cst_46 = arith.constant 9.765625E-4 : f32
    %101 = vector.broadcast %cst_46 : f32 to vector<32x1xf32>
    %102 = arith.mulf %100, %101 : vector<32x1xf32>
    %103 = vector.broadcast %102 : vector<32x1xf32> to vector<32x256xf32>
    %104 = arith.subf %97, %103 : vector<32x256xf32>
    %105 = arith.mulf %104, %104 : vector<32x256xf32>
    %cst_47 = arith.constant dense<0.000000e+00> : vector<32xf32>
    %106 = vector.multi_reduction <add>, %105, %cst_47 [1] : vector<32x256xf32> to vector<32xf32>
    %107 = vector.shape_cast %106 : vector<32xf32> to vector<32x1xf32>
    %cst_48 = arith.constant dense<0.000000e+00> : vector<32x1xf32>
    %108 = tpu.matmul %0, %107, %cst_48 {dimension_numbers = #tpu.dot_dimension_numbers<[1], [0], [0], [1], [0, 0, 1, 1], [], []>} : vector<32x32xf32>, vector<32x1xf32>, vector<32x1xf32> -> vector<32x1xf32>
    %cst_49 = arith.constant 9.765625E-4 : f32
    %109 = vector.broadcast %cst_49 : f32 to vector<32x1xf32>
    %110 = arith.mulf %108, %109 : vector<32x1xf32>
    %cst_50 = arith.constant 9.99999997E-7 : f32
    %111 = vector.broadcast %cst_50 : f32 to vector<32x1xf32>
    %112 = arith.addf %110, %111 : vector<32x1xf32>
    %113 = math.rsqrt %112 : vector<32x1xf32>
    %114 = vector.broadcast %113 : vector<32x1xf32> to vector<32x256xf32>
    %115 = arith.mulf %104, %114 : vector<32x256xf32>
    %c0_51 = arith.constant 0 : index
    %c3_52 = arith.constant 3 : index
    %116 = vector.load %arg7[%c0_51, %c3_52] : memref<32x20xf32, #tpu.memory_space<vmem>>, vector<32x1xf32>
    %117 = vector.broadcast %116 : vector<32x1xf32> to vector<32x256xf32>
    %118 = arith.mulf %115, %117 : vector<32x256xf32>
    %c0_53 = arith.constant 0 : index
    %c4_54 = arith.constant 4 : index
    %119 = vector.load %arg7[%c0_53, %c4_54] : memref<32x20xf32, #tpu.memory_space<vmem>>, vector<32x1xf32>
    %120 = vector.broadcast %119 : vector<32x1xf32> to vector<32x256xf32>
    %121 = arith.addf %118, %120 : vector<32x256xf32>
    %cst_55 = arith.constant 0.000000e+00 : f32
    %122 = vector.broadcast %cst_55 : f32 to vector<32x256xf32>
    %123 = arith.subf %122, %121 : vector<32x256xf32>
    %124 = math.exp %123 : vector<32x256xf32>
    %cst_56 = arith.constant 1.000000e+00 : f32
    %125 = vector.broadcast %cst_56 : f32 to vector<32x256xf32>
    %126 = arith.addf %125, %124 : vector<32x256xf32>
    %cst_57 = arith.constant 1.000000e+00 : f32
    %127 = vector.broadcast %cst_57 : f32 to vector<32x256xf32>
    %128 = arith.divf %127, %126 : vector<32x256xf32>
    %129 = arith.mulf %121, %128 : vector<32x256xf32>
    %c0_58 = arith.constant 0 : index
    %c288 = arith.constant 288 : index
    %130 = vector.load %arg8[%c0_58, %c288] : memref<32x864xbf16, #tpu.memory_space<vmem>>, vector<32x288xbf16>
    %c17_i32_59 = arith.constant 17 : i32
    %131 = tpu.dynamic_rotate %129 by %c17_i32_59 dim 1 : vector<32x256xf32>, i32 -> vector<32x256xf32>
    %c0_60 = arith.constant 0 : index
    %c0_61 = arith.constant 0 : index
    %c0_62 = arith.constant 0 : index
    %132 = vector.load %arg5[%c0_60, %c0_61, %c0_62] : memref<9x1x256xf32, #tpu.memory_space<vmem>>, vector<1x1x256xf32>
    %133 = vector.shape_cast %132 : vector<1x1x256xf32> to vector<1x256xf32>
    %134 = vector.broadcast %133 : vector<1x256xf32> to vector<32x256xf32>
    %135 = arith.mulf %131, %134 : vector<32x256xf32>
    %136 = arith.truncf %135 : vector<32x256xf32> to vector<32x256xbf16>
    %c16_i32_63 = arith.constant 16 : i32
    %137 = tpu.dynamic_rotate %129 by %c16_i32_63 dim 1 : vector<32x256xf32>, i32 -> vector<32x256xf32>
    %c1_64 = arith.constant 1 : index
    %c0_65 = arith.constant 0 : index
    %c0_66 = arith.constant 0 : index
    %138 = vector.load %arg5[%c1_64, %c0_65, %c0_66] : memref<9x1x256xf32, #tpu.memory_space<vmem>>, vector<1x1x256xf32>
    %139 = vector.shape_cast %138 : vector<1x1x256xf32> to vector<1x256xf32>
    %140 = vector.broadcast %139 : vector<1x256xf32> to vector<32x256xf32>
    %141 = arith.mulf %137, %140 : vector<32x256xf32>
    %142 = arith.truncf %141 : vector<32x256xf32> to vector<32x256xbf16>
    %c15_i32_67 = arith.constant 15 : i32
    %143 = tpu.dynamic_rotate %129 by %c15_i32_67 dim 1 : vector<32x256xf32>, i32 -> vector<32x256xf32>
    %c2_68 = arith.constant 2 : index
    %c0_69 = arith.constant 0 : index
    %c0_70 = arith.constant 0 : index
    %144 = vector.load %arg5[%c2_68, %c0_69, %c0_70] : memref<9x1x256xf32, #tpu.memory_space<vmem>>, vector<1x1x256xf32>
    %145 = vector.shape_cast %144 : vector<1x1x256xf32> to vector<1x256xf32>
    %146 = vector.broadcast %145 : vector<1x256xf32> to vector<32x256xf32>
    %147 = arith.mulf %143, %146 : vector<32x256xf32>
    %148 = arith.truncf %147 : vector<32x256xf32> to vector<32x256xbf16>
    %c1_i32_71 = arith.constant 1 : i32
    %149 = tpu.dynamic_rotate %129 by %c1_i32_71 dim 1 : vector<32x256xf32>, i32 -> vector<32x256xf32>
    %c3_72 = arith.constant 3 : index
    %c0_73 = arith.constant 0 : index
    %c0_74 = arith.constant 0 : index
    %150 = vector.load %arg5[%c3_72, %c0_73, %c0_74] : memref<9x1x256xf32, #tpu.memory_space<vmem>>, vector<1x1x256xf32>
    %151 = vector.shape_cast %150 : vector<1x1x256xf32> to vector<1x256xf32>
    %152 = vector.broadcast %151 : vector<1x256xf32> to vector<32x256xf32>
    %153 = arith.mulf %149, %152 : vector<32x256xf32>
    %154 = arith.truncf %153 : vector<32x256xf32> to vector<32x256xbf16>
    %c4_75 = arith.constant 4 : index
    %c0_76 = arith.constant 0 : index
    %c0_77 = arith.constant 0 : index
    %155 = vector.load %arg5[%c4_75, %c0_76, %c0_77] : memref<9x1x256xf32, #tpu.memory_space<vmem>>, vector<1x1x256xf32>
    %156 = vector.shape_cast %155 : vector<1x1x256xf32> to vector<1x256xf32>
    %157 = vector.broadcast %156 : vector<1x256xf32> to vector<32x256xf32>
    %158 = arith.mulf %129, %157 : vector<32x256xf32>
    %159 = arith.truncf %158 : vector<32x256xf32> to vector<32x256xbf16>
    %c255_i32_78 = arith.constant 255 : i32
    %160 = tpu.dynamic_rotate %129 by %c255_i32_78 dim 1 : vector<32x256xf32>, i32 -> vector<32x256xf32>
    %c5_79 = arith.constant 5 : index
    %c0_80 = arith.constant 0 : index
    %c0_81 = arith.constant 0 : index
    %161 = vector.load %arg5[%c5_79, %c0_80, %c0_81] : memref<9x1x256xf32, #tpu.memory_space<vmem>>, vector<1x1x256xf32>
    %162 = vector.shape_cast %161 : vector<1x1x256xf32> to vector<1x256xf32>
    %163 = vector.broadcast %162 : vector<1x256xf32> to vector<32x256xf32>
    %164 = arith.mulf %160, %163 : vector<32x256xf32>
    %165 = arith.truncf %164 : vector<32x256xf32> to vector<32x256xbf16>
    %c241_i32_82 = arith.constant 241 : i32
    %166 = tpu.dynamic_rotate %129 by %c241_i32_82 dim 1 : vector<32x256xf32>, i32 -> vector<32x256xf32>
    %c6_83 = arith.constant 6 : index
    %c0_84 = arith.constant 0 : index
    %c0_85 = arith.constant 0 : index
    %167 = vector.load %arg5[%c6_83, %c0_84, %c0_85] : memref<9x1x256xf32, #tpu.memory_space<vmem>>, vector<1x1x256xf32>
    %168 = vector.shape_cast %167 : vector<1x1x256xf32> to vector<1x256xf32>
    %169 = vector.broadcast %168 : vector<1x256xf32> to vector<32x256xf32>
    %170 = arith.mulf %166, %169 : vector<32x256xf32>
    %171 = arith.truncf %170 : vector<32x256xf32> to vector<32x256xbf16>
    %c240_i32_86 = arith.constant 240 : i32
    %172 = tpu.dynamic_rotate %129 by %c240_i32_86 dim 1 : vector<32x256xf32>, i32 -> vector<32x256xf32>
    %c7_87 = arith.constant 7 : index
    %c0_88 = arith.constant 0 : index
    %c0_89 = arith.constant 0 : index
    %173 = vector.load %arg5[%c7_87, %c0_88, %c0_89] : memref<9x1x256xf32, #tpu.memory_space<vmem>>, vector<1x1x256xf32>
    %174 = vector.shape_cast %173 : vector<1x1x256xf32> to vector<1x256xf32>
    %175 = vector.broadcast %174 : vector<1x256xf32> to vector<32x256xf32>
    %176 = arith.mulf %172, %175 : vector<32x256xf32>
    %177 = arith.truncf %176 : vector<32x256xf32> to vector<32x256xbf16>
    %c239_i32_90 = arith.constant 239 : i32
    %178 = tpu.dynamic_rotate %129 by %c239_i32_90 dim 1 : vector<32x256xf32>, i32 -> vector<32x256xf32>
    %c8_91 = arith.constant 8 : index
    %c0_92 = arith.constant 0 : index
    %c0_93 = arith.constant 0 : index
    %179 = vector.load %arg5[%c8_91, %c0_92, %c0_93] : memref<9x1x256xf32, #tpu.memory_space<vmem>>, vector<1x1x256xf32>
    %180 = vector.shape_cast %179 : vector<1x1x256xf32> to vector<1x256xf32>
    %181 = vector.broadcast %180 : vector<1x256xf32> to vector<32x256xf32>
    %182 = arith.mulf %178, %181 : vector<32x256xf32>
    %183 = arith.truncf %182 : vector<32x256xf32> to vector<32x256xbf16>
    %184 = tpu.concatenate %136, %142, %148, %154, %159, %165, %171, %177, %183 in 0 : vector<32x256xbf16>, vector<32x256xbf16>, vector<32x256xbf16>, vector<32x256xbf16>, vector<32x256xbf16>, vector<32x256xbf16>, vector<32x256xbf16>, vector<32x256xbf16>, vector<32x256xbf16> -> vector<288x256xbf16>
    %cst_94 = arith.constant dense<0.000000e+00> : vector<32x256xf32>
    %185 = tpu.matmul %130, %184, %cst_94 {dimension_numbers = #tpu.dot_dimension_numbers<[1], [0], [0], [1], [0, 0, 1, 1], [], []>} : vector<32x288xbf16>, vector<288x256xbf16>, vector<32x256xf32> -> vector<32x256xf32>
    %c0_95 = arith.constant 0 : index
    %c5_96 = arith.constant 5 : index
    %186 = vector.load %arg7[%c0_95, %c5_96] : memref<32x20xf32, #tpu.memory_space<vmem>>, vector<32x1xf32>
    %187 = vector.broadcast %186 : vector<32x1xf32> to vector<32x256xf32>
    %188 = arith.addf %185, %187 : vector<32x256xf32>
    %189 = arith.addf %2, %188 : vector<32x256xf32>
    %cst_97 = arith.constant dense<0.000000e+00> : vector<32xf32>
    %190 = vector.multi_reduction <add>, %189, %cst_97 [1] : vector<32x256xf32> to vector<32xf32>
    %191 = vector.shape_cast %190 : vector<32xf32> to vector<32x1xf32>
    %cst_98 = arith.constant dense<0.000000e+00> : vector<32x1xf32>
    %192 = tpu.matmul %0, %191, %cst_98 {dimension_numbers = #tpu.dot_dimension_numbers<[1], [0], [0], [1], [0, 0, 1, 1], [], []>} : vector<32x32xf32>, vector<32x1xf32>, vector<32x1xf32> -> vector<32x1xf32>
    %cst_99 = arith.constant 9.765625E-4 : f32
    %193 = vector.broadcast %cst_99 : f32 to vector<32x1xf32>
    %194 = arith.mulf %192, %193 : vector<32x1xf32>
    %195 = vector.broadcast %194 : vector<32x1xf32> to vector<32x256xf32>
    %196 = arith.subf %189, %195 : vector<32x256xf32>
    %197 = arith.mulf %196, %196 : vector<32x256xf32>
    %cst_100 = arith.constant dense<0.000000e+00> : vector<32xf32>
    %198 = vector.multi_reduction <add>, %197, %cst_100 [1] : vector<32x256xf32> to vector<32xf32>
    %199 = vector.shape_cast %198 : vector<32xf32> to vector<32x1xf32>
    %cst_101 = arith.constant dense<0.000000e+00> : vector<32x1xf32>
    %200 = tpu.matmul %0, %199, %cst_101 {dimension_numbers = #tpu.dot_dimension_numbers<[1], [0], [0], [1], [0, 0, 1, 1], [], []>} : vector<32x32xf32>, vector<32x1xf32>, vector<32x1xf32> -> vector<32x1xf32>
    %cst_102 = arith.constant 9.765625E-4 : f32
    %201 = vector.broadcast %cst_102 : f32 to vector<32x1xf32>
    %202 = arith.mulf %200, %201 : vector<32x1xf32>
    %cst_103 = arith.constant 9.99999997E-7 : f32
    %203 = vector.broadcast %cst_103 : f32 to vector<32x1xf32>
    %204 = arith.addf %202, %203 : vector<32x1xf32>
    %205 = math.rsqrt %204 : vector<32x1xf32>
    %206 = vector.broadcast %205 : vector<32x1xf32> to vector<32x256xf32>
    %207 = arith.mulf %196, %206 : vector<32x256xf32>
    %c0_104 = arith.constant 0 : index
    %c7_105 = arith.constant 7 : index
    %208 = vector.load %arg7[%c0_104, %c7_105] : memref<32x20xf32, #tpu.memory_space<vmem>>, vector<32x1xf32>
    %209 = vector.broadcast %208 : vector<32x1xf32> to vector<32x256xf32>
    %210 = arith.mulf %207, %209 : vector<32x256xf32>
    %c0_106 = arith.constant 0 : index
    %c8_107 = arith.constant 8 : index
    %211 = vector.load %arg7[%c0_106, %c8_107] : memref<32x20xf32, #tpu.memory_space<vmem>>, vector<32x1xf32>
    %212 = vector.broadcast %211 : vector<32x1xf32> to vector<32x256xf32>
    %213 = arith.addf %210, %212 : vector<32x256xf32>
    %c0_108 = arith.constant 0 : index
    %c0_109 = arith.constant 0 : index
    %214 = vector.load %arg9[%c0_108, %c0_109] : memref<32x320xbf16, #tpu.memory_space<vmem>>, vector<32x32xbf16>
    %215 = arith.truncf %213 : vector<32x256xf32> to vector<32x256xbf16>
    %cst_110 = arith.constant dense<0.000000e+00> : vector<32x256xf32>
    %216 = tpu.matmul %214, %215, %cst_110 {dimension_numbers = #tpu.dot_dimension_numbers<[1], [0], [0], [1], [0, 0, 1, 1], [], []>} : vector<32x32xbf16>, vector<32x256xbf16>, vector<32x256xf32> -> vector<32x256xf32>
    %c0_111 = arith.constant 0 : index
    %c9 = arith.constant 9 : index
    %217 = vector.load %arg7[%c0_111, %c9] : memref<32x20xf32, #tpu.memory_space<vmem>>, vector<32x1xf32>
    %218 = vector.broadcast %217 : vector<32x1xf32> to vector<32x256xf32>
    %219 = arith.addf %216, %218 : vector<32x256xf32>
    %cst_112 = arith.constant dense<0.000000e+00> : vector<256xf32>
    %220 = vector.multi_reduction <add>, %219, %cst_112 [0] : vector<32x256xf32> to vector<256xf32>
    %221 = vector.shape_cast %220 : vector<256xf32> to vector<1x256xf32>
    %cst_113 = arith.constant 3.200000e+01 : f32
    %222 = vector.broadcast %cst_113 : f32 to vector<1x256xf32>
    %223 = arith.divf %221, %222 : vector<1x256xf32>
    %224 = vector.broadcast %223 : vector<1x256xf32> to vector<32x256xf32>
    %225 = arith.subf %219, %224 : vector<32x256xf32>
    %226 = arith.mulf %225, %225 : vector<32x256xf32>
    %cst_114 = arith.constant dense<0.000000e+00> : vector<256xf32>
    %227 = vector.multi_reduction <add>, %226, %cst_114 [0] : vector<32x256xf32> to vector<256xf32>
    %228 = vector.shape_cast %227 : vector<256xf32> to vector<1x256xf32>
    %cst_115 = arith.constant 3.200000e+01 : f32
    %229 = vector.broadcast %cst_115 : f32 to vector<1x256xf32>
    %230 = arith.divf %228, %229 : vector<1x256xf32>
    %cst_116 = arith.constant 9.99999974E-6 : f32
    %231 = vector.broadcast %cst_116 : f32 to vector<1x256xf32>
    %232 = arith.addf %230, %231 : vector<1x256xf32>
    %233 = math.rsqrt %232 : vector<1x256xf32>
    %234 = vector.broadcast %233 : vector<1x256xf32> to vector<32x256xf32>
    %235 = arith.mulf %225, %234 : vector<32x256xf32>
    %c0_117 = arith.constant 0 : index
    %c10 = arith.constant 10 : index
    %236 = vector.load %arg7[%c0_117, %c10] : memref<32x20xf32, #tpu.memory_space<vmem>>, vector<32x1xf32>
    %237 = vector.broadcast %236 : vector<32x1xf32> to vector<32x256xf32>
    %238 = arith.mulf %235, %237 : vector<32x256xf32>
    %c0_118 = arith.constant 0 : index
    %c11 = arith.constant 11 : index
    %239 = vector.load %arg7[%c0_118, %c11] : memref<32x20xf32, #tpu.memory_space<vmem>>, vector<32x1xf32>
    %240 = vector.broadcast %239 : vector<32x1xf32> to vector<32x256xf32>
    %241 = arith.addf %238, %240 : vector<32x256xf32>
    %242 = arith.truncf %241 : vector<32x256xf32> to vector<32x256xbf16>
    %c0_119 = arith.constant 0 : index
    %c32 = arith.constant 32 : index
    %243 = vector.load %arg9[%c0_119, %c32] : memref<32x320xbf16, #tpu.memory_space<vmem>>, vector<32x32xbf16>
    %cst_120 = arith.constant dense<0.000000e+00> : vector<32x256xf32>
    %244 = tpu.matmul %243, %242, %cst_120 {dimension_numbers = #tpu.dot_dimension_numbers<[1], [0], [0], [1], [0, 0, 1, 1], [], []>} : vector<32x32xbf16>, vector<32x256xbf16>, vector<32x256xf32> -> vector<32x256xf32>
    %c0_121 = arith.constant 0 : index
    %c64 = arith.constant 64 : index
    %245 = vector.load %arg9[%c0_121, %c64] : memref<32x320xbf16, #tpu.memory_space<vmem>>, vector<32x32xbf16>
    %cst_122 = arith.constant dense<0.000000e+00> : vector<32x256xf32>
    %246 = tpu.matmul %245, %242, %cst_122 {dimension_numbers = #tpu.dot_dimension_numbers<[1], [0], [0], [1], [0, 0, 1, 1], [], []>} : vector<32x32xbf16>, vector<32x256xbf16>, vector<32x256xf32> -> vector<32x256xf32>
    %c0_123 = arith.constant 0 : index
    %c96 = arith.constant 96 : index
    %247 = vector.load %arg9[%c0_123, %c96] : memref<32x320xbf16, #tpu.memory_space<vmem>>, vector<32x32xbf16>
    %cst_124 = arith.constant dense<0.000000e+00> : vector<32x256xf32>
    %248 = tpu.matmul %247, %242, %cst_124 {dimension_numbers = #tpu.dot_dimension_numbers<[1], [0], [0], [1], [0, 0, 1, 1], [], []>} : vector<32x32xbf16>, vector<32x256xbf16>, vector<32x256xf32> -> vector<32x256xf32>
    %c0_125 = arith.constant 0 : index
    %c128 = arith.constant 128 : index
    %249 = vector.load %arg9[%c0_125, %c128] : memref<32x320xbf16, #tpu.memory_space<vmem>>, vector<32x32xbf16>
    %250 = arith.truncf %244 : vector<32x256xf32> to vector<32x256xbf16>
    %251 = arith.truncf %246 : vector<32x256xf32> to vector<32x256xbf16>
    %252 = arith.truncf %248 : vector<32x256xf32> to vector<32x256xbf16>
    %253 = vector.extract_strided_slice %250 {offsets = [0, 0], sizes = [16, 128], strides = [1, 1]} : vector<32x256xbf16> to vector<16x128xbf16>
    %254 = vector.extract_strided_slice %251 {offsets = [0, 0], sizes = [16, 256], strides = [1, 1]} : vector<32x256xbf16> to vector<16x256xbf16>
    %255 = vector.extract_strided_slice %252 {offsets = [0, 0], sizes = [16, 256], strides = [1, 1]} : vector<32x256xbf16> to vector<16x256xbf16>
    %cst_126 = arith.constant dense<0.000000e+00> : vector<256x128xf32>
    %256 = tpu.matmul %254, %253, %cst_126 {dimension_numbers = #tpu.dot_dimension_numbers<[0], [0], [1], [1], [0, 1, 1, 1], [], []>} : vector<16x256xbf16>, vector<16x128xbf16>, vector<256x128xf32> -> vector<256x128xf32>
    %cst_127 = arith.constant dense<0xFF800000> : vector<128xf32>
    %257 = vector.multi_reduction <maximumf>, %256, %cst_127 [0] : vector<256x128xf32> to vector<128xf32>
    %258 = vector.shape_cast %257 : vector<128xf32> to vector<1x128xf32>
    %259 = vector.broadcast %258 : vector<1x128xf32> to vector<256x128xf32>
    %260 = arith.subf %256, %259 : vector<256x128xf32>
    %261 = math.exp %260 : vector<256x128xf32>
    %cst_128 = arith.constant dense<0.000000e+00> : vector<128xf32>
    %262 = vector.multi_reduction <add>, %261, %cst_128 [0] : vector<256x128xf32> to vector<128xf32>
    %263 = vector.shape_cast %262 : vector<128xf32> to vector<1x128xf32>
    %264 = arith.truncf %261 : vector<256x128xf32> to vector<256x128xbf16>
    %cst_129 = arith.constant dense<0.000000e+00> : vector<16x128xf32>
    %265 = tpu.matmul %255, %264, %cst_129 {dimension_numbers = #tpu.dot_dimension_numbers<[1], [0], [0], [1], [0, 0, 1, 1], [], []>} : vector<16x256xbf16>, vector<256x128xbf16>, vector<16x128xf32> -> vector<16x128xf32>
    %266 = vector.broadcast %263 : vector<1x128xf32> to vector<16x128xf32>
    %267 = arith.divf %265, %266 : vector<16x128xf32>
    %268 = vector.extract_strided_slice %249 {offsets = [0, 0], sizes = [32, 16], strides = [1, 1]} : vector<32x32xbf16> to vector<32x16xbf16>
    %269 = arith.truncf %267 : vector<16x128xf32> to vector<16x128xbf16>
    %cst_130 = arith.constant dense<0.000000e+00> : vector<32x128xf32>
    %270 = tpu.matmul %268, %269, %cst_130 {dimension_numbers = #tpu.dot_dimension_numbers<[1], [0], [0], [1], [0, 0, 1, 1], [], []>} : vector<32x16xbf16>, vector<16x128xbf16>, vector<32x128xf32> -> vector<32x128xf32>
    %271 = vector.extract_strided_slice %250 {offsets = [16, 0], sizes = [16, 128], strides = [1, 1]} : vector<32x256xbf16> to vector<16x128xbf16>
    %272 = vector.extract_strided_slice %251 {offsets = [16, 0], sizes = [16, 256], strides = [1, 1]} : vector<32x256xbf16> to vector<16x256xbf16>
    %273 = vector.extract_strided_slice %252 {offsets = [16, 0], sizes = [16, 256], strides = [1, 1]} : vector<32x256xbf16> to vector<16x256xbf16>
    %cst_131 = arith.constant dense<0.000000e+00> : vector<256x128xf32>
    %274 = tpu.matmul %272, %271, %cst_131 {dimension_numbers = #tpu.dot_dimension_numbers<[0], [0], [1], [1], [0, 1, 1, 1], [], []>} : vector<16x256xbf16>, vector<16x128xbf16>, vector<256x128xf32> -> vector<256x128xf32>
    %cst_132 = arith.constant dense<0xFF800000> : vector<128xf32>
    %275 = vector.multi_reduction <maximumf>, %274, %cst_132 [0] : vector<256x128xf32> to vector<128xf32>
    %276 = vector.shape_cast %275 : vector<128xf32> to vector<1x128xf32>
    %277 = vector.broadcast %276 : vector<1x128xf32> to vector<256x128xf32>
    %278 = arith.subf %274, %277 : vector<256x128xf32>
    %279 = math.exp %278 : vector<256x128xf32>
    %cst_133 = arith.constant dense<0.000000e+00> : vector<128xf32>
    %280 = vector.multi_reduction <add>, %279, %cst_133 [0] : vector<256x128xf32> to vector<128xf32>
    %281 = vector.shape_cast %280 : vector<128xf32> to vector<1x128xf32>
    %282 = arith.truncf %279 : vector<256x128xf32> to vector<256x128xbf16>
    %cst_134 = arith.constant dense<0.000000e+00> : vector<16x128xf32>
    %283 = tpu.matmul %273, %282, %cst_134 {dimension_numbers = #tpu.dot_dimension_numbers<[1], [0], [0], [1], [0, 0, 1, 1], [], []>} : vector<16x256xbf16>, vector<256x128xbf16>, vector<16x128xf32> -> vector<16x128xf32>
    %284 = vector.broadcast %281 : vector<1x128xf32> to vector<16x128xf32>
    %285 = arith.divf %283, %284 : vector<16x128xf32>
    %286 = vector.extract_strided_slice %249 {offsets = [0, 16], sizes = [32, 16], strides = [1, 1]} : vector<32x32xbf16> to vector<32x16xbf16>
    %287 = arith.truncf %285 : vector<16x128xf32> to vector<16x128xbf16>
    %cst_135 = arith.constant dense<0.000000e+00> : vector<32x128xf32>
    %288 = tpu.matmul %286, %287, %cst_135 {dimension_numbers = #tpu.dot_dimension_numbers<[1], [0], [0], [1], [0, 0, 1, 1], [], []>} : vector<32x16xbf16>, vector<16x128xbf16>, vector<32x128xf32> -> vector<32x128xf32>
    %289 = arith.addf %270, %288 : vector<32x128xf32>
    %290 = vector.extract_strided_slice %250 {offsets = [0, 128], sizes = [16, 128], strides = [1, 1]} : vector<32x256xbf16> to vector<16x128xbf16>
    %291 = vector.extract_strided_slice %251 {offsets = [0, 0], sizes = [16, 256], strides = [1, 1]} : vector<32x256xbf16> to vector<16x256xbf16>
    %292 = vector.extract_strided_slice %252 {offsets = [0, 0], sizes = [16, 256], strides = [1, 1]} : vector<32x256xbf16> to vector<16x256xbf16>
    %cst_136 = arith.constant dense<0.000000e+00> : vector<256x128xf32>
    %293 = tpu.matmul %291, %290, %cst_136 {dimension_numbers = #tpu.dot_dimension_numbers<[0], [0], [1], [1], [0, 1, 1, 1], [], []>} : vector<16x256xbf16>, vector<16x128xbf16>, vector<256x128xf32> -> vector<256x128xf32>
    %cst_137 = arith.constant dense<0xFF800000> : vector<128xf32>
    %294 = vector.multi_reduction <maximumf>, %293, %cst_137 [0] : vector<256x128xf32> to vector<128xf32>
    %295 = vector.shape_cast %294 : vector<128xf32> to vector<1x128xf32>
    %296 = vector.broadcast %295 : vector<1x128xf32> to vector<256x128xf32>
    %297 = arith.subf %293, %296 : vector<256x128xf32>
    %298 = math.exp %297 : vector<256x128xf32>
    %cst_138 = arith.constant dense<0.000000e+00> : vector<128xf32>
    %299 = vector.multi_reduction <add>, %298, %cst_138 [0] : vector<256x128xf32> to vector<128xf32>
    %300 = vector.shape_cast %299 : vector<128xf32> to vector<1x128xf32>
    %301 = arith.truncf %298 : vector<256x128xf32> to vector<256x128xbf16>
    %cst_139 = arith.constant dense<0.000000e+00> : vector<16x128xf32>
    %302 = tpu.matmul %292, %301, %cst_139 {dimension_numbers = #tpu.dot_dimension_numbers<[1], [0], [0], [1], [0, 0, 1, 1], [], []>} : vector<16x256xbf16>, vector<256x128xbf16>, vector<16x128xf32> -> vector<16x128xf32>
    %303 = vector.broadcast %300 : vector<1x128xf32> to vector<16x128xf32>
    %304 = arith.divf %302, %303 : vector<16x128xf32>
    %305 = vector.extract_strided_slice %249 {offsets = [0, 0], sizes = [32, 16], strides = [1, 1]} : vector<32x32xbf16> to vector<32x16xbf16>
    %306 = arith.truncf %304 : vector<16x128xf32> to vector<16x128xbf16>
    %cst_140 = arith.constant dense<0.000000e+00> : vector<32x128xf32>
    %307 = tpu.matmul %305, %306, %cst_140 {dimension_numbers = #tpu.dot_dimension_numbers<[1], [0], [0], [1], [0, 0, 1, 1], [], []>} : vector<32x16xbf16>, vector<16x128xbf16>, vector<32x128xf32> -> vector<32x128xf32>
    %308 = vector.extract_strided_slice %250 {offsets = [16, 128], sizes = [16, 128], strides = [1, 1]} : vector<32x256xbf16> to vector<16x128xbf16>
    %309 = vector.extract_strided_slice %251 {offsets = [16, 0], sizes = [16, 256], strides = [1, 1]} : vector<32x256xbf16> to vector<16x256xbf16>
    %310 = vector.extract_strided_slice %252 {offsets = [16, 0], sizes = [16, 256], strides = [1, 1]} : vector<32x256xbf16> to vector<16x256xbf16>
    %cst_141 = arith.constant dense<0.000000e+00> : vector<256x128xf32>
    %311 = tpu.matmul %309, %308, %cst_141 {dimension_numbers = #tpu.dot_dimension_numbers<[0], [0], [1], [1], [0, 1, 1, 1], [], []>} : vector<16x256xbf16>, vector<16x128xbf16>, vector<256x128xf32> -> vector<256x128xf32>
    %cst_142 = arith.constant dense<0xFF800000> : vector<128xf32>
    %312 = vector.multi_reduction <maximumf>, %311, %cst_142 [0] : vector<256x128xf32> to vector<128xf32>
    %313 = vector.shape_cast %312 : vector<128xf32> to vector<1x128xf32>
    %314 = vector.broadcast %313 : vector<1x128xf32> to vector<256x128xf32>
    %315 = arith.subf %311, %314 : vector<256x128xf32>
    %316 = math.exp %315 : vector<256x128xf32>
    %cst_143 = arith.constant dense<0.000000e+00> : vector<128xf32>
    %317 = vector.multi_reduction <add>, %316, %cst_143 [0] : vector<256x128xf32> to vector<128xf32>
    %318 = vector.shape_cast %317 : vector<128xf32> to vector<1x128xf32>
    %319 = arith.truncf %316 : vector<256x128xf32> to vector<256x128xbf16>
    %cst_144 = arith.constant dense<0.000000e+00> : vector<16x128xf32>
    %320 = tpu.matmul %310, %319, %cst_144 {dimension_numbers = #tpu.dot_dimension_numbers<[1], [0], [0], [1], [0, 0, 1, 1], [], []>} : vector<16x256xbf16>, vector<256x128xbf16>, vector<16x128xf32> -> vector<16x128xf32>
    %321 = vector.broadcast %318 : vector<1x128xf32> to vector<16x128xf32>
    %322 = arith.divf %320, %321 : vector<16x128xf32>
    %323 = vector.extract_strided_slice %249 {offsets = [0, 16], sizes = [32, 16], strides = [1, 1]} : vector<32x32xbf16> to vector<32x16xbf16>
    %324 = arith.truncf %322 : vector<16x128xf32> to vector<16x128xbf16>
    %cst_145 = arith.constant dense<0.000000e+00> : vector<32x128xf32>
    %325 = tpu.matmul %323, %324, %cst_145 {dimension_numbers = #tpu.dot_dimension_numbers<[1], [0], [0], [1], [0, 0, 1, 1], [], []>} : vector<32x16xbf16>, vector<16x128xbf16>, vector<32x128xf32> -> vector<32x128xf32>
    %326 = arith.addf %307, %325 : vector<32x128xf32>
    %327 = tpu.concatenate %289, %326 in 1 : vector<32x128xf32>, vector<32x128xf32> -> vector<32x256xf32>
    %c0_146 = arith.constant 0 : index
    %c12 = arith.constant 12 : index
    %328 = vector.load %arg7[%c0_146, %c12] : memref<32x20xf32, #tpu.memory_space<vmem>>, vector<32x1xf32>
    %329 = vector.broadcast %328 : vector<32x1xf32> to vector<32x256xf32>
    %330 = arith.addf %327, %329 : vector<32x256xf32>
    %331 = arith.addf %330, %219 : vector<32x256xf32>
    %cst_147 = arith.constant dense<0.000000e+00> : vector<256xf32>
    %332 = vector.multi_reduction <add>, %331, %cst_147 [0] : vector<32x256xf32> to vector<256xf32>
    %333 = vector.shape_cast %332 : vector<256xf32> to vector<1x256xf32>
    %cst_148 = arith.constant 3.200000e+01 : f32
    %334 = vector.broadcast %cst_148 : f32 to vector<1x256xf32>
    %335 = arith.divf %333, %334 : vector<1x256xf32>
    %336 = vector.broadcast %335 : vector<1x256xf32> to vector<32x256xf32>
    %337 = arith.subf %331, %336 : vector<32x256xf32>
    %338 = arith.mulf %337, %337 : vector<32x256xf32>
    %cst_149 = arith.constant dense<0.000000e+00> : vector<256xf32>
    %339 = vector.multi_reduction <add>, %338, %cst_149 [0] : vector<32x256xf32> to vector<256xf32>
    %340 = vector.shape_cast %339 : vector<256xf32> to vector<1x256xf32>
    %cst_150 = arith.constant 3.200000e+01 : f32
    %341 = vector.broadcast %cst_150 : f32 to vector<1x256xf32>
    %342 = arith.divf %340, %341 : vector<1x256xf32>
    %cst_151 = arith.constant 9.99999974E-6 : f32
    %343 = vector.broadcast %cst_151 : f32 to vector<1x256xf32>
    %344 = arith.addf %342, %343 : vector<1x256xf32>
    %345 = math.rsqrt %344 : vector<1x256xf32>
    %346 = vector.broadcast %345 : vector<1x256xf32> to vector<32x256xf32>
    %347 = arith.mulf %337, %346 : vector<32x256xf32>
    %c0_152 = arith.constant 0 : index
    %c13 = arith.constant 13 : index
    %348 = vector.load %arg7[%c0_152, %c13] : memref<32x20xf32, #tpu.memory_space<vmem>>, vector<32x1xf32>
    %349 = vector.broadcast %348 : vector<32x1xf32> to vector<32x256xf32>
    %350 = arith.mulf %347, %349 : vector<32x256xf32>
    %c0_153 = arith.constant 0 : index
    %c14 = arith.constant 14 : index
    %351 = vector.load %arg7[%c0_153, %c14] : memref<32x20xf32, #tpu.memory_space<vmem>>, vector<32x1xf32>
    %352 = vector.broadcast %351 : vector<32x1xf32> to vector<32x256xf32>
    %353 = arith.addf %350, %352 : vector<32x256xf32>
    %354 = arith.truncf %353 : vector<32x256xf32> to vector<32x256xbf16>
    %c0_154 = arith.constant 0 : index
    %c0_155 = arith.constant 0 : index
    %c0_156 = arith.constant 0 : index
    %355 = vector.load %arg3[%c0_154, %c0_155, %c0_156] : memref<1x8x32xf32, #tpu.memory_space<vmem>>, vector<1x8x32xf32>
    %356 = vector.shape_cast %355 : vector<1x8x32xf32> to vector<8x32xf32>
    %357 = arith.truncf %356 : vector<8x32xf32> to vector<8x32xbf16>
    %c0_157 = arith.constant 0 : index
    %c160 = arith.constant 160 : index
    %358 = vector.load %arg9[%c0_157, %c160] : memref<32x320xbf16, #tpu.memory_space<vmem>>, vector<32x32xbf16>
    %cst_158 = arith.constant dense<0.000000e+00> : vector<32x256xf32>
    %359 = tpu.matmul %358, %354, %cst_158 {dimension_numbers = #tpu.dot_dimension_numbers<[1], [0], [0], [1], [0, 0, 1, 1], [], []>} : vector<32x32xbf16>, vector<32x256xbf16>, vector<32x256xf32> -> vector<32x256xf32>
    %c0_159 = arith.constant 0 : index
    %c192 = arith.constant 192 : index
    %360 = vector.load %arg9[%c0_159, %c192] : memref<32x320xbf16, #tpu.memory_space<vmem>>, vector<32x32xbf16>
    %cst_160 = arith.constant dense<0.000000e+00> : vector<32x8xf32>
    %361 = tpu.matmul %360, %357, %cst_160 {dimension_numbers = #tpu.dot_dimension_numbers<[1], [1], [0], [0], [0, 0, 1, 0], [], []>} : vector<32x32xbf16>, vector<8x32xbf16>, vector<32x8xf32> -> vector<32x8xf32>
    %c0_161 = arith.constant 0 : index
    %c224 = arith.constant 224 : index
    %362 = vector.load %arg9[%c0_161, %c224] : memref<32x320xbf16, #tpu.memory_space<vmem>>, vector<32x32xbf16>
    %cst_162 = arith.constant dense<0.000000e+00> : vector<32x8xf32>
    %363 = tpu.matmul %362, %357, %cst_162 {dimension_numbers = #tpu.dot_dimension_numbers<[1], [1], [0], [0], [0, 0, 1, 0], [], []>} : vector<32x32xbf16>, vector<8x32xbf16>, vector<32x8xf32> -> vector<32x8xf32>
    %c0_163 = arith.constant 0 : index
    %c256 = arith.constant 256 : index
    %364 = vector.load %arg9[%c0_163, %c256] : memref<32x320xbf16, #tpu.memory_space<vmem>>, vector<32x32xbf16>
    %365 = arith.truncf %359 : vector<32x256xf32> to vector<32x256xbf16>
    %366 = arith.truncf %361 : vector<32x8xf32> to vector<32x8xbf16>
    %367 = arith.truncf %363 : vector<32x8xf32> to vector<32x8xbf16>
    %368 = vector.extract_strided_slice %365 {offsets = [0, 0], sizes = [16, 256], strides = [1, 1]} : vector<32x256xbf16> to vector<16x256xbf16>
    %369 = vector.extract_strided_slice %366 {offsets = [0, 0], sizes = [16, 8], strides = [1, 1]} : vector<32x8xbf16> to vector<16x8xbf16>
    %370 = vector.extract_strided_slice %367 {offsets = [0, 0], sizes = [16, 8], strides = [1, 1]} : vector<32x8xbf16> to vector<16x8xbf16>
    %cst_164 = arith.constant dense<0.000000e+00> : vector<8x256xf32>
    %371 = tpu.matmul %369, %368, %cst_164 {dimension_numbers = #tpu.dot_dimension_numbers<[0], [0], [1], [1], [0, 1, 1, 1], [], []>} : vector<16x8xbf16>, vector<16x256xbf16>, vector<8x256xf32> -> vector<8x256xf32>
    %cst_165 = arith.constant dense<0xFF800000> : vector<256xf32>
    %372 = vector.multi_reduction <maximumf>, %371, %cst_165 [0] : vector<8x256xf32> to vector<256xf32>
    %373 = vector.shape_cast %372 : vector<256xf32> to vector<1x256xf32>
    %374 = vector.broadcast %373 : vector<1x256xf32> to vector<8x256xf32>
    %375 = arith.subf %371, %374 : vector<8x256xf32>
    %376 = math.exp %375 : vector<8x256xf32>
    %cst_166 = arith.constant dense<0.000000e+00> : vector<256xf32>
    %377 = vector.multi_reduction <add>, %376, %cst_166 [0] : vector<8x256xf32> to vector<256xf32>
    %378 = vector.shape_cast %377 : vector<256xf32> to vector<1x256xf32>
    %379 = arith.truncf %376 : vector<8x256xf32> to vector<8x256xbf16>
    %cst_167 = arith.constant dense<0.000000e+00> : vector<16x256xf32>
    %380 = tpu.matmul %370, %379, %cst_167 {dimension_numbers = #tpu.dot_dimension_numbers<[1], [0], [0], [1], [0, 0, 1, 1], [], []>} : vector<16x8xbf16>, vector<8x256xbf16>, vector<16x256xf32> -> vector<16x256xf32>
    %381 = vector.broadcast %378 : vector<1x256xf32> to vector<16x256xf32>
    %382 = arith.divf %380, %381 : vector<16x256xf32>
    %383 = vector.extract_strided_slice %364 {offsets = [0, 0], sizes = [32, 16], strides = [1, 1]} : vector<32x32xbf16> to vector<32x16xbf16>
    %384 = arith.truncf %382 : vector<16x256xf32> to vector<16x256xbf16>
    %cst_168 = arith.constant dense<0.000000e+00> : vector<32x256xf32>
    %385 = tpu.matmul %383, %384, %cst_168 {dimension_numbers = #tpu.dot_dimension_numbers<[1], [0], [0], [1], [0, 0, 1, 1], [], []>} : vector<32x16xbf16>, vector<16x256xbf16>, vector<32x256xf32> -> vector<32x256xf32>
    %386 = vector.extract_strided_slice %365 {offsets = [16, 0], sizes = [16, 256], strides = [1, 1]} : vector<32x256xbf16> to vector<16x256xbf16>
    %387 = vector.extract_strided_slice %366 {offsets = [16, 0], sizes = [16, 8], strides = [1, 1]} : vector<32x8xbf16> to vector<16x8xbf16>
    %388 = vector.extract_strided_slice %367 {offsets = [16, 0], sizes = [16, 8], strides = [1, 1]} : vector<32x8xbf16> to vector<16x8xbf16>
    %cst_169 = arith.constant dense<0.000000e+00> : vector<8x256xf32>
    %389 = tpu.matmul %387, %386, %cst_169 {dimension_numbers = #tpu.dot_dimension_numbers<[0], [0], [1], [1], [0, 1, 1, 1], [], []>} : vector<16x8xbf16>, vector<16x256xbf16>, vector<8x256xf32> -> vector<8x256xf32>
    %cst_170 = arith.constant dense<0xFF800000> : vector<256xf32>
    %390 = vector.multi_reduction <maximumf>, %389, %cst_170 [0] : vector<8x256xf32> to vector<256xf32>
    %391 = vector.shape_cast %390 : vector<256xf32> to vector<1x256xf32>
    %392 = vector.broadcast %391 : vector<1x256xf32> to vector<8x256xf32>
    %393 = arith.subf %389, %392 : vector<8x256xf32>
    %394 = math.exp %393 : vector<8x256xf32>
    %cst_171 = arith.constant dense<0.000000e+00> : vector<256xf32>
    %395 = vector.multi_reduction <add>, %394, %cst_171 [0] : vector<8x256xf32> to vector<256xf32>
    %396 = vector.shape_cast %395 : vector<256xf32> to vector<1x256xf32>
    %397 = arith.truncf %394 : vector<8x256xf32> to vector<8x256xbf16>
    %cst_172 = arith.constant dense<0.000000e+00> : vector<16x256xf32>
    %398 = tpu.matmul %388, %397, %cst_172 {dimension_numbers = #tpu.dot_dimension_numbers<[1], [0], [0], [1], [0, 0, 1, 1], [], []>} : vector<16x8xbf16>, vector<8x256xbf16>, vector<16x256xf32> -> vector<16x256xf32>
    %399 = vector.broadcast %396 : vector<1x256xf32> to vector<16x256xf32>
    %400 = arith.divf %398, %399 : vector<16x256xf32>
    %401 = vector.extract_strided_slice %364 {offsets = [0, 16], sizes = [32, 16], strides = [1, 1]} : vector<32x32xbf16> to vector<32x16xbf16>
    %402 = arith.truncf %400 : vector<16x256xf32> to vector<16x256xbf16>
    %cst_173 = arith.constant dense<0.000000e+00> : vector<32x256xf32>
    %403 = tpu.matmul %401, %402, %cst_173 {dimension_numbers = #tpu.dot_dimension_numbers<[1], [0], [0], [1], [0, 0, 1, 1], [], []>} : vector<32x16xbf16>, vector<16x256xbf16>, vector<32x256xf32> -> vector<32x256xf32>
    %404 = arith.addf %385, %403 : vector<32x256xf32>
    %c0_174 = arith.constant 0 : index
    %c15 = arith.constant 15 : index
    %405 = vector.load %arg7[%c0_174, %c15] : memref<32x20xf32, #tpu.memory_space<vmem>>, vector<32x1xf32>
    %406 = vector.broadcast %405 : vector<32x1xf32> to vector<32x256xf32>
    %407 = arith.addf %404, %406 : vector<32x256xf32>
    %408 = arith.addf %407, %331 : vector<32x256xf32>
    %cst_175 = arith.constant dense<0.000000e+00> : vector<256xf32>
    %409 = vector.multi_reduction <add>, %408, %cst_175 [0] : vector<32x256xf32> to vector<256xf32>
    %410 = vector.shape_cast %409 : vector<256xf32> to vector<1x256xf32>
    %cst_176 = arith.constant 3.200000e+01 : f32
    %411 = vector.broadcast %cst_176 : f32 to vector<1x256xf32>
    %412 = arith.divf %410, %411 : vector<1x256xf32>
    %413 = vector.broadcast %412 : vector<1x256xf32> to vector<32x256xf32>
    %414 = arith.subf %408, %413 : vector<32x256xf32>
    %415 = arith.mulf %414, %414 : vector<32x256xf32>
    %cst_177 = arith.constant dense<0.000000e+00> : vector<256xf32>
    %416 = vector.multi_reduction <add>, %415, %cst_177 [0] : vector<32x256xf32> to vector<256xf32>
    %417 = vector.shape_cast %416 : vector<256xf32> to vector<1x256xf32>
    %cst_178 = arith.constant 3.200000e+01 : f32
    %418 = vector.broadcast %cst_178 : f32 to vector<1x256xf32>
    %419 = arith.divf %417, %418 : vector<1x256xf32>
    %cst_179 = arith.constant 9.99999974E-6 : f32
    %420 = vector.broadcast %cst_179 : f32 to vector<1x256xf32>
    %421 = arith.addf %419, %420 : vector<1x256xf32>
    %422 = math.rsqrt %421 : vector<1x256xf32>
    %423 = vector.broadcast %422 : vector<1x256xf32> to vector<32x256xf32>
    %424 = arith.mulf %414, %423 : vector<32x256xf32>
    %c0_180 = arith.constant 0 : index
    %c16 = arith.constant 16 : index
    %425 = vector.load %arg7[%c0_180, %c16] : memref<32x20xf32, #tpu.memory_space<vmem>>, vector<32x1xf32>
    %426 = vector.broadcast %425 : vector<32x1xf32> to vector<32x256xf32>
    %427 = arith.mulf %424, %426 : vector<32x256xf32>
    %c0_181 = arith.constant 0 : index
    %c17 = arith.constant 17 : index
    %428 = vector.load %arg7[%c0_181, %c17] : memref<32x20xf32, #tpu.memory_space<vmem>>, vector<32x1xf32>
    %429 = vector.broadcast %428 : vector<32x1xf32> to vector<32x256xf32>
    %430 = arith.addf %427, %429 : vector<32x256xf32>
    %431 = arith.truncf %430 : vector<32x256xf32> to vector<32x256xbf16>
    %c0_182 = arith.constant 0 : index
    %c0_183 = arith.constant 0 : index
    %432 = vector.load %arg10[%c0_182, %c0_183] : memref<256x32xbf16, #tpu.memory_space<vmem>>, vector<256x32xbf16>
    %c0_184 = arith.constant 0 : index
    %c0_185 = arith.constant 0 : index
    %433 = vector.load %arg11[%c0_184, %c0_185] : memref<256x1xf32, #tpu.memory_space<vmem>>, vector<256x1xf32>
    %c0_186 = arith.constant 0 : index
    %c0_187 = arith.constant 0 : index
    %434 = vector.load %arg12[%c0_186, %c0_187] : memref<32x128xbf16, #tpu.memory_space<vmem>>, vector<32x128xbf16>
    %435 = vector.extract_strided_slice %431 {offsets = [0, 0], sizes = [32, 128], strides = [1, 1]} : vector<32x256xbf16> to vector<32x128xbf16>
    %cst_188 = arith.constant dense<0.000000e+00> : vector<256x128xf32>
    %436 = tpu.matmul %432, %435, %cst_188 {dimension_numbers = #tpu.dot_dimension_numbers<[1], [0], [0], [1], [0, 0, 1, 1], [], []>} : vector<256x32xbf16>, vector<32x128xbf16>, vector<256x128xf32> -> vector<256x128xf32>
    %437 = vector.broadcast %433 : vector<256x1xf32> to vector<256x128xf32>
    %438 = arith.addf %436, %437 : vector<256x128xf32>
    %439 = vector.extract_strided_slice %438 {offsets = [0, 0], sizes = [128, 128], strides = [1, 1]} : vector<256x128xf32> to vector<128x128xf32>
    %440 = vector.extract_strided_slice %438 {offsets = [128, 0], sizes = [128, 128], strides = [1, 1]} : vector<256x128xf32> to vector<128x128xf32>
    %cst_189 = arith.constant 5.000000e-01 : f32
    %441 = vector.broadcast %cst_189 : f32 to vector<128x128xf32>
    %442 = arith.mulf %441, %440 : vector<128x128xf32>
    %cst_190 = arith.constant 0.707106769 : f32
    %443 = vector.broadcast %cst_190 : f32 to vector<128x128xf32>
    %444 = arith.mulf %440, %443 : vector<128x128xf32>
    %cst_191 = arith.constant 0.000000e+00 : f32
    %445 = vector.broadcast %cst_191 : f32 to vector<128x128xf32>
    %446 = arith.cmpf oge, %444, %445 : vector<128x128xf32>
    %cst_192 = arith.constant 1.000000e+00 : f32
    %cst_193 = arith.constant -1.000000e+00 : f32
    %447 = vector.broadcast %cst_192 : f32 to vector<128x128xf32>
    %448 = vector.broadcast %cst_193 : f32 to vector<128x128xf32>
    %449 = arith.select %446, %447, %448 : vector<128x128xi1>, vector<128x128xf32>
    %450 = math.absf %444 : vector<128x128xf32>
    %cst_194 = arith.constant 0.327591091 : f32
    %451 = vector.broadcast %cst_194 : f32 to vector<128x128xf32>
    %452 = arith.mulf %451, %450 : vector<128x128xf32>
    %cst_195 = arith.constant 1.000000e+00 : f32
    %453 = vector.broadcast %cst_195 : f32 to vector<128x128xf32>
    %454 = arith.addf %453, %452 : vector<128x128xf32>
    %cst_196 = arith.constant 1.000000e+00 : f32
    %455 = vector.broadcast %cst_196 : f32 to vector<128x128xf32>
    %456 = arith.divf %455, %454 : vector<128x128xf32>
    %cst_197 = arith.constant 1.06140542 : f32
    %457 = vector.broadcast %cst_197 : f32 to vector<128x128xf32>
    %458 = arith.mulf %457, %456 : vector<128x128xf32>
    %cst_198 = arith.constant -1.45315206 : f32
    %459 = vector.broadcast %cst_198 : f32 to vector<128x128xf32>
    %460 = arith.addf %458, %459 : vector<128x128xf32>
    %461 = arith.mulf %460, %456 : vector<128x128xf32>
    %cst_199 = arith.constant 1.42141378 : f32
    %462 = vector.broadcast %cst_199 : f32 to vector<128x128xf32>
    %463 = arith.addf %461, %462 : vector<128x128xf32>
    %464 = arith.mulf %463, %456 : vector<128x128xf32>
    %cst_200 = arith.constant -0.284496725 : f32
    %465 = vector.broadcast %cst_200 : f32 to vector<128x128xf32>
    %466 = arith.addf %464, %465 : vector<128x128xf32>
    %467 = arith.mulf %466, %456 : vector<128x128xf32>
    %cst_201 = arith.constant 0.254829586 : f32
    %468 = vector.broadcast %cst_201 : f32 to vector<128x128xf32>
    %469 = arith.addf %467, %468 : vector<128x128xf32>
    %470 = arith.mulf %469, %456 : vector<128x128xf32>
    %cst_202 = arith.constant 0.000000e+00 : f32
    %471 = vector.broadcast %cst_202 : f32 to vector<128x128xf32>
    %472 = arith.subf %471, %450 : vector<128x128xf32>
    %473 = arith.mulf %472, %450 : vector<128x128xf32>
    %474 = math.exp %473 : vector<128x128xf32>
    %475 = arith.mulf %470, %474 : vector<128x128xf32>
    %cst_203 = arith.constant 1.000000e+00 : f32
    %476 = vector.broadcast %cst_203 : f32 to vector<128x128xf32>
    %477 = arith.subf %476, %475 : vector<128x128xf32>
    %478 = arith.mulf %449, %477 : vector<128x128xf32>
    %cst_204 = arith.constant 1.000000e+00 : f32
    %479 = vector.broadcast %cst_204 : f32 to vector<128x128xf32>
    %480 = arith.addf %479, %478 : vector<128x128xf32>
    %481 = arith.mulf %442, %480 : vector<128x128xf32>
    %482 = arith.mulf %439, %481 : vector<128x128xf32>
    %483 = arith.truncf %482 : vector<128x128xf32> to vector<128x128xbf16>
    %cst_205 = arith.constant dense<0.000000e+00> : vector<32x128xf32>
    %484 = tpu.matmul %434, %483, %cst_205 {dimension_numbers = #tpu.dot_dimension_numbers<[1], [0], [0], [1], [0, 0, 1, 1], [], []>} : vector<32x128xbf16>, vector<128x128xbf16>, vector<32x128xf32> -> vector<32x128xf32>
    %485 = vector.extract_strided_slice %431 {offsets = [0, 128], sizes = [32, 128], strides = [1, 1]} : vector<32x256xbf16> to vector<32x128xbf16>
    %cst_206 = arith.constant dense<0.000000e+00> : vector<256x128xf32>
    %486 = tpu.matmul %432, %485, %cst_206 {dimension_numbers = #tpu.dot_dimension_numbers<[1], [0], [0], [1], [0, 0, 1, 1], [], []>} : vector<256x32xbf16>, vector<32x128xbf16>, vector<256x128xf32> -> vector<256x128xf32>
    %487 = vector.broadcast %433 : vector<256x1xf32> to vector<256x128xf32>
    %488 = arith.addf %486, %487 : vector<256x128xf32>
    %489 = vector.extract_strided_slice %488 {offsets = [0, 0], sizes = [128, 128], strides = [1, 1]} : vector<256x128xf32> to vector<128x128xf32>
    %490 = vector.extract_strided_slice %488 {offsets = [128, 0], sizes = [128, 128], strides = [1, 1]} : vector<256x128xf32> to vector<128x128xf32>
    %cst_207 = arith.constant 5.000000e-01 : f32
    %491 = vector.broadcast %cst_207 : f32 to vector<128x128xf32>
    %492 = arith.mulf %491, %490 : vector<128x128xf32>
    %cst_208 = arith.constant 0.707106769 : f32
    %493 = vector.broadcast %cst_208 : f32 to vector<128x128xf32>
    %494 = arith.mulf %490, %493 : vector<128x128xf32>
    %cst_209 = arith.constant 0.000000e+00 : f32
    %495 = vector.broadcast %cst_209 : f32 to vector<128x128xf32>
    %496 = arith.cmpf oge, %494, %495 : vector<128x128xf32>
    %cst_210 = arith.constant 1.000000e+00 : f32
    %cst_211 = arith.constant -1.000000e+00 : f32
    %497 = vector.broadcast %cst_210 : f32 to vector<128x128xf32>
    %498 = vector.broadcast %cst_211 : f32 to vector<128x128xf32>
    %499 = arith.select %496, %497, %498 : vector<128x128xi1>, vector<128x128xf32>
    %500 = math.absf %494 : vector<128x128xf32>
    %cst_212 = arith.constant 0.327591091 : f32
    %501 = vector.broadcast %cst_212 : f32 to vector<128x128xf32>
    %502 = arith.mulf %501, %500 : vector<128x128xf32>
    %cst_213 = arith.constant 1.000000e+00 : f32
    %503 = vector.broadcast %cst_213 : f32 to vector<128x128xf32>
    %504 = arith.addf %503, %502 : vector<128x128xf32>
    %cst_214 = arith.constant 1.000000e+00 : f32
    %505 = vector.broadcast %cst_214 : f32 to vector<128x128xf32>
    %506 = arith.divf %505, %504 : vector<128x128xf32>
    %cst_215 = arith.constant 1.06140542 : f32
    %507 = vector.broadcast %cst_215 : f32 to vector<128x128xf32>
    %508 = arith.mulf %507, %506 : vector<128x128xf32>
    %cst_216 = arith.constant -1.45315206 : f32
    %509 = vector.broadcast %cst_216 : f32 to vector<128x128xf32>
    %510 = arith.addf %508, %509 : vector<128x128xf32>
    %511 = arith.mulf %510, %506 : vector<128x128xf32>
    %cst_217 = arith.constant 1.42141378 : f32
    %512 = vector.broadcast %cst_217 : f32 to vector<128x128xf32>
    %513 = arith.addf %511, %512 : vector<128x128xf32>
    %514 = arith.mulf %513, %506 : vector<128x128xf32>
    %cst_218 = arith.constant -0.284496725 : f32
    %515 = vector.broadcast %cst_218 : f32 to vector<128x128xf32>
    %516 = arith.addf %514, %515 : vector<128x128xf32>
    %517 = arith.mulf %516, %506 : vector<128x128xf32>
    %cst_219 = arith.constant 0.254829586 : f32
    %518 = vector.broadcast %cst_219 : f32 to vector<128x128xf32>
    %519 = arith.addf %517, %518 : vector<128x128xf32>
    %520 = arith.mulf %519, %506 : vector<128x128xf32>
    %cst_220 = arith.constant 0.000000e+00 : f32
    %521 = vector.broadcast %cst_220 : f32 to vector<128x128xf32>
    %522 = arith.subf %521, %500 : vector<128x128xf32>
    %523 = arith.mulf %522, %500 : vector<128x128xf32>
    %524 = math.exp %523 : vector<128x128xf32>
    %525 = arith.mulf %520, %524 : vector<128x128xf32>
    %cst_221 = arith.constant 1.000000e+00 : f32
    %526 = vector.broadcast %cst_221 : f32 to vector<128x128xf32>
    %527 = arith.subf %526, %525 : vector<128x128xf32>
    %528 = arith.mulf %499, %527 : vector<128x128xf32>
    %cst_222 = arith.constant 1.000000e+00 : f32
    %529 = vector.broadcast %cst_222 : f32 to vector<128x128xf32>
    %530 = arith.addf %529, %528 : vector<128x128xf32>
    %531 = arith.mulf %492, %530 : vector<128x128xf32>
    %532 = arith.mulf %489, %531 : vector<128x128xf32>
    %533 = arith.truncf %532 : vector<128x128xf32> to vector<128x128xbf16>
    %cst_223 = arith.constant dense<0.000000e+00> : vector<32x128xf32>
    %534 = tpu.matmul %434, %533, %cst_223 {dimension_numbers = #tpu.dot_dimension_numbers<[1], [0], [0], [1], [0, 0, 1, 1], [], []>} : vector<32x128xbf16>, vector<128x128xbf16>, vector<32x128xf32> -> vector<32x128xf32>
    %535 = tpu.concatenate %484, %534 in 1 : vector<32x128xf32>, vector<32x128xf32> -> vector<32x256xf32>
    %c0_224 = arith.constant 0 : index
    %c18 = arith.constant 18 : index
    %536 = vector.load %arg7[%c0_224, %c18] : memref<32x20xf32, #tpu.memory_space<vmem>>, vector<32x1xf32>
    %537 = vector.broadcast %536 : vector<32x1xf32> to vector<32x256xf32>
    %538 = arith.addf %535, %537 : vector<32x256xf32>
    %539 = arith.addf %538, %408 : vector<32x256xf32>
    %c0_225 = arith.constant 0 : index
    %c288_226 = arith.constant 288 : index
    %540 = vector.load %arg9[%c0_225, %c288_226] : memref<32x320xbf16, #tpu.memory_space<vmem>>, vector<32x32xbf16>
    %541 = arith.truncf %539 : vector<32x256xf32> to vector<32x256xbf16>
    %cst_227 = arith.constant dense<0.000000e+00> : vector<32x256xf32>
    %542 = tpu.matmul %540, %541, %cst_227 {dimension_numbers = #tpu.dot_dimension_numbers<[1], [0], [0], [1], [0, 0, 1, 1], [], []>} : vector<32x32xbf16>, vector<32x256xbf16>, vector<32x256xf32> -> vector<32x256xf32>
    %c0_228 = arith.constant 0 : index
    %c19 = arith.constant 19 : index
    %543 = vector.load %arg7[%c0_228, %c19] : memref<32x20xf32, #tpu.memory_space<vmem>>, vector<32x1xf32>
    %544 = vector.broadcast %543 : vector<32x1xf32> to vector<32x256xf32>
    %545 = arith.addf %542, %544 : vector<32x256xf32>
    %546 = arith.addf %545, %189 : vector<32x256xf32>
    %c0_229 = arith.constant 0 : index
    %c0_230 = arith.constant 0 : index
    %c0_231 = arith.constant 0 : index
    %547 = vector.load %arg13[%c0_229, %c0_230, %c0_231] : memref<1x32x256xf32, #tpu.memory_space<vmem>>, vector<1x32x256xf32>
    %548 = vector.shape_cast %547 : vector<1x32x256xf32> to vector<32x256xf32>
    %549 = vector.shape_cast %546 : vector<32x256xf32> to vector<1x32x256xf32>
    tpu.vector_store %arg13[%c0_229, %c0_230, %c0_231], %549 {strides = array<i32>} : memref<1x32x256xf32, #tpu.memory_space<vmem>>, vector<1x32x256xf32>,
    %c0_232 = arith.constant 0 : index
    %c576 = arith.constant 576 : index
    %550 = vector.load %arg8[%c0_232, %c576] : memref<32x864xbf16, #tpu.memory_space<vmem>>, vector<32x288xbf16>
    %c17_i32_233 = arith.constant 17 : i32
    %551 = tpu.dynamic_rotate %546 by %c17_i32_233 dim 1 : vector<32x256xf32>, i32 -> vector<32x256xf32>
    %c0_234 = arith.constant 0 : index
    %c0_235 = arith.constant 0 : index
    %c0_236 = arith.constant 0 : index
    %552 = vector.load %arg5[%c0_234, %c0_235, %c0_236] : memref<9x1x256xf32, #tpu.memory_space<vmem>>, vector<1x1x256xf32>
    %553 = vector.shape_cast %552 : vector<1x1x256xf32> to vector<1x256xf32>
    %554 = vector.broadcast %553 : vector<1x256xf32> to vector<32x256xf32>
    %555 = arith.mulf %551, %554 : vector<32x256xf32>
    %556 = arith.truncf %555 : vector<32x256xf32> to vector<32x256xbf16>
    %c16_i32_237 = arith.constant 16 : i32
    %557 = tpu.dynamic_rotate %546 by %c16_i32_237 dim 1 : vector<32x256xf32>, i32 -> vector<32x256xf32>
    %c1_238 = arith.constant 1 : index
    %c0_239 = arith.constant 0 : index
    %c0_240 = arith.constant 0 : index
    %558 = vector.load %arg5[%c1_238, %c0_239, %c0_240] : memref<9x1x256xf32, #tpu.memory_space<vmem>>, vector<1x1x256xf32>
    %559 = vector.shape_cast %558 : vector<1x1x256xf32> to vector<1x256xf32>
    %560 = vector.broadcast %559 : vector<1x256xf32> to vector<32x256xf32>
    %561 = arith.mulf %557, %560 : vector<32x256xf32>
    %562 = arith.truncf %561 : vector<32x256xf32> to vector<32x256xbf16>
    %c15_i32_241 = arith.constant 15 : i32
    %563 = tpu.dynamic_rotate %546 by %c15_i32_241 dim 1 : vector<32x256xf32>, i32 -> vector<32x256xf32>
    %c2_242 = arith.constant 2 : index
    %c0_243 = arith.constant 0 : index
    %c0_244 = arith.constant 0 : index
    %564 = vector.load %arg5[%c2_242, %c0_243, %c0_244] : memref<9x1x256xf32, #tpu.memory_space<vmem>>, vector<1x1x256xf32>
    %565 = vector.shape_cast %564 : vector<1x1x256xf32> to vector<1x256xf32>
    %566 = vector.broadcast %565 : vector<1x256xf32> to vector<32x256xf32>
    %567 = arith.mulf %563, %566 : vector<32x256xf32>
    %568 = arith.truncf %567 : vector<32x256xf32> to vector<32x256xbf16>
    %c1_i32_245 = arith.constant 1 : i32
    %569 = tpu.dynamic_rotate %546 by %c1_i32_245 dim 1 : vector<32x256xf32>, i32 -> vector<32x256xf32>
    %c3_246 = arith.constant 3 : index
    %c0_247 = arith.constant 0 : index
    %c0_248 = arith.constant 0 : index
    %570 = vector.load %arg5[%c3_246, %c0_247, %c0_248] : memref<9x1x256xf32, #tpu.memory_space<vmem>>, vector<1x1x256xf32>
    %571 = vector.shape_cast %570 : vector<1x1x256xf32> to vector<1x256xf32>
    %572 = vector.broadcast %571 : vector<1x256xf32> to vector<32x256xf32>
    %573 = arith.mulf %569, %572 : vector<32x256xf32>
    %574 = arith.truncf %573 : vector<32x256xf32> to vector<32x256xbf16>
    %c4_249 = arith.constant 4 : index
    %c0_250 = arith.constant 0 : index
    %c0_251 = arith.constant 0 : index
    %575 = vector.load %arg5[%c4_249, %c0_250, %c0_251] : memref<9x1x256xf32, #tpu.memory_space<vmem>>, vector<1x1x256xf32>
    %576 = vector.shape_cast %575 : vector<1x1x256xf32> to vector<1x256xf32>
    %577 = vector.broadcast %576 : vector<1x256xf32> to vector<32x256xf32>
    %578 = arith.mulf %546, %577 : vector<32x256xf32>
    %579 = arith.truncf %578 : vector<32x256xf32> to vector<32x256xbf16>
    %c255_i32_252 = arith.constant 255 : i32
    %580 = tpu.dynamic_rotate %546 by %c255_i32_252 dim 1 : vector<32x256xf32>, i32 -> vector<32x256xf32>
    %c5_253 = arith.constant 5 : index
    %c0_254 = arith.constant 0 : index
    %c0_255 = arith.constant 0 : index
    %581 = vector.load %arg5[%c5_253, %c0_254, %c0_255] : memref<9x1x256xf32, #tpu.memory_space<vmem>>, vector<1x1x256xf32>
    %582 = vector.shape_cast %581 : vector<1x1x256xf32> to vector<1x256xf32>
    %583 = vector.broadcast %582 : vector<1x256xf32> to vector<32x256xf32>
    %584 = arith.mulf %580, %583 : vector<32x256xf32>
    %585 = arith.truncf %584 : vector<32x256xf32> to vector<32x256xbf16>
    %c241_i32_256 = arith.constant 241 : i32
    %586 = tpu.dynamic_rotate %546 by %c241_i32_256 dim 1 : vector<32x256xf32>, i32 -> vector<32x256xf32>
    %c6_257 = arith.constant 6 : index
    %c0_258 = arith.constant 0 : index
    %c0_259 = arith.constant 0 : index
    %587 = vector.load %arg5[%c6_257, %c0_258, %c0_259] : memref<9x1x256xf32, #tpu.memory_space<vmem>>, vector<1x1x256xf32>
    %588 = vector.shape_cast %587 : vector<1x1x256xf32> to vector<1x256xf32>
    %589 = vector.broadcast %588 : vector<1x256xf32> to vector<32x256xf32>
    %590 = arith.mulf %586, %589 : vector<32x256xf32>
    %591 = arith.truncf %590 : vector<32x256xf32> to vector<32x256xbf16>
    %c240_i32_260 = arith.constant 240 : i32
    %592 = tpu.dynamic_rotate %546 by %c240_i32_260 dim 1 : vector<32x256xf32>, i32 -> vector<32x256xf32>
    %c7_261 = arith.constant 7 : index
    %c0_262 = arith.constant 0 : index
    %c0_263 = arith.constant 0 : index
    %593 = vector.load %arg5[%c7_261, %c0_262, %c0_263] : memref<9x1x256xf32, #tpu.memory_space<vmem>>, vector<1x1x256xf32>
    %594 = vector.shape_cast %593 : vector<1x1x256xf32> to vector<1x256xf32>
    %595 = vector.broadcast %594 : vector<1x256xf32> to vector<32x256xf32>
    %596 = arith.mulf %592, %595 : vector<32x256xf32>
    %597 = arith.truncf %596 : vector<32x256xf32> to vector<32x256xbf16>
    %c239_i32_264 = arith.constant 239 : i32
    %598 = tpu.dynamic_rotate %546 by %c239_i32_264 dim 1 : vector<32x256xf32>, i32 -> vector<32x256xf32>
    %c8_265 = arith.constant 8 : index
    %c0_266 = arith.constant 0 : index
    %c0_267 = arith.constant 0 : index
    %599 = vector.load %arg5[%c8_265, %c0_266, %c0_267] : memref<9x1x256xf32, #tpu.memory_space<vmem>>, vector<1x1x256xf32>
    %600 = vector.shape_cast %599 : vector<1x1x256xf32> to vector<1x256xf32>
    %601 = vector.broadcast %600 : vector<1x256xf32> to vector<32x256xf32>
    %602 = arith.mulf %598, %601 : vector<32x256xf32>
    %603 = arith.truncf %602 : vector<32x256xf32> to vector<32x256xbf16>
    %604 = tpu.concatenate %556, %562, %568, %574, %579, %585, %591, %597, %603 in 0 : vector<32x256xbf16>, vector<32x256xbf16>, vector<32x256xbf16>, vector<32x256xbf16>, vector<32x256xbf16>, vector<32x256xbf16>, vector<32x256xbf16>, vector<32x256xbf16>, vector<32x256xbf16> -> vector<288x256xbf16>
    %cst_268 = arith.constant dense<0.000000e+00> : vector<32x256xf32>
    %605 = tpu.matmul %550, %604, %cst_268 {dimension_numbers = #tpu.dot_dimension_numbers<[1], [0], [0], [1], [0, 0, 1, 1], [], []>} : vector<32x288xbf16>, vector<288x256xbf16>, vector<32x256xf32> -> vector<32x256xf32>
    %c0_269 = arith.constant 0 : index
    %c0_270 = arith.constant 0 : index
    %606 = vector.load %arg6[%c0_269, %c0_270] : memref<256x64xf32, #tpu.memory_space<vmem>>, vector<256x64xf32>
    %cst_271 = arith.constant dense<0.000000e+00> : vector<32x64xf32>
    %607 = tpu.matmul %605, %606, %cst_271 {dimension_numbers = #tpu.dot_dimension_numbers<[1], [0], [0], [1], [0, 0, 1, 1], [], []>} : vector<32x256xf32>, vector<256x64xf32>, vector<32x64xf32> -> vector<32x64xf32>
    %c0_272 = arith.constant 0 : index
    %c6_273 = arith.constant 6 : index
    %608 = vector.load %arg7[%c0_272, %c6_273] : memref<32x20xf32, #tpu.memory_space<vmem>>, vector<32x1xf32>
    %609 = vector.broadcast %608 : vector<32x1xf32> to vector<32x64xf32>
    %610 = arith.addf %607, %609 : vector<32x64xf32>
    %c0_274 = arith.constant 0 : index
    %c0_275 = arith.constant 0 : index
    %c0_276 = arith.constant 0 : index
    %611 = vector.load %arg14[%c0_274, %c0_275, %c0_276] : memref<1x32x64xf32, #tpu.memory_space<vmem>>, vector<1x32x64xf32>
    %612 = vector.shape_cast %611 : vector<1x32x64xf32> to vector<32x64xf32>
    %613 = vector.shape_cast %610 : vector<32x64xf32> to vector<1x32x64xf32>
    tpu.vector_store %arg14[%c0_274, %c0_275, %c0_276], %613 {strides = array<i32>} : memref<1x32x64xf32, #tpu.memory_space<vmem>>, vector<1x32x64xf32>,
    return
  }
  func.func @transform_0(%arg0: i32) -> (i32, i32, i32) {
    %c0_i32 = arith.constant 0 : i32
    %c0_i32_0 = arith.constant 0 : i32
    %c0_i32_1 = arith.constant 0 : i32
    return %arg0, %c0_i32, %c0_i32_0 : i32, i32, i32
  }
  func.func @transform_1(%arg0: i32) -> (i32, i32, i32) {
    %c0_i32 = arith.constant 0 : i32
    %c0_i32_0 = arith.constant 0 : i32
    %c0_i32_1 = arith.constant 0 : i32
    return %arg0, %c0_i32, %c0_i32_0 : i32, i32, i32
  }
  func.func @transform_2(%arg0: i32) -> (i32, i32, i32) {
    %c0_i32 = arith.constant 0 : i32
    %c0_i32_0 = arith.constant 0 : i32
    %c0_i32_1 = arith.constant 0 : i32
    return %arg0, %c0_i32, %c0_i32_0 : i32, i32, i32
  }
  func.func @transform_3(%arg0: i32) -> (i32, i32) {
    %c0_i32 = arith.constant 0 : i32
    %c0_i32_0 = arith.constant 0 : i32
    %c0_i32_1 = arith.constant 0 : i32
    return %c0_i32, %c0_i32_0 : i32, i32
  }
  func.func @transform_4(%arg0: i32) -> (i32, i32, i32) {
    %c0_i32 = arith.constant 0 : i32
    %c0_i32_0 = arith.constant 0 : i32
    %c0_i32_1 = arith.constant 0 : i32
    %c0_i32_2 = arith.constant 0 : i32
    return %c0_i32, %c0_i32_0, %c0_i32_1 : i32, i32, i32
  }
  func.func @transform_5(%arg0: i32) -> (i32, i32) {
    %c0_i32 = arith.constant 0 : i32
    %c0_i32_0 = arith.constant 0 : i32
    %c0_i32_1 = arith.constant 0 : i32
    return %c0_i32, %c0_i32_0 : i32, i32
  }
  func.func @transform_6(%arg0: i32) -> (i32, i32) {
    %c0_i32 = arith.constant 0 : i32
    %c0_i32_0 = arith.constant 0 : i32
    %c0_i32_1 = arith.constant 0 : i32
    return %c0_i32, %c0_i32_0 : i32, i32
  }
  func.func @transform_7(%arg0: i32) -> (i32, i32) {
    %c0_i32 = arith.constant 0 : i32
    %c0_i32_0 = arith.constant 0 : i32
    %c0_i32_1 = arith.constant 0 : i32
    return %c0_i32, %c0_i32_0 : i32, i32
  }
  func.func @transform_8(%arg0: i32) -> (i32, i32) {
    %c0_i32 = arith.constant 0 : i32
    %c0_i32_0 = arith.constant 0 : i32
    %c0_i32_1 = arith.constant 0 : i32
    return %c0_i32, %c0_i32_0 : i32, i32
  }
  func.func @transform_9(%arg0: i32) -> (i32, i32) {
    %c0_i32 = arith.constant 0 : i32
    %c0_i32_0 = arith.constant 0 : i32
    %c0_i32_1 = arith.constant 0 : i32
    return %c0_i32, %c0_i32_0 : i32, i32
  }
  func.func @transform_10(%arg0: i32) -> (i32, i32) {
    %c0_i32 = arith.constant 0 : i32
    %c0_i32_0 = arith.constant 0 : i32
    %c0_i32_1 = arith.constant 0 : i32
    return %c0_i32, %c0_i32_0 : i32, i32
  }
  func.func @transform_11(%arg0: i32) -> (i32, i32) {
    %c0_i32 = arith.constant 0 : i32
    %c0_i32_0 = arith.constant 0 : i32
    %c0_i32_1 = arith.constant 0 : i32
    return %c0_i32, %c0_i32_0 : i32, i32
  }
  func.func @transform_12(%arg0: i32) -> (i32, i32, i32) {
    %c0_i32 = arith.constant 0 : i32
    %c0_i32_0 = arith.constant 0 : i32
    %c0_i32_1 = arith.constant 0 : i32
    return %arg0, %c0_i32, %c0_i32_0 : i32, i32, i32
  }
  func.func @transform_13(%arg0: i32) -> (i32, i32, i32) {
    %c0_i32 = arith.constant 0 : i32
    %c0_i32_0 = arith.constant 0 : i32
    %c0_i32_1 = arith.constant 0 : i32
    return %arg0, %c0_i32, %c0_i32_0 : i32, i32, i32
  }
}

</mosaic_0001>

<llo_original>
// kernel: cross_attn_down_block_forward.1
$region0: #{cross_attn_down_block_forward.1}
  #allocation0 [shape = 'u32[]', space=smem, size = 0x4, offset = 0x4, fixed_abs, tag = 'smem constant byte address 0x4 - core index']
  #allocation1 [shape = 'u32[72,128]{1,0:T(1,128)}', space=vmem, size = 0x9000, scoped, tag = 'internal scratch']
  %s0 = inlined_call_operand.vmem [shape: f32[2,32,256], index: 0, kind: input, shape index: {}]
  %s1 = inlined_call_operand.vmem [shape: f32[2,32,1], index: 1, kind: input, shape index: {}]
  %s2 = inlined_call_operand.vmem [shape: f32[2,8,32], index: 2, kind: input, shape index: {}]
  %s3 = inlined_call_operand.vmem [shape: f32[32,32], index: 3, kind: input, shape index: {}]
  %s4 = inlined_call_operand.vmem [shape: f32[9,1,256], index: 4, kind: input, shape index: {}]
  %s5 = inlined_call_operand.vmem [shape: f32[256,64], index: 5, kind: input, shape index: {}]
  %s6 = inlined_call_operand.vmem [shape: f32[32,20], index: 6, kind: input, shape index: {}]
  %s7 = inlined_call_operand.vmem [shape: bf16[32,864], index: 7, kind: input, shape index: {}]
  %s8 = inlined_call_operand.vmem [shape: bf16[32,320], index: 8, kind: input, shape index: {}]
  %s9 = inlined_call_operand.vmem [shape: bf16[256,32], index: 9, kind: input, shape index: {}]
  %s10 = inlined_call_operand.vmem [shape: f32[256,1], index: 10, kind: input, shape index: {}]
  %s11 = inlined_call_operand.vmem [shape: bf16[32,128], index: 11, kind: input, shape index: {}]
  %s12 = inlined_call_operand.vmem [shape: f32[2,32,256], index: 12, kind: output, shape index: {0}]
  %s13 = inlined_call_operand.vmem [shape: f32[2,32,64], index: 13, kind: output, shape index: {1}]
  %14 = xla_tuple %s12, %s13
  %s15 = sld [smem:[#allocation0]]
  $region89: #{cross_attn_down_block_forward.1} parent=0
    _
  %s17 = ssub.s32 1, %s15
  %s18 = scalar_select 0, %s17, %s15
  loop: start=0, step=1, limit=4
  $region2: #{cross_attn_down_block_forward.1} parent=0 // loop_pre_header
    _
  $region3: #{cross_attn_down_block_forward.1} parent=0 // loop_header
    %s20 = sphi 0, %s24
    %p21 = scmp.ge.s32.totalorder %s20, 4
    %s30 = sphi 0, %s32
    %s33 = sphi 0, %s30
    %s34 = sphi 0, %s33
    %s50 = sphi 0, %s34
    %s56 = sphi 0, %s58
    %s59 = sphi 0, %s56
    %s60 = sphi 0, %s59
    %s76 = sphi 0, %s60
    %s82 = sphi 0, %s84
    %s85 = sphi 0, %s82
    %s86 = sphi 0, %s85
    %s102 = sphi 0, %s86
    %s106 = sphi 0, %s106
    %s108 = sphi 0, %s106
    %s109 = sphi 0, %s108
    %s123 = sphi 0, %s109
    %s127 = sphi 0, %s127
    %s129 = sphi 0, %s127
    %s130 = sphi 0, %s129
    %s144 = sphi 0, %s130
    %s148 = sphi 0, %s148
    %s150 = sphi 0, %s148
    %s151 = sphi 0, %s150
    %s165 = sphi 0, %s151
    %s169 = sphi 0, %s169
    %s171 = sphi 0, %s169
    %s172 = sphi 0, %s171
    %s186 = sphi 0, %s172
    %s190 = sphi 0, %s190
    %s192 = sphi 0, %s190
    %s193 = sphi 0, %s192
    %s207 = sphi 0, %s193
    %s211 = sphi 0, %s211
    %s213 = sphi 0, %s211
    %s214 = sphi 0, %s213
    %s228 = sphi 0, %s214
    %s232 = sphi 0, %s232
    %s234 = sphi 0, %s232
    %s235 = sphi 0, %s234
    %s249 = sphi 0, %s235
    %s253 = sphi 0, %s253
    %s255 = sphi 0, %s253
    %s256 = sphi 0, %s255
    %s270 = sphi 0, %s256
    %s274 = sphi 0, %s274
    %s276 = sphi 0, %s274
    %s277 = sphi 0, %s276
    %s291 = sphi 0, %s277
    %s297 = sphi 0, %s299
    %s300 = sphi 0, %s297
    %s301 = sphi 0, %s300
    %s317 = sphi 0, %s301
    %s323 = sphi 0, %s325
    %s326 = sphi 0, %s323
    %s327 = sphi 0, %s326
    %s343 = sphi 0, %s327
  $region4: #{cross_attn_down_block_forward.1} parent=0 // loop_header_branch
    %23 = sbr.rel (%p21) target = $region8
  $region5: #{cross_attn_down_block_forward.1} parent=0 // loop_body
    %s25 = ssub.s32 %s20, 1
    %s26 = ssub.s32 %s20, 2
    %s27 = sadd.s32 %s20, 1
    %s28 = ssub.s32 %s20, %s27
    %p29 = scmp.eq.s32.totalorder %s28, 0
    %s31 = sadd.s32 %s30, 1
    %s32 = scalar_select %p29, %s30, %s31
    %p35 = pneg %p29
    %p36 = scmp.eq.s32.totalorder %s20, 1
    %p37 = por %p35, %p36
    %p38 = scmp.ne.s32.totalorder %s30, %s33
    %p39 = scmp.eq.s32.totalorder %s20, 0
    %p40 = por %p38, %p39
    %p41 = scmp.ne.s32.totalorder %s30, %s33
    %p42 = scmp.eq.s32.totalorder %s25, 1
    %p43 = por %p41, %p42
    %p44 = scmp.ne.s32.totalorder %s33, %s34
    %p45 = scmp.eq.s32.totalorder %s25, 0
    %p46 = por %p44, %p45
    %p47 = scmp.ne.s32.totalorder %s33, %s34
    %p48 = scmp.eq.s32.totalorder %s26, 1
    %p49 = por %p47, %p48
    %p51 = scmp.ne.s32.totalorder %s34, %s50
    %p52 = scmp.eq.s32.totalorder %s26, 0
    %p53 = por %p51, %p52
    %s54 = ssub.s32 %s20, %s27
    %p55 = scmp.eq.s32.totalorder %s54, 0
    %s57 = sadd.s32 %s56, 1
    %s58 = scalar_select %p55, %s56, %s57
    %p61 = pneg %p55
    %p62 = scmp.eq.s32.totalorder %s20, 1
    %p63 = por %p61, %p62
    %p64 = scmp.ne.s32.totalorder %s56, %s59
    %p65 = scmp.eq.s32.totalorder %s20, 0
    %p66 = por %p64, %p65
    %p67 = scmp.ne.s32.totalorder %s56, %s59
    %p68 = scmp.eq.s32.totalorder %s25, 1
    %p69 = por %p67, %p68
    %p70 = scmp.ne.s32.totalorder %s59, %s60
    %p71 = scmp.eq.s32.totalorder %s25, 0
    %p72 = por %p70, %p71
    %p73 = scmp.ne.s32.totalorder %s59, %s60
    %p74 = scmp.eq.s32.totalorder %s26, 1
    %p75 = por %p73, %p74
    %p77 = scmp.ne.s32.totalorder %s60, %s76
    %p78 = scmp.eq.s32.totalorder %s26, 0
    %p79 = por %p77, %p78
    %s80 = ssub.s32 %s20, %s27
    %p81 = scmp.eq.s32.totalorder %s80, 0
    %s83 = sadd.s32 %s82, 1
    %s84 = scalar_select %p81, %s82, %s83
    %p87 = pneg %p81
    %p88 = scmp.eq.s32.totalorder %s20, 1
    %p89 = por %p87, %p88
    %p90 = scmp.ne.s32.totalorder %s82, %s85
    %p91 = scmp.eq.s32.totalorder %s20, 0
    %p92 = por %p90, %p91
    %p93 = scmp.ne.s32.totalorder %s82, %s85
    %p94 = scmp.eq.s32.totalorder %s25, 1
    %p95 = por %p93, %p94
    %p96 = scmp.ne.s32.totalorder %s85, %s86
    %p97 = scmp.eq.s32.totalorder %s25, 0
    %p98 = por %p96, %p97
    %p99 = scmp.ne.s32.totalorder %s85, %s86
    %p100 = scmp.eq.s32.totalorder %s26, 1
    %p101 = por %p99, %p100
    %p103 = scmp.ne.s32.totalorder %s86, %s102
    %p104 = scmp.eq.s32.totalorder %s26, 0
    %p105 = por %p103, %p104
    %s107 = sadd.s32 %s106, 1
    %p110 = scmp.eq.s32.totalorder %s20, 1
    %p111 = scmp.ne.s32.totalorder %s106, %s108
    %p112 = scmp.eq.s32.totalorder %s20, 0
    %p113 = por %p111, %p112
    %p114 = scmp.ne.s32.totalorder %s106, %s108
    %p115 = scmp.eq.s32.totalorder %s25, 1
    %p116 = por %p114, %p115
    %p117 = scmp.ne.s32.totalorder %s108, %s109
    %p118 = scmp.eq.s32.totalorder %s25, 0
    %p119 = por %p117, %p118
    %p120 = scmp.ne.s32.totalorder %s108, %s109
    %p121 = scmp.eq.s32.totalorder %s26, 1
    %p122 = por %p120, %p121
    %p124 = scmp.ne.s32.totalorder %s109, %s123
    %p125 = scmp.eq.s32.totalorder %s26, 0
    %p126 = por %p124, %p125
    %s128 = sadd.s32 %s127, 1
    %p131 = scmp.eq.s32.totalorder %s20, 1
    %p132 = scmp.ne.s32.totalorder %s127, %s129
    %p133 = scmp.eq.s32.totalorder %s20, 0
    %p134 = por %p132, %p133
    %p135 = scmp.ne.s32.totalorder %s127, %s129
    %p136 = scmp.eq.s32.totalorder %s25, 1
    %p137 = por %p135, %p136
    %p138 = scmp.ne.s32.totalorder %s129, %s130
    %p139 = scmp.eq.s32.totalorder %s25, 0
    %p140 = por %p138, %p139
    %p141 = scmp.ne.s32.totalorder %s129, %s130
    %p142 = scmp.eq.s32.totalorder %s26, 1
    %p143 = por %p141, %p142
    %p145 = scmp.ne.s32.totalorder %s130, %s144
    %p146 = scmp.eq.s32.totalorder %s26, 0
    %p147 = por %p145, %p146
    %s149 = sadd.s32 %s148, 1
    %p152 = scmp.eq.s32.totalorder %s20, 1
    %p153 = scmp.ne.s32.totalorder %s148, %s150
    %p154 = scmp.eq.s32.totalorder %s20, 0
    %p155 = por %p153, %p154
    %p156 = scmp.ne.s32.totalorder %s148, %s150
    %p157 = scmp.eq.s32.totalorder %s25, 1
    %p158 = por %p156, %p157
    %p159 = scmp.ne.s32.totalorder %s150, %s151
    %p160 = scmp.eq.s32.totalorder %s25, 0
    %p161 = por %p159, %p160
    %p162 = scmp.ne.s32.totalorder %s150, %s151
    %p163 = scmp.eq.s32.totalorder %s26, 1
    %p164 = por %p162, %p163
    %p166 = scmp.ne.s32.totalorder %s151, %s165
    %p167 = scmp.eq.s32.totalorder %s26, 0
    %p168 = por %p166, %p167
    %s170 = sadd.s32 %s169, 1
    %p173 = scmp.eq.s32.totalorder %s20, 1
    %p174 = scmp.ne.s32.totalorder %s169, %s171
    %p175 = scmp.eq.s32.totalorder %s20, 0
    %p176 = por %p174, %p175
    %p177 = scmp.ne.s32.totalorder %s169, %s171
    %p178 = scmp.eq.s32.totalorder %s25, 1
    %p179 = por %p177, %p178
    %p180 = scmp.ne.s32.totalorder %s171, %s172
    %p181 = scmp.eq.s32.totalorder %s25, 0
    %p182 = por %p180, %p181
    %p183 = scmp.ne.s32.totalorder %s171, %s172
    %p184 = scmp.eq.s32.totalorder %s26, 1
    %p185 = por %p183, %p184
    %p187 = scmp.ne.s32.totalorder %s172, %s186
    %p188 = scmp.eq.s32.totalorder %s26, 0
    %p189 = por %p187, %p188
    %s191 = sadd.s32 %s190, 1
    %p194 = scmp.eq.s32.totalorder %s20, 1
    %p195 = scmp.ne.s32.totalorder %s190, %s192
    %p196 = scmp.eq.s32.totalorder %s20, 0
    %p197 = por %p195, %p196
    %p198 = scmp.ne.s32.totalorder %s190, %s192
    %p199 = scmp.eq.s32.totalorder %s25, 1
    %p200 = por %p198, %p199
    %p201 = scmp.ne.s32.totalorder %s192, %s193
    %p202 = scmp.eq.s32.totalorder %s25, 0
    %p203 = por %p201, %p202
    %p204 = scmp.ne.s32.totalorder %s192, %s193
    %p205 = scmp.eq.s32.totalorder %s26, 1
    %p206 = por %p204, %p205
    %p208 = scmp.ne.s32.totalorder %s193, %s207
    %p209 = scmp.eq.s32.totalorder %s26, 0
    %p210 = por %p208, %p209
    %s212 = sadd.s32 %s211, 1
    %p215 = scmp.eq.s32.totalorder %s20, 1
    %p216 = scmp.ne.s32.totalorder %s211, %s213
    %p217 = scmp.eq.s32.totalorder %s20, 0
    %p218 = por %p216, %p217
    %p219 = scmp.ne.s32.totalorder %s211, %s213
    %p220 = scmp.eq.s32.totalorder %s25, 1
    %p221 = por %p219, %p220
    %p222 = scmp.ne.s32.totalorder %s213, %s214
    %p223 = scmp.eq.s32.totalorder %s25, 0
    %p224 = por %p222, %p223
    %p225 = scmp.ne.s32.totalorder %s213, %s214
    %p226 = scmp.eq.s32.totalorder %s26, 1
    %p227 = por %p225, %p226
    %p229 = scmp.ne.s32.totalorder %s214, %s228
    %p230 = scmp.eq.s32.totalorder %s26, 0
    %p231 = por %p229, %p230
    %s233 = sadd.s32 %s232, 1
    %p236 = scmp.eq.s32.totalorder %s20, 1
    %p237 = scmp.ne.s32.totalorder %s232, %s234
    %p238 = scmp.eq.s32.totalorder %s20, 0
    %p239 = por %p237, %p238
    %p240 = scmp.ne.s32.totalorder %s232, %s234
    %p241 = scmp.eq.s32.totalorder %s25, 1
    %p242 = por %p240, %p241
    %p243 = scmp.ne.s32.totalorder %s234, %s235
    %p244 = scmp.eq.s32.totalorder %s25, 0
    %p245 = por %p243, %p244
    %p246 = scmp.ne.s32.totalorder %s234, %s235
    %p247 = scmp.eq.s32.totalorder %s26, 1
    %p248 = por %p246, %p247
    %p250 = scmp.ne.s32.totalorder %s235, %s249
    %p251 = scmp.eq.s32.totalorder %s26, 0
    %p252 = por %p250, %p251
    %s254 = sadd.s32 %s253, 1
    %p257 = scmp.eq.s32.totalorder %s20, 1
    %p258 = scmp.ne.s32.totalorder %s253, %s255
    %p259 = scmp.eq.s32.totalorder %s20, 0
    %p260 = por %p258, %p259
    %p261 = scmp.ne.s32.totalorder %s253, %s255
    %p262 = scmp.eq.s32.totalorder %s25, 1
    %p263 = por %p261, %p262
    %p264 = scmp.ne.s32.totalorder %s255, %s256
    %p265 = scmp.eq.s32.totalorder %s25, 0
    %p266 = por %p264, %p265
    %p267 = scmp.ne.s32.totalorder %s255, %s256
    %p268 = scmp.eq.s32.totalorder %s26, 1
    %p269 = por %p267, %p268
    %p271 = scmp.ne.s32.totalorder %s256, %s270
    %p272 = scmp.eq.s32.totalorder %s26, 0
    %p273 = por %p271, %p272
    %s275 = sadd.s32 %s274, 1
    %p278 = scmp.eq.s32.totalorder %s20, 1
    %p279 = scmp.ne.s32.totalorder %s274, %s276
    %p280 = scmp.eq.s32.totalorder %s20, 0
    %p281 = por %p279, %p280
    %p282 = scmp.ne.s32.totalorder %s274, %s276
    %p283 = scmp.eq.s32.totalorder %s25, 1
    %p284 = por %p282, %p283
    %p285 = scmp.ne.s32.totalorder %s276, %s277
    %p286 = scmp.eq.s32.totalorder %s25, 0
    %p287 = por %p285, %p286
    %p288 = scmp.ne.s32.totalorder %s276, %s277
    %p289 = scmp.eq.s32.totalorder %s26, 1
    %p290 = por %p288, %p289
    %p292 = scmp.ne.s32.totalorder %s277, %s291
    %p293 = scmp.eq.s32.totalorder %s26, 0
    %p294 = por %p292, %p293
    %s295 = ssub.s32 %s20, %s27
    %p296 = scmp.eq.s32.totalorder %s295, 0
    %s298 = sadd.s32 %s297, 1
    %s299 = scalar_select %p296, %s297, %s298
    %p302 = pneg %p296
    %p303 = scmp.eq.s32.totalorder %s20, 1
    %p304 = por %p302, %p303
    %p305 = scmp.ne.s32.totalorder %s297, %s300
    %p306 = scmp.eq.s32.totalorder %s20, 0
    %p307 = por %p305, %p306
    %p308 = scmp.ne.s32.totalorder %s297, %s300
    %p309 = scmp.eq.s32.totalorder %s25, 1
    %p310 = por %p308, %p309
    %p311 = scmp.ne.s32.totalorder %s300, %s301
    %p312 = scmp.eq.s32.totalorder %s25, 0
    %p313 = por %p311, %p312
    %p314 = scmp.ne.s32.totalorder %s300, %s301
    %p315 = scmp.eq.s32.totalorder %s26, 1
    %p316 = por %p314, %p315
    %p318 = scmp.ne.s32.totalorder %s301, %s317
    %p319 = scmp.eq.s32.totalorder %s26, 0
    %p320 = por %p318, %p319
    %s321 = ssub.s32 %s20, %s27
    %p322 = scmp.eq.s32.totalorder %s321, 0
    %s324 = sadd.s32 %s323, 1
    %s325 = scalar_select %p322, %s323, %s324
    %p328 = pneg %p322
    %p329 = scmp.eq.s32.totalorder %s20, 1
    %p330 = por %p328, %p329
    %p331 = scmp.ne.s32.totalorder %s323, %s326
    %p332 = scmp.eq.s32.totalorder %s20, 0
    %p333 = por %p331, %p332
    %p334 = scmp.ne.s32.totalorder %s323, %s326
    %p335 = scmp.eq.s32.totalorder %s25, 1
    %p336 = por %p334, %p335
    %p337 = scmp.ne.s32.totalorder %s326, %s327
    %p338 = scmp.eq.s32.totalorder %s25, 0
    %p339 = por %p337, %p338
    %p340 = scmp.ne.s32.totalorder %s326, %s327
    %p341 = scmp.eq.s32.totalorder %s26, 1
    %p342 = por %p340, %p341
    %p344 = scmp.ne.s32.totalorder %s327, %s343
    %p345 = scmp.eq.s32.totalorder %s26, 0
    %p346 = por %p344, %p345
    %p347 = scmp.le.s32.totalorder 1, %s20
    %p348 = scmp.lt.s32.totalorder %s20, 3
    %p349 = pnand %p347, %p348
    %p350 = pneg %p349
    // Predicated region
    $region9: #{cross_attn_down_block_forward.1} parent=5 // pred_check
      _
    $region10: #{cross_attn_down_block_forward.1} parent=5 // pred_check_branch
      %352 = sbr.rel (%p349) target = $region12
    $region11: #{cross_attn_down_block_forward.1} parent=5 // pred_region
      %s353 = ssub.s32 %s20, 1
      // Predicated region
      $region13: #{cross_attn_down_block_forward.1} parent=11 // pred_check
        %p354 = pneg %p119
      $region14: #{cross_attn_down_block_forward.1} parent=11 // pred_check_branch
        %356 = sbr.rel (%p354) target = $region16
      $region15: #{cross_attn_down_block_forward.1} parent=11 // pred_region
        _
      $region16: #{cross_attn_down_block_forward.1} parent=11 // pred_fallthru
        _
      // Predicated region
      $region17: #{cross_attn_down_block_forward.1} parent=11 // pred_check
        %p357 = pneg %p140
      $region18: #{cross_attn_down_block_forward.1} parent=11 // pred_check_branch
        %359 = sbr.rel (%p357) target = $region20
      $region19: #{cross_attn_down_block_forward.1} parent=11 // pred_region
        _
      $region20: #{cross_attn_down_block_forward.1} parent=11 // pred_fallthru
        _
      // Predicated region
      $region21: #{cross_attn_down_block_forward.1} parent=11 // pred_check
        %p360 = pneg %p161
      $region22: #{cross_attn_down_block_forward.1} parent=11 // pred_check_branch
        %362 = sbr.rel (%p360) target = $region24
      $region23: #{cross_attn_down_block_forward.1} parent=11 // pred_region
        _
      $region24: #{cross_attn_down_block_forward.1} parent=11 // pred_fallthru
        _
      // Predicated region
      $region25: #{cross_attn_down_block_forward.1} parent=11 // pred_check
        %p363 = pneg %p182
      $region26: #{cross_attn_down_block_forward.1} parent=11 // pred_check_branch
        %365 = sbr.rel (%p363) target = $region28
      $region27: #{cross_attn_down_block_forward.1} parent=11 // pred_region
        _
      $region28: #{cross_attn_down_block_forward.1} parent=11 // pred_fallthru
        _
      // Predicated region
      $region29: #{cross_attn_down_block_forward.1} parent=11 // pred_check
        %p366 = pneg %p203
      $region30: #{cross_attn_down_block_forward.1} parent=11 // pred_check_branch
        %368 = sbr.rel (%p366) target = $region32
      $region31: #{cross_attn_down_block_forward.1} parent=11 // pred_region
        _
      $region32: #{cross_attn_down_block_forward.1} parent=11 // pred_fallthru
        _
      // Predicated region
      $region33: #{cross_attn_down_block_forward.1} parent=11 // pred_check
        %p369 = pneg %p224
      $region34: #{cross_attn_down_block_forward.1} parent=11 // pred_check_branch
        %371 = sbr.rel (%p369) target = $region36
      $region35: #{cross_attn_down_block_forward.1} parent=11 // pred_region
        _
      $region36: #{cross_attn_down_block_forward.1} parent=11 // pred_fallthru
        _
      // Predicated region
      $region37: #{cross_attn_down_block_forward.1} parent=11 // pred_check
        %p372 = pneg %p245
      $region38: #{cross_attn_down_block_forward.1} parent=11 // pred_check_branch
        %374 = sbr.rel (%p372) target = $region40
      $region39: #{cross_attn_down_block_forward.1} parent=11 // pred_region
        _
      $region40: #{cross_attn_down_block_forward.1} parent=11 // pred_fallthru
        _
      // Predicated region
      $region41: #{cross_attn_down_block_forward.1} parent=11 // pred_check
        %p375 = pneg %p266
      $region42: #{cross_attn_down_block_forward.1} parent=11 // pred_check_branch
        %377 = sbr.rel (%p375) target = $region44
      $region43: #{cross_attn_down_block_forward.1} parent=11 // pred_region
        _
      $region44: #{cross_attn_down_block_forward.1} parent=11 // pred_fallthru
        _
      // Predicated region
      $region45: #{cross_attn_down_block_forward.1} parent=11 // pred_check
        %p378 = pneg %p287
      $region46: #{cross_attn_down_block_forward.1} parent=11 // pred_check_branch
        %380 = sbr.rel (%p378) target = $region48
      $region47: #{cross_attn_down_block_forward.1} parent=11 // pred_region
        _
      $region48: #{cross_attn_down_block_forward.1} parent=11 // pred_fallthru
        _
    $region12: #{cross_attn_down_block_forward.1} parent=5 // pred_fallthru
      _
    %p381 = scmp.lt.s32.totalorder %s20, 2
    // Predicated region
    $region49: #{cross_attn_down_block_forward.1} parent=5 // pred_check
      %p382 = pneg %p381
    $region50: #{cross_attn_down_block_forward.1} parent=5 // pred_check_branch
      %384 = sbr.rel (%p382) target = $region52
    $region51: #{cross_attn_down_block_forward.1} parent=5 // pred_region
      // Predicated region
      $region53: #{cross_attn_down_block_forward.1} parent=51 // pred_check
        %p385 = pneg %p40
      $region54: #{cross_attn_down_block_forward.1} parent=51 // pred_check_branch
        %387 = sbr.rel (%p385) target = $region56
      $region55: #{cross_attn_down_block_forward.1} parent=51 // pred_region
        %p388 = scmp.lt.s32.totalorder %s20, 1
        %s389 = scalar_select %p388, %s20, 1
        %s390 = smul.addr %s389, 8
        %s391 = smul.addr %s390, 8
        %s392 = scalar_lea.vmem %s0, %s391
      $region56: #{cross_attn_down_block_forward.1} parent=51 // pred_fallthru
        _
      // Predicated region
      $region57: #{cross_attn_down_block_forward.1} parent=51 // pred_check
        %p393 = pneg %p66
      $region58: #{cross_attn_down_block_forward.1} parent=51 // pred_check_branch
        %395 = sbr.rel (%p393) target = $region60
      $region59: #{cross_attn_down_block_forward.1} parent=51 // pred_region
        %p396 = scmp.lt.s32.totalorder %s20, 1
        %s397 = scalar_select %p396, %s20, 1
        %s398 = smul.addr %s397, 4
        %s399 = smul.addr %s398, 8
        %s400 = scalar_lea.vmem %s1, %s399
      $region60: #{cross_attn_down_block_forward.1} parent=51 // pred_fallthru
        _
      // Predicated region
      $region61: #{cross_attn_down_block_forward.1} parent=51 // pred_check
        %p401 = pneg %p92
      $region62: #{cross_attn_down_block_forward.1} parent=51 // pred_check_branch
        %403 = sbr.rel (%p401) target = $region64
      $region63: #{cross_attn_down_block_forward.1} parent=51 // pred_region
        %p404 = scmp.lt.s32.totalorder %s20, 1
        %s405 = scalar_select %p404, %s20, 1
        %s406 = smul.addr %s405, 8
        %s407 = scalar_lea.vmem %s2, %s406
      $region64: #{cross_attn_down_block_forward.1} parent=51 // pred_fallthru
        _
    $region52: #{cross_attn_down_block_forward.1} parent=5 // pred_fallthru
      _
    %p408 = scmp.le.s32.totalorder 1, %s20
    %p409 = scmp.lt.s32.totalorder %s20, 3
    %p410 = pnand %p408, %p409
    %p411 = pneg %p410
    // Predicated region
    $region65: #{cross_attn_down_block_forward.1} parent=5 // pred_check
      _
    $region66: #{cross_attn_down_block_forward.1} parent=5 // pred_check_branch
      %413 = sbr.rel (%p410) target = $region68
    $region67: #{cross_attn_down_block_forward.1} parent=5 // pred_region
      %s414 = ssub.s32 %s20, 1
      %p415 = scmp.lt.s32.totalorder %s25, 1
      %s416 = scalar_select %p415, %s25, 1
      %s417 = smul.addr %s416, 8
      %s418 = smul.addr %s417, 8
      %s419 = scalar_lea.vmem %s0, %s418
      %p420 = pneg %p46
      %p421 = pneg %p43
      %p422 = scmp.lt.s32.totalorder %s25, 1
      %s423 = scalar_select %p422, %s25, 1
      %s424 = smul.addr %s423, 4
      %s425 = smul.addr %s424, 8
      %s426 = scalar_lea.vmem %s1, %s425
      %p427 = pneg %p72
      %p428 = pneg %p69
      %p429 = scmp.lt.s32.totalorder %s25, 1
      %s430 = scalar_select %p429, %s25, 1
      %s431 = smul.addr %s430, 8
      %s432 = scalar_lea.vmem %s2, %s431
      %p433 = pneg %p98
      %p434 = pneg %p95
      %p435 = pneg %p119
      %p436 = pneg %p116
      %p437 = pneg %p140
      %p438 = pneg %p137
      %p439 = pneg %p161
      %p440 = pneg %p158
      %p441 = pneg %p182
      %p442 = pneg %p179
      %p443 = pneg %p203
      %p444 = pneg %p200
      %p445 = pneg %p224
      %p446 = pneg %p221
      %p447 = pneg %p245
      %p448 = pneg %p242
      %p449 = pneg %p266
      %p450 = pneg %p263
      %p451 = pneg %p287
      %p452 = pneg %p284
      %p453 = pneg %p313
      %p454 = pneg %p310
      %p455 = scmp.lt.s32.totalorder %s25, 1
      %s456 = scalar_select %p455, %s25, 1
      %s457 = smul.addr %s456, 8
      %s458 = smul.addr %s457, 8
      %s459 = scalar_lea.vmem %s12, %s458
      %p460 = pneg %p339
      %p461 = pneg %p336
      %p462 = scmp.lt.s32.totalorder %s25, 1
      %s463 = scalar_select %p462, %s25, 1
      %s464 = smul.addr %s463, 4
      %s465 = smul.addr %s464, 8
      %s466 = scalar_lea.vmem %s13, %s465
      %p467 = scmp.lt.s32.totalorder %s25, 1
      %s468 = scalar_select %p467, %s25, 1
      %s469 = smul.addr %s468, 8
      %s470 = smul.addr %s469, 8
      %s471 = scalar_lea.vmem %s0, %s470
      %p472 = scmp.lt.s32.totalorder %s25, 1
      %s473 = scalar_select %p472, %s25, 1
      %s474 = smul.addr %s473, 4
      %s475 = smul.addr %s474, 8
      %s476 = scalar_lea.vmem %s1, %s475
      %p477 = scmp.lt.s32.totalorder %s25, 1
      %s478 = scalar_select %p477, %s25, 1
      %s479 = smul.addr %s478, 8
      %s480 = scalar_lea.vmem %s2, %s479
      %p481 = scmp.lt.s32.totalorder %s25, 1
      %s482 = scalar_select %p481, %s25, 1
      %s483 = smul.addr %s482, 8
      %s484 = smul.addr %s483, 8
      %s485 = scalar_lea.vmem %s12, %s484
      %p486 = scmp.lt.s32.totalorder %s25, 1
      %s487 = scalar_select %p486, %s25, 1
      %s488 = smul.addr %s487, 4
      %s489 = smul.addr %s488, 8
      %s490 = scalar_lea.vmem %s13, %s489
      %v492 = vld [vmem:[%s3] sm:$0xff]
      %v493 = vld [vmem:[%s3 + $0x8] sm:$0xff]
      %v494 = vld [vmem:[%s3 + $0x10] sm:$0xff]
      %v495 = vld [vmem:[%s3 + $0x18] sm:$0xff]
      %v496 = vld [vmem:[%s471] sm:$0xff]
      %v497 = vld [vmem:[%s471 + $0x8] sm:$0xff]
      %v498 = vld [vmem:[%s471 + $0x10] sm:$0xff]
      %v499 = vld [vmem:[%s471 + $0x18] sm:$0xff]
      %v500 = vld [vmem:[%s471 + $0x20] sm:$0xff]
      %v501 = vld [vmem:[%s471 + $0x28] sm:$0xff]
      %v502 = vld [vmem:[%s471 + $0x30] sm:$0xff]
      %v503 = vld [vmem:[%s471 + $0x38] sm:$0xff]
      %v504 = vadd.f32 %v496, %v497
      %505 = vadd.xlane.f32.xlu0 %v504
      %v506 = vpop.xlane.xlu0 %505
      %v507 = vadd.f32 %v498, %v499
      %508 = vadd.xlane.f32.xlu0 %v507
      %v509 = vpop.xlane.xlu0 %508
      %v510 = vadd.f32 %v500, %v501
      %511 = vadd.xlane.f32.xlu0 %v510
      %v512 = vpop.xlane.xlu0 %511
      %v513 = vadd.f32 %v502, %v503
      %514 = vadd.xlane.f32.xlu0 %v513
      %v515 = vpop.xlane.xlu0 %514
      %vm516 = vcmask 261120
      %v518 = vsel %vm516, %v492, 0
      %v521 = vsel %vm516, %v493, 0
      %v524 = vsel %vm516, %v494, 0
      %v527 = vsel %vm516, %v495, 0
      %529 = vmatpush.msra.mxu0 0.0
      %530 = vmatpush.msra.mxu0 0.0
      %531 = vmatpush.msra.mxu0 0.0
      %532 = vmatpush.msra.mxu0 0.0
      %533 = vmatpush.msra.mxu0 0.0
      %534 = vmatpush.msra.mxu0 0.0
      %535 = vmatpush.msra.mxu0 0.0
      %536 = vmatpush.msra.mxu0 0.0
      %537 = vmatpush.msra.mxu0 0.0
      %538 = vmatpush.msra.mxu0 0.0
      %539 = vmatpush.msra.mxu0 0.0
      %540 = vmatpush.msra.mxu0 0.0
      %541 = vmatpush.msra.mxu0 %v515
      %542 = vmatpush.msra.mxu0 %v512
      %543 = vmatpush.msra.mxu0 %v509
      %544 = vmatpush.msra.mxu0 %v506
      %545 = vmatmul.f32.gmra.mxu0 %v518
      %v546 = vpop.f32.mrf.mxu0
      %v547 = vadd.f32 0.0, %v546
      %548 = vmatmul.f32.gmra.mxu0 %v521
      %v549 = vpop.f32.mrf.mxu0
      %v550 = vadd.f32 0.0, %v549
      %551 = vmatmul.f32.gmra.mxu0 %v524
      %v552 = vpop.f32.mrf.mxu0
      %v553 = vadd.f32 0.0, %v552
      %554 = vmatmul.f32.gmra.mxu0 %v527
      %v555 = vpop.f32.mrf.mxu0
      %v556 = vadd.f32 0.0, %v555
      %557 = vdwg.mxu0
      %v558 = vmul.f32 %v547, 0.0009765625
      %v559 = vmul.f32 %v550, 0.0009765625
      %v560 = vmul.f32 %v553, 0.0009765625
      %v561 = vmul.f32 %v556, 0.0009765625
      %563 = vset.pattern.permute.xlu0 0
      %564 = vperm.xlu0 %563, %v558
      %v565 = vpop.permute.xlu0 %564
      %568 = vset.pattern.permute.xlu0 0
      %569 = vperm.xlu0 %568, %v559
      %v570 = vpop.permute.xlu0 %569
      %573 = vset.pattern.permute.xlu0 0
      %574 = vperm.xlu0 %573, %v560
      %v575 = vpop.permute.xlu0 %574
      %578 = vset.pattern.permute.xlu0 0
      %579 = vperm.xlu0 %578, %v561
      %v580 = vpop.permute.xlu0 %579
      %v582 = vsub.f32 %v496, %v565
      %v583 = vsub.f32 %v497, %v565
      %v584 = vsub.f32 %v498, %v570
      %v585 = vsub.f32 %v499, %v570
      %v586 = vsub.f32 %v500, %v575
      %v587 = vsub.f32 %v501, %v575
      %v588 = vsub.f32 %v502, %v580
      %v589 = vsub.f32 %v503, %v580
      %v590 = vmul.f32 %v582, %v582
      %v591 = vmul.f32 %v583, %v583
      %v592 = vmul.f32 %v584, %v584
      %v593 = vmul.f32 %v585, %v585
      %v594 = vmul.f32 %v586, %v586
      %v595 = vmul.f32 %v587, %v587
      %v596 = vmul.f32 %v588, %v588
      %v597 = vmul.f32 %v589, %v589
      %v598 = vadd.f32 %v590, %v591
      %599 = vadd.xlane.f32.xlu0 %v598
      %v600 = vpop.xlane.xlu0 %599
      %v601 = vadd.f32 %v592, %v593
      %602 = vadd.xlane.f32.xlu0 %v601
      %v603 = vpop.xlane.xlu0 %602
      %v604 = vadd.f32 %v594, %v595
      %605 = vadd.xlane.f32.xlu0 %v604
      %v606 = vpop.xlane.xlu0 %605
      %v607 = vadd.f32 %v596, %v597
      %608 = vadd.xlane.f32.xlu0 %v607
      %v609 = vpop.xlane.xlu0 %608
      %610 = vmatpush.msra.mxu0 0.0
      %611 = vmatpush.msra.mxu0 0.0
      %612 = vmatpush.msra.mxu0 0.0
      %613 = vmatpush.msra.mxu0 0.0
      %614 = vmatpush.msra.mxu0 0.0
      %615 = vmatpush.msra.mxu0 0.0
      %616 = vmatpush.msra.mxu0 0.0
      %617 = vmatpush.msra.mxu0 0.0
      %618 = vmatpush.msra.mxu0 0.0
      %619 = vmatpush.msra.mxu0 0.0
      %620 = vmatpush.msra.mxu0 0.0
      %621 = vmatpush.msra.mxu0 0.0
      %622 = vmatpush.msra.mxu0 %v609
      %623 = vmatpush.msra.mxu0 %v606
      %624 = vmatpush.msra.mxu0 %v603
      %625 = vmatpush.msra.mxu0 %v600
      %626 = vmatmul.f32.gmra.mxu0 %v518
      %v627 = vpop.f32.mrf.mxu0
      %v628 = vadd.f32 0.0, %v627
      %629 = vmatmul.f32.gmra.mxu0 %v521
      %v630 = vpop.f32.mrf.mxu0
      %v631 = vadd.f32 0.0, %v630
      %632 = vmatmul.f32.gmra.mxu0 %v524
      %v633 = vpop.f32.mrf.mxu0
      %v634 = vadd.f32 0.0, %v633
      %635 = vmatmul.f32.gmra.mxu0 %v527
      %v636 = vpop.f32.mrf.mxu0
      %v637 = vadd.f32 0.0, %v636
      %638 = vdwg.mxu0
      %v639 = vmul.f32 %v628, 0.0009765625
      %v640 = vmul.f32 %v631, 0.0009765625
      %v641 = vmul.f32 %v634, 0.0009765625
      %v642 = vmul.f32 %v637, 0.0009765625
      %v643 = vadd.f32 %v639, 1e-06
      %v644 = vadd.f32 %v640, 1e-06
      %v645 = vadd.f32 %v641, 1e-06
      %v646 = vadd.f32 %v642, 1e-06
      %v647 = vrsqrt.pop %v643
      %v648 = vmul.f32 %v647, %v643
      %v649 = vmul.f32 %v648, %v647
      %v650 = vmul.f32 0.5, %v649
      %v651 = vsub.f32 1.5, %v650
      %v652 = vmul.f32 %v647, %v651
      %vm653 = vweird.f32 %v643
      %vm654 = vweird.f32 %v647
      %vm655 = vmor %vm653, %vm654
      %v656 = vsel %vm655, %v647, %v652
      %v657 = vrsqrt.pop %v644
      %v658 = vmul.f32 %v657, %v644
      %v659 = vmul.f32 %v658, %v657
      %v660 = vmul.f32 0.5, %v659
      %v661 = vsub.f32 1.5, %v660
      %v662 = vmul.f32 %v657, %v661
      %vm663 = vweird.f32 %v644
      %vm664 = vweird.f32 %v657
      %vm665 = vmor %vm663, %vm664
      %v666 = vsel %vm665, %v657, %v662
      %v667 = vrsqrt.pop %v645
      %v668 = vmul.f32 %v667, %v645
      %v669 = vmul.f32 %v668, %v667
      %v670 = vmul.f32 0.5, %v669
      %v671 = vsub.f32 1.5, %v670
      %v672 = vmul.f32 %v667, %v671
      %vm673 = vweird.f32 %v645
      %vm674 = vweird.f32 %v667
      %vm675 = vmor %vm673, %vm674
      %v676 = vsel %vm675, %v667, %v672
      %v677 = vrsqrt.pop %v646
      %v678 = vmul.f32 %v677, %v646
      %v679 = vmul.f32 %v678, %v677
      %v680 = vmul.f32 0.5, %v679
      %v681 = vsub.f32 1.5, %v680
      %v682 = vmul.f32 %v677, %v681
      %vm683 = vweird.f32 %v646
      %vm684 = vweird.f32 %v677
      %vm685 = vmor %vm683, %vm684
      %v686 = vsel %vm685, %v677, %v682
      %688 = vset.pattern.permute.xlu0 0
      %689 = vperm.xlu0 %688, %v656
      %v690 = vpop.permute.xlu0 %689
      %693 = vset.pattern.permute.xlu0 0
      %694 = vperm.xlu0 %693, %v666
      %v695 = vpop.permute.xlu0 %694
      %698 = vset.pattern.permute.xlu0 0
      %699 = vperm.xlu0 %698, %v676
      %v700 = vpop.permute.xlu0 %699
      %703 = vset.pattern.permute.xlu0 0
      %704 = vperm.xlu0 %703, %v686
      %v705 = vpop.permute.xlu0 %704
      %v707 = vmul.f32 %v582, %v690
      %v708 = vmul.f32 %v583, %v690
      %v709 = vmul.f32 %v584, %v695
      %v710 = vmul.f32 %v585, %v695
      %v711 = vmul.f32 %v586, %v700
      %v712 = vmul.f32 %v587, %v700
      %v713 = vmul.f32 %v588, %v705
      %v714 = vmul.f32 %v589, %v705
      %v715 = vld [vmem:[%s6] sm:$0xff]
      %v716 = vld [vmem:[%s6 + $0x8] sm:$0xff]
      %v717 = vld [vmem:[%s6 + $0x10] sm:$0xff]
      %v718 = vld [vmem:[%s6 + $0x18] sm:$0xff]
      %720 = vset.pattern.permute.xlu0 0
      %721 = vperm.xlu0 %720, %v715
      %v722 = vpop.permute.xlu0 %721
      %725 = vset.pattern.permute.xlu0 0
      %726 = vperm.xlu0 %725, %v716
      %v727 = vpop.permute.xlu0 %726
      %730 = vset.pattern.permute.xlu0 0
      %731 = vperm.xlu0 %730, %v717
      %v732 = vpop.permute.xlu0 %731
      %735 = vset.pattern.permute.xlu0 0
      %736 = vperm.xlu0 %735, %v718
      %v737 = vpop.permute.xlu0 %736
      %v739 = vmul.f32 %v707, %v722
      %v740 = vmul.f32 %v708, %v722
      %v741 = vmul.f32 %v709, %v727
      %v742 = vmul.f32 %v710, %v727
      %v743 = vmul.f32 %v711, %v732
      %v744 = vmul.f32 %v712, %v732
      %v745 = vmul.f32 %v713, %v737
      %v746 = vmul.f32 %v714, %v737
      %747 = vset.pattern.permute.xlu0 1
      %748 = vperm.xlu0 %747, %v715
      %v749 = vpop.permute.xlu0 %748
      %751 = vset.pattern.permute.xlu0 1
      %752 = vperm.xlu0 %751, %v716
      %v753 = vpop.permute.xlu0 %752
      %755 = vset.pattern.permute.xlu0 1
      %756 = vperm.xlu0 %755, %v717
      %v757 = vpop.permute.xlu0 %756
      %759 = vset.pattern.permute.xlu0 1
      %760 = vperm.xlu0 %759, %v718
      %v761 = vpop.permute.xlu0 %760
      %v763 = vadd.f32 %v739, %v749
      %v764 = vadd.f32 %v740, %v749
      %v765 = vadd.f32 %v741, %v753
      %v766 = vadd.f32 %v742, %v753
      %v767 = vadd.f32 %v743, %v757
      %v768 = vadd.f32 %v744, %v757
      %v769 = vadd.f32 %v745, %v761
      %v770 = vadd.f32 %v746, %v761
      %v771 = vsub.f32 0.0, %v763
      %v772 = vsub.f32 0.0, %v764
      %v773 = vsub.f32 0.0, %v765
      %v774 = vsub.f32 0.0, %v766
      %v775 = vsub.f32 0.0, %v767
      %v776 = vsub.f32 0.0, %v768
      %v777 = vsub.f32 0.0, %v769
      %v778 = vsub.f32 0.0, %v770
      %v779 = vmul.f32 %v771, 1.442695
      %v780 = vpow.pop %v779
      %v781 = vmul.f32 %v772, 1.442695
      %v782 = vpow.pop %v781
      %v783 = vmul.f32 %v773, 1.442695
      %v784 = vpow.pop %v783
      %v785 = vmul.f32 %v774, 1.442695
      %v786 = vpow.pop %v785
      %v787 = vmul.f32 %v775, 1.442695
      %v788 = vpow.pop %v787
      %v789 = vmul.f32 %v776, 1.442695
      %v790 = vpow.pop %v789
      %v791 = vmul.f32 %v777, 1.442695
      %v792 = vpow.pop %v791
      %v793 = vmul.f32 %v778, 1.442695
      %v794 = vpow.pop %v793
      %v795 = vadd.f32 %v780, 1.0
      %v796 = vadd.f32 %v782, 1.0
      %v797 = vadd.f32 %v784, 1.0
      %v798 = vadd.f32 %v786, 1.0
      %v799 = vadd.f32 %v788, 1.0
      %v800 = vadd.f32 %v790, 1.0
      %v801 = vadd.f32 %v792, 1.0
      %v802 = vadd.f32 %v794, 1.0
      %v803 = vrcp.pop %v795
      %v804 = vmul.f32 %v795, %v803
      %v805 = vsub.f32 1.0, %v804
      %v806 = vmul.f32 %v803, %v805
      %v807 = vadd.f32 %v803, %v806
      %vm808 = vweird.f32 %v795
      %vm809 = vweird.f32 %v803
      %vm810 = vmor %vm808, %vm809
      %v811 = vsel %vm810, %v803, %v807
      %v812 = vand.u32 2147483647, %v795
      %vm813 = vcmp.eq.f32.partialorder %v812, 8.507059e+37
      %v814 = vand.u32 %v795, 2147483648
      %v815 = vor.u32 1.1754944e-38, %v814
      %v816 = vsel %vm813, %v815, %v811
      %v817 = vmul.f32 1.0, %v816
      %v818 = vrcp.pop %v796
      %v819 = vmul.f32 %v796, %v818
      %v820 = vsub.f32 1.0, %v819
      %v821 = vmul.f32 %v818, %v820
      %v822 = vadd.f32 %v818, %v821
      %vm823 = vweird.f32 %v796
      %vm824 = vweird.f32 %v818
      %vm825 = vmor %vm823, %vm824
      %v826 = vsel %vm825, %v818, %v822
      %v827 = vand.u32 2147483647, %v796
      %vm828 = vcmp.eq.f32.partialorder %v827, 8.507059e+37
      %v829 = vand.u32 %v796, 2147483648
      %v830 = vor.u32 1.1754944e-38, %v829
      %v831 = vsel %vm828, %v830, %v826
      %v832 = vmul.f32 1.0, %v831
      %v833 = vrcp.pop %v797
      %v834 = vmul.f32 %v797, %v833
      %v835 = vsub.f32 1.0, %v834
      %v836 = vmul.f32 %v833, %v835
      %v837 = vadd.f32 %v833, %v836
      %vm838 = vweird.f32 %v797
      %vm839 = vweird.f32 %v833
      %vm840 = vmor %vm838, %vm839
      %v841 = vsel %vm840, %v833, %v837
      %v842 = vand.u32 2147483647, %v797
      %vm843 = vcmp.eq.f32.partialorder %v842, 8.507059e+37
      %v844 = vand.u32 %v797, 2147483648
      %v845 = vor.u32 1.1754944e-38, %v844
      %v846 = vsel %vm843, %v845, %v841
      %v847 = vmul.f32 1.0, %v846
      %v848 = vrcp.pop %v798
      %v849 = vmul.f32 %v798, %v848
      %v850 = vsub.f32 1.0, %v849
      %v851 = vmul.f32 %v848, %v850
      %v852 = vadd.f32 %v848, %v851
      %vm853 = vweird.f32 %v798
      %vm854 = vweird.f32 %v848
      %vm855 = vmor %vm853, %vm854
      %v856 = vsel %vm855, %v848, %v852
      %v857 = vand.u32 2147483647, %v798
      %vm858 = vcmp.eq.f32.partialorder %v857, 8.507059e+37
      %v859 = vand.u32 %v798, 2147483648
      %v860 = vor.u32 1.1754944e-38, %v859
      %v861 = vsel %vm858, %v860, %v856
      %v862 = vmul.f32 1.0, %v861
      %v863 = vrcp.pop %v799
      %v864 = vmul.f32 %v799, %v863
      %v865 = vsub.f32 1.0, %v864
      %v866 = vmul.f32 %v863, %v865
      %v867 = vadd.f32 %v863, %v866
      %vm868 = vweird.f32 %v799
      %vm869 = vweird.f32 %v863
      %vm870 = vmor %vm868, %vm869
      %v871 = vsel %vm870, %v863, %v867
      %v872 = vand.u32 2147483647, %v799
      %vm873 = vcmp.eq.f32.partialorder %v872, 8.507059e+37
      %v874 = vand.u32 %v799, 2147483648
      %v875 = vor.u32 1.1754944e-38, %v874
      %v876 = vsel %vm873, %v875, %v871
      %v877 = vmul.f32 1.0, %v876
      %v878 = vrcp.pop %v800
      %v879 = vmul.f32 %v800, %v878
      %v880 = vsub.f32 1.0, %v879
      %v881 = vmul.f32 %v878, %v880
      %v882 = vadd.f32 %v878, %v881
      %vm883 = vweird.f32 %v800
      %vm884 = vweird.f32 %v878
      %vm885 = vmor %vm883, %vm884
      %v886 = vsel %vm885, %v878, %v882
      %v887 = vand.u32 2147483647, %v800
      %vm888 = vcmp.eq.f32.partialorder %v887, 8.507059e+37
      %v889 = vand.u32 %v800, 2147483648
      %v890 = vor.u32 1.1754944e-38, %v889
      %v891 = vsel %vm888, %v890, %v886
      %v892 = vmul.f32 1.0, %v891
      %v893 = vrcp.pop %v801
      %v894 = vmul.f32 %v801, %v893
      %v895 = vsub.f32 1.0, %v894
      %v896 = vmul.f32 %v893, %v895
      %v897 = vadd.f32 %v893, %v896
      %vm898 = vweird.f32 %v801
      %vm899 = vweird.f32 %v893
      %vm900 = vmor %vm898, %vm899
      %v901 = vsel %vm900, %v893, %v897
      %v902 = vand.u32 2147483647, %v801
      %vm903 = vcmp.eq.f32.partialorder %v902, 8.507059e+37
      %v904 = vand.u32 %v801, 2147483648
      %v905 = vor.u32 1.1754944e-38, %v904
      %v906 = vsel %vm903, %v905, %v901
      %v907 = vmul.f32 1.0, %v906
      %v908 = vrcp.pop %v802
      %v909 = vmul.f32 %v802, %v908
      %v910 = vsub.f32 1.0, %v909
      %v911 = vmul.f32 %v908, %v910
      %v912 = vadd.f32 %v908, %v911
      %vm913 = vweird.f32 %v802
      %vm914 = vweird.f32 %v908
      %vm915 = vmor %vm913, %vm914
      %v916 = vsel %vm915, %v908, %v912
      %v917 = vand.u32 2147483647, %v802
      %vm918 = vcmp.eq.f32.partialorder %v917, 8.507059e+37
      %v919 = vand.u32 %v802, 2147483648
      %v920 = vor.u32 1.1754944e-38, %v919
      %v921 = vsel %vm918, %v920, %v916
      %v922 = vmul.f32 1.0, %v921
      %v923 = vmul.f32 %v763, %v817
      %v924 = vmul.f32 %v764, %v832
      %v925 = vmul.f32 %v765, %v847
      %v926 = vmul.f32 %v766, %v862
      %v927 = vmul.f32 %v767, %v877
      %v928 = vmul.f32 %v768, %v892
      %v929 = vmul.f32 %v769, %v907
      %v930 = vmul.f32 %v770, %v922
      %v931 = vld [vmem:[%s7] sm:$0xff]
      %v932 = vld [vmem:[%s7 + $0x8] sm:$0xf]
      %v933 = vld [vmem:[%s7 + $0x1c] sm:$0xff]
      %v934 = vld [vmem:[%s7 + $0x24] sm:$0xf]
      %v935 = vld [vmem:[%s7 + $0x38] sm:$0xff]
      %v936 = vld [vmem:[%s7 + $0x40] sm:$0xf]
      %v937 = vld [vmem:[%s7 + $0x54] sm:$0xff]
      %v938 = vld [vmem:[%s7 + $0x5c] sm:$0xf]
      %939 = vrot.lane.b32.xlu0 %v923, 17
      %v940 = vpop.permute.xlu0 %939
      %941 = vrot.lane.b32.xlu0 %v925, 17
      %v942 = vpop.permute.xlu0 %941
      %943 = vrot.lane.b32.xlu0 %v927, 17
      %v944 = vpop.permute.xlu0 %943
      %945 = vrot.lane.b32.xlu0 %v929, 17
      %v946 = vpop.permute.xlu0 %945
      %947 = vrot.lane.b32.xlu0 %v924, 17
      %v948 = vpop.permute.xlu0 %947
      %949 = vrot.lane.b32.xlu0 %v926, 17
      %v950 = vpop.permute.xlu0 %949
      %951 = vrot.lane.b32.xlu0 %v928, 17
      %v952 = vpop.permute.xlu0 %951
      %953 = vrot.lane.b32.xlu0 %v930, 17
      %v954 = vpop.permute.xlu0 %953
      %v955 = vlaneseq
      %v956 = vand.u32 %v955, 127
      %vm957 = vcmp.lt.s32.totalorder %v956, 17
      %v958 = vsel %vm957, %v940, %v948
      %v959 = vsel %vm957, %v942, %v950
      %v960 = vsel %vm957, %v944, %v952
      %v961 = vsel %vm957, %v946, %v954
      %v962 = vsel %vm957, %v948, %v940
      %v963 = vsel %vm957, %v950, %v942
      %v964 = vsel %vm957, %v952, %v944
      %v965 = vsel %vm957, %v954, %v946
      %v966 = vld [vmem:[%s4] sm:$0x3]
      %v968 = vperm.slane %v966, 0
      %v969 = vperm.slane %v966, 1
      %v972 = vmul.f32 %v962, %v968
      %v973 = vmul.f32 %v958, %v969
      %v974 = vmul.f32 %v963, %v968
      %v975 = vmul.f32 %v959, %v969
      %v976 = vmul.f32 %v964, %v968
      %v977 = vmul.f32 %v960, %v969
      %v978 = vmul.f32 %v965, %v968
      %v979 = vmul.f32 %v961, %v969
      %v980 = vpack.c.bf16 %v973, %v972
      %v981 = vpack.c.bf16 %v975, %v974
      %v982 = vpack.c.bf16 %v977, %v976
      %v983 = vpack.c.bf16 %v979, %v978
      %984 = vrot.lane.b32.xlu0 %v923, 16
      %v985 = vpop.permute.xlu0 %984
      %986 = vrot.lane.b32.xlu0 %v925, 16
      %v987 = vpop.permute.xlu0 %986
      %988 = vrot.lane.b32.xlu0 %v927, 16
      %v989 = vpop.permute.xlu0 %988
      %990 = vrot.lane.b32.xlu0 %v929, 16
      %v991 = vpop.permute.xlu0 %990
      %992 = vrot.lane.b32.xlu0 %v924, 16
      %v993 = vpop.permute.xlu0 %992
      %994 = vrot.lane.b32.xlu0 %v926, 16
      %v995 = vpop.permute.xlu0 %994
      %996 = vrot.lane.b32.xlu0 %v928, 16
      %v997 = vpop.permute.xlu0 %996
      %998 = vrot.lane.b32.xlu0 %v930, 16
      %v999 = vpop.permute.xlu0 %998
      %vm1000 = vcmp.lt.s32.totalorder %v956, 16
      %v1001 = vsel %vm1000, %v985, %v993
      %v1002 = vsel %vm1000, %v987, %v995
      %v1003 = vsel %vm1000, %v989, %v997
      %v1004 = vsel %vm1000, %v991, %v999
      %v1005 = vsel %vm1000, %v993, %v985
      %v1006 = vsel %vm1000, %v995, %v987
      %v1007 = vsel %vm1000, %v997, %v989
      %v1008 = vsel %vm1000, %v999, %v991
      %s1009 = scalar_lea.vmem %s4, 2
      %v1010 = vld [vmem:[%s1009] sm:$0x3]
      %v1012 = vperm.slane %v1010, 0
      %v1013 = vperm.slane %v1010, 1
      %v1016 = vmul.f32 %v1005, %v1012
      %v1017 = vmul.f32 %v1001, %v1013
      %v1018 = vmul.f32 %v1006, %v1012
      %v1019 = vmul.f32 %v1002, %v1013
      %v1020 = vmul.f32 %v1007, %v1012
      %v1021 = vmul.f32 %v1003, %v1013
      %v1022 = vmul.f32 %v1008, %v1012
      %v1023 = vmul.f32 %v1004, %v1013
      %v1024 = vpack.c.bf16 %v1017, %v1016
      %v1025 = vpack.c.bf16 %v1019, %v1018
      %v1026 = vpack.c.bf16 %v1021, %v1020
      %v1027 = vpack.c.bf16 %v1023, %v1022
      %1028 = vrot.lane.b32.xlu0 %v923, 15
      %v1029 = vpop.permute.xlu0 %1028
      %1030 = vrot.lane.b32.xlu0 %v925, 15
      %v1031 = vpop.permute.xlu0 %1030
      %1032 = vrot.lane.b32.xlu0 %v927, 15
      %v1033 = vpop.permute.xlu0 %1032
      %1034 = vrot.lane.b32.xlu0 %v929, 15
      %v1035 = vpop.permute.xlu0 %1034
      %1036 = vrot.lane.b32.xlu0 %v924, 15
      %v1037 = vpop.permute.xlu0 %1036
      %1038 = vrot.lane.b32.xlu0 %v926, 15
      %v1039 = vpop.permute.xlu0 %1038
      %1040 = vrot.lane.b32.xlu0 %v928, 15
      %v1041 = vpop.permute.xlu0 %1040
      %1042 = vrot.lane.b32.xlu0 %v930, 15
      %v1043 = vpop.permute.xlu0 %1042
      %vm1044 = vcmp.lt.s32.totalorder %v956, 15
      %v1045 = vsel %vm1044, %v1029, %v1037
      %v1046 = vsel %vm1044, %v1031, %v1039
      %v1047 = vsel %vm1044, %v1033, %v1041
      %v1048 = vsel %vm1044, %v1035, %v1043
      %v1049 = vsel %vm1044, %v1037, %v1029
      %v1050 = vsel %vm1044, %v1039, %v1031
      %v1051 = vsel %vm1044, %v1041, %v1033
      %v1052 = vsel %vm1044, %v1043, %v1035
      %s1053 = scalar_lea.vmem %s4, 4
      %v1054 = vld [vmem:[%s1053] sm:$0x3]
      %v1056 = vperm.slane %v1054, 0
      %v1057 = vperm.slane %v1054, 1
      %v1060 = vmul.f32 %v1049, %v1056
      %v1061 = vmul.f32 %v1045, %v1057
      %v1062 = vmul.f32 %v1050, %v1056
      %v1063 = vmul.f32 %v1046, %v1057
      %v1064 = vmul.f32 %v1051, %v1056
      %v1065 = vmul.f32 %v1047, %v1057
      %v1066 = vmul.f32 %v1052, %v1056
      %v1067 = vmul.f32 %v1048, %v1057
      %v1068 = vpack.c.bf16 %v1061, %v1060
      %v1069 = vpack.c.bf16 %v1063, %v1062
      %v1070 = vpack.c.bf16 %v1065, %v1064
      %v1071 = vpack.c.bf16 %v1067, %v1066
      %1072 = vrot.lane.b32.xlu0 %v923, 1
      %v1073 = vpop.permute.xlu0 %1072
      %1074 = vrot.lane.b32.xlu0 %v925, 1
      %v1075 = vpop.permute.xlu0 %1074
      %1076 = vrot.lane.b32.xlu0 %v927, 1
      %v1077 = vpop.permute.xlu0 %1076
      %1078 = vrot.lane.b32.xlu0 %v929, 1
      %v1079 = vpop.permute.xlu0 %1078
      %1080 = vrot.lane.b32.xlu0 %v924, 1
      %v1081 = vpop.permute.xlu0 %1080
      %1082 = vrot.lane.b32.xlu0 %v926, 1
      %v1083 = vpop.permute.xlu0 %1082
      %1084 = vrot.lane.b32.xlu0 %v928, 1
      %v1085 = vpop.permute.xlu0 %1084
      %1086 = vrot.lane.b32.xlu0 %v930, 1
      %v1087 = vpop.permute.xlu0 %1086
      %vm1088 = vcmp.lt.s32.totalorder %v956, 1
      %v1089 = vsel %vm1088, %v1073, %v1081
      %v1090 = vsel %vm1088, %v1075, %v1083
      %v1091 = vsel %vm1088, %v1077, %v1085
      %v1092 = vsel %vm1088, %v1079, %v1087
      %v1093 = vsel %vm1088, %v1081, %v1073
      %v1094 = vsel %vm1088, %v1083, %v1075
      %v1095 = vsel %vm1088, %v1085, %v1077
      %v1096 = vsel %vm1088, %v1087, %v1079
      %s1097 = scalar_lea.vmem %s4, 6
      %v1098 = vld [vmem:[%s1097] sm:$0x3]
      %v1100 = vperm.slane %v1098, 0
      %v1101 = vperm.slane %v1098, 1
      %v1104 = vmul.f32 %v1093, %v1100
      %v1105 = vmul.f32 %v1089, %v1101
      %v1106 = vmul.f32 %v1094, %v1100
      %v1107 = vmul.f32 %v1090, %v1101
      %v1108 = vmul.f32 %v1095, %v1100
      %v1109 = vmul.f32 %v1091, %v1101
      %v1110 = vmul.f32 %v1096, %v1100
      %v1111 = vmul.f32 %v1092, %v1101
      %v1112 = vpack.c.bf16 %v1105, %v1104
      %v1113 = vpack.c.bf16 %v1107, %v1106
      %v1114 = vpack.c.bf16 %v1109, %v1108
      %v1115 = vpack.c.bf16 %v1111, %v1110
      %s1116 = scalar_lea.vmem %s4, 8
      %v1117 = vld [vmem:[%s1116] sm:$0x3]
      %v1119 = vperm.slane %v1117, 0
      %v1120 = vperm.slane %v1117, 1
      %v1123 = vmul.f32 %v923, %v1119
      %v1124 = vmul.f32 %v924, %v1120
      %v1125 = vmul.f32 %v925, %v1119
      %v1126 = vmul.f32 %v926, %v1120
      %v1127 = vmul.f32 %v927, %v1119
      %v1128 = vmul.f32 %v928, %v1120
      %v1129 = vmul.f32 %v929, %v1119
      %v1130 = vmul.f32 %v930, %v1120
      %v1131 = vpack.c.bf16 %v1124, %v1123
      %v1132 = vpack.c.bf16 %v1126, %v1125
      %v1133 = vpack.c.bf16 %v1128, %v1127
      %v1134 = vpack.c.bf16 %v1130, %v1129
      %1135 = vrot.lane.b32.xlu0 %v923, 127
      %v1136 = vpop.permute.xlu0 %1135
      %1137 = vrot.lane.b32.xlu0 %v925, 127
      %v1138 = vpop.permute.xlu0 %1137
      %1139 = vrot.lane.b32.xlu0 %v927, 127
      %v1140 = vpop.permute.xlu0 %1139
      %1141 = vrot.lane.b32.xlu0 %v929, 127
      %v1142 = vpop.permute.xlu0 %1141
      %1143 = vrot.lane.b32.xlu0 %v924, 127
      %v1144 = vpop.permute.xlu0 %1143
      %1145 = vrot.lane.b32.xlu0 %v926, 127
      %v1146 = vpop.permute.xlu0 %1145
      %1147 = vrot.lane.b32.xlu0 %v928, 127
      %v1148 = vpop.permute.xlu0 %1147
      %1149 = vrot.lane.b32.xlu0 %v930, 127
      %v1150 = vpop.permute.xlu0 %1149
      %vm1151 = vcmp.lt.s32.totalorder %v956, 127
      %v1152 = vsel %vm1151, %v1136, %v1144
      %v1153 = vsel %vm1151, %v1138, %v1146
      %v1154 = vsel %vm1151, %v1140, %v1148
      %v1155 = vsel %vm1151, %v1142, %v1150
      %v1156 = vsel %vm1151, %v1144, %v1136
      %v1157 = vsel %vm1151, %v1146, %v1138
      %v1158 = vsel %vm1151, %v1148, %v1140
      %v1159 = vsel %vm1151, %v1150, %v1142
      %s1160 = scalar_lea.vmem %s4, 10
      %v1161 = vld [vmem:[%s1160] sm:$0x3]
      %v1163 = vperm.slane %v1161, 0
      %v1164 = vperm.slane %v1161, 1
      %v1167 = vmul.f32 %v1152, %v1163
      %v1168 = vmul.f32 %v1156, %v1164
      %v1169 = vmul.f32 %v1153, %v1163
      %v1170 = vmul.f32 %v1157, %v1164
      %v1171 = vmul.f32 %v1154, %v1163
      %v1172 = vmul.f32 %v1158, %v1164
      %v1173 = vmul.f32 %v1155, %v1163
      %v1174 = vmul.f32 %v1159, %v1164
      %v1175 = vpack.c.bf16 %v1168, %v1167
      %v1176 = vpack.c.bf16 %v1170, %v1169
      %v1177 = vpack.c.bf16 %v1172, %v1171
      %v1178 = vpack.c.bf16 %v1174, %v1173
      %1179 = vrot.lane.b32.xlu0 %v923, 113
      %v1180 = vpop.permute.xlu0 %1179
      %1181 = vrot.lane.b32.xlu0 %v925, 113
      %v1182 = vpop.permute.xlu0 %1181
      %1183 = vrot.lane.b32.xlu0 %v927, 113
      %v1184 = vpop.permute.xlu0 %1183
      %1185 = vrot.lane.b32.xlu0 %v929, 113
      %v1186 = vpop.permute.xlu0 %1185
      %1187 = vrot.lane.b32.xlu0 %v924, 113
      %v1188 = vpop.permute.xlu0 %1187
      %1189 = vrot.lane.b32.xlu0 %v926, 113
      %v1190 = vpop.permute.xlu0 %1189
      %1191 = vrot.lane.b32.xlu0 %v928, 113
      %v1192 = vpop.permute.xlu0 %1191
      %1193 = vrot.lane.b32.xlu0 %v930, 113
      %v1194 = vpop.permute.xlu0 %1193
      %vm1195 = vcmp.lt.s32.totalorder %v956, 113
      %v1196 = vsel %vm1195, %v1180, %v1188
      %v1197 = vsel %vm1195, %v1182, %v1190
      %v1198 = vsel %vm1195, %v1184, %v1192
      %v1199 = vsel %vm1195, %v1186, %v1194
      %v1200 = vsel %vm1195, %v1188, %v1180
      %v1201 = vsel %vm1195, %v1190, %v1182
      %v1202 = vsel %vm1195, %v1192, %v1184
      %v1203 = vsel %vm1195, %v1194, %v1186
      %s1204 = scalar_lea.vmem %s4, 12
      %v1205 = vld [vmem:[%s1204] sm:$0x3]
      %v1207 = vperm.slane %v1205, 0
      %v1208 = vperm.slane %v1205, 1
      %v1211 = vmul.f32 %v1196, %v1207
      %v1212 = vmul.f32 %v1200, %v1208
      %v1213 = vmul.f32 %v1197, %v1207
      %v1214 = vmul.f32 %v1201, %v1208
      %v1215 = vmul.f32 %v1198, %v1207
      %v1216 = vmul.f32 %v1202, %v1208
      %v1217 = vmul.f32 %v1199, %v1207
      %v1218 = vmul.f32 %v1203, %v1208
      %v1219 = vpack.c.bf16 %v1212, %v1211
      %v1220 = vpack.c.bf16 %v1214, %v1213
      %v1221 = vpack.c.bf16 %v1216, %v1215
      %v1222 = vpack.c.bf16 %v1218, %v1217
      %1223 = vrot.lane.b32.xlu0 %v923, 112
      %v1224 = vpop.permute.xlu0 %1223
      %1225 = vrot.lane.b32.xlu0 %v925, 112
      %v1226 = vpop.permute.xlu0 %1225
      %1227 = vrot.lane.b32.xlu0 %v927, 112
      %v1228 = vpop.permute.xlu0 %1227
      %1229 = vrot.lane.b32.xlu0 %v929, 112
      %v1230 = vpop.permute.xlu0 %1229
      %1231 = vrot.lane.b32.xlu0 %v924, 112
      %v1232 = vpop.permute.xlu0 %1231
      %1233 = vrot.lane.b32.xlu0 %v926, 112
      %v1234 = vpop.permute.xlu0 %1233
      %1235 = vrot.lane.b32.xlu0 %v928, 112
      %v1236 = vpop.permute.xlu0 %1235
      %1237 = vrot.lane.b32.xlu0 %v930, 112
      %v1238 = vpop.permute.xlu0 %1237
      %vm1239 = vcmp.lt.s32.totalorder %v956, 112
      %v1240 = vsel %vm1239, %v1224, %v1232
      %v1241 = vsel %vm1239, %v1226, %v1234
      %v1242 = vsel %vm1239, %v1228, %v1236
      %v1243 = vsel %vm1239, %v1230, %v1238
      %v1244 = vsel %vm1239, %v1232, %v1224
      %v1245 = vsel %vm1239, %v1234, %v1226
      %v1246 = vsel %vm1239, %v1236, %v1228
      %v1247 = vsel %vm1239, %v1238, %v1230
      %s1248 = scalar_lea.vmem %s4, 14
      %v1249 = vld [vmem:[%s1248] sm:$0x3]
      %v1251 = vperm.slane %v1249, 0
      %v1252 = vperm.slane %v1249, 1
      %v1255 = vmul.f32 %v1240, %v1251
      %v1256 = vmul.f32 %v1244, %v1252
      %v1257 = vmul.f32 %v1241, %v1251
      %v1258 = vmul.f32 %v1245, %v1252
      %v1259 = vmul.f32 %v1242, %v1251
      %v1260 = vmul.f32 %v1246, %v1252
      %v1261 = vmul.f32 %v1243, %v1251
      %v1262 = vmul.f32 %v1247, %v1252
      %v1263 = vpack.c.bf16 %v1256, %v1255
      %v1264 = vpack.c.bf16 %v1258, %v1257
      %v1265 = vpack.c.bf16 %v1260, %v1259
      %v1266 = vpack.c.bf16 %v1262, %v1261
      %1267 = vrot.lane.b32.xlu0 %v923, 111
      %v1268 = vpop.permute.xlu0 %1267
      %1269 = vrot.lane.b32.xlu0 %v925, 111
      %v1270 = vpop.permute.xlu0 %1269
      %1271 = vrot.lane.b32.xlu0 %v927, 111
      %v1272 = vpop.permute.xlu0 %1271
      %1273 = vrot.lane.b32.xlu0 %v929, 111
      %v1274 = vpop.permute.xlu0 %1273
      %1275 = vrot.lane.b32.xlu0 %v924, 111
      %v1276 = vpop.permute.xlu0 %1275
      %1277 = vrot.lane.b32.xlu0 %v926, 111
      %v1278 = vpop.permute.xlu0 %1277
      %1279 = vrot.lane.b32.xlu0 %v928, 111
      %v1280 = vpop.permute.xlu0 %1279
      %1281 = vrot.lane.b32.xlu0 %v930, 111
      %v1282 = vpop.permute.xlu0 %1281
      %vm1283 = vcmp.lt.s32.totalorder %v956, 111
      %v1284 = vsel %vm1283, %v1268, %v1276
      %v1285 = vsel %vm1283, %v1270, %v1278
      %v1286 = vsel %vm1283, %v1272, %v1280
      %v1287 = vsel %vm1283, %v1274, %v1282
      %v1288 = vsel %vm1283, %v1276, %v1268
      %v1289 = vsel %vm1283, %v1278, %v1270
      %v1290 = vsel %vm1283, %v1280, %v1272
      %v1291 = vsel %vm1283, %v1282, %v1274
      %s1292 = scalar_lea.vmem %s4, 16
      %v1293 = vld [vmem:[%s1292] sm:$0x3]
      %v1295 = vperm.slane %v1293, 0
      %v1296 = vperm.slane %v1293, 1
      %v1299 = vmul.f32 %v1284, %v1295
      %v1300 = vmul.f32 %v1288, %v1296
      %v1301 = vmul.f32 %v1285, %v1295
      %v1302 = vmul.f32 %v1289, %v1296
      %v1303 = vmul.f32 %v1286, %v1295
      %v1304 = vmul.f32 %v1290, %v1296
      %v1305 = vmul.f32 %v1287, %v1295
      %v1306 = vmul.f32 %v1291, %v1296
      %v1307 = vpack.c.bf16 %v1300, %v1299
      %v1308 = vpack.c.bf16 %v1302, %v1301
      %v1309 = vpack.c.bf16 %v1304, %v1303
      %v1310 = vpack.c.bf16 %v1306, %v1305
      %v1315 = vunpack.c.l.b16 %v980
      %v1316 = vunpack.c.h.b16 %v980
      %v1317 = vunpack.c.l.b16 %v981
      %v1318 = vunpack.c.h.b16 %v981
      %v1319 = vunpack.c.l.b16 %v982
      %v1320 = vunpack.c.h.b16 %v982
      %v1321 = vunpack.c.l.b16 %v983
      %v1322 = vunpack.c.h.b16 %v983
      %v1323 = vpack.c.b16 %v1317, %v1315
      %v1324 = vpack.c.b16 %v1318, %v1316
      %v1325 = vpack.c.b16 %v1321, %v1319
      %v1326 = vpack.c.b16 %v1322, %v1320
      %v1335 = vunpack.c.l.b16 %v1024
      %v1336 = vunpack.c.h.b16 %v1024
      %v1337 = vunpack.c.l.b16 %v1025
      %v1338 = vunpack.c.h.b16 %v1025
      %v1339 = vunpack.c.l.b16 %v1026
      %v1340 = vunpack.c.h.b16 %v1026
      %v1341 = vunpack.c.l.b16 %v1027
      %v1342 = vunpack.c.h.b16 %v1027
      %v1343 = vpack.c.b16 %v1337, %v1335
      %v1344 = vpack.c.b16 %v1338, %v1336
      %v1345 = vpack.c.b16 %v1341, %v1339
      %v1346 = vpack.c.b16 %v1342, %v1340
      %v1355 = vunpack.c.l.b16 %v1068
      %v1356 = vunpack.c.h.b16 %v1068
      %v1357 = vunpack.c.l.b16 %v1069
      %v1358 = vunpack.c.h.b16 %v1069
      %v1359 = vunpack.c.l.b16 %v1070
      %v1360 = vunpack.c.h.b16 %v1070
      %v1361 = vunpack.c.l.b16 %v1071
      %v1362 = vunpack.c.h.b16 %v1071
      %v1363 = vpack.c.b16 %v1357, %v1355
      %v1364 = vpack.c.b16 %v1358, %v1356
      %v1365 = vpack.c.b16 %v1361, %v1359
      %v1366 = vpack.c.b16 %v1362, %v1360
      %v1375 = vunpack.c.l.b16 %v1112
      %v1376 = vunpack.c.h.b16 %v1112
      %v1377 = vunpack.c.l.b16 %v1113
      %v1378 = vunpack.c.h.b16 %v1113
      %v1379 = vunpack.c.l.b16 %v1114
      %v1380 = vunpack.c.h.b16 %v1114
      %v1381 = vunpack.c.l.b16 %v1115
      %v1382 = vunpack.c.h.b16 %v1115
      %v1383 = vpack.c.b16 %v1377, %v1375
      %v1384 = vpack.c.b16 %v1378, %v1376
      %v1385 = vpack.c.b16 %v1381, %v1379
      %v1386 = vpack.c.b16 %v1382, %v1380
      %v1395 = vunpack.c.l.b16 %v1131
      %v1396 = vunpack.c.h.b16 %v1131
      %v1397 = vunpack.c.l.b16 %v1132
      %v1398 = vunpack.c.h.b16 %v1132
      %v1399 = vunpack.c.l.b16 %v1133
      %v1400 = vunpack.c.h.b16 %v1133
      %v1401 = vunpack.c.l.b16 %v1134
      %v1402 = vunpack.c.h.b16 %v1134
      %v1403 = vpack.c.b16 %v1397, %v1395
      %v1404 = vpack.c.b16 %v1398, %v1396
      %v1405 = vpack.c.b16 %v1401, %v1399
      %v1406 = vpack.c.b16 %v1402, %v1400
      %v1415 = vunpack.c.l.b16 %v1175
      %v1416 = vunpack.c.h.b16 %v1175
      %v1417 = vunpack.c.l.b16 %v1176
      %v1418 = vunpack.c.h.b16 %v1176
      %v1419 = vunpack.c.l.b16 %v1177
      %v1420 = vunpack.c.h.b16 %v1177
      %v1421 = vunpack.c.l.b16 %v1178
      %v1422 = vunpack.c.h.b16 %v1178
      %v1423 = vpack.c.b16 %v1417, %v1415
      %v1424 = vpack.c.b16 %v1418, %v1416
      %v1425 = vpack.c.b16 %v1421, %v1419
      %v1426 = vpack.c.b16 %v1422, %v1420
      %v1435 = vunpack.c.l.b16 %v1219
      %v1436 = vunpack.c.h.b16 %v1219
      %v1437 = vunpack.c.l.b16 %v1220
      %v1438 = vunpack.c.h.b16 %v1220
      %v1439 = vunpack.c.l.b16 %v1221
      %v1440 = vunpack.c.h.b16 %v1221
      %v1441 = vunpack.c.l.b16 %v1222
      %v1442 = vunpack.c.h.b16 %v1222
      %v1443 = vpack.c.b16 %v1437, %v1435
      %v1444 = vpack.c.b16 %v1438, %v1436
      %v1445 = vpack.c.b16 %v1441, %v1439
      %v1446 = vpack.c.b16 %v1442, %v1440
      %v1455 = vunpack.c.l.b16 %v1263
      %v1456 = vunpack.c.h.b16 %v1263
      %v1457 = vunpack.c.l.b16 %v1264
      %v1458 = vunpack.c.h.b16 %v1264
      %v1459 = vunpack.c.l.b16 %v1265
      %v1460 = vunpack.c.h.b16 %v1265
      %v1461 = vunpack.c.l.b16 %v1266
      %v1462 = vunpack.c.h.b16 %v1266
      %v1463 = vpack.c.b16 %v1457, %v1455
      %v1464 = vpack.c.b16 %v1458, %v1456
      %v1465 = vpack.c.b16 %v1461, %v1459
      %v1466 = vpack.c.b16 %v1462, %v1460
      %v1475 = vunpack.c.l.b16 %v1307
      %v1476 = vunpack.c.h.b16 %v1307
      %v1477 = vunpack.c.l.b16 %v1308
      %v1478 = vunpack.c.h.b16 %v1308
      %v1479 = vunpack.c.l.b16 %v1309
      %v1480 = vunpack.c.h.b16 %v1309
      %v1481 = vunpack.c.l.b16 %v1310
      %v1482 = vunpack.c.h.b16 %v1310
      %v1483 = vpack.c.b16 %v1477, %v1475
      %v1484 = vpack.c.b16 %v1478, %v1476
      %v1485 = vpack.c.b16 %v1481, %v1479
      %v1486 = vpack.c.b16 %v1482, %v1480
      %1491 = vset.pattern.permute.xlu0 2
      %1492 = vperm.xlu0 %1491, %v715
      %v1493 = vpop.permute.xlu0 %1492
      %1495 = vset.pattern.permute.xlu0 2
      %1496 = vperm.xlu0 %1495, %v716
      %v1497 = vpop.permute.xlu0 %1496
      %1499 = vset.pattern.permute.xlu0 2
      %1500 = vperm.xlu0 %1499, %v717
      %v1501 = vpop.permute.xlu0 %1500
      %1503 = vset.pattern.permute.xlu0 2
      %1504 = vperm.xlu0 %1503, %v718
      %v1505 = vpop.permute.xlu0 %1504
      %v1515 = vunpack.c.l.b16 %v931
      %v1516 = vunpack.c.h.b16 %v931
      %v1517 = vunpack.c.l.b16 %v932
      %v1518 = vunpack.c.l.b16 %v933
      %v1519 = vunpack.c.h.b16 %v933
      %v1520 = vunpack.c.l.b16 %v934
      %v1521 = vunpack.c.l.b16 %v935
      %v1522 = vunpack.c.h.b16 %v935
      %v1523 = vunpack.c.l.b16 %v936
      %v1524 = vunpack.c.l.b16 %v937
      %v1525 = vunpack.c.h.b16 %v937
      %v1526 = vunpack.c.l.b16 %v938
      %v1527 = vpack.c.b16 %v1518, %v1515
      %v1528 = vpack.c.b16 %v1519, %v1516
      %v1529 = vpack.c.b16 %v1520, %v1517
      %v1530 = vpack.c.b16 %v1524, %v1521
      %v1531 = vpack.c.b16 %v1525, %v1522
      %v1532 = vpack.c.b16 %v1526, %v1523
      %v1538 = vsel %vm516, %v1529, 0
      %v1541 = vsel %vm516, %v1532, 0
      %1543 = vmatpush.bf16.msra.mxu0 %v1385
      %1544 = vmatpush.bf16.msra.mxu0 %v1383
      %1545 = vmatpush.bf16.msra.mxu0 %v1365
      %1546 = vmatpush.bf16.msra.mxu0 %v1363
      %1547 = vmatpush.bf16.msra.mxu0 %v1345
      %1548 = vmatpush.bf16.msra.mxu0 %v1343
      %1549 = vmatpush.bf16.msra.mxu0 %v1325
      %1550 = vmatpush.bf16.msra.mxu0 %v1323
      %1551 = vmatmul.bf16.gmra.mxu0 %v1527
      %v1552 = vpop.f32.mrf.mxu0
      %v1553 = vadd.f32 %v1493, %v1552
      %v1554 = vpop.f32.mrf.mxu0
      %v1555 = vadd.f32 %v1497, %v1554
      %1556 = vmatmul.bf16.gmra.mxu0 %v1530
      %v1557 = vpop.f32.mrf.mxu0
      %v1558 = vadd.f32 %v1501, %v1557
      %v1559 = vpop.f32.mrf.mxu0
      %v1560 = vadd.f32 %v1505, %v1559
      %1561 = vdwg.mxu0
      %1562 = vmatpush.bf16.msra.mxu0 %v1465
      %1563 = vmatpush.bf16.msra.mxu0 %v1463
      %1564 = vmatpush.bf16.msra.mxu0 %v1445
      %1565 = vmatpush.bf16.msra.mxu0 %v1443
      %1566 = vmatpush.bf16.msra.mxu0 %v1425
      %1567 = vmatpush.bf16.msra.mxu0 %v1423
      %1568 = vmatpush.bf16.msra.mxu0 %v1405
      %1569 = vmatpush.bf16.msra.mxu0 %v1403
      %1570 = vmatmul.bf16.gmra.mxu0 %v1528
      %v1571 = vpop.f32.mrf.mxu0
      %v1572 = vadd.f32 %v1553, %v1571
      %v1573 = vpop.f32.mrf.mxu0
      %v1574 = vadd.f32 %v1555, %v1573
      %1575 = vmatmul.bf16.gmra.mxu0 %v1531
      %v1576 = vpop.f32.mrf.mxu0
      %v1577 = vadd.f32 %v1558, %v1576
      %v1578 = vpop.f32.mrf.mxu0
      %v1579 = vadd.f32 %v1560, %v1578
      %1580 = vdwg.mxu0
      %1581 = vmatpush.bf16.msra.mxu0 0
      %1582 = vmatpush.bf16.msra.mxu0 0
      %1583 = vmatpush.bf16.msra.mxu0 0
      %1584 = vmatpush.bf16.msra.mxu0 0
      %1585 = vmatpush.bf16.msra.mxu0 0
      %1586 = vmatpush.bf16.msra.mxu0 0
      %1587 = vmatpush.bf16.msra.mxu0 %v1485
      %1588 = vmatpush.bf16.msra.mxu0 %v1483
      %1589 = vmatmul.bf16.gmra.mxu0 %v1538
      %v1590 = vpop.f32.mrf.mxu0
      %v1591 = vadd.f32 %v1572, %v1590
      %v1592 = vpop.f32.mrf.mxu0
      %v1593 = vadd.f32 %v1574, %v1592
      %1594 = vmatmul.bf16.gmra.mxu0 %v1541
      %v1595 = vpop.f32.mrf.mxu0
      %v1596 = vadd.f32 %v1577, %v1595
      %v1597 = vpop.f32.mrf.mxu0
      %v1598 = vadd.f32 %v1579, %v1597
      %1599 = vdwg.mxu0
      %1600 = vmatpush.bf16.msra.mxu0 %v1386
      %1601 = vmatpush.bf16.msra.mxu0 %v1384
      %1602 = vmatpush.bf16.msra.mxu0 %v1366
      %1603 = vmatpush.bf16.msra.mxu0 %v1364
      %1604 = vmatpush.bf16.msra.mxu0 %v1346
      %1605 = vmatpush.bf16.msra.mxu0 %v1344
      %1606 = vmatpush.bf16.msra.mxu0 %v1326
      %1607 = vmatpush.bf16.msra.mxu0 %v1324
      %1608 = vmatmul.bf16.gmra.mxu0 %v1527
      %v1609 = vpop.f32.mrf.mxu0
      %v1610 = vadd.f32 %v1493, %v1609
      %v1611 = vpop.f32.mrf.mxu0
      %v1612 = vadd.f32 %v1497, %v1611
      %1613 = vmatmul.bf16.gmra.mxu0 %v1530
      %v1614 = vpop.f32.mrf.mxu0
      %v1615 = vadd.f32 %v1501, %v1614
      %v1616 = vpop.f32.mrf.mxu0
      %v1617 = vadd.f32 %v1505, %v1616
      %1618 = vdwg.mxu0
      %1619 = vmatpush.bf16.msra.mxu0 %v1466
      %1620 = vmatpush.bf16.msra.mxu0 %v1464
      %1621 = vmatpush.bf16.msra.mxu0 %v1446
      %1622 = vmatpush.bf16.msra.mxu0 %v1444
      %1623 = vmatpush.bf16.msra.mxu0 %v1426
      %1624 = vmatpush.bf16.msra.mxu0 %v1424
      %1625 = vmatpush.bf16.msra.mxu0 %v1406
      %1626 = vmatpush.bf16.msra.mxu0 %v1404
      %1627 = vmatmul.bf16.gmra.mxu0 %v1528
      %v1628 = vpop.f32.mrf.mxu0
      %v1629 = vadd.f32 %v1610, %v1628
      %v1630 = vpop.f32.mrf.mxu0
      %v1631 = vadd.f32 %v1612, %v1630
      %1632 = vmatmul.bf16.gmra.mxu0 %v1531
      %v1633 = vpop.f32.mrf.mxu0
      %v1634 = vadd.f32 %v1615, %v1633
      %v1635 = vpop.f32.mrf.mxu0
      %v1636 = vadd.f32 %v1617, %v1635
      %1637 = vdwg.mxu0
      %1638 = vmatpush.bf16.msra.mxu0 0
      %1639 = vmatpush.bf16.msra.mxu0 0
      %1640 = vmatpush.bf16.msra.mxu0 0
      %1641 = vmatpush.bf16.msra.mxu0 0
      %1642 = vmatpush.bf16.msra.mxu0 0
      %1643 = vmatpush.bf16.msra.mxu0 0
      %1644 = vmatpush.bf16.msra.mxu0 %v1486
      %1645 = vmatpush.bf16.msra.mxu0 %v1484
      %1646 = vmatmul.bf16.gmra.mxu0 %v1538
      %v1647 = vpop.f32.mrf.mxu0
      %v1648 = vadd.f32 %v1629, %v1647
      %v1649 = vpop.f32.mrf.mxu0
      %v1650 = vadd.f32 %v1631, %v1649
      %1651 = vmatmul.bf16.gmra.mxu0 %v1541
      %v1652 = vpop.f32.mrf.mxu0
      %v1653 = vadd.f32 %v1634, %v1652
      %v1654 = vpop.f32.mrf.mxu0
      %v1655 = vadd.f32 %v1636, %v1654
      %1656 = vdwg.mxu0
      %v1657 = vld [vmem:[%s476] sm:$0xff]
      %v1658 = vld [vmem:[%s476 + $0x8] sm:$0xff]
      %v1659 = vld [vmem:[%s476 + $0x10] sm:$0xff]
      %v1660 = vld [vmem:[%s476 + $0x18] sm:$0xff]
      %1662 = vset.pattern.permute.xlu0 0
      %1663 = vperm.xlu0 %1662, %v1657
      %v1664 = vpop.permute.xlu0 %1663
      %1667 = vset.pattern.permute.xlu0 0
      %1668 = vperm.xlu0 %1667, %v1658
      %v1669 = vpop.permute.xlu0 %1668
      %1672 = vset.pattern.permute.xlu0 0
      %1673 = vperm.xlu0 %1672, %v1659
      %v1674 = vpop.permute.xlu0 %1673
      %1677 = vset.pattern.permute.xlu0 0
      %1678 = vperm.xlu0 %1677, %v1660
      %v1679 = vpop.permute.xlu0 %1678
      %v1681 = vadd.f32 %v1591, %v1664
      %v1682 = vadd.f32 %v1648, %v1664
      %v1683 = vadd.f32 %v1593, %v1669
      %v1684 = vadd.f32 %v1650, %v1669
      %v1685 = vadd.f32 %v1596, %v1674
      %v1686 = vadd.f32 %v1653, %v1674
      %v1687 = vadd.f32 %v1598, %v1679
      %v1688 = vadd.f32 %v1655, %v1679
      %v1689 = vadd.f32 %v1681, %v1682
      %1690 = vadd.xlane.f32.xlu0 %v1689
      %v1691 = vpop.xlane.xlu0 %1690
      %v1692 = vadd.f32 %v1683, %v1684
      %1693 = vadd.xlane.f32.xlu0 %v1692
      %v1694 = vpop.xlane.xlu0 %1693
      %v1695 = vadd.f32 %v1685, %v1686
      %1696 = vadd.xlane.f32.xlu0 %v1695
      %v1697 = vpop.xlane.xlu0 %1696
      %v1698 = vadd.f32 %v1687, %v1688
      %1699 = vadd.xlane.f32.xlu0 %v1698
      %v1700 = vpop.xlane.xlu0 %1699
      %1701 = vmatpush.msra.mxu0 0.0
      %1702 = vmatpush.msra.mxu0 0.0
      %1703 = vmatpush.msra.mxu0 0.0
      %1704 = vmatpush.msra.mxu0 0.0
      %1705 = vmatpush.msra.mxu0 0.0
      %1706 = vmatpush.msra.mxu0 0.0
      %1707 = vmatpush.msra.mxu0 0.0
      %1708 = vmatpush.msra.mxu0 0.0
      %1709 = vmatpush.msra.mxu0 0.0
      %1710 = vmatpush.msra.mxu0 0.0
      %1711 = vmatpush.msra.mxu0 0.0
      %1712 = vmatpush.msra.mxu0 0.0
      %1713 = vmatpush.msra.mxu0 %v1700
      %1714 = vmatpush.msra.mxu0 %v1697
      %1715 = vmatpush.msra.mxu0 %v1694
      %1716 = vmatpush.msra.mxu0 %v1691
      %1717 = vmatmul.f32.gmra.mxu0 %v518
      %v1718 = vpop.f32.mrf.mxu0
      %v1719 = vadd.f32 0.0, %v1718
      %1720 = vmatmul.f32.gmra.mxu0 %v521
      %v1721 = vpop.f32.mrf.mxu0
      %v1722 = vadd.f32 0.0, %v1721
      %1723 = vmatmul.f32.gmra.mxu0 %v524
      %v1724 = vpop.f32.mrf.mxu0
      %v1725 = vadd.f32 0.0, %v1724
      %1726 = vmatmul.f32.gmra.mxu0 %v527
      %v1727 = vpop.f32.mrf.mxu0
      %v1728 = vadd.f32 0.0, %v1727
      %1729 = vdwg.mxu0
      %v1730 = vmul.f32 %v1719, 0.0009765625
      %v1731 = vmul.f32 %v1722, 0.0009765625
      %v1732 = vmul.f32 %v1725, 0.0009765625
      %v1733 = vmul.f32 %v1728, 0.0009765625
      %1735 = vset.pattern.permute.xlu0 0
      %1736 = vperm.xlu0 %1735, %v1730
      %v1737 = vpop.permute.xlu0 %1736
      %1740 = vset.pattern.permute.xlu0 0
      %1741 = vperm.xlu0 %1740, %v1731
      %v1742 = vpop.permute.xlu0 %1741
      %1745 = vset.pattern.permute.xlu0 0
      %1746 = vperm.xlu0 %1745, %v1732
      %v1747 = vpop.permute.xlu0 %1746
      %1750 = vset.pattern.permute.xlu0 0
      %1751 = vperm.xlu0 %1750, %v1733
      %v1752 = vpop.permute.xlu0 %1751
      %v1754 = vsub.f32 %v1681, %v1737
      %v1755 = vsub.f32 %v1682, %v1737
      %v1756 = vsub.f32 %v1683, %v1742
      %v1757 = vsub.f32 %v1684, %v1742
      %v1758 = vsub.f32 %v1685, %v1747
      %v1759 = vsub.f32 %v1686, %v1747
      %v1760 = vsub.f32 %v1687, %v1752
      %v1761 = vsub.f32 %v1688, %v1752
      %v1762 = vmul.f32 %v1754, %v1754
      %v1763 = vmul.f32 %v1755, %v1755
      %v1764 = vmul.f32 %v1756, %v1756
      %v1765 = vmul.f32 %v1757, %v1757
      %v1766 = vmul.f32 %v1758, %v1758
      %v1767 = vmul.f32 %v1759, %v1759
      %v1768 = vmul.f32 %v1760, %v1760
      %v1769 = vmul.f32 %v1761, %v1761
      %v1770 = vadd.f32 %v1762, %v1763
      %1771 = vadd.xlane.f32.xlu0 %v1770
      %v1772 = vpop.xlane.xlu0 %1771
      %v1773 = vadd.f32 %v1764, %v1765
      %1774 = vadd.xlane.f32.xlu0 %v1773
      %v1775 = vpop.xlane.xlu0 %1774
      %v1776 = vadd.f32 %v1766, %v1767
      %1777 = vadd.xlane.f32.xlu0 %v1776
      %v1778 = vpop.xlane.xlu0 %1777
      %v1779 = vadd.f32 %v1768, %v1769
      %1780 = vadd.xlane.f32.xlu0 %v1779
      %v1781 = vpop.xlane.xlu0 %1780
      %1782 = vmatpush.msra.mxu0 0.0
      %1783 = vmatpush.msra.mxu0 0.0
      %1784 = vmatpush.msra.mxu0 0.0
      %1785 = vmatpush.msra.mxu0 0.0
      %1786 = vmatpush.msra.mxu0 0.0
      %1787 = vmatpush.msra.mxu0 0.0
      %1788 = vmatpush.msra.mxu0 0.0
      %1789 = vmatpush.msra.mxu0 0.0
      %1790 = vmatpush.msra.mxu0 0.0
      %1791 = vmatpush.msra.mxu0 0.0
      %1792 = vmatpush.msra.mxu0 0.0
      %1793 = vmatpush.msra.mxu0 0.0
      %1794 = vmatpush.msra.mxu0 %v1781
      %1795 = vmatpush.msra.mxu0 %v1778
      %1796 = vmatpush.msra.mxu0 %v1775
      %1797 = vmatpush.msra.mxu0 %v1772
      %1798 = vmatmul.f32.gmra.mxu0 %v518
      %v1799 = vpop.f32.mrf.mxu0
      %v1800 = vadd.f32 0.0, %v1799
      %1801 = vmatmul.f32.gmra.mxu0 %v521
      %v1802 = vpop.f32.mrf.mxu0
      %v1803 = vadd.f32 0.0, %v1802
      %1804 = vmatmul.f32.gmra.mxu0 %v524
      %v1805 = vpop.f32.mrf.mxu0
      %v1806 = vadd.f32 0.0, %v1805
      %1807 = vmatmul.f32.gmra.mxu0 %v527
      %v1808 = vpop.f32.mrf.mxu0
      %v1809 = vadd.f32 0.0, %v1808
      %1810 = vdwg.mxu0
      %v1811 = vmul.f32 %v1800, 0.0009765625
      %v1812 = vmul.f32 %v1803, 0.0009765625
      %v1813 = vmul.f32 %v1806, 0.0009765625
      %v1814 = vmul.f32 %v1809, 0.0009765625
      %v1815 = vadd.f32 %v1811, 1e-06
      %v1816 = vadd.f32 %v1812, 1e-06
      %v1817 = vadd.f32 %v1813, 1e-06
      %v1818 = vadd.f32 %v1814, 1e-06
      %v1819 = vrsqrt.pop %v1815
      %v1820 = vmul.f32 %v1819, %v1815
      %v1821 = vmul.f32 %v1820, %v1819
      %v1822 = vmul.f32 0.5, %v1821
      %v1823 = vsub.f32 1.5, %v1822
      %v1824 = vmul.f32 %v1819, %v1823
      %vm1825 = vweird.f32 %v1815
      %vm1826 = vweird.f32 %v1819
      %vm1827 = vmor %vm1825, %vm1826
      %v1828 = vsel %vm1827, %v1819, %v1824
      %v1829 = vrsqrt.pop %v1816
      %v1830 = vmul.f32 %v1829, %v1816
      %v1831 = vmul.f32 %v1830, %v1829
      %v1832 = vmul.f32 0.5, %v1831
      %v1833 = vsub.f32 1.5, %v1832
      %v1834 = vmul.f32 %v1829, %v1833
      %vm1835 = vweird.f32 %v1816
      %vm1836 = vweird.f32 %v1829
      %vm1837 = vmor %vm1835, %vm1836
      %v1838 = vsel %vm1837, %v1829, %v1834
      %v1839 = vrsqrt.pop %v1817
      %v1840 = vmul.f32 %v1839, %v1817
      %v1841 = vmul.f32 %v1840, %v1839
      %v1842 = vmul.f32 0.5, %v1841
      %v1843 = vsub.f32 1.5, %v1842
      %v1844 = vmul.f32 %v1839, %v1843
      %vm1845 = vweird.f32 %v1817
      %vm1846 = vweird.f32 %v1839
      %vm1847 = vmor %vm1845, %vm1846
      %v1848 = vsel %vm1847, %v1839, %v1844
      %v1849 = vrsqrt.pop %v1818
      %v1850 = vmul.f32 %v1849, %v1818
      %v1851 = vmul.f32 %v1850, %v1849
      %v1852 = vmul.f32 0.5, %v1851
      %v1853 = vsub.f32 1.5, %v1852
      %v1854 = vmul.f32 %v1849, %v1853
      %vm1855 = vweird.f32 %v1818
      %vm1856 = vweird.f32 %v1849
      %vm1857 = vmor %vm1855, %vm1856
      %v1858 = vsel %vm1857, %v1849, %v1854
      %1860 = vset.pattern.permute.xlu0 0
      %1861 = vperm.xlu0 %1860, %v1828
      %v1862 = vpop.permute.xlu0 %1861
      %1865 = vset.pattern.permute.xlu0 0
      %1866 = vperm.xlu0 %1865, %v1838
      %v1867 = vpop.permute.xlu0 %1866
      %1870 = vset.pattern.permute.xlu0 0
      %1871 = vperm.xlu0 %1870, %v1848
      %v1872 = vpop.permute.xlu0 %1871
      %1875 = vset.pattern.permute.xlu0 0
      %1876 = vperm.xlu0 %1875, %v1858
      %v1877 = vpop.permute.xlu0 %1876
      %v1879 = vmul.f32 %v1754, %v1862
      %v1880 = vmul.f32 %v1755, %v1862
      %v1881 = vmul.f32 %v1756, %v1867
      %v1882 = vmul.f32 %v1757, %v1867
      %v1883 = vmul.f32 %v1758, %v1872
      %v1884 = vmul.f32 %v1759, %v1872
      %v1885 = vmul.f32 %v1760, %v1877
      %v1886 = vmul.f32 %v1761, %v1877
      %1887 = vset.pattern.permute.xlu0 3
      %1888 = vperm.xlu0 %1887, %v715
      %v1889 = vpop.permute.xlu0 %1888
      %1891 = vset.pattern.permute.xlu0 3
      %1892 = vperm.xlu0 %1891, %v716
      %v1893 = vpop.permute.xlu0 %1892
      %1895 = vset.pattern.permute.xlu0 3
      %1896 = vperm.xlu0 %1895, %v717
      %v1897 = vpop.permute.xlu0 %1896
      %1899 = vset.pattern.permute.xlu0 3
      %1900 = vperm.xlu0 %1899, %v718
      %v1901 = vpop.permute.xlu0 %1900
      %v1903 = vmul.f32 %v1879, %v1889
      %v1904 = vmul.f32 %v1880, %v1889
      %v1905 = vmul.f32 %v1881, %v1893
      %v1906 = vmul.f32 %v1882, %v1893
      %v1907 = vmul.f32 %v1883, %v1897
      %v1908 = vmul.f32 %v1884, %v1897
      %v1909 = vmul.f32 %v1885, %v1901
      %v1910 = vmul.f32 %v1886, %v1901
      %1911 = vset.pattern.permute.xlu0 4
      %1912 = vperm.xlu0 %1911, %v715
      %v1913 = vpop.permute.xlu0 %1912
      %1915 = vset.pattern.permute.xlu0 4
      %1916 = vperm.xlu0 %1915, %v716
      %v1917 = vpop.permute.xlu0 %1916
      %1919 = vset.pattern.permute.xlu0 4
      %1920 = vperm.xlu0 %1919, %v717
      %v1921 = vpop.permute.xlu0 %1920
      %1923 = vset.pattern.permute.xlu0 4
      %1924 = vperm.xlu0 %1923, %v718
      %v1925 = vpop.permute.xlu0 %1924
      %v1927 = vadd.f32 %v1903, %v1913
      %v1928 = vadd.f32 %v1904, %v1913
      %v1929 = vadd.f32 %v1905, %v1917
      %v1930 = vadd.f32 %v1906, %v1917
      %v1931 = vadd.f32 %v1907, %v1921
      %v1932 = vadd.f32 %v1908, %v1921
      %v1933 = vadd.f32 %v1909, %v1925
      %v1934 = vadd.f32 %v1910, %v1925
      %v1935 = vsub.f32 0.0, %v1927
      %v1936 = vsub.f32 0.0, %v1928
      %v1937 = vsub.f32 0.0, %v1929
      %v1938 = vsub.f32 0.0, %v1930
      %v1939 = vsub.f32 0.0, %v1931
      %v1940 = vsub.f32 0.0, %v1932
      %v1941 = vsub.f32 0.0, %v1933
      %v1942 = vsub.f32 0.0, %v1934
      %v1943 = vmul.f32 %v1935, 1.442695
      %v1944 = vpow.pop %v1943
      %v1945 = vmul.f32 %v1936, 1.442695
      %v1946 = vpow.pop %v1945
      %v1947 = vmul.f32 %v1937, 1.442695
      %v1948 = vpow.pop %v1947
      %v1949 = vmul.f32 %v1938, 1.442695
      %v1950 = vpow.pop %v1949
      %v1951 = vmul.f32 %v1939, 1.442695
      %v1952 = vpow.pop %v1951
      %v1953 = vmul.f32 %v1940, 1.442695
      %v1954 = vpow.pop %v1953
      %v1955 = vmul.f32 %v1941, 1.442695
      %v1956 = vpow.pop %v1955
      %v1957 = vmul.f32 %v1942, 1.442695
      %v1958 = vpow.pop %v1957
      %v1959 = vadd.f32 %v1944, 1.0
      %v1960 = vadd.f32 %v1946, 1.0
      %v1961 = vadd.f32 %v1948, 1.0
      %v1962 = vadd.f32 %v1950, 1.0
      %v1963 = vadd.f32 %v1952, 1.0
      %v1964 = vadd.f32 %v1954, 1.0
      %v1965 = vadd.f32 %v1956, 1.0
      %v1966 = vadd.f32 %v1958, 1.0
      %v1967 = vrcp.pop %v1959
      %v1968 = vmul.f32 %v1959, %v1967
      %v1969 = vsub.f32 1.0, %v1968
      %v1970 = vmul.f32 %v1967, %v1969
      %v1971 = vadd.f32 %v1967, %v1970
      %vm1972 = vweird.f32 %v1959
      %vm1973 = vweird.f32 %v1967
      %vm1974 = vmor %vm1972, %vm1973
      %v1975 = vsel %vm1974, %v1967, %v1971
      %v1976 = vand.u32 2147483647, %v1959
      %vm1977 = vcmp.eq.f32.partialorder %v1976, 8.507059e+37
      %v1978 = vand.u32 %v1959, 2147483648
      %v1979 = vor.u32 1.1754944e-38, %v1978
      %v1980 = vsel %vm1977, %v1979, %v1975
      %v1981 = vmul.f32 1.0, %v1980
      %v1982 = vrcp.pop %v1960
      %v1983 = vmul.f32 %v1960, %v1982
      %v1984 = vsub.f32 1.0, %v1983
      %v1985 = vmul.f32 %v1982, %v1984
      %v1986 = vadd.f32 %v1982, %v1985
      %vm1987 = vweird.f32 %v1960
      %vm1988 = vweird.f32 %v1982
      %vm1989 = vmor %vm1987, %vm1988
      %v1990 = vsel %vm1989, %v1982, %v1986
      %v1991 = vand.u32 2147483647, %v1960
      %vm1992 = vcmp.eq.f32.partialorder %v1991, 8.507059e+37
      %v1993 = vand.u32 %v1960, 2147483648
      %v1994 = vor.u32 1.1754944e-38, %v1993
      %v1995 = vsel %vm1992, %v1994, %v1990
      %v1996 = vmul.f32 1.0, %v1995
      %v1997 = vrcp.pop %v1961
      %v1998 = vmul.f32 %v1961, %v1997
      %v1999 = vsub.f32 1.0, %v1998
      %v2000 = vmul.f32 %v1997, %v1999
      %v2001 = vadd.f32 %v1997, %v2000
      %vm2002 = vweird.f32 %v1961
      %vm2003 = vweird.f32 %v1997
      %vm2004 = vmor %vm2002, %vm2003
      %v2005 = vsel %vm2004, %v1997, %v2001
      %v2006 = vand.u32 2147483647, %v1961
      %vm2007 = vcmp.eq.f32.partialorder %v2006, 8.507059e+37
      %v2008 = vand.u32 %v1961, 2147483648
      %v2009 = vor.u32 1.1754944e-38, %v2008
      %v2010 = vsel %vm2007, %v2009, %v2005
      %v2011 = vmul.f32 1.0, %v2010
      %v2012 = vrcp.pop %v1962
      %v2013 = vmul.f32 %v1962, %v2012
      %v2014 = vsub.f32 1.0, %v2013
      %v2015 = vmul.f32 %v2012, %v2014
      %v2016 = vadd.f32 %v2012, %v2015
      %vm2017 = vweird.f32 %v1962
      %vm2018 = vweird.f32 %v2012
      %vm2019 = vmor %vm2017, %vm2018
      %v2020 = vsel %vm2019, %v2012, %v2016
      %v2021 = vand.u32 2147483647, %v1962
      %vm2022 = vcmp.eq.f32.partialorder %v2021, 8.507059e+37
      %v2023 = vand.u32 %v1962, 2147483648
      %v2024 = vor.u32 1.1754944e-38, %v2023
      %v2025 = vsel %vm2022, %v2024, %v2020
      %v2026 = vmul.f32 1.0, %v2025
      %v2027 = vrcp.pop %v1963
      %v2028 = vmul.f32 %v1963, %v2027
      %v2029 = vsub.f32 1.0, %v2028
      %v2030 = vmul.f32 %v2027, %v2029
      %v2031 = vadd.f32 %v2027, %v2030
      %vm2032 = vweird.f32 %v1963
      %vm2033 = vweird.f32 %v2027
      %vm2034 = vmor %vm2032, %vm2033
      %v2035 = vsel %vm2034, %v2027, %v2031
      %v2036 = vand.u32 2147483647, %v1963
      %vm2037 = vcmp.eq.f32.partialorder %v2036, 8.507059e+37
      %v2038 = vand.u32 %v1963, 2147483648
      %v2039 = vor.u32 1.1754944e-38, %v2038
      %v2040 = vsel %vm2037, %v2039, %v2035
      %v2041 = vmul.f32 1.0, %v2040
      %v2042 = vrcp.pop %v1964
      %v2043 = vmul.f32 %v1964, %v2042
      %v2044 = vsub.f32 1.0, %v2043
      %v2045 = vmul.f32 %v2042, %v2044
      %v2046 = vadd.f32 %v2042, %v2045
      %vm2047 = vweird.f32 %v1964
      %vm2048 = vweird.f32 %v2042
      %vm2049 = vmor %vm2047, %vm2048
      %v2050 = vsel %vm2049, %v2042, %v2046
      %v2051 = vand.u32 2147483647, %v1964
      %vm2052 = vcmp.eq.f32.partialorder %v2051, 8.507059e+37
      %v2053 = vand.u32 %v1964, 2147483648
      %v2054 = vor.u32 1.1754944e-38, %v2053
      %v2055 = vsel %vm2052, %v2054, %v2050
      %v2056 = vmul.f32 1.0, %v2055
      %v2057 = vrcp.pop %v1965
      %v2058 = vmul.f32 %v1965, %v2057
      %v2059 = vsub.f32 1.0, %v2058
      %v2060 = vmul.f32 %v2057, %v2059
      %v2061 = vadd.f32 %v2057, %v2060
      %vm2062 = vweird.f32 %v1965
      %vm2063 = vweird.f32 %v2057
      %vm2064 = vmor %vm2062, %vm2063
      %v2065 = vsel %vm2064, %v2057, %v2061
      %v2066 = vand.u32 2147483647, %v1965
      %vm2067 = vcmp.eq.f32.partialorder %v2066, 8.507059e+37
      %v2068 = vand.u32 %v1965, 2147483648
      %v2069 = vor.u32 1.1754944e-38, %v2068
      %v2070 = vsel %vm2067, %v2069, %v2065
      %v2071 = vmul.f32 1.0, %v2070
      %v2072 = vrcp.pop %v1966
      %v2073 = vmul.f32 %v1966, %v2072
      %v2074 = vsub.f32 1.0, %v2073
      %v2075 = vmul.f32 %v2072, %v2074
      %v2076 = vadd.f32 %v2072, %v2075
      %vm2077 = vweird.f32 %v1966
      %vm2078 = vweird.f32 %v2072
      %vm2079 = vmor %vm2077, %vm2078
      %v2080 = vsel %vm2079, %v2072, %v2076
      %v2081 = vand.u32 2147483647, %v1966
      %vm2082 = vcmp.eq.f32.partialorder %v2081, 8.507059e+37
      %v2083 = vand.u32 %v1966, 2147483648
      %v2084 = vor.u32 1.1754944e-38, %v2083
      %v2085 = vsel %vm2082, %v2084, %v2080
      %v2086 = vmul.f32 1.0, %v2085
      %v2087 = vmul.f32 %v1927, %v1981
      %v2088 = vmul.f32 %v1928, %v1996
      %v2089 = vmul.f32 %v1929, %v2011
      %v2090 = vmul.f32 %v1930, %v2026
      %v2091 = vmul.f32 %v1931, %v2041
      %v2092 = vmul.f32 %v1932, %v2056
      %v2093 = vmul.f32 %v1933, %v2071
      %v2094 = vmul.f32 %v1934, %v2086
      %v2095 = vld [vmem:[%s7 + $0x8] sm:$0xff]
      %v2096 = vld [vmem:[%s7 + $0x10] sm:$0xf]
      %v2097 = vld [vmem:[%s7 + $0x24] sm:$0xff]
      %v2098 = vld [vmem:[%s7 + $0x2c] sm:$0xf]
      %v2099 = vld [vmem:[%s7 + $0x40] sm:$0xff]
      %v2100 = vld [vmem:[%s7 + $0x48] sm:$0xf]
      %v2101 = vld [vmem:[%s7 + $0x5c] sm:$0xff]
      %v2102 = vld [vmem:[%s7 + $0x64] sm:$0xf]
      %2103 = vrot.lane.b32.xlu0 %v2087, 17
      %v2104 = vpop.permute.xlu0 %2103
      %2105 = vrot.lane.b32.xlu0 %v2089, 17
      %v2106 = vpop.permute.xlu0 %2105
      %2107 = vrot.lane.b32.xlu0 %v2091, 17
      %v2108 = vpop.permute.xlu0 %2107
      %2109 = vrot.lane.b32.xlu0 %v2093, 17
      %v2110 = vpop.permute.xlu0 %2109
      %2111 = vrot.lane.b32.xlu0 %v2088, 17
      %v2112 = vpop.permute.xlu0 %2111
      %2113 = vrot.lane.b32.xlu0 %v2090, 17
      %v2114 = vpop.permute.xlu0 %2113
      %2115 = vrot.lane.b32.xlu0 %v2092, 17
      %v2116 = vpop.permute.xlu0 %2115
      %2117 = vrot.lane.b32.xlu0 %v2094, 17
      %v2118 = vpop.permute.xlu0 %2117
      %v2119 = vsel %vm957, %v2104, %v2112
      %v2120 = vsel %vm957, %v2106, %v2114
      %v2121 = vsel %vm957, %v2108, %v2116
      %v2122 = vsel %vm957, %v2110, %v2118
      %v2123 = vsel %vm957, %v2112, %v2104
      %v2124 = vsel %vm957, %v2114, %v2106
      %v2125 = vsel %vm957, %v2116, %v2108
      %v2126 = vsel %vm957, %v2118, %v2110
      %v2127 = vmul.f32 %v2123, %v968
      %v2128 = vmul.f32 %v2119, %v969
      %v2129 = vmul.f32 %v2124, %v968
      %v2130 = vmul.f32 %v2120, %v969
      %v2131 = vmul.f32 %v2125, %v968
      %v2132 = vmul.f32 %v2121, %v969
      %v2133 = vmul.f32 %v2126, %v968
      %v2134 = vmul.f32 %v2122, %v969
      %v2135 = vpack.c.bf16 %v2128, %v2127
      %v2136 = vpack.c.bf16 %v2130, %v2129
      %v2137 = vpack.c.bf16 %v2132, %v2131
      %v2138 = vpack.c.bf16 %v2134, %v2133
      %2139 = vrot.lane.b32.xlu0 %v2087, 16
      %v2140 = vpop.permute.xlu0 %2139
      %2141 = vrot.lane.b32.xlu0 %v2089, 16
      %v2142 = vpop.permute.xlu0 %2141
      %2143 = vrot.lane.b32.xlu0 %v2091, 16
      %v2144 = vpop.permute.xlu0 %2143
      %2145 = vrot.lane.b32.xlu0 %v2093, 16
      %v2146 = vpop.permute.xlu0 %2145
      %2147 = vrot.lane.b32.xlu0 %v2088, 16
      %v2148 = vpop.permute.xlu0 %2147
      %2149 = vrot.lane.b32.xlu0 %v2090, 16
      %v2150 = vpop.permute.xlu0 %2149
      %2151 = vrot.lane.b32.xlu0 %v2092, 16
      %v2152 = vpop.permute.xlu0 %2151
      %2153 = vrot.lane.b32.xlu0 %v2094, 16
      %v2154 = vpop.permute.xlu0 %2153
      %v2155 = vsel %vm1000, %v2140, %v2148
      %v2156 = vsel %vm1000, %v2142, %v2150
      %v2157 = vsel %vm1000, %v2144, %v2152
      %v2158 = vsel %vm1000, %v2146, %v2154
      %v2159 = vsel %vm1000, %v2148, %v2140
      %v2160 = vsel %vm1000, %v2150, %v2142
      %v2161 = vsel %vm1000, %v2152, %v2144
      %v2162 = vsel %vm1000, %v2154, %v2146
      %v2163 = vmul.f32 %v2159, %v1012
      %v2164 = vmul.f32 %v2155, %v1013
      %v2165 = vmul.f32 %v2160, %v1012
      %v2166 = vmul.f32 %v2156, %v1013
      %v2167 = vmul.f32 %v2161, %v1012
      %v2168 = vmul.f32 %v2157, %v1013
      %v2169 = vmul.f32 %v2162, %v1012
      %v2170 = vmul.f32 %v2158, %v1013
      %v2171 = vpack.c.bf16 %v2164, %v2163
      %v2172 = vpack.c.bf16 %v2166, %v2165
      %v2173 = vpack.c.bf16 %v2168, %v2167
      %v2174 = vpack.c.bf16 %v2170, %v2169
      %2175 = vrot.lane.b32.xlu0 %v2087, 15
      %v2176 = vpop.permute.xlu0 %2175
      %2177 = vrot.lane.b32.xlu0 %v2089, 15
      %v2178 = vpop.permute.xlu0 %2177
      %2179 = vrot.lane.b32.xlu0 %v2091, 15
      %v2180 = vpop.permute.xlu0 %2179
      %2181 = vrot.lane.b32.xlu0 %v2093, 15
      %v2182 = vpop.permute.xlu0 %2181
      %2183 = vrot.lane.b32.xlu0 %v2088, 15
      %v2184 = vpop.permute.xlu0 %2183
      %2185 = vrot.lane.b32.xlu0 %v2090, 15
      %v2186 = vpop.permute.xlu0 %2185
      %2187 = vrot.lane.b32.xlu0 %v2092, 15
      %v2188 = vpop.permute.xlu0 %2187
      %2189 = vrot.lane.b32.xlu0 %v2094, 15
      %v2190 = vpop.permute.xlu0 %2189
      %v2191 = vsel %vm1044, %v2176, %v2184
      %v2192 = vsel %vm1044, %v2178, %v2186
      %v2193 = vsel %vm1044, %v2180, %v2188
      %v2194 = vsel %vm1044, %v2182, %v2190
      %v2195 = vsel %vm1044, %v2184, %v2176
      %v2196 = vsel %vm1044, %v2186, %v2178
      %v2197 = vsel %vm1044, %v2188, %v2180
      %v2198 = vsel %vm1044, %v2190, %v2182
      %v2199 = vmul.f32 %v2195, %v1056
      %v2200 = vmul.f32 %v2191, %v1057
      %v2201 = vmul.f32 %v2196, %v1056
      %v2202 = vmul.f32 %v2192, %v1057
      %v2203 = vmul.f32 %v2197, %v1056
      %v2204 = vmul.f32 %v2193, %v1057
      %v2205 = vmul.f32 %v2198, %v1056
      %v2206 = vmul.f32 %v2194, %v1057
      %v2207 = vpack.c.bf16 %v2200, %v2199
      %v2208 = vpack.c.bf16 %v2202, %v2201
      %v2209 = vpack.c.bf16 %v2204, %v2203
      %v2210 = vpack.c.bf16 %v2206, %v2205
      %2211 = vrot.lane.b32.xlu0 %v2087, 1
      %v2212 = vpop.permute.xlu0 %2211
      %2213 = vrot.lane.b32.xlu0 %v2089, 1
      %v2214 = vpop.permute.xlu0 %2213
      %2215 = vrot.lane.b32.xlu0 %v2091, 1
      %v2216 = vpop.permute.xlu0 %2215
      %2217 = vrot.lane.b32.xlu0 %v2093, 1
      %v2218 = vpop.permute.xlu0 %2217
      %2219 = vrot.lane.b32.xlu0 %v2088, 1
      %v2220 = vpop.permute.xlu0 %2219
      %2221 = vrot.lane.b32.xlu0 %v2090, 1
      %v2222 = vpop.permute.xlu0 %2221
      %2223 = vrot.lane.b32.xlu0 %v2092, 1
      %v2224 = vpop.permute.xlu0 %2223
      %2225 = vrot.lane.b32.xlu0 %v2094, 1
      %v2226 = vpop.permute.xlu0 %2225
      %v2227 = vsel %vm1088, %v2212, %v2220
      %v2228 = vsel %vm1088, %v2214, %v2222
      %v2229 = vsel %vm1088, %v2216, %v2224
      %v2230 = vsel %vm1088, %v2218, %v2226
      %v2231 = vsel %vm1088, %v2220, %v2212
      %v2232 = vsel %vm1088, %v2222, %v2214
      %v2233 = vsel %vm1088, %v2224, %v2216
      %v2234 = vsel %vm1088, %v2226, %v2218
      %v2235 = vmul.f32 %v2231, %v1100
      %v2236 = vmul.f32 %v2227, %v1101
      %v2237 = vmul.f32 %v2232, %v1100
      %v2238 = vmul.f32 %v2228, %v1101
      %v2239 = vmul.f32 %v2233, %v1100
      %v2240 = vmul.f32 %v2229, %v1101
      %v2241 = vmul.f32 %v2234, %v1100
      %v2242 = vmul.f32 %v2230, %v1101
      %v2243 = vpack.c.bf16 %v2236, %v2235
      %v2244 = vpack.c.bf16 %v2238, %v2237
      %v2245 = vpack.c.bf16 %v2240, %v2239
      %v2246 = vpack.c.bf16 %v2242, %v2241
      %v2247 = vmul.f32 %v2087, %v1119
      %v2248 = vmul.f32 %v2088, %v1120
      %v2249 = vmul.f32 %v2089, %v1119
      %v2250 = vmul.f32 %v2090, %v1120
      %v2251 = vmul.f32 %v2091, %v1119
      %v2252 = vmul.f32 %v2092, %v1120
      %v2253 = vmul.f32 %v2093, %v1119
      %v2254 = vmul.f32 %v2094, %v1120
      %v2255 = vpack.c.bf16 %v2248, %v2247
      %v2256 = vpack.c.bf16 %v2250, %v2249
      %v2257 = vpack.c.bf16 %v2252, %v2251
      %v2258 = vpack.c.bf16 %v2254, %v2253
      %2259 = vrot.lane.b32.xlu0 %v2087, 127
      %v2260 = vpop.permute.xlu0 %2259
      %2261 = vrot.lane.b32.xlu0 %v2089, 127
      %v2262 = vpop.permute.xlu0 %2261
      %2263 = vrot.lane.b32.xlu0 %v2091, 127
      %v2264 = vpop.permute.xlu0 %2263
      %2265 = vrot.lane.b32.xlu0 %v2093, 127
      %v2266 = vpop.permute.xlu0 %2265
      %2267 = vrot.lane.b32.xlu0 %v2088, 127
      %v2268 = vpop.permute.xlu0 %2267
      %2269 = vrot.lane.b32.xlu0 %v2090, 127
      %v2270 = vpop.permute.xlu0 %2269
      %2271 = vrot.lane.b32.xlu0 %v2092, 127
      %v2272 = vpop.permute.xlu0 %2271
      %2273 = vrot.lane.b32.xlu0 %v2094, 127
      %v2274 = vpop.permute.xlu0 %2273
      %v2275 = vsel %vm1151, %v2260, %v2268
      %v2276 = vsel %vm1151, %v2262, %v2270
      %v2277 = vsel %vm1151, %v2264, %v2272
      %v2278 = vsel %vm1151, %v2266, %v2274
      %v2279 = vsel %vm1151, %v2268, %v2260
      %v2280 = vsel %vm1151, %v2270, %v2262
      %v2281 = vsel %vm1151, %v2272, %v2264
      %v2282 = vsel %vm1151, %v2274, %v2266
      %v2283 = vmul.f32 %v2275, %v1163
      %v2284 = vmul.f32 %v2279, %v1164
      %v2285 = vmul.f32 %v2276, %v1163
      %v2286 = vmul.f32 %v2280, %v1164
      %v2287 = vmul.f32 %v2277, %v1163
      %v2288 = vmul.f32 %v2281, %v1164
      %v2289 = vmul.f32 %v2278, %v1163
      %v2290 = vmul.f32 %v2282, %v1164
      %v2291 = vpack.c.bf16 %v2284, %v2283
      %v2292 = vpack.c.bf16 %v2286, %v2285
      %v2293 = vpack.c.bf16 %v2288, %v2287
      %v2294 = vpack.c.bf16 %v2290, %v2289
      %2295 = vrot.lane.b32.xlu0 %v2087, 113
      %v2296 = vpop.permute.xlu0 %2295
      %2297 = vrot.lane.b32.xlu0 %v2089, 113
      %v2298 = vpop.permute.xlu0 %2297
      %2299 = vrot.lane.b32.xlu0 %v2091, 113
      %v2300 = vpop.permute.xlu0 %2299
      %2301 = vrot.lane.b32.xlu0 %v2093, 113
      %v2302 = vpop.permute.xlu0 %2301
      %2303 = vrot.lane.b32.xlu0 %v2088, 113
      %v2304 = vpop.permute.xlu0 %2303
      %2305 = vrot.lane.b32.xlu0 %v2090, 113
      %v2306 = vpop.permute.xlu0 %2305
      %2307 = vrot.lane.b32.xlu0 %v2092, 113
      %v2308 = vpop.permute.xlu0 %2307
      %2309 = vrot.lane.b32.xlu0 %v2094, 113
      %v2310 = vpop.permute.xlu0 %2309
      %v2311 = vsel %vm1195, %v2296, %v2304
      %v2312 = vsel %vm1195, %v2298, %v2306
      %v2313 = vsel %vm1195, %v2300, %v2308
      %v2314 = vsel %vm1195, %v2302, %v2310
      %v2315 = vsel %vm1195, %v2304, %v2296
      %v2316 = vsel %vm1195, %v2306, %v2298
      %v2317 = vsel %vm1195, %v2308, %v2300
      %v2318 = vsel %vm1195, %v2310, %v2302
      %v2319 = vmul.f32 %v2311, %v1207
      %v2320 = vmul.f32 %v2315, %v1208
      %v2321 = vmul.f32 %v2312, %v1207
      %v2322 = vmul.f32 %v2316, %v1208
      %v2323 = vmul.f32 %v2313, %v1207
      %v2324 = vmul.f32 %v2317, %v1208
      %v2325 = vmul.f32 %v2314, %v1207
      %v2326 = vmul.f32 %v2318, %v1208
      %v2327 = vpack.c.bf16 %v2320, %v2319
      %v2328 = vpack.c.bf16 %v2322, %v2321
      %v2329 = vpack.c.bf16 %v2324, %v2323
      %v2330 = vpack.c.bf16 %v2326, %v2325
      %2331 = vrot.lane.b32.xlu0 %v2087, 112
      %v2332 = vpop.permute.xlu0 %2331
      %2333 = vrot.lane.b32.xlu0 %v2089, 112
      %v2334 = vpop.permute.xlu0 %2333
      %2335 = vrot.lane.b32.xlu0 %v2091, 112
      %v2336 = vpop.permute.xlu0 %2335
      %2337 = vrot.lane.b32.xlu0 %v2093, 112
      %v2338 = vpop.permute.xlu0 %2337
      %2339 = vrot.lane.b32.xlu0 %v2088, 112
      %v2340 = vpop.permute.xlu0 %2339
      %2341 = vrot.lane.b32.xlu0 %v2090, 112
      %v2342 = vpop.permute.xlu0 %2341
      %2343 = vrot.lane.b32.xlu0 %v2092, 112
      %v2344 = vpop.permute.xlu0 %2343
      %2345 = vrot.lane.b32.xlu0 %v2094, 112
      %v2346 = vpop.permute.xlu0 %2345
      %v2347 = vsel %vm1239, %v2332, %v2340
      %v2348 = vsel %vm1239, %v2334, %v2342
      %v2349 = vsel %vm1239, %v2336, %v2344
      %v2350 = vsel %vm1239, %v2338, %v2346
      %v2351 = vsel %vm1239, %v2340, %v2332
      %v2352 = vsel %vm1239, %v2342, %v2334
      %v2353 = vsel %vm1239, %v2344, %v2336
      %v2354 = vsel %vm1239, %v2346, %v2338
      %v2355 = vmul.f32 %v2347, %v1251
      %v2356 = vmul.f32 %v2351, %v1252
      %v2357 = vmul.f32 %v2348, %v1251
      %v2358 = vmul.f32 %v2352, %v1252
      %v2359 = vmul.f32 %v2349, %v1251
      %v2360 = vmul.f32 %v2353, %v1252
      %v2361 = vmul.f32 %v2350, %v1251
      %v2362 = vmul.f32 %v2354, %v1252
      %v2363 = vpack.c.bf16 %v2356, %v2355
      %v2364 = vpack.c.bf16 %v2358, %v2357
      %v2365 = vpack.c.bf16 %v2360, %v2359
      %v2366 = vpack.c.bf16 %v2362, %v2361
      %2367 = vrot.lane.b32.xlu0 %v2087, 111
      %v2368 = vpop.permute.xlu0 %2367
      %2369 = vrot.lane.b32.xlu0 %v2089, 111
      %v2370 = vpop.permute.xlu0 %2369
      %2371 = vrot.lane.b32.xlu0 %v2091, 111
      %v2372 = vpop.permute.xlu0 %2371
      %2373 = vrot.lane.b32.xlu0 %v2093, 111
      %v2374 = vpop.permute.xlu0 %2373
      %2375 = vrot.lane.b32.xlu0 %v2088, 111
      %v2376 = vpop.permute.xlu0 %2375
      %2377 = vrot.lane.b32.xlu0 %v2090, 111
      %v2378 = vpop.permute.xlu0 %2377
      %2379 = vrot.lane.b32.xlu0 %v2092, 111
      %v2380 = vpop.permute.xlu0 %2379
      %2381 = vrot.lane.b32.xlu0 %v2094, 111
      %v2382 = vpop.permute.xlu0 %2381
      %v2383 = vsel %vm1283, %v2368, %v2376
      %v2384 = vsel %vm1283, %v2370, %v2378
      %v2385 = vsel %vm1283, %v2372, %v2380
      %v2386 = vsel %vm1283, %v2374, %v2382
      %v2387 = vsel %vm1283, %v2376, %v2368
      %v2388 = vsel %vm1283, %v2378, %v2370
      %v2389 = vsel %vm1283, %v2380, %v2372
      %v2390 = vsel %vm1283, %v2382, %v2374
      %v2391 = vmul.f32 %v2383, %v1295
      %v2392 = vmul.f32 %v2387, %v1296
      %v2393 = vmul.f32 %v2384, %v1295
      %v2394 = vmul.f32 %v2388, %v1296
      %v2395 = vmul.f32 %v2385, %v1295
      %v2396 = vmul.f32 %v2389, %v1296
      %v2397 = vmul.f32 %v2386, %v1295
      %v2398 = vmul.f32 %v2390, %v1296
      %v2399 = vpack.c.bf16 %v2392, %v2391
      %v2400 = vpack.c.bf16 %v2394, %v2393
      %v2401 = vpack.c.bf16 %v2396, %v2395
      %v2402 = vpack.c.bf16 %v2398, %v2397
      %v2407 = vunpack.c.l.b16 %v2135
      %v2408 = vunpack.c.h.b16 %v2135
      %v2409 = vunpack.c.l.b16 %v2136
      %v2410 = vunpack.c.h.b16 %v2136
      %v2411 = vunpack.c.l.b16 %v2137
      %v2412 = vunpack.c.h.b16 %v2137
      %v2413 = vunpack.c.l.b16 %v2138
      %v2414 = vunpack.c.h.b16 %v2138
      %v2415 = vpack.c.b16 %v2409, %v2407
      %v2416 = vpack.c.b16 %v2410, %v2408
      %v2417 = vpack.c.b16 %v2413, %v2411
      %v2418 = vpack.c.b16 %v2414, %v2412
      %v2427 = vunpack.c.l.b16 %v2171
      %v2428 = vunpack.c.h.b16 %v2171
      %v2429 = vunpack.c.l.b16 %v2172
      %v2430 = vunpack.c.h.b16 %v2172
      %v2431 = vunpack.c.l.b16 %v2173
      %v2432 = vunpack.c.h.b16 %v2173
      %v2433 = vunpack.c.l.b16 %v2174
      %v2434 = vunpack.c.h.b16 %v2174
      %v2435 = vpack.c.b16 %v2429, %v2427
      %v2436 = vpack.c.b16 %v2430, %v2428
      %v2437 = vpack.c.b16 %v2433, %v2431
      %v2438 = vpack.c.b16 %v2434, %v2432
      %v2447 = vunpack.c.l.b16 %v2207
      %v2448 = vunpack.c.h.b16 %v2207
      %v2449 = vunpack.c.l.b16 %v2208
      %v2450 = vunpack.c.h.b16 %v2208
      %v2451 = vunpack.c.l.b16 %v2209
      %v2452 = vunpack.c.h.b16 %v2209
      %v2453 = vunpack.c.l.b16 %v2210
      %v2454 = vunpack.c.h.b16 %v2210
      %v2455 = vpack.c.b16 %v2449, %v2447
      %v2456 = vpack.c.b16 %v2450, %v2448
      %v2457 = vpack.c.b16 %v2453, %v2451
      %v2458 = vpack.c.b16 %v2454, %v2452
      %v2467 = vunpack.c.l.b16 %v2243
      %v2468 = vunpack.c.h.b16 %v2243
      %v2469 = vunpack.c.l.b16 %v2244
      %v2470 = vunpack.c.h.b16 %v2244
      %v2471 = vunpack.c.l.b16 %v2245
      %v2472 = vunpack.c.h.b16 %v2245
      %v2473 = vunpack.c.l.b16 %v2246
      %v2474 = vunpack.c.h.b16 %v2246
      %v2475 = vpack.c.b16 %v2469, %v2467
      %v2476 = vpack.c.b16 %v2470, %v2468
      %v2477 = vpack.c.b16 %v2473, %v2471
      %v2478 = vpack.c.b16 %v2474, %v2472
      %v2487 = vunpack.c.l.b16 %v2255
      %v2488 = vunpack.c.h.b16 %v2255
      %v2489 = vunpack.c.l.b16 %v2256
      %v2490 = vunpack.c.h.b16 %v2256
      %v2491 = vunpack.c.l.b16 %v2257
      %v2492 = vunpack.c.h.b16 %v2257
      %v2493 = vunpack.c.l.b16 %v2258
      %v2494 = vunpack.c.h.b16 %v2258
      %v2495 = vpack.c.b16 %v2489, %v2487
      %v2496 = vpack.c.b16 %v2490, %v2488
      %v2497 = vpack.c.b16 %v2493, %v2491
      %v2498 = vpack.c.b16 %v2494, %v2492
      %v2507 = vunpack.c.l.b16 %v2291
      %v2508 = vunpack.c.h.b16 %v2291
      %v2509 = vunpack.c.l.b16 %v2292
      %v2510 = vunpack.c.h.b16 %v2292
      %v2511 = vunpack.c.l.b16 %v2293
      %v2512 = vunpack.c.h.b16 %v2293
      %v2513 = vunpack.c.l.b16 %v2294
      %v2514 = vunpack.c.h.b16 %v2294
      %v2515 = vpack.c.b16 %v2509, %v2507
      %v2516 = vpack.c.b16 %v2510, %v2508
      %v2517 = vpack.c.b16 %v2513, %v2511
      %v2518 = vpack.c.b16 %v2514, %v2512
      %v2527 = vunpack.c.l.b16 %v2327
      %v2528 = vunpack.c.h.b16 %v2327
      %v2529 = vunpack.c.l.b16 %v2328
      %v2530 = vunpack.c.h.b16 %v2328
      %v2531 = vunpack.c.l.b16 %v2329
      %v2532 = vunpack.c.h.b16 %v2329
      %v2533 = vunpack.c.l.b16 %v2330
      %v2534 = vunpack.c.h.b16 %v2330
      %v2535 = vpack.c.b16 %v2529, %v2527
      %v2536 = vpack.c.b16 %v2530, %v2528
      %v2537 = vpack.c.b16 %v2533, %v2531
      %v2538 = vpack.c.b16 %v2534, %v2532
      %v2547 = vunpack.c.l.b16 %v2363
      %v2548 = vunpack.c.h.b16 %v2363
      %v2549 = vunpack.c.l.b16 %v2364
      %v2550 = vunpack.c.h.b16 %v2364
      %v2551 = vunpack.c.l.b16 %v2365
      %v2552 = vunpack.c.h.b16 %v2365
      %v2553 = vunpack.c.l.b16 %v2366
      %v2554 = vunpack.c.h.b16 %v2366
      %v2555 = vpack.c.b16 %v2549, %v2547
      %v2556 = vpack.c.b16 %v2550, %v2548
      %v2557 = vpack.c.b16 %v2553, %v2551
      %v2558 = vpack.c.b16 %v2554, %v2552
      %v2567 = vunpack.c.l.b16 %v2399
      %v2568 = vunpack.c.h.b16 %v2399
      %v2569 = vunpack.c.l.b16 %v2400
      %v2570 = vunpack.c.h.b16 %v2400
      %v2571 = vunpack.c.l.b16 %v2401
      %v2572 = vunpack.c.h.b16 %v2401
      %v2573 = vunpack.c.l.b16 %v2402
      %v2574 = vunpack.c.h.b16 %v2402
      %v2575 = vpack.c.b16 %v2569, %v2567
      %v2576 = vpack.c.b16 %v2570, %v2568
      %v2577 = vpack.c.b16 %v2573, %v2571
      %v2578 = vpack.c.b16 %v2574, %v2572
      %2583 = vset.pattern.permute.xlu0 5
      %2584 = vperm.xlu0 %2583, %v715
      %v2585 = vpop.permute.xlu0 %2584
      %2587 = vset.pattern.permute.xlu0 5
      %2588 = vperm.xlu0 %2587, %v716
      %v2589 = vpop.permute.xlu0 %2588
      %2591 = vset.pattern.permute.xlu0 5
      %2592 = vperm.xlu0 %2591, %v717
      %v2593 = vpop.permute.xlu0 %2592
      %2595 = vset.pattern.permute.xlu0 5
      %2596 = vperm.xlu0 %2595, %v718
      %v2597 = vpop.permute.xlu0 %2596
      %v2607 = vunpack.c.l.b16 %v2095
      %v2608 = vunpack.c.h.b16 %v2095
      %v2609 = vunpack.c.l.b16 %v2096
      %v2610 = vunpack.c.l.b16 %v2097
      %v2611 = vunpack.c.h.b16 %v2097
      %v2612 = vunpack.c.l.b16 %v2098
      %v2613 = vunpack.c.l.b16 %v2099
      %v2614 = vunpack.c.h.b16 %v2099
      %v2615 = vunpack.c.l.b16 %v2100
      %v2616 = vunpack.c.l.b16 %v2101
      %v2617 = vunpack.c.h.b16 %v2101
      %v2618 = vunpack.c.l.b16 %v2102
      %v2619 = vpack.c.b16 %v2610, %v2607
      %v2620 = vpack.c.b16 %v2611, %v2608
      %v2621 = vpack.c.b16 %v2612, %v2609
      %v2622 = vpack.c.b16 %v2616, %v2613
      %v2623 = vpack.c.b16 %v2617, %v2614
      %v2624 = vpack.c.b16 %v2618, %v2615
      %2625 = vrot.lane.b32.xlu0 %v2619, 96
      %v2626 = vpop.permute.xlu0 %2625
      %2627 = vrot.lane.b32.xlu0 %v2620, 96
      %v2628 = vpop.permute.xlu0 %2627
      %2629 = vrot.lane.b32.xlu0 %v2621, 96
      %v2630 = vpop.permute.xlu0 %2629
      %2631 = vrot.lane.b32.xlu0 %v2622, 96
      %v2632 = vpop.permute.xlu0 %2631
      %2633 = vrot.lane.b32.xlu0 %v2623, 96
      %v2634 = vpop.permute.xlu0 %2633
      %2635 = vrot.lane.b32.xlu0 %v2624, 96
      %v2636 = vpop.permute.xlu0 %2635
      %vm2637 = vcmask 785408
      %v2638 = vsel %vm2637, %v2626, %v2628
      %v2639 = vsel %vm2637, %v2628, %v2630
      %v2640 = vsel %vm2637, %v2632, %v2634
      %v2641 = vsel %vm2637, %v2634, %v2636
      %v2647 = vsel %vm516, %v2630, 0
      %v2650 = vsel %vm516, %v2636, 0
      %2652 = vmatpush.bf16.msra.mxu0 %v2477
      %2653 = vmatpush.bf16.msra.mxu0 %v2475
      %2654 = vmatpush.bf16.msra.mxu0 %v2457
      %2655 = vmatpush.bf16.msra.mxu0 %v2455
      %2656 = vmatpush.bf16.msra.mxu0 %v2437
      %2657 = vmatpush.bf16.msra.mxu0 %v2435
      %2658 = vmatpush.bf16.msra.mxu0 %v2417
      %2659 = vmatpush.bf16.msra.mxu0 %v2415
      %2660 = vmatmul.bf16.gmra.mxu0 %v2638
      %v2661 = vpop.f32.mrf.mxu0
      %v2662 = vadd.f32 %v2585, %v2661
      %v2663 = vpop.f32.mrf.mxu0
      %v2664 = vadd.f32 %v2589, %v2663
      %2665 = vmatmul.bf16.gmra.mxu0 %v2640
      %v2666 = vpop.f32.mrf.mxu0
      %v2667 = vadd.f32 %v2593, %v2666
      %v2668 = vpop.f32.mrf.mxu0
      %v2669 = vadd.f32 %v2597, %v2668
      %2670 = vdwg.mxu0
      %2671 = vmatpush.bf16.msra.mxu0 %v2557
      %2672 = vmatpush.bf16.msra.mxu0 %v2555
      %2673 = vmatpush.bf16.msra.mxu0 %v2537
      %2674 = vmatpush.bf16.msra.mxu0 %v2535
      %2675 = vmatpush.bf16.msra.mxu0 %v2517
      %2676 = vmatpush.bf16.msra.mxu0 %v2515
      %2677 = vmatpush.bf16.msra.mxu0 %v2497
      %2678 = vmatpush.bf16.msra.mxu0 %v2495
      %2679 = vmatmul.bf16.gmra.mxu0 %v2639
      %v2680 = vpop.f32.mrf.mxu0
      %v2681 = vadd.f32 %v2662, %v2680
      %v2682 = vpop.f32.mrf.mxu0
      %v2683 = vadd.f32 %v2664, %v2682
      %2684 = vmatmul.bf16.gmra.mxu0 %v2641
      %v2685 = vpop.f32.mrf.mxu0
      %v2686 = vadd.f32 %v2667, %v2685
      %v2687 = vpop.f32.mrf.mxu0
      %v2688 = vadd.f32 %v2669, %v2687
      %2689 = vdwg.mxu0
      %2690 = vmatpush.bf16.msra.mxu0 0
      %2691 = vmatpush.bf16.msra.mxu0 0
      %2692 = vmatpush.bf16.msra.mxu0 0
      %2693 = vmatpush.bf16.msra.mxu0 0
      %2694 = vmatpush.bf16.msra.mxu0 0
      %2695 = vmatpush.bf16.msra.mxu0 0
      %2696 = vmatpush.bf16.msra.mxu0 %v2577
      %2697 = vmatpush.bf16.msra.mxu0 %v2575
      %2698 = vmatmul.bf16.gmra.mxu0 %v2647
      %v2699 = vpop.f32.mrf.mxu0
      %v2700 = vadd.f32 %v2681, %v2699
      %v2701 = vpop.f32.mrf.mxu0
      %v2702 = vadd.f32 %v2683, %v2701
      %2703 = vmatmul.bf16.gmra.mxu0 %v2650
      %v2704 = vpop.f32.mrf.mxu0
      %v2705 = vadd.f32 %v2686, %v2704
      %v2706 = vpop.f32.mrf.mxu0
      %v2707 = vadd.f32 %v2688, %v2706
      %2708 = vdwg.mxu0
      %2709 = vmatpush.bf16.msra.mxu0 %v2478
      %2710 = vmatpush.bf16.msra.mxu0 %v2476
      %2711 = vmatpush.bf16.msra.mxu0 %v2458
      %2712 = vmatpush.bf16.msra.mxu0 %v2456
      %2713 = vmatpush.bf16.msra.mxu0 %v2438
      %2714 = vmatpush.bf16.msra.mxu0 %v2436
      %2715 = vmatpush.bf16.msra.mxu0 %v2418
      %2716 = vmatpush.bf16.msra.mxu0 %v2416
      %2717 = vmatmul.bf16.gmra.mxu0 %v2638
      %v2718 = vpop.f32.mrf.mxu0
      %v2719 = vadd.f32 %v2585, %v2718
      %v2720 = vpop.f32.mrf.mxu0
      %v2721 = vadd.f32 %v2589, %v2720
      %2722 = vmatmul.bf16.gmra.mxu0 %v2640
      %v2723 = vpop.f32.mrf.mxu0
      %v2724 = vadd.f32 %v2593, %v2723
      %v2725 = vpop.f32.mrf.mxu0
      %v2726 = vadd.f32 %v2597, %v2725
      %2727 = vdwg.mxu0
      %2728 = vmatpush.bf16.msra.mxu0 %v2558
      %2729 = vmatpush.bf16.msra.mxu0 %v2556
      %2730 = vmatpush.bf16.msra.mxu0 %v2538
      %2731 = vmatpush.bf16.msra.mxu0 %v2536
      %2732 = vmatpush.bf16.msra.mxu0 %v2518
      %2733 = vmatpush.bf16.msra.mxu0 %v2516
      %2734 = vmatpush.bf16.msra.mxu0 %v2498
      %2735 = vmatpush.bf16.msra.mxu0 %v2496
      %2736 = vmatmul.bf16.gmra.mxu0 %v2639
      %v2737 = vpop.f32.mrf.mxu0
      %v2738 = vadd.f32 %v2719, %v2737
      %v2739 = vpop.f32.mrf.mxu0
      %v2740 = vadd.f32 %v2721, %v2739
      %2741 = vmatmul.bf16.gmra.mxu0 %v2641
      %v2742 = vpop.f32.mrf.mxu0
      %v2743 = vadd.f32 %v2724, %v2742
      %v2744 = vpop.f32.mrf.mxu0
      %v2745 = vadd.f32 %v2726, %v2744
      %2746 = vdwg.mxu0
      %2747 = vmatpush.bf16.msra.mxu0 0
      %2748 = vmatpush.bf16.msra.mxu0 0
      %2749 = vmatpush.bf16.msra.mxu0 0
      %2750 = vmatpush.bf16.msra.mxu0 0
      %2751 = vmatpush.bf16.msra.mxu0 0
      %2752 = vmatpush.bf16.msra.mxu0 0
      %2753 = vmatpush.bf16.msra.mxu0 %v2578
      %2754 = vmatpush.bf16.msra.mxu0 %v2576
      %2755 = vmatmul.bf16.gmra.mxu0 %v2647
      %v2756 = vpop.f32.mrf.mxu0
      %v2757 = vadd.f32 %v2738, %v2756
      %v2758 = vpop.f32.mrf.mxu0
      %v2759 = vadd.f32 %v2740, %v2758
      %2760 = vmatmul.bf16.gmra.mxu0 %v2650
      %v2761 = vpop.f32.mrf.mxu0
      %v2762 = vadd.f32 %v2743, %v2761
      %v2763 = vpop.f32.mrf.mxu0
      %v2764 = vadd.f32 %v2745, %v2763
      %2765 = vdwg.mxu0
      %v2766 = vadd.f32 %v496, %v2700
      %v2767 = vadd.f32 %v497, %v2757
      %v2768 = vadd.f32 %v498, %v2702
      %v2769 = vadd.f32 %v499, %v2759
      %v2770 = vadd.f32 %v500, %v2705
      %v2771 = vadd.f32 %v501, %v2762
      %v2772 = vadd.f32 %v502, %v2707
      %v2773 = vadd.f32 %v503, %v2764
      %v2774 = vadd.f32 %v2766, %v2767
      %2775 = vadd.xlane.f32.xlu0 %v2774
      %v2776 = vpop.xlane.xlu0 %2775
      %v2777 = vadd.f32 %v2768, %v2769
      %2778 = vadd.xlane.f32.xlu0 %v2777
      %v2779 = vpop.xlane.xlu0 %2778
      %v2780 = vadd.f32 %v2770, %v2771
      %2781 = vadd.xlane.f32.xlu0 %v2780
      %v2782 = vpop.xlane.xlu0 %2781
      %v2783 = vadd.f32 %v2772, %v2773
      %2784 = vadd.xlane.f32.xlu0 %v2783
      %v2785 = vpop.xlane.xlu0 %2784
      %2786 = vmatpush.msra.mxu0 0.0
      %2787 = vmatpush.msra.mxu0 0.0
      %2788 = vmatpush.msra.mxu0 0.0
      %2789 = vmatpush.msra.mxu0 0.0
      %2790 = vmatpush.msra.mxu0 0.0
      %2791 = vmatpush.msra.mxu0 0.0
      %2792 = vmatpush.msra.mxu0 0.0
      %2793 = vmatpush.msra.mxu0 0.0
      %2794 = vmatpush.msra.mxu0 0.0
      %2795 = vmatpush.msra.mxu0 0.0
      %2796 = vmatpush.msra.mxu0 0.0
      %2797 = vmatpush.msra.mxu0 0.0
      %2798 = vmatpush.msra.mxu0 %v2785
      %2799 = vmatpush.msra.mxu0 %v2782
      %2800 = vmatpush.msra.mxu0 %v2779
      %2801 = vmatpush.msra.mxu0 %v2776
      %2802 = vmatmul.f32.gmra.mxu0 %v518
      %v2803 = vpop.f32.mrf.mxu0
      %v2804 = vadd.f32 0.0, %v2803
      %2805 = vmatmul.f32.gmra.mxu0 %v521
      %v2806 = vpop.f32.mrf.mxu0
      %v2807 = vadd.f32 0.0, %v2806
      %2808 = vmatmul.f32.gmra.mxu0 %v524
      %v2809 = vpop.f32.mrf.mxu0
      %v2810 = vadd.f32 0.0, %v2809
      %2811 = vmatmul.f32.gmra.mxu0 %v527
      %v2812 = vpop.f32.mrf.mxu0
      %v2813 = vadd.f32 0.0, %v2812
      %2814 = vdwg.mxu0
      %v2815 = vmul.f32 %v2804, 0.0009765625
      %v2816 = vmul.f32 %v2807, 0.0009765625
      %v2817 = vmul.f32 %v2810, 0.0009765625
      %v2818 = vmul.f32 %v2813, 0.0009765625
      %2820 = vset.pattern.permute.xlu0 0
      %2821 = vperm.xlu0 %2820, %v2815
      %v2822 = vpop.permute.xlu0 %2821
      %2825 = vset.pattern.permute.xlu0 0
      %2826 = vperm.xlu0 %2825, %v2816
      %v2827 = vpop.permute.xlu0 %2826
      %2830 = vset.pattern.permute.xlu0 0
      %2831 = vperm.xlu0 %2830, %v2817
      %v2832 = vpop.permute.xlu0 %2831
      %2835 = vset.pattern.permute.xlu0 0
      %2836 = vperm.xlu0 %2835, %v2818
      %v2837 = vpop.permute.xlu0 %2836
      %v2839 = vsub.f32 %v2766, %v2822
      %v2840 = vsub.f32 %v2767, %v2822
      %v2841 = vsub.f32 %v2768, %v2827
      %v2842 = vsub.f32 %v2769, %v2827
      %v2843 = vsub.f32 %v2770, %v2832
      %v2844 = vsub.f32 %v2771, %v2832
      %v2845 = vsub.f32 %v2772, %v2837
      %v2846 = vsub.f32 %v2773, %v2837
      %v2847 = vmul.f32 %v2839, %v2839
      %v2848 = vmul.f32 %v2840, %v2840
      %v2849 = vmul.f32 %v2841, %v2841
      %v2850 = vmul.f32 %v2842, %v2842
      %v2851 = vmul.f32 %v2843, %v2843
      %v2852 = vmul.f32 %v2844, %v2844
      %v2853 = vmul.f32 %v2845, %v2845
      %v2854 = vmul.f32 %v2846, %v2846
      %v2855 = vadd.f32 %v2847, %v2848
      %2856 = vadd.xlane.f32.xlu0 %v2855
      %v2857 = vpop.xlane.xlu0 %2856
      %v2858 = vadd.f32 %v2849, %v2850
      %2859 = vadd.xlane.f32.xlu0 %v2858
      %v2860 = vpop.xlane.xlu0 %2859
      %v2861 = vadd.f32 %v2851, %v2852
      %2862 = vadd.xlane.f32.xlu0 %v2861
      %v2863 = vpop.xlane.xlu0 %2862
      %v2864 = vadd.f32 %v2853, %v2854
      %2865 = vadd.xlane.f32.xlu0 %v2864
      %v2866 = vpop.xlane.xlu0 %2865
      %2867 = vmatpush.msra.mxu0 0.0
      %2868 = vmatpush.msra.mxu0 0.0
      %2869 = vmatpush.msra.mxu0 0.0
      %2870 = vmatpush.msra.mxu0 0.0
      %2871 = vmatpush.msra.mxu0 0.0
      %2872 = vmatpush.msra.mxu0 0.0
      %2873 = vmatpush.msra.mxu0 0.0
      %2874 = vmatpush.msra.mxu0 0.0
      %2875 = vmatpush.msra.mxu0 0.0
      %2876 = vmatpush.msra.mxu0 0.0
      %2877 = vmatpush.msra.mxu0 0.0
      %2878 = vmatpush.msra.mxu0 0.0
      %2879 = vmatpush.msra.mxu0 %v2866
      %2880 = vmatpush.msra.mxu0 %v2863
      %2881 = vmatpush.msra.mxu0 %v2860
      %2882 = vmatpush.msra.mxu0 %v2857
      %2883 = vmatmul.f32.gmra.mxu0 %v518
      %v2884 = vpop.f32.mrf.mxu0
      %v2885 = vadd.f32 0.0, %v2884
      %2886 = vmatmul.f32.gmra.mxu0 %v521
      %v2887 = vpop.f32.mrf.mxu0
      %v2888 = vadd.f32 0.0, %v2887
      %2889 = vmatmul.f32.gmra.mxu0 %v524
      %v2890 = vpop.f32.mrf.mxu0
      %v2891 = vadd.f32 0.0, %v2890
      %2892 = vmatmul.f32.gmra.mxu0 %v527
      %v2893 = vpop.f32.mrf.mxu0
      %v2894 = vadd.f32 0.0, %v2893
      %2895 = vdwg.mxu0
      %v2896 = vmul.f32 %v2885, 0.0009765625
      %v2897 = vmul.f32 %v2888, 0.0009765625
      %v2898 = vmul.f32 %v2891, 0.0009765625
      %v2899 = vmul.f32 %v2894, 0.0009765625
      %v2900 = vadd.f32 %v2896, 1e-06
      %v2901 = vadd.f32 %v2897, 1e-06
      %v2902 = vadd.f32 %v2898, 1e-06
      %v2903 = vadd.f32 %v2899, 1e-06
      %v2904 = vrsqrt.pop %v2900
      %v2905 = vmul.f32 %v2904, %v2900
      %v2906 = vmul.f32 %v2905, %v2904
      %v2907 = vmul.f32 0.5, %v2906
      %v2908 = vsub.f32 1.5, %v2907
      %v2909 = vmul.f32 %v2904, %v2908
      %vm2910 = vweird.f32 %v2900
      %vm2911 = vweird.f32 %v2904
      %vm2912 = vmor %vm2910, %vm2911
      %v2913 = vsel %vm2912, %v2904, %v2909
      %v2914 = vrsqrt.pop %v2901
      %v2915 = vmul.f32 %v2914, %v2901
      %v2916 = vmul.f32 %v2915, %v2914
      %v2917 = vmul.f32 0.5, %v2916
      %v2918 = vsub.f32 1.5, %v2917
      %v2919 = vmul.f32 %v2914, %v2918
      %vm2920 = vweird.f32 %v2901
      %vm2921 = vweird.f32 %v2914
      %vm2922 = vmor %vm2920, %vm2921
      %v2923 = vsel %vm2922, %v2914, %v2919
      %v2924 = vrsqrt.pop %v2902
      %v2925 = vmul.f32 %v2924, %v2902
      %v2926 = vmul.f32 %v2925, %v2924
      %v2927 = vmul.f32 0.5, %v2926
      %v2928 = vsub.f32 1.5, %v2927
      %v2929 = vmul.f32 %v2924, %v2928
      %vm2930 = vweird.f32 %v2902
      %vm2931 = vweird.f32 %v2924
      %vm2932 = vmor %vm2930, %vm2931
      %v2933 = vsel %vm2932, %v2924, %v2929
      %v2934 = vrsqrt.pop %v2903
      %v2935 = vmul.f32 %v2934, %v2903
      %v2936 = vmul.f32 %v2935, %v2934
      %v2937 = vmul.f32 0.5, %v2936
      %v2938 = vsub.f32 1.5, %v2937
      %v2939 = vmul.f32 %v2934, %v2938
      %vm2940 = vweird.f32 %v2903
      %vm2941 = vweird.f32 %v2934
      %vm2942 = vmor %vm2940, %vm2941
      %v2943 = vsel %vm2942, %v2934, %v2939
      %2945 = vset.pattern.permute.xlu0 0
      %2946 = vperm.xlu0 %2945, %v2913
      %v2947 = vpop.permute.xlu0 %2946
      %2950 = vset.pattern.permute.xlu0 0
      %2951 = vperm.xlu0 %2950, %v2923
      %v2952 = vpop.permute.xlu0 %2951
      %2955 = vset.pattern.permute.xlu0 0
      %2956 = vperm.xlu0 %2955, %v2933
      %v2957 = vpop.permute.xlu0 %2956
      %2960 = vset.pattern.permute.xlu0 0
      %2961 = vperm.xlu0 %2960, %v2943
      %v2962 = vpop.permute.xlu0 %2961
      %v2964 = vmul.f32 %v2839, %v2947
      %v2965 = vmul.f32 %v2840, %v2947
      %v2966 = vmul.f32 %v2841, %v2952
      %v2967 = vmul.f32 %v2842, %v2952
      %v2968 = vmul.f32 %v2843, %v2957
      %v2969 = vmul.f32 %v2844, %v2957
      %v2970 = vmul.f32 %v2845, %v2962
      %v2971 = vmul.f32 %v2846, %v2962
      %2972 = vset.pattern.permute.xlu0 7
      %2973 = vperm.xlu0 %2972, %v715
      %v2974 = vpop.permute.xlu0 %2973
      %2976 = vset.pattern.permute.xlu0 7
      %2977 = vperm.xlu0 %2976, %v716
      %v2978 = vpop.permute.xlu0 %2977
      %2980 = vset.pattern.permute.xlu0 7
      %2981 = vperm.xlu0 %2980, %v717
      %v2982 = vpop.permute.xlu0 %2981
      %2984 = vset.pattern.permute.xlu0 7
      %2985 = vperm.xlu0 %2984, %v718
      %v2986 = vpop.permute.xlu0 %2985
      %v2988 = vmul.f32 %v2964, %v2974
      %v2989 = vmul.f32 %v2965, %v2974
      %v2990 = vmul.f32 %v2966, %v2978
      %v2991 = vmul.f32 %v2967, %v2978
      %v2992 = vmul.f32 %v2968, %v2982
      %v2993 = vmul.f32 %v2969, %v2982
      %v2994 = vmul.f32 %v2970, %v2986
      %v2995 = vmul.f32 %v2971, %v2986
      %2996 = vset.pattern.permute.xlu0 8
      %2997 = vperm.xlu0 %2996, %v715
      %v2998 = vpop.permute.xlu0 %2997
      %3000 = vset.pattern.permute.xlu0 8
      %3001 = vperm.xlu0 %3000, %v716
      %v3002 = vpop.permute.xlu0 %3001
      %3004 = vset.pattern.permute.xlu0 8
      %3005 = vperm.xlu0 %3004, %v717
      %v3006 = vpop.permute.xlu0 %3005
      %3008 = vset.pattern.permute.xlu0 8
      %3009 = vperm.xlu0 %3008, %v718
      %v3010 = vpop.permute.xlu0 %3009
      %v3012 = vadd.f32 %v2988, %v2998
      %v3013 = vadd.f32 %v2989, %v2998
      %v3014 = vadd.f32 %v2990, %v3002
      %v3015 = vadd.f32 %v2991, %v3002
      %v3016 = vadd.f32 %v2992, %v3006
      %v3017 = vadd.f32 %v2993, %v3006
      %v3018 = vadd.f32 %v2994, %v3010
      %v3019 = vadd.f32 %v2995, %v3010
      %v3020 = vld [vmem:[%s8] sm:$0xf]
      %v3021 = vld [vmem:[%s8 + $0xc] sm:$0xf]
      %v3022 = vld [vmem:[%s8 + $0x18] sm:$0xf]
      %v3023 = vld [vmem:[%s8 + $0x24] sm:$0xf]
      %v3024 = vpack.c.bf16 %v3014, %v3012
      %v3025 = vpack.c.bf16 %v3015, %v3013
      %v3026 = vpack.c.bf16 %v3018, %v3016
      %v3027 = vpack.c.bf16 %v3019, %v3017
      %3028 = vset.pattern.permute.xlu0 9
      %3029 = vperm.xlu0 %3028, %v715
      %v3030 = vpop.permute.xlu0 %3029
      %3032 = vset.pattern.permute.xlu0 9
      %3033 = vperm.xlu0 %3032, %v716
      %v3034 = vpop.permute.xlu0 %3033
      %3036 = vset.pattern.permute.xlu0 9
      %3037 = vperm.xlu0 %3036, %v717
      %v3038 = vpop.permute.xlu0 %3037
      %3040 = vset.pattern.permute.xlu0 9
      %3041 = vperm.xlu0 %3040, %v718
      %v3042 = vpop.permute.xlu0 %3041
      %v3048 = vunpack.c.l.b16 %v3020
      %v3049 = vunpack.c.l.b16 %v3021
      %v3050 = vunpack.c.l.b16 %v3022
      %v3051 = vunpack.c.l.b16 %v3023
      %v3052 = vpack.c.b16 %v3049, %v3048
      %v3053 = vpack.c.b16 %v3051, %v3050
      %v3055 = vsel %vm516, %v3052, 0
      %v3058 = vsel %vm516, %v3053, 0
      %3060 = vmatpush.bf16.msra.mxu0 0
      %3061 = vmatpush.bf16.msra.mxu0 0
      %3062 = vmatpush.bf16.msra.mxu0 0
      %3063 = vmatpush.bf16.msra.mxu0 0
      %3064 = vmatpush.bf16.msra.mxu0 0
      %3065 = vmatpush.bf16.msra.mxu0 0
      %3066 = vmatpush.bf16.msra.mxu0 %v3026
      %3067 = vmatpush.bf16.msra.mxu0 %v3024
      %3068 = vmatmul.bf16.gmra.mxu0 %v3055
      %v3069 = vpop.f32.mrf.mxu0
      %v3070 = vadd.f32 %v3030, %v3069
      %v3071 = vpop.f32.mrf.mxu0
      %v3072 = vadd.f32 %v3034, %v3071
      %3073 = vmatmul.bf16.gmra.mxu0 %v3058
      %v3074 = vpop.f32.mrf.mxu0
      %v3075 = vadd.f32 %v3038, %v3074
      %v3076 = vpop.f32.mrf.mxu0
      %v3077 = vadd.f32 %v3042, %v3076
      %3078 = vdwg.mxu0
      %3079 = vmatpush.bf16.msra.mxu0 0
      %3080 = vmatpush.bf16.msra.mxu0 0
      %3081 = vmatpush.bf16.msra.mxu0 0
      %3082 = vmatpush.bf16.msra.mxu0 0
      %3083 = vmatpush.bf16.msra.mxu0 0
      %3084 = vmatpush.bf16.msra.mxu0 0
      %3085 = vmatpush.bf16.msra.mxu0 %v3027
      %3086 = vmatpush.bf16.msra.mxu0 %v3025
      %3087 = vmatmul.bf16.gmra.mxu0 %v3055
      %v3088 = vpop.f32.mrf.mxu0
      %v3089 = vadd.f32 %v3030, %v3088
      %v3090 = vpop.f32.mrf.mxu0
      %v3091 = vadd.f32 %v3034, %v3090
      %3092 = vmatmul.bf16.gmra.mxu0 %v3058
      %v3093 = vpop.f32.mrf.mxu0
      %v3094 = vadd.f32 %v3038, %v3093
      %v3095 = vpop.f32.mrf.mxu0
      %v3096 = vadd.f32 %v3042, %v3095
      %3097 = vdwg.mxu0
      %v3098 = vadd.f32 %v3070, %v3072
      %v3099 = vadd.f32 %v3098, %v3075
      %v3100 = vadd.f32 %v3099, %v3077
      %v3101 = vrot.slane %v3100, 4
      %v3102 = vadd.f32 %v3100, %v3101
      %v3103 = vrot.slane %v3102, 2
      %v3104 = vadd.f32 %v3102, %v3103
      %v3105 = vrot.slane %v3104, 1
      %v3106 = vadd.f32 %v3104, %v3105
      %v3107 = vadd.f32 %v3089, %v3091
      %v3108 = vadd.f32 %v3107, %v3094
      %v3109 = vadd.f32 %v3108, %v3096
      %v3110 = vrot.slane %v3109, 4
      %v3111 = vadd.f32 %v3109, %v3110
      %v3112 = vrot.slane %v3111, 2
      %v3113 = vadd.f32 %v3111, %v3112
      %v3114 = vrot.slane %v3113, 1
      %v3115 = vadd.f32 %v3113, %v3114
      %v3116 = vrcp.pop 32.0
      %v3117 = vmul.f32 32.0, %v3116
      %v3118 = vsub.f32 1.0, %v3117
      %v3119 = vmul.f32 %v3116, %v3118
      %v3120 = vadd.f32 %v3116, %v3119
      %vm3121 = vweird.f32 %v3116
      %v3122 = vsel %vm3121, %v3116, %v3120
      %v3123 = vmul.f32 %v3106, %v3122
      %v3124 = vmul.f32 %v3115, %v3122
      %v3125 = vsub.f32 %v3070, %v3123
      %v3126 = vsub.f32 %v3089, %v3124
      %v3127 = vsub.f32 %v3072, %v3123
      %v3128 = vsub.f32 %v3091, %v3124
      %v3129 = vsub.f32 %v3075, %v3123
      %v3130 = vsub.f32 %v3094, %v3124
      %v3131 = vsub.f32 %v3077, %v3123
      %v3132 = vsub.f32 %v3096, %v3124
      %v3133 = vmul.f32 %v3125, %v3125
      %v3134 = vmul.f32 %v3126, %v3126
      %v3135 = vmul.f32 %v3127, %v3127
      %v3136 = vmul.f32 %v3128, %v3128
      %v3137 = vmul.f32 %v3129, %v3129
      %v3138 = vmul.f32 %v3130, %v3130
      %v3139 = vmul.f32 %v3131, %v3131
      %v3140 = vmul.f32 %v3132, %v3132
      %v3141 = vadd.f32 %v3133, %v3135
      %v3142 = vadd.f32 %v3141, %v3137
      %v3143 = vadd.f32 %v3142, %v3139
      %v3144 = vrot.slane %v3143, 4
      %v3145 = vadd.f32 %v3143, %v3144
      %v3146 = vrot.slane %v3145, 2
      %v3147 = vadd.f32 %v3145, %v3146
      %v3148 = vrot.slane %v3147, 1
      %v3149 = vadd.f32 %v3147, %v3148
      %v3150 = vadd.f32 %v3134, %v3136
      %v3151 = vadd.f32 %v3150, %v3138
      %v3152 = vadd.f32 %v3151, %v3140
      %v3153 = vrot.slane %v3152, 4
      %v3154 = vadd.f32 %v3152, %v3153
      %v3155 = vrot.slane %v3154, 2
      %v3156 = vadd.f32 %v3154, %v3155
      %v3157 = vrot.slane %v3156, 1
      %v3158 = vadd.f32 %v3156, %v3157
      %v3159 = vmul.f32 %v3149, %v3122
      %v3160 = vmul.f32 %v3158, %v3122
      %v3161 = vadd.f32 %v3159, 1e-05
      %v3162 = vadd.f32 %v3160, 1e-05
      %v3163 = vrsqrt.pop %v3161
      %v3164 = vmul.f32 %v3163, %v3161
      %v3165 = vmul.f32 %v3164, %v3163
      %v3166 = vmul.f32 0.5, %v3165
      %v3167 = vsub.f32 1.5, %v3166
      %v3168 = vmul.f32 %v3163, %v3167
      %vm3169 = vweird.f32 %v3161
      %vm3170 = vweird.f32 %v3163
      %vm3171 = vmor %vm3169, %vm3170
      %v3172 = vsel %vm3171, %v3163, %v3168
      %v3173 = vrsqrt.pop %v3162
      %v3174 = vmul.f32 %v3173, %v3162
      %v3175 = vmul.f32 %v3174, %v3173
      %v3176 = vmul.f32 0.5, %v3175
      %v3177 = vsub.f32 1.5, %v3176
      %v3178 = vmul.f32 %v3173, %v3177
      %vm3179 = vweird.f32 %v3162
      %vm3180 = vweird.f32 %v3173
      %vm3181 = vmor %vm3179, %vm3180
      %v3182 = vsel %vm3181, %v3173, %v3178
      %v3183 = vmul.f32 %v3125, %v3172
      %v3184 = vmul.f32 %v3126, %v3182
      %v3185 = vmul.f32 %v3127, %v3172
      %v3186 = vmul.f32 %v3128, %v3182
      %v3187 = vmul.f32 %v3129, %v3172
      %v3188 = vmul.f32 %v3130, %v3182
      %v3189 = vmul.f32 %v3131, %v3172
      %v3190 = vmul.f32 %v3132, %v3182
      %3191 = vset.pattern.permute.xlu0 10
      %3192 = vperm.xlu0 %3191, %v715
      %v3193 = vpop.permute.xlu0 %3192
      %3195 = vset.pattern.permute.xlu0 10
      %3196 = vperm.xlu0 %3195, %v716
      %v3197 = vpop.permute.xlu0 %3196
      %3199 = vset.pattern.permute.xlu0 10
      %3200 = vperm.xlu0 %3199, %v717
      %v3201 = vpop.permute.xlu0 %3200
      %3203 = vset.pattern.permute.xlu0 10
      %3204 = vperm.xlu0 %3203, %v718
      %v3205 = vpop.permute.xlu0 %3204
      %v3207 = vmul.f32 %v3183, %v3193
      %v3208 = vmul.f32 %v3184, %v3193
      %v3209 = vmul.f32 %v3185, %v3197
      %v3210 = vmul.f32 %v3186, %v3197
      %v3211 = vmul.f32 %v3187, %v3201
      %v3212 = vmul.f32 %v3188, %v3201
      %v3213 = vmul.f32 %v3189, %v3205
      %v3214 = vmul.f32 %v3190, %v3205
      %3215 = vset.pattern.permute.xlu0 11
      %3216 = vperm.xlu0 %3215, %v715
      %v3217 = vpop.permute.xlu0 %3216
      %3219 = vset.pattern.permute.xlu0 11
      %3220 = vperm.xlu0 %3219, %v716
      %v3221 = vpop.permute.xlu0 %3220
      %3223 = vset.pattern.permute.xlu0 11
      %3224 = vperm.xlu0 %3223, %v717
      %v3225 = vpop.permute.xlu0 %3224
      %3227 = vset.pattern.permute.xlu0 11
      %3228 = vperm.xlu0 %3227, %v718
      %v3229 = vpop.permute.xlu0 %3228
      %v3231 = vadd.f32 %v3207, %v3217
      %v3232 = vadd.f32 %v3208, %v3217
      %v3233 = vadd.f32 %v3209, %v3221
      %v3234 = vadd.f32 %v3210, %v3221
      %v3235 = vadd.f32 %v3211, %v3225
      %v3236 = vadd.f32 %v3212, %v3225
      %v3237 = vadd.f32 %v3213, %v3229
      %v3238 = vadd.f32 %v3214, %v3229
      %v3239 = vpack.c.bf16 %v3233, %v3231
      %v3240 = vpack.c.bf16 %v3234, %v3232
      %v3241 = vpack.c.bf16 %v3237, %v3235
      %v3242 = vpack.c.bf16 %v3238, %v3236
      %3243 = vrot.lane.b32.xlu0 %v3052, 96
      %v3244 = vpop.permute.xlu0 %3243
      %3245 = vrot.lane.b32.xlu0 %v3053, 96
      %v3246 = vpop.permute.xlu0 %3245
      %v3248 = vsel %vm516, %v3244, 0
      %v3251 = vsel %vm516, %v3246, 0
      %3253 = vmatpush.bf16.msra.mxu0 0
      %3254 = vmatpush.bf16.msra.mxu0 0
      %3255 = vmatpush.bf16.msra.mxu0 0
      %3256 = vmatpush.bf16.msra.mxu0 0
      %3257 = vmatpush.bf16.msra.mxu0 0
      %3258 = vmatpush.bf16.msra.mxu0 0
      %3259 = vmatpush.bf16.msra.mxu0 %v3241
      %3260 = vmatpush.bf16.msra.mxu0 %v3239
      %3261 = vmatmul.bf16.gmra.mxu0 %v3248
      %v3262 = vpop.f32.mrf.mxu0
      %v3263 = vadd.f32 0.0, %v3262
      %v3264 = vpop.f32.mrf.mxu0
      %v3265 = vadd.f32 0.0, %v3264
      %3266 = vmatmul.bf16.gmra.mxu0 %v3251
      %v3267 = vpop.f32.mrf.mxu0
      %v3268 = vadd.f32 0.0, %v3267
      %v3269 = vpop.f32.mrf.mxu0
      %v3270 = vadd.f32 0.0, %v3269
      %3271 = vdwg.mxu0
      %3272 = vmatpush.bf16.msra.mxu0 0
      %3273 = vmatpush.bf16.msra.mxu0 0
      %3274 = vmatpush.bf16.msra.mxu0 0
      %3275 = vmatpush.bf16.msra.mxu0 0
      %3276 = vmatpush.bf16.msra.mxu0 0
      %3277 = vmatpush.bf16.msra.mxu0 0
      %3278 = vmatpush.bf16.msra.mxu0 %v3242
      %3279 = vmatpush.bf16.msra.mxu0 %v3240
      %3280 = vmatmul.bf16.gmra.mxu0 %v3248
      %v3281 = vpop.f32.mrf.mxu0
      %v3282 = vadd.f32 0.0, %v3281
      %v3283 = vpop.f32.mrf.mxu0
      %v3284 = vadd.f32 0.0, %v3283
      %3285 = vmatmul.bf16.gmra.mxu0 %v3251
      %v3286 = vpop.f32.mrf.mxu0
      %v3287 = vadd.f32 0.0, %v3286
      %v3288 = vpop.f32.mrf.mxu0
      %v3289 = vadd.f32 0.0, %v3288
      %3290 = vdwg.mxu0
      %3291 = vrot.lane.b32.xlu0 %v3052, 64
      %v3292 = vpop.permute.xlu0 %3291
      %3293 = vrot.lane.b32.xlu0 %v3053, 64
      %v3294 = vpop.permute.xlu0 %3293
      %v3296 = vsel %vm516, %v3292, 0
      %v3299 = vsel %vm516, %v3294, 0
      %3301 = vmatpush.bf16.msra.mxu0 0
      %3302 = vmatpush.bf16.msra.mxu0 0
      %3303 = vmatpush.bf16.msra.mxu0 0
      %3304 = vmatpush.bf16.msra.mxu0 0
      %3305 = vmatpush.bf16.msra.mxu0 0
      %3306 = vmatpush.bf16.msra.mxu0 0
      %3307 = vmatpush.bf16.msra.mxu0 %v3241
      %3308 = vmatpush.bf16.msra.mxu0 %v3239
      %3309 = vmatmul.bf16.gmra.mxu0 %v3296
      %v3310 = vpop.f32.mrf.mxu0
      %v3311 = vadd.f32 0.0, %v3310
      %v3312 = vpop.f32.mrf.mxu0
      %v3313 = vadd.f32 0.0, %v3312
      %3314 = vmatmul.bf16.gmra.mxu0 %v3299
      %v3315 = vpop.f32.mrf.mxu0
      %v3316 = vadd.f32 0.0, %v3315
      %v3317 = vpop.f32.mrf.mxu0
      %v3318 = vadd.f32 0.0, %v3317
      %3319 = vdwg.mxu0
      %3320 = vmatpush.bf16.msra.mxu0 0
      %3321 = vmatpush.bf16.msra.mxu0 0
      %3322 = vmatpush.bf16.msra.mxu0 0
      %3323 = vmatpush.bf16.msra.mxu0 0
      %3324 = vmatpush.bf16.msra.mxu0 0
      %3325 = vmatpush.bf16.msra.mxu0 0
      %3326 = vmatpush.bf16.msra.mxu0 %v3242
      %3327 = vmatpush.bf16.msra.mxu0 %v3240
      %3328 = vmatmul.bf16.gmra.mxu0 %v3296
      %v3329 = vpop.f32.mrf.mxu0
      %v3330 = vadd.f32 0.0, %v3329
      %v3331 = vpop.f32.mrf.mxu0
      %v3332 = vadd.f32 0.0, %v3331
      %3333 = vmatmul.bf16.gmra.mxu0 %v3299
      %v3334 = vpop.f32.mrf.mxu0
      %v3335 = vadd.f32 0.0, %v3334
      %v3336 = vpop.f32.mrf.mxu0
      %v3337 = vadd.f32 0.0, %v3336
      %3338 = vdwg.mxu0
      %3339 = vrot.lane.b32.xlu0 %v3052, 32
      %v3340 = vpop.permute.xlu0 %3339
      %3341 = vrot.lane.b32.xlu0 %v3053, 32
      %v3342 = vpop.permute.xlu0 %3341
      %v3344 = vsel %vm516, %v3340, 0
      %v3347 = vsel %vm516, %v3342, 0
      %3349 = vmatpush.bf16.msra.mxu0 0
      %3350 = vmatpush.bf16.msra.mxu0 0
      %3351 = vmatpush.bf16.msra.mxu0 0
      %3352 = vmatpush.bf16.msra.mxu0 0
      %3353 = vmatpush.bf16.msra.mxu0 0
      %3354 = vmatpush.bf16.msra.mxu0 0
      %3355 = vmatpush.bf16.msra.mxu0 %v3241
      %3356 = vmatpush.bf16.msra.mxu0 %v3239
      %3357 = vmatmul.bf16.gmra.mxu0 %v3344
      %v3358 = vpop.f32.mrf.mxu0
      %v3359 = vadd.f32 0.0, %v3358
      %v3360 = vpop.f32.mrf.mxu0
      %v3361 = vadd.f32 0.0, %v3360
      %3362 = vmatmul.bf16.gmra.mxu0 %v3347
      %v3363 = vpop.f32.mrf.mxu0
      %v3364 = vadd.f32 0.0, %v3363
      %v3365 = vpop.f32.mrf.mxu0
      %v3366 = vadd.f32 0.0, %v3365
      %3367 = vdwg.mxu0
      %3368 = vmatpush.bf16.msra.mxu0 0
      %3369 = vmatpush.bf16.msra.mxu0 0
      %3370 = vmatpush.bf16.msra.mxu0 0
      %3371 = vmatpush.bf16.msra.mxu0 0
      %3372 = vmatpush.bf16.msra.mxu0 0
      %3373 = vmatpush.bf16.msra.mxu0 0
      %3374 = vmatpush.bf16.msra.mxu0 %v3242
      %3375 = vmatpush.bf16.msra.mxu0 %v3240
      %3376 = vmatmul.bf16.gmra.mxu0 %v3344
      %v3377 = vpop.f32.mrf.mxu0
      %v3378 = vadd.f32 0.0, %v3377
      %v3379 = vpop.f32.mrf.mxu0
      %v3380 = vadd.f32 0.0, %v3379
      %3381 = vmatmul.bf16.gmra.mxu0 %v3347
      %v3382 = vpop.f32.mrf.mxu0
      %v3383 = vadd.f32 0.0, %v3382
      %v3384 = vpop.f32.mrf.mxu0
      %v3385 = vadd.f32 0.0, %v3384
      %3386 = vdwg.mxu0
      %v3387 = vld [vmem:[%s8 + $0x4] sm:$0xf]
      %v3388 = vld [vmem:[%s8 + $0x10] sm:$0xf]
      %v3389 = vld [vmem:[%s8 + $0x1c] sm:$0xf]
      %v3390 = vld [vmem:[%s8 + $0x28] sm:$0xf]
      %v3391 = vpack.c.bf16 %v3282, %v3263
      %v3392 = vpack.c.bf16 %v3284, %v3265
      %v3393 = vpack.c.bf16 %v3287, %v3268
      %v3394 = vpack.c.bf16 %v3289, %v3270
      %v3395 = vpack.c.bf16 %v3330, %v3311
      %v3396 = vpack.c.bf16 %v3332, %v3313
      %v3397 = vpack.c.bf16 %v3335, %v3316
      %v3398 = vpack.c.bf16 %v3337, %v3318
      %v3399 = vpack.c.bf16 %v3378, %v3359
      %v3400 = vpack.c.bf16 %v3380, %v3361
      %v3401 = vpack.c.bf16 %v3383, %v3364
      %v3402 = vpack.c.bf16 %v3385, %v3366
      %v3405 = vunpack.c.l.b16 %v3395
      %v3406 = vunpack.c.h.b16 %v3395
      %v3407 = vunpack.c.l.b16 %v3396
      %v3408 = vunpack.c.h.b16 %v3396
      %v3409 = vpack.c.b16 %v3407, %v3405
      %v3410 = vpack.c.b16 %v3408, %v3406
      %3413 = vxpose.binary.xlu0.c.b16.start [1/16] %v3410, %v3409, 128
      %3414 = vxpose.binary.xlu0.c.b16.cont [2/16] 0, 0, 128
      %3415 = vxpose.binary.xlu0.c.b16.cont [3/16] 0, 0, 128
      %3416 = vxpose.binary.xlu0.c.b16.cont [4/16] 0, 0, 128
      %3417 = vxpose.binary.xlu0.c.b16.cont [5/16] 0, 0, 128
      %3418 = vxpose.binary.xlu0.c.b16.cont [6/16] 0, 0, 128
      %3419 = vxpose.binary.xlu0.c.b16.cont [7/16] 0, 0, 128
      %3420 = vxpose.binary.xlu0.c.b16.end [8/16] 0, 0, 128
      %v3421 = vpop.trf.xlu0
      %v3422 = vpop.trf.xlu0
      %v3423 = vpop.trf.xlu0
      %v3424 = vpop.trf.xlu0
      %v3425 = vpop.trf.xlu0
      %v3426 = vpop.trf.xlu0
      %v3427 = vpop.trf.xlu0
      %v3428 = vpop.trf.xlu0
      %v3429 = vpop.trf.xlu0
      %v3430 = vpop.trf.xlu0
      %v3431 = vpop.trf.xlu0
      %v3432 = vpop.trf.xlu0
      %v3433 = vpop.trf.xlu0
      %v3434 = vpop.trf.xlu0
      %v3435 = vpop.trf.xlu0
      %v3436 = vpop.trf.xlu0
      %v3439 = vunpack.c.l.b16 %v3391
      %v3440 = vunpack.c.l.b16 %v3392
      %v3441 = vpack.c.b16 %v3440, %v3439
      %vm3443 = vcmask 130048
      %v3445 = vsel %vm3443, %v3421, 0
      %v3448 = vsel %vm3443, %v3423, 0
      %v3451 = vsel %vm3443, %v3425, 0
      %v3454 = vsel %vm3443, %v3427, 0
      %v3457 = vsel %vm3443, %v3429, 0
      %v3460 = vsel %vm3443, %v3431, 0
      %v3463 = vsel %vm3443, %v3433, 0
      %v3466 = vsel %vm3443, %v3435, 0
      %v3469 = vsel %vm3443, %v3422, 0
      %v3472 = vsel %vm3443, %v3424, 0
      %v3475 = vsel %vm3443, %v3426, 0
      %v3478 = vsel %vm3443, %v3428, 0
      %v3481 = vsel %vm3443, %v3430, 0
      %v3484 = vsel %vm3443, %v3432, 0
      %v3487 = vsel %vm3443, %v3434, 0
      %v3490 = vsel %vm3443, %v3436, 0
      %3492 = vmatpush.bf16.msra.mxu0 0
      %3493 = vmatpush.bf16.msra.mxu0 0
      %3494 = vmatpush.bf16.msra.mxu0 0
      %3495 = vmatpush.bf16.msra.mxu0 0
      %3496 = vmatpush.bf16.msra.mxu0 0
      %3497 = vmatpush.bf16.msra.mxu0 0
      %3498 = vmatpush.bf16.msra.mxu0 0
      %3499 = vmatpush.bf16.msra.mxu0 %v3441
      %3500 = vmatmul.bf16.gmra.mxu0 %v3445
      %v3501 = vpop.f32.mrf.mxu0
      %v3502 = vadd.f32 0.0, %v3501
      %v3503 = vpop.f32.mrf.mxu0
      %v3504 = vadd.f32 0.0, %v3503
      %3505 = vmatmul.bf16.gmra.mxu0 %v3448
      %v3506 = vpop.f32.mrf.mxu0
      %v3507 = vadd.f32 0.0, %v3506
      %v3508 = vpop.f32.mrf.mxu0
      %v3509 = vadd.f32 0.0, %v3508
      %3510 = vmatmul.bf16.gmra.mxu0 %v3451
      %v3511 = vpop.f32.mrf.mxu0
      %v3512 = vadd.f32 0.0, %v3511
      %v3513 = vpop.f32.mrf.mxu0
      %v3514 = vadd.f32 0.0, %v3513
      %3515 = vmatmul.bf16.gmra.mxu0 %v3454
      %v3516 = vpop.f32.mrf.mxu0
      %v3517 = vadd.f32 0.0, %v3516
      %v3518 = vpop.f32.mrf.mxu0
      %v3519 = vadd.f32 0.0, %v3518
      %3520 = vmatmul.bf16.gmra.mxu0 %v3457
      %v3521 = vpop.f32.mrf.mxu0
      %v3522 = vadd.f32 0.0, %v3521
      %v3523 = vpop.f32.mrf.mxu0
      %v3524 = vadd.f32 0.0, %v3523
      %3525 = vmatmul.bf16.gmra.mxu0 %v3460
      %v3526 = vpop.f32.mrf.mxu0
      %v3527 = vadd.f32 0.0, %v3526
      %v3528 = vpop.f32.mrf.mxu0
      %v3529 = vadd.f32 0.0, %v3528
      %3530 = vmatmul.bf16.gmra.mxu0 %v3463
      %v3531 = vpop.f32.mrf.mxu0
      %v3532 = vadd.f32 0.0, %v3531
      %v3533 = vpop.f32.mrf.mxu0
      %v3534 = vadd.f32 0.0, %v3533
      %3535 = vmatmul.bf16.gmra.mxu0 %v3466
      %v3536 = vpop.f32.mrf.mxu0
      %v3537 = vadd.f32 0.0, %v3536
      %v3538 = vpop.f32.mrf.mxu0
      %v3539 = vadd.f32 0.0, %v3538
      %3540 = vmatmul.bf16.gmra.mxu0 %v3469
      %v3541 = vpop.f32.mrf.mxu0
      %v3542 = vadd.f32 0.0, %v3541
      %v3543 = vpop.f32.mrf.mxu0
      %v3544 = vadd.f32 0.0, %v3543
      %3545 = vmatmul.bf16.gmra.mxu0 %v3472
      %v3546 = vpop.f32.mrf.mxu0
      %v3547 = vadd.f32 0.0, %v3546
      %v3548 = vpop.f32.mrf.mxu0
      %v3549 = vadd.f32 0.0, %v3548
      %3550 = vmatmul.bf16.gmra.mxu0 %v3475
      %v3551 = vpop.f32.mrf.mxu0
      %v3552 = vadd.f32 0.0, %v3551
      %v3553 = vpop.f32.mrf.mxu0
      %v3554 = vadd.f32 0.0, %v3553
      %3555 = vmatmul.bf16.gmra.mxu0 %v3478
      %v3556 = vpop.f32.mrf.mxu0
      %v3557 = vadd.f32 0.0, %v3556
      %v3558 = vpop.f32.mrf.mxu0
      %v3559 = vadd.f32 0.0, %v3558
      %3560 = vmatmul.bf16.gmra.mxu0 %v3481
      %v3561 = vpop.f32.mrf.mxu0
      %v3562 = vadd.f32 0.0, %v3561
      %v3563 = vpop.f32.mrf.mxu0
      %v3564 = vadd.f32 0.0, %v3563
      %3565 = vmatmul.bf16.gmra.mxu0 %v3484
      %v3566 = vpop.f32.mrf.mxu0
      %v3567 = vadd.f32 0.0, %v3566
      %v3568 = vpop.f32.mrf.mxu0
      %v3569 = vadd.f32 0.0, %v3568
      %3570 = vmatmul.bf16.gmra.mxu0 %v3487
      %v3571 = vpop.f32.mrf.mxu0
      %v3572 = vadd.f32 0.0, %v3571
      %v3573 = vpop.f32.mrf.mxu0
      %v3574 = vadd.f32 0.0, %v3573
      %3575 = vmatmul.bf16.gmra.mxu0 %v3490
      %v3576 = vpop.f32.mrf.mxu0
      %v3577 = vadd.f32 0.0, %v3576
      %v3578 = vpop.f32.mrf.mxu0
      %v3579 = vadd.f32 0.0, %v3578
      %3580 = vdwg.mxu0
      %v3581 = vmax.f32 %v3502, %v3512
      %v3582 = vmax.f32 %v3504, %v3514
      %v3583 = vmax.f32 %v3507, %v3517
      %v3584 = vmax.f32 %v3509, %v3519
      %v3585 = vmax.f32 %v3581, %v3522
      %v3586 = vmax.f32 %v3582, %v3524
      %v3587 = vmax.f32 %v3583, %v3527
      %v3588 = vmax.f32 %v3584, %v3529
      %v3589 = vmax.f32 %v3585, %v3532
      %v3590 = vmax.f32 %v3586, %v3534
      %v3591 = vmax.f32 %v3587, %v3537
      %v3592 = vmax.f32 %v3588, %v3539
      %v3593 = vmax.f32 %v3589, %v3542
      %v3594 = vmax.f32 %v3590, %v3544
      %v3595 = vmax.f32 %v3591, %v3547
      %v3596 = vmax.f32 %v3592, %v3549
      %v3597 = vmax.f32 %v3593, %v3552
      %v3598 = vmax.f32 %v3594, %v3554
      %v3599 = vmax.f32 %v3595, %v3557
      %v3600 = vmax.f32 %v3596, %v3559
      %v3601 = vmax.f32 %v3597, %v3562
      %v3602 = vmax.f32 %v3598, %v3564
      %v3603 = vmax.f32 %v3599, %v3567
      %v3604 = vmax.f32 %v3600, %v3569
      %v3605 = vmax.f32 %v3601, %v3572
      %v3606 = vmax.f32 %v3602, %v3574
      %v3607 = vmax.f32 %v3603, %v3577
      %v3608 = vmax.f32 %v3604, %v3579
      %v3609 = vmax.f32 %v3605, %v3606
      %v3610 = vmax.f32 %v3607, %v3608
      %v3611 = vmax.f32 %v3609, %v3610
      %v3612 = vrot.slane %v3611, 4
      %v3613 = vmax.f32 %v3611, %v3612
      %v3614 = vrot.slane %v3613, 2
      %v3615 = vmax.f32 %v3613, %v3614
      %v3616 = vrot.slane %v3615, 1
      %v3617 = vmax.f32 %v3615, %v3616
      %v3618 = vsub.f32 %v3502, %v3617
      %v3619 = vsub.f32 %v3504, %v3617
      %v3620 = vsub.f32 %v3507, %v3617
      %v3621 = vsub.f32 %v3509, %v3617
      %v3622 = vsub.f32 %v3512, %v3617
      %v3623 = vsub.f32 %v3514, %v3617
      %v3624 = vsub.f32 %v3517, %v3617
      %v3625 = vsub.f32 %v3519, %v3617
      %v3626 = vsub.f32 %v3522, %v3617
      %v3627 = vsub.f32 %v3524, %v3617
      %v3628 = vsub.f32 %v3527, %v3617
      %v3629 = vsub.f32 %v3529, %v3617
      %v3630 = vsub.f32 %v3532, %v3617
      %v3631 = vsub.f32 %v3534, %v3617
      %v3632 = vsub.f32 %v3537, %v3617
      %v3633 = vsub.f32 %v3539, %v3617
      %v3634 = vsub.f32 %v3542, %v3617
      %v3635 = vsub.f32 %v3544, %v3617
      %v3636 = vsub.f32 %v3547, %v3617
      %v3637 = vsub.f32 %v3549, %v3617
      %v3638 = vsub.f32 %v3552, %v3617
      %v3639 = vsub.f32 %v3554, %v3617
      %v3640 = vsub.f32 %v3557, %v3617
      %v3641 = vsub.f32 %v3559, %v3617
      %v3642 = vsub.f32 %v3562, %v3617
      %v3643 = vsub.f32 %v3564, %v3617
      %v3644 = vsub.f32 %v3567, %v3617
      %v3645 = vsub.f32 %v3569, %v3617
      %v3646 = vsub.f32 %v3572, %v3617
      %v3647 = vsub.f32 %v3574, %v3617
      %v3648 = vsub.f32 %v3577, %v3617
      %v3649 = vsub.f32 %v3579, %v3617
      %v3650 = vmul.f32 %v3618, 1.442695
      %v3651 = vpow.pop %v3650
      %v3652 = vmul.f32 %v3619, 1.442695
      %v3653 = vpow.pop %v3652
      %v3654 = vmul.f32 %v3620, 1.442695
      %v3655 = vpow.pop %v3654
      %v3656 = vmul.f32 %v3621, 1.442695
      %v3657 = vpow.pop %v3656
      %v3658 = vmul.f32 %v3622, 1.442695
      %v3659 = vpow.pop %v3658
      %v3660 = vmul.f32 %v3623, 1.442695
      %v3661 = vpow.pop %v3660
      %v3662 = vmul.f32 %v3624, 1.442695
      %v3663 = vpow.pop %v3662
      %v3664 = vmul.f32 %v3625, 1.442695
      %v3665 = vpow.pop %v3664
      %v3666 = vmul.f32 %v3626, 1.442695
      %v3667 = vpow.pop %v3666
      %v3668 = vmul.f32 %v3627, 1.442695
      %v3669 = vpow.pop %v3668
      %v3670 = vmul.f32 %v3628, 1.442695
      %v3671 = vpow.pop %v3670
      %v3672 = vmul.f32 %v3629, 1.442695
      %v3673 = vpow.pop %v3672
      %v3674 = vmul.f32 %v3630, 1.442695
      %v3675 = vpow.pop %v3674
      %v3676 = vmul.f32 %v3631, 1.442695
      %v3677 = vpow.pop %v3676
      %v3678 = vmul.f32 %v3632, 1.442695
      %v3679 = vpow.pop %v3678
      %v3680 = vmul.f32 %v3633, 1.442695
      %v3681 = vpow.pop %v3680
      %v3682 = vmul.f32 %v3634, 1.442695
      %v3683 = vpow.pop %v3682
      %v3684 = vmul.f32 %v3635, 1.442695
      %v3685 = vpow.pop %v3684
      %v3686 = vmul.f32 %v3636, 1.442695
      %v3687 = vpow.pop %v3686
      %v3688 = vmul.f32 %v3637, 1.442695
      %v3689 = vpow.pop %v3688
      %v3690 = vmul.f32 %v3638, 1.442695
      %v3691 = vpow.pop %v3690
      %v3692 = vmul.f32 %v3639, 1.442695
      %v3693 = vpow.pop %v3692
      %v3694 = vmul.f32 %v3640, 1.442695
      %v3695 = vpow.pop %v3694
      %v3696 = vmul.f32 %v3641, 1.442695
      %v3697 = vpow.pop %v3696
      %v3698 = vmul.f32 %v3642, 1.442695
      %v3699 = vpow.pop %v3698
      %v3700 = vmul.f32 %v3643, 1.442695
      %v3701 = vpow.pop %v3700
      %v3702 = vmul.f32 %v3644, 1.442695
      %v3703 = vpow.pop %v3702
      %v3704 = vmul.f32 %v3645, 1.442695
      %v3705 = vpow.pop %v3704
      %v3706 = vmul.f32 %v3646, 1.442695
      %v3707 = vpow.pop %v3706
      %v3708 = vmul.f32 %v3647, 1.442695
      %v3709 = vpow.pop %v3708
      %v3710 = vmul.f32 %v3648, 1.442695
      %v3711 = vpow.pop %v3710
      %v3712 = vmul.f32 %v3649, 1.442695
      %v3713 = vpow.pop %v3712
      %v3714 = vadd.f32 %v3651, %v3653
      %v3715 = vadd.f32 %v3714, %v3655
      %v3716 = vadd.f32 %v3715, %v3657
      %v3717 = vadd.f32 %v3716, %v3659
      %v3718 = vadd.f32 %v3717, %v3661
      %v3719 = vadd.f32 %v3718, %v3663
      %v3720 = vadd.f32 %v3719, %v3665
      %v3721 = vadd.f32 %v3720, %v3667
      %v3722 = vadd.f32 %v3721, %v3669
      %v3723 = vadd.f32 %v3722, %v3671
      %v3724 = vadd.f32 %v3723, %v3673
      %v3725 = vadd.f32 %v3724, %v3675
      %v3726 = vadd.f32 %v3725, %v3677
      %v3727 = vadd.f32 %v3726, %v3679
      %v3728 = vadd.f32 %v3727, %v3681
      %v3729 = vadd.f32 %v3728, %v3683
      %v3730 = vadd.f32 %v3729, %v3685
      %v3731 = vadd.f32 %v3730, %v3687
      %v3732 = vadd.f32 %v3731, %v3689
      %v3733 = vadd.f32 %v3732, %v3691
      %v3734 = vadd.f32 %v3733, %v3693
      %v3735 = vadd.f32 %v3734, %v3695
      %v3736 = vadd.f32 %v3735, %v3697
      %v3737 = vadd.f32 %v3736, %v3699
      %v3738 = vadd.f32 %v3737, %v3701
      %v3739 = vadd.f32 %v3738, %v3703
      %v3740 = vadd.f32 %v3739, %v3705
      %v3741 = vadd.f32 %v3740, %v3707
      %v3742 = vadd.f32 %v3741, %v3709
      %v3743 = vadd.f32 %v3742, %v3711
      %v3744 = vadd.f32 %v3743, %v3713
      %v3745 = vrot.slane %v3744, 4
      %v3746 = vadd.f32 %v3744, %v3745
      %v3747 = vrot.slane %v3746, 2
      %v3748 = vadd.f32 %v3746, %v3747
      %v3749 = vrot.slane %v3748, 1
      %v3750 = vadd.f32 %v3748, %v3749
      %v3751 = vpack.c.bf16 %v3653, %v3651
      %v3752 = vpack.c.bf16 %v3657, %v3655
      %v3753 = vpack.c.bf16 %v3661, %v3659
      %v3754 = vpack.c.bf16 %v3665, %v3663
      %v3755 = vpack.c.bf16 %v3669, %v3667
      %v3756 = vpack.c.bf16 %v3673, %v3671
      %v3757 = vpack.c.bf16 %v3677, %v3675
      %v3758 = vpack.c.bf16 %v3681, %v3679
      %v3759 = vpack.c.bf16 %v3685, %v3683
      %v3760 = vpack.c.bf16 %v3689, %v3687
      %v3761 = vpack.c.bf16 %v3693, %v3691
      %v3762 = vpack.c.bf16 %v3697, %v3695
      %v3763 = vpack.c.bf16 %v3701, %v3699
      %v3764 = vpack.c.bf16 %v3705, %v3703
      %v3765 = vpack.c.bf16 %v3709, %v3707
      %v3766 = vpack.c.bf16 %v3713, %v3711
      %v3769 = vunpack.c.l.b16 %v3399
      %v3770 = vunpack.c.h.b16 %v3399
      %v3771 = vunpack.c.l.b16 %v3400
      %v3772 = vunpack.c.h.b16 %v3400
      %v3773 = vpack.c.b16 %v3771, %v3769
      %v3774 = vpack.c.b16 %v3772, %v3770
      %3777 = vmatpush.bf16.msra.mxu0 %v3758
      %3778 = vmatpush.bf16.msra.mxu0 %v3757
      %3779 = vmatpush.bf16.msra.mxu0 %v3756
      %3780 = vmatpush.bf16.msra.mxu0 %v3755
      %3781 = vmatpush.bf16.msra.mxu0 %v3754
      %3782 = vmatpush.bf16.msra.mxu0 %v3753
      %3783 = vmatpush.bf16.msra.mxu0 %v3752
      %3784 = vmatpush.bf16.msra.mxu0 %v3751
      %3785 = vmatmul.bf16.gmra.mxu0 %v3773
      %v3786 = vpop.f32.mrf.mxu0
      %v3787 = vadd.f32 0.0, %v3786
      %v3788 = vpop.f32.mrf.mxu0
      %v3789 = vadd.f32 0.0, %v3788
      %3790 = vdwg.mxu0
      %3791 = vmatpush.bf16.msra.mxu0 %v3766
      %3792 = vmatpush.bf16.msra.mxu0 %v3765
      %3793 = vmatpush.bf16.msra.mxu0 %v3764
      %3794 = vmatpush.bf16.msra.mxu0 %v3763
      %3795 = vmatpush.bf16.msra.mxu0 %v3762
      %3796 = vmatpush.bf16.msra.mxu0 %v3761
      %3797 = vmatpush.bf16.msra.mxu0 %v3760
      %3798 = vmatpush.bf16.msra.mxu0 %v3759
      %3799 = vmatmul.bf16.gmra.mxu0 %v3774
      %v3800 = vpop.f32.mrf.mxu0
      %v3801 = vadd.f32 %v3787, %v3800
      %v3802 = vpop.f32.mrf.mxu0
      %v3803 = vadd.f32 %v3789, %v3802
      %3804 = vdwg.mxu0
      %v3805 = vrcp.pop %v3750
      %v3806 = vmul.f32 %v3750, %v3805
      %v3807 = vsub.f32 1.0, %v3806
      %v3808 = vmul.f32 %v3805, %v3807
      %v3809 = vadd.f32 %v3805, %v3808
      %vm3810 = vweird.f32 %v3750
      %vm3811 = vweird.f32 %v3805
      %vm3812 = vmor %vm3810, %vm3811
      %v3813 = vsel %vm3812, %v3805, %v3809
      %v3814 = vand.u32 2147483647, %v3750
      %vm3815 = vcmp.eq.f32.partialorder %v3814, 8.507059e+37
      %v3816 = vand.u32 %v3750, 2147483648
      %v3817 = vor.u32 1.1754944e-38, %v3816
      %v3818 = vsel %vm3815, %v3817, %v3813
      %v3819 = vmul.f32 %v3801, %v3818
      %v3820 = vmul.f32 %v3803, %v3818
      %v3821 = vpack.c.bf16 %v3820, %v3819
      %v3824 = vunpack.c.l.b16 %v3397
      %v3825 = vunpack.c.h.b16 %v3397
      %v3826 = vunpack.c.l.b16 %v3398
      %v3827 = vunpack.c.h.b16 %v3398
      %v3828 = vpack.c.b16 %v3826, %v3824
      %v3829 = vpack.c.b16 %v3827, %v3825
      %3832 = vxpose.binary.xlu0.c.b16.start [1/16] %v3829, %v3828, 128
      %3833 = vxpose.binary.xlu0.c.b16.cont [2/16] 0, 0, 128
      %3834 = vxpose.binary.xlu0.c.b16.cont [3/16] 0, 0, 128
      %3835 = vxpose.binary.xlu0.c.b16.cont [4/16] 0, 0, 128
      %3836 = vxpose.binary.xlu0.c.b16.cont [5/16] 0, 0, 128
      %3837 = vxpose.binary.xlu0.c.b16.cont [6/16] 0, 0, 128
      %3838 = vxpose.binary.xlu0.c.b16.cont [7/16] 0, 0, 128
      %3839 = vxpose.binary.xlu0.c.b16.end [8/16] 0, 0, 128
      %v3840 = vpop.trf.xlu0
      %v3841 = vpop.trf.xlu0
      %v3842 = vpop.trf.xlu0
      %v3843 = vpop.trf.xlu0
      %v3844 = vpop.trf.xlu0
      %v3845 = vpop.trf.xlu0
      %v3846 = vpop.trf.xlu0
      %v3847 = vpop.trf.xlu0
      %v3848 = vpop.trf.xlu0
      %v3849 = vpop.trf.xlu0
      %v3850 = vpop.trf.xlu0
      %v3851 = vpop.trf.xlu0
      %v3852 = vpop.trf.xlu0
      %v3853 = vpop.trf.xlu0
      %v3854 = vpop.trf.xlu0
      %v3855 = vpop.trf.xlu0
      %v3858 = vunpack.c.l.b16 %v3393
      %v3859 = vunpack.c.l.b16 %v3394
      %v3860 = vpack.c.b16 %v3859, %v3858
      %v3863 = vsel %vm3443, %v3840, 0
      %v3866 = vsel %vm3443, %v3842, 0
      %v3869 = vsel %vm3443, %v3844, 0
      %v3872 = vsel %vm3443, %v3846, 0
      %v3875 = vsel %vm3443, %v3848, 0
      %v3878 = vsel %vm3443, %v3850, 0
      %v3881 = vsel %vm3443, %v3852, 0
      %v3884 = vsel %vm3443, %v3854, 0
      %v3887 = vsel %vm3443, %v3841, 0
      %v3890 = vsel %vm3443, %v3843, 0
      %v3893 = vsel %vm3443, %v3845, 0
      %v3896 = vsel %vm3443, %v3847, 0
      %v3899 = vsel %vm3443, %v3849, 0
      %v3902 = vsel %vm3443, %v3851, 0
      %v3905 = vsel %vm3443, %v3853, 0
      %v3908 = vsel %vm3443, %v3855, 0
      %3910 = vmatpush.bf16.msra.mxu0 0
      %3911 = vmatpush.bf16.msra.mxu0 0
      %3912 = vmatpush.bf16.msra.mxu0 0
      %3913 = vmatpush.bf16.msra.mxu0 0
      %3914 = vmatpush.bf16.msra.mxu0 0
      %3915 = vmatpush.bf16.msra.mxu0 0
      %3916 = vmatpush.bf16.msra.mxu0 0
      %3917 = vmatpush.bf16.msra.mxu0 %v3860
      %3918 = vmatmul.bf16.gmra.mxu0 %v3863
      %v3919 = vpop.f32.mrf.mxu0
      %v3920 = vadd.f32 0.0, %v3919
      %v3921 = vpop.f32.mrf.mxu0
      %v3922 = vadd.f32 0.0, %v3921
      %3923 = vmatmul.bf16.gmra.mxu0 %v3866
      %v3924 = vpop.f32.mrf.mxu0
      %v3925 = vadd.f32 0.0, %v3924
      %v3926 = vpop.f32.mrf.mxu0
      %v3927 = vadd.f32 0.0, %v3926
      %3928 = vmatmul.bf16.gmra.mxu0 %v3869
      %v3929 = vpop.f32.mrf.mxu0
      %v3930 = vadd.f32 0.0, %v3929
      %v3931 = vpop.f32.mrf.mxu0
      %v3932 = vadd.f32 0.0, %v3931
      %3933 = vmatmul.bf16.gmra.mxu0 %v3872
      %v3934 = vpop.f32.mrf.mxu0
      %v3935 = vadd.f32 0.0, %v3934
      %v3936 = vpop.f32.mrf.mxu0
      %v3937 = vadd.f32 0.0, %v3936
      %3938 = vmatmul.bf16.gmra.mxu0 %v3875
      %v3939 = vpop.f32.mrf.mxu0
      %v3940 = vadd.f32 0.0, %v3939
      %v3941 = vpop.f32.mrf.mxu0
      %v3942 = vadd.f32 0.0, %v3941
      %3943 = vmatmul.bf16.gmra.mxu0 %v3878
      %v3944 = vpop.f32.mrf.mxu0
      %v3945 = vadd.f32 0.0, %v3944
      %v3946 = vpop.f32.mrf.mxu0
      %v3947 = vadd.f32 0.0, %v3946
      %3948 = vmatmul.bf16.gmra.mxu0 %v3881
      %v3949 = vpop.f32.mrf.mxu0
      %v3950 = vadd.f32 0.0, %v3949
      %v3951 = vpop.f32.mrf.mxu0
      %v3952 = vadd.f32 0.0, %v3951
      %3953 = vmatmul.bf16.gmra.mxu0 %v3884
      %v3954 = vpop.f32.mrf.mxu0
      %v3955 = vadd.f32 0.0, %v3954
      %v3956 = vpop.f32.mrf.mxu0
      %v3957 = vadd.f32 0.0, %v3956
      %3958 = vmatmul.bf16.gmra.mxu0 %v3887
      %v3959 = vpop.f32.mrf.mxu0
      %v3960 = vadd.f32 0.0, %v3959
      %v3961 = vpop.f32.mrf.mxu0
      %v3962 = vadd.f32 0.0, %v3961
      %3963 = vmatmul.bf16.gmra.mxu0 %v3890
      %v3964 = vpop.f32.mrf.mxu0
      %v3965 = vadd.f32 0.0, %v3964
      %v3966 = vpop.f32.mrf.mxu0
      %v3967 = vadd.f32 0.0, %v3966
      %3968 = vmatmul.bf16.gmra.mxu0 %v3893
      %v3969 = vpop.f32.mrf.mxu0
      %v3970 = vadd.f32 0.0, %v3969
      %v3971 = vpop.f32.mrf.mxu0
      %v3972 = vadd.f32 0.0, %v3971
      %3973 = vmatmul.bf16.gmra.mxu0 %v3896
      %v3974 = vpop.f32.mrf.mxu0
      %v3975 = vadd.f32 0.0, %v3974
      %v3976 = vpop.f32.mrf.mxu0
      %v3977 = vadd.f32 0.0, %v3976
      %3978 = vmatmul.bf16.gmra.mxu0 %v3899
      %v3979 = vpop.f32.mrf.mxu0
      %v3980 = vadd.f32 0.0, %v3979
      %v3981 = vpop.f32.mrf.mxu0
      %v3982 = vadd.f32 0.0, %v3981
      %3983 = vmatmul.bf16.gmra.mxu0 %v3902
      %v3984 = vpop.f32.mrf.mxu0
      %v3985 = vadd.f32 0.0, %v3984
      %v3986 = vpop.f32.mrf.mxu0
      %v3987 = vadd.f32 0.0, %v3986
      %3988 = vmatmul.bf16.gmra.mxu0 %v3905
      %v3989 = vpop.f32.mrf.mxu0
      %v3990 = vadd.f32 0.0, %v3989
      %v3991 = vpop.f32.mrf.mxu0
      %v3992 = vadd.f32 0.0, %v3991
      %3993 = vmatmul.bf16.gmra.mxu0 %v3908
      %v3994 = vpop.f32.mrf.mxu0
      %v3995 = vadd.f32 0.0, %v3994
      %v3996 = vpop.f32.mrf.mxu0
      %v3997 = vadd.f32 0.0, %v3996
      %3998 = vdwg.mxu0
      %v3999 = vmax.f32 %v3920, %v3930
      %v4000 = vmax.f32 %v3922, %v3932
      %v4001 = vmax.f32 %v3925, %v3935
      %v4002 = vmax.f32 %v3927, %v3937
      %v4003 = vmax.f32 %v3999, %v3940
      %v4004 = vmax.f32 %v4000, %v3942
      %v4005 = vmax.f32 %v4001, %v3945
      %v4006 = vmax.f32 %v4002, %v3947
      %v4007 = vmax.f32 %v4003, %v3950
      %v4008 = vmax.f32 %v4004, %v3952
      %v4009 = vmax.f32 %v4005, %v3955
      %v4010 = vmax.f32 %v4006, %v3957
      %v4011 = vmax.f32 %v4007, %v3960
      %v4012 = vmax.f32 %v4008, %v3962
      %v4013 = vmax.f32 %v4009, %v3965
      %v4014 = vmax.f32 %v4010, %v3967
      %v4015 = vmax.f32 %v4011, %v3970
      %v4016 = vmax.f32 %v4012, %v3972
      %v4017 = vmax.f32 %v4013, %v3975
      %v4018 = vmax.f32 %v4014, %v3977
      %v4019 = vmax.f32 %v4015, %v3980
      %v4020 = vmax.f32 %v4016, %v3982
      %v4021 = vmax.f32 %v4017, %v3985
      %v4022 = vmax.f32 %v4018, %v3987
      %v4023 = vmax.f32 %v4019, %v3990
      %v4024 = vmax.f32 %v4020, %v3992
      %v4025 = vmax.f32 %v4021, %v3995
      %v4026 = vmax.f32 %v4022, %v3997
      %v4027 = vmax.f32 %v4023, %v4024
      %v4028 = vmax.f32 %v4025, %v4026
      %v4029 = vmax.f32 %v4027, %v4028
      %v4030 = vrot.slane %v4029, 4
      %v4031 = vmax.f32 %v4029, %v4030
      %v4032 = vrot.slane %v4031, 2
      %v4033 = vmax.f32 %v4031, %v4032
      %v4034 = vrot.slane %v4033, 1
      %v4035 = vmax.f32 %v4033, %v4034
      %v4036 = vsub.f32 %v3920, %v4035
      %v4037 = vsub.f32 %v3922, %v4035
      %v4038 = vsub.f32 %v3925, %v4035
      %v4039 = vsub.f32 %v3927, %v4035
      %v4040 = vsub.f32 %v3930, %v4035
      %v4041 = vsub.f32 %v3932, %v4035
      %v4042 = vsub.f32 %v3935, %v4035
      %v4043 = vsub.f32 %v3937, %v4035
      %v4044 = vsub.f32 %v3940, %v4035
      %v4045 = vsub.f32 %v3942, %v4035
      %v4046 = vsub.f32 %v3945, %v4035
      %v4047 = vsub.f32 %v3947, %v4035
      %v4048 = vsub.f32 %v3950, %v4035
      %v4049 = vsub.f32 %v3952, %v4035
      %v4050 = vsub.f32 %v3955, %v4035
      %v4051 = vsub.f32 %v3957, %v4035
      %v4052 = vsub.f32 %v3960, %v4035
      %v4053 = vsub.f32 %v3962, %v4035
      %v4054 = vsub.f32 %v3965, %v4035
      %v4055 = vsub.f32 %v3967, %v4035
      %v4056 = vsub.f32 %v3970, %v4035
      %v4057 = vsub.f32 %v3972, %v4035
      %v4058 = vsub.f32 %v3975, %v4035
      %v4059 = vsub.f32 %v3977, %v4035
      %v4060 = vsub.f32 %v3980, %v4035
      %v4061 = vsub.f32 %v3982, %v4035
      %v4062 = vsub.f32 %v3985, %v4035
      %v4063 = vsub.f32 %v3987, %v4035
      %v4064 = vsub.f32 %v3990, %v4035
      %v4065 = vsub.f32 %v3992, %v4035
      %v4066 = vsub.f32 %v3995, %v4035
      %v4067 = vsub.f32 %v3997, %v4035
      %v4068 = vmul.f32 %v4036, 1.442695
      %v4069 = vpow.pop %v4068
      %v4070 = vmul.f32 %v4037, 1.442695
      %v4071 = vpow.pop %v4070
      %v4072 = vmul.f32 %v4038, 1.442695
      %v4073 = vpow.pop %v4072
      %v4074 = vmul.f32 %v4039, 1.442695
      %v4075 = vpow.pop %v4074
      %v4076 = vmul.f32 %v4040, 1.442695
      %v4077 = vpow.pop %v4076
      %v4078 = vmul.f32 %v4041, 1.442695
      %v4079 = vpow.pop %v4078
      %v4080 = vmul.f32 %v4042, 1.442695
      %v4081 = vpow.pop %v4080
      %v4082 = vmul.f32 %v4043, 1.442695
      %v4083 = vpow.pop %v4082
      %v4084 = vmul.f32 %v4044, 1.442695
      %v4085 = vpow.pop %v4084
      %v4086 = vmul.f32 %v4045, 1.442695
      %v4087 = vpow.pop %v4086
      %v4088 = vmul.f32 %v4046, 1.442695
      %v4089 = vpow.pop %v4088
      %v4090 = vmul.f32 %v4047, 1.442695
      %v4091 = vpow.pop %v4090
      %v4092 = vmul.f32 %v4048, 1.442695
      %v4093 = vpow.pop %v4092
      %v4094 = vmul.f32 %v4049, 1.442695
      %v4095 = vpow.pop %v4094
      %v4096 = vmul.f32 %v4050, 1.442695
      %v4097 = vpow.pop %v4096
      %v4098 = vmul.f32 %v4051, 1.442695
      %v4099 = vpow.pop %v4098
      %v4100 = vmul.f32 %v4052, 1.442695
      %v4101 = vpow.pop %v4100
      %v4102 = vmul.f32 %v4053, 1.442695
      %v4103 = vpow.pop %v4102
      %v4104 = vmul.f32 %v4054, 1.442695
      %v4105 = vpow.pop %v4104
      %v4106 = vmul.f32 %v4055, 1.442695
      %v4107 = vpow.pop %v4106
      %v4108 = vmul.f32 %v4056, 1.442695
      %v4109 = vpow.pop %v4108
      %v4110 = vmul.f32 %v4057, 1.442695
      %v4111 = vpow.pop %v4110
      %v4112 = vmul.f32 %v4058, 1.442695
      %v4113 = vpow.pop %v4112
      %v4114 = vmul.f32 %v4059, 1.442695
      %v4115 = vpow.pop %v4114
      %v4116 = vmul.f32 %v4060, 1.442695
      %v4117 = vpow.pop %v4116
      %v4118 = vmul.f32 %v4061, 1.442695
      %v4119 = vpow.pop %v4118
      %v4120 = vmul.f32 %v4062, 1.442695
      %v4121 = vpow.pop %v4120
      %v4122 = vmul.f32 %v4063, 1.442695
      %v4123 = vpow.pop %v4122
      %v4124 = vmul.f32 %v4064, 1.442695
      %v4125 = vpow.pop %v4124
      %v4126 = vmul.f32 %v4065, 1.442695
      %v4127 = vpow.pop %v4126
      %v4128 = vmul.f32 %v4066, 1.442695
      %v4129 = vpow.pop %v4128
      %v4130 = vmul.f32 %v4067, 1.442695
      %v4131 = vpow.pop %v4130
      %v4132 = vadd.f32 %v4069, %v4071
      %v4133 = vadd.f32 %v4132, %v4073
      %v4134 = vadd.f32 %v4133, %v4075
      %v4135 = vadd.f32 %v4134, %v4077
      %v4136 = vadd.f32 %v4135, %v4079
      %v4137 = vadd.f32 %v4136, %v4081
      %v4138 = vadd.f32 %v4137, %v4083
      %v4139 = vadd.f32 %v4138, %v4085
      %v4140 = vadd.f32 %v4139, %v4087
      %v4141 = vadd.f32 %v4140, %v4089
      %v4142 = vadd.f32 %v4141, %v4091
      %v4143 = vadd.f32 %v4142, %v4093
      %v4144 = vadd.f32 %v4143, %v4095
      %v4145 = vadd.f32 %v4144, %v4097
      %v4146 = vadd.f32 %v4145, %v4099
      %v4147 = vadd.f32 %v4146, %v4101
      %v4148 = vadd.f32 %v4147, %v4103
      %v4149 = vadd.f32 %v4148, %v4105
      %v4150 = vadd.f32 %v4149, %v4107
      %v4151 = vadd.f32 %v4150, %v4109
      %v4152 = vadd.f32 %v4151, %v4111
      %v4153 = vadd.f32 %v4152, %v4113
      %v4154 = vadd.f32 %v4153, %v4115
      %v4155 = vadd.f32 %v4154, %v4117
      %v4156 = vadd.f32 %v4155, %v4119
      %v4157 = vadd.f32 %v4156, %v4121
      %v4158 = vadd.f32 %v4157, %v4123
      %v4159 = vadd.f32 %v4158, %v4125
      %v4160 = vadd.f32 %v4159, %v4127
      %v4161 = vadd.f32 %v4160, %v4129
      %v4162 = vadd.f32 %v4161, %v4131
      %v4163 = vrot.slane %v4162, 4
      %v4164 = vadd.f32 %v4162, %v4163
      %v4165 = vrot.slane %v4164, 2
      %v4166 = vadd.f32 %v4164, %v4165
      %v4167 = vrot.slane %v4166, 1
      %v4168 = vadd.f32 %v4166, %v4167
      %v4169 = vpack.c.bf16 %v4071, %v4069
      %v4170 = vpack.c.bf16 %v4075, %v4073
      %v4171 = vpack.c.bf16 %v4079, %v4077
      %v4172 = vpack.c.bf16 %v4083, %v4081
      %v4173 = vpack.c.bf16 %v4087, %v4085
      %v4174 = vpack.c.bf16 %v4091, %v4089
      %v4175 = vpack.c.bf16 %v4095, %v4093
      %v4176 = vpack.c.bf16 %v4099, %v4097
      %v4177 = vpack.c.bf16 %v4103, %v4101
      %v4178 = vpack.c.bf16 %v4107, %v4105
      %v4179 = vpack.c.bf16 %v4111, %v4109
      %v4180 = vpack.c.bf16 %v4115, %v4113
      %v4181 = vpack.c.bf16 %v4119, %v4117
      %v4182 = vpack.c.bf16 %v4123, %v4121
      %v4183 = vpack.c.bf16 %v4127, %v4125
      %v4184 = vpack.c.bf16 %v4131, %v4129
      %v4187 = vunpack.c.l.b16 %v3401
      %v4188 = vunpack.c.h.b16 %v3401
      %v4189 = vunpack.c.l.b16 %v3402
      %v4190 = vunpack.c.h.b16 %v3402
      %v4191 = vpack.c.b16 %v4189, %v4187
      %v4192 = vpack.c.b16 %v4190, %v4188
      %4195 = vmatpush.bf16.msra.mxu0 %v4176
      %4196 = vmatpush.bf16.msra.mxu0 %v4175
      %4197 = vmatpush.bf16.msra.mxu0 %v4174
      %4198 = vmatpush.bf16.msra.mxu0 %v4173
      %4199 = vmatpush.bf16.msra.mxu0 %v4172
      %4200 = vmatpush.bf16.msra.mxu0 %v4171
      %4201 = vmatpush.bf16.msra.mxu0 %v4170
      %4202 = vmatpush.bf16.msra.mxu0 %v4169
      %4203 = vmatmul.bf16.gmra.mxu0 %v4191
      %v4204 = vpop.f32.mrf.mxu0
      %v4205 = vadd.f32 0.0, %v4204
      %v4206 = vpop.f32.mrf.mxu0
      %v4207 = vadd.f32 0.0, %v4206
      %4208 = vdwg.mxu0
      %4209 = vmatpush.bf16.msra.mxu0 %v4184
      %4210 = vmatpush.bf16.msra.mxu0 %v4183
      %4211 = vmatpush.bf16.msra.mxu0 %v4182
      %4212 = vmatpush.bf16.msra.mxu0 %v4181
      %4213 = vmatpush.bf16.msra.mxu0 %v4180
      %4214 = vmatpush.bf16.msra.mxu0 %v4179
      %4215 = vmatpush.bf16.msra.mxu0 %v4178
      %4216 = vmatpush.bf16.msra.mxu0 %v4177
      %4217 = vmatmul.bf16.gmra.mxu0 %v4192
      %v4218 = vpop.f32.mrf.mxu0
      %v4219 = vadd.f32 %v4205, %v4218
      %v4220 = vpop.f32.mrf.mxu0
      %v4221 = vadd.f32 %v4207, %v4220
      %4222 = vdwg.mxu0
      %v4223 = vrcp.pop %v4168
      %v4224 = vmul.f32 %v4168, %v4223
      %v4225 = vsub.f32 1.0, %v4224
      %v4226 = vmul.f32 %v4223, %v4225
      %v4227 = vadd.f32 %v4223, %v4226
      %vm4228 = vweird.f32 %v4168
      %vm4229 = vweird.f32 %v4223
      %vm4230 = vmor %vm4228, %vm4229
      %v4231 = vsel %vm4230, %v4223, %v4227
      %v4232 = vand.u32 2147483647, %v4168
      %vm4233 = vcmp.eq.f32.partialorder %v4232, 8.507059e+37
      %v4234 = vand.u32 %v4168, 2147483648
      %v4235 = vor.u32 1.1754944e-38, %v4234
      %v4236 = vsel %vm4233, %v4235, %v4231
      %v4237 = vmul.f32 %v4219, %v4236
      %v4238 = vmul.f32 %v4221, %v4236
      %v4239 = vpack.c.bf16 %v4238, %v4237
      %v4244 = vunpack.c.l.b16 %v3387
      %v4245 = vunpack.c.l.b16 %v3388
      %v4246 = vunpack.c.l.b16 %v3389
      %v4247 = vunpack.c.l.b16 %v3390
      %v4248 = vpack.c.b16 %v4245, %v4244
      %v4249 = vpack.c.b16 %v4247, %v4246
      %4250 = vrot.lane.b32.xlu0 %v4248, 112
      %v4251 = vpop.permute.xlu0 %4250
      %4252 = vrot.lane.b32.xlu0 %v4249, 112
      %v4253 = vpop.permute.xlu0 %4252
      %v4255 = vsel %vm3443, %v4251, 0
      %v4258 = vsel %vm3443, %v4253, 0
      %4260 = vmatpush.bf16.msra.mxu0 0
      %4261 = vmatpush.bf16.msra.mxu0 0
      %4262 = vmatpush.bf16.msra.mxu0 0
      %4263 = vmatpush.bf16.msra.mxu0 0
      %4264 = vmatpush.bf16.msra.mxu0 0
      %4265 = vmatpush.bf16.msra.mxu0 0
      %4266 = vmatpush.bf16.msra.mxu0 0
      %4267 = vmatpush.bf16.msra.mxu0 %v4239
      %4268 = vmatmul.bf16.gmra.mxu0 %v4255
      %v4269 = vpop.f32.mrf.mxu0
      %v4270 = vadd.f32 0.0, %v4269
      %v4271 = vpop.f32.mrf.mxu0
      %v4272 = vadd.f32 0.0, %v4271
      %4273 = vmatmul.bf16.gmra.mxu0 %v4258
      %v4274 = vpop.f32.mrf.mxu0
      %v4275 = vadd.f32 0.0, %v4274
      %v4276 = vpop.f32.mrf.mxu0
      %v4277 = vadd.f32 0.0, %v4276
      %4278 = vdwg.mxu0
      %v4280 = vsel %vm3443, %v4248, 0
      %v4283 = vsel %vm3443, %v4249, 0
      %4285 = vmatpush.bf16.msra.mxu0 0
      %4286 = vmatpush.bf16.msra.mxu0 0
      %4287 = vmatpush.bf16.msra.mxu0 0
      %4288 = vmatpush.bf16.msra.mxu0 0
      %4289 = vmatpush.bf16.msra.mxu0 0
      %4290 = vmatpush.bf16.msra.mxu0 0
      %4291 = vmatpush.bf16.msra.mxu0 0
      %4292 = vmatpush.bf16.msra.mxu0 %v3821
      %4293 = vmatmul.bf16.gmra.mxu0 %v4280
      %v4294 = vpop.f32.mrf.mxu0
      %v4295 = vadd.f32 %v4270, %v4294
      %v4296 = vpop.f32.mrf.mxu0
      %v4297 = vadd.f32 %v4272, %v4296
      %4298 = vmatmul.bf16.gmra.mxu0 %v4283
      %v4299 = vpop.f32.mrf.mxu0
      %v4300 = vadd.f32 %v4275, %v4299
      %v4301 = vpop.f32.mrf.mxu0
      %v4302 = vadd.f32 %v4277, %v4301
      %4303 = vdwg.mxu0
      %v4304 = vunpack.c.h.b16 %v3391
      %v4305 = vunpack.c.h.b16 %v3392
      %v4306 = vpack.c.b16 %v4305, %v4304
      %4308 = vmatpush.bf16.msra.mxu0 0
      %4309 = vmatpush.bf16.msra.mxu0 0
      %4310 = vmatpush.bf16.msra.mxu0 0
      %4311 = vmatpush.bf16.msra.mxu0 0
      %4312 = vmatpush.bf16.msra.mxu0 0
      %4313 = vmatpush.bf16.msra.mxu0 0
      %4314 = vmatpush.bf16.msra.mxu0 0
      %4315 = vmatpush.bf16.msra.mxu0 %v4306
      %4316 = vmatmul.bf16.gmra.mxu0 %v3445
      %v4317 = vpop.f32.mrf.mxu0
      %v4318 = vadd.f32 0.0, %v4317
      %v4319 = vpop.f32.mrf.mxu0
      %v4320 = vadd.f32 0.0, %v4319
      %4321 = vmatmul.bf16.gmra.mxu0 %v3448
      %v4322 = vpop.f32.mrf.mxu0
      %v4323 = vadd.f32 0.0, %v4322
      %v4324 = vpop.f32.mrf.mxu0
      %v4325 = vadd.f32 0.0, %v4324
      %4326 = vmatmul.bf16.gmra.mxu0 %v3451
      %v4327 = vpop.f32.mrf.mxu0
      %v4328 = vadd.f32 0.0, %v4327
      %v4329 = vpop.f32.mrf.mxu0
      %v4330 = vadd.f32 0.0, %v4329
      %4331 = vmatmul.bf16.gmra.mxu0 %v3454
      %v4332 = vpop.f32.mrf.mxu0
      %v4333 = vadd.f32 0.0, %v4332
      %v4334 = vpop.f32.mrf.mxu0
      %v4335 = vadd.f32 0.0, %v4334
      %4336 = vmatmul.bf16.gmra.mxu0 %v3457
      %v4337 = vpop.f32.mrf.mxu0
      %v4338 = vadd.f32 0.0, %v4337
      %v4339 = vpop.f32.mrf.mxu0
      %v4340 = vadd.f32 0.0, %v4339
      %4341 = vmatmul.bf16.gmra.mxu0 %v3460
      %v4342 = vpop.f32.mrf.mxu0
      %v4343 = vadd.f32 0.0, %v4342
      %v4344 = vpop.f32.mrf.mxu0
      %v4345 = vadd.f32 0.0, %v4344
      %4346 = vmatmul.bf16.gmra.mxu0 %v3463
      %v4347 = vpop.f32.mrf.mxu0
      %v4348 = vadd.f32 0.0, %v4347
      %v4349 = vpop.f32.mrf.mxu0
      %v4350 = vadd.f32 0.0, %v4349
      %4351 = vmatmul.bf16.gmra.mxu0 %v3466
      %v4352 = vpop.f32.mrf.mxu0
      %v4353 = vadd.f32 0.0, %v4352
      %v4354 = vpop.f32.mrf.mxu0
      %v4355 = vadd.f32 0.0, %v4354
      %4356 = vmatmul.bf16.gmra.mxu0 %v3469
      %v4357 = vpop.f32.mrf.mxu0
      %v4358 = vadd.f32 0.0, %v4357
      %v4359 = vpop.f32.mrf.mxu0
      %v4360 = vadd.f32 0.0, %v4359
      %4361 = vmatmul.bf16.gmra.mxu0 %v3472
      %v4362 = vpop.f32.mrf.mxu0
      %v4363 = vadd.f32 0.0, %v4362
      %v4364 = vpop.f32.mrf.mxu0
      %v4365 = vadd.f32 0.0, %v4364
      %4366 = vmatmul.bf16.gmra.mxu0 %v3475
      %v4367 = vpop.f32.mrf.mxu0
      %v4368 = vadd.f32 0.0, %v4367
      %v4369 = vpop.f32.mrf.mxu0
      %v4370 = vadd.f32 0.0, %v4369
      %4371 = vmatmul.bf16.gmra.mxu0 %v3478
      %v4372 = vpop.f32.mrf.mxu0
      %v4373 = vadd.f32 0.0, %v4372
      %v4374 = vpop.f32.mrf.mxu0
      %v4375 = vadd.f32 0.0, %v4374
      %4376 = vmatmul.bf16.gmra.mxu0 %v3481
      %v4377 = vpop.f32.mrf.mxu0
      %v4378 = vadd.f32 0.0, %v4377
      %v4379 = vpop.f32.mrf.mxu0
      %v4380 = vadd.f32 0.0, %v4379
      %4381 = vmatmul.bf16.gmra.mxu0 %v3484
      %v4382 = vpop.f32.mrf.mxu0
      %v4383 = vadd.f32 0.0, %v4382
      %v4384 = vpop.f32.mrf.mxu0
      %v4385 = vadd.f32 0.0, %v4384
      %4386 = vmatmul.bf16.gmra.mxu0 %v3487
      %v4387 = vpop.f32.mrf.mxu0
      %v4388 = vadd.f32 0.0, %v4387
      %v4389 = vpop.f32.mrf.mxu0
      %v4390 = vadd.f32 0.0, %v4389
      %4391 = vmatmul.bf16.gmra.mxu0 %v3490
      %v4392 = vpop.f32.mrf.mxu0
      %v4393 = vadd.f32 0.0, %v4392
      %v4394 = vpop.f32.mrf.mxu0
      %v4395 = vadd.f32 0.0, %v4394
      %4396 = vdwg.mxu0
      %v4397 = vmax.f32 %v4318, %v4328
      %v4398 = vmax.f32 %v4320, %v4330
      %v4399 = vmax.f32 %v4323, %v4333
      %v4400 = vmax.f32 %v4325, %v4335
      %v4401 = vmax.f32 %v4397, %v4338
      %v4402 = vmax.f32 %v4398, %v4340
      %v4403 = vmax.f32 %v4399, %v4343
      %v4404 = vmax.f32 %v4400, %v4345
      %v4405 = vmax.f32 %v4401, %v4348
      %v4406 = vmax.f32 %v4402, %v4350
      %v4407 = vmax.f32 %v4403, %v4353
      %v4408 = vmax.f32 %v4404, %v4355
      %v4409 = vmax.f32 %v4405, %v4358
      %v4410 = vmax.f32 %v4406, %v4360
      %v4411 = vmax.f32 %v4407, %v4363
      %v4412 = vmax.f32 %v4408, %v4365
      %v4413 = vmax.f32 %v4409, %v4368
      %v4414 = vmax.f32 %v4410, %v4370
      %v4415 = vmax.f32 %v4411, %v4373
      %v4416 = vmax.f32 %v4412, %v4375
      %v4417 = vmax.f32 %v4413, %v4378
      %v4418 = vmax.f32 %v4414, %v4380
      %v4419 = vmax.f32 %v4415, %v4383
      %v4420 = vmax.f32 %v4416, %v4385
      %v4421 = vmax.f32 %v4417, %v4388
      %v4422 = vmax.f32 %v4418, %v4390
      %v4423 = vmax.f32 %v4419, %v4393
      %v4424 = vmax.f32 %v4420, %v4395
      %v4425 = vmax.f32 %v4421, %v4422
      %v4426 = vmax.f32 %v4423, %v4424
      %v4427 = vmax.f32 %v4425, %v4426
      %v4428 = vrot.slane %v4427, 4
      %v4429 = vmax.f32 %v4427, %v4428
      %v4430 = vrot.slane %v4429, 2
      %v4431 = vmax.f32 %v4429, %v4430
      %v4432 = vrot.slane %v4431, 1
      %v4433 = vmax.f32 %v4431, %v4432
      %v4434 = vsub.f32 %v4318, %v4433
      %v4435 = vsub.f32 %v4320, %v4433
      %v4436 = vsub.f32 %v4323, %v4433
      %v4437 = vsub.f32 %v4325, %v4433
      %v4438 = vsub.f32 %v4328, %v4433
      %v4439 = vsub.f32 %v4330, %v4433
      %v4440 = vsub.f32 %v4333, %v4433
      %v4441 = vsub.f32 %v4335, %v4433
      %v4442 = vsub.f32 %v4338, %v4433
      %v4443 = vsub.f32 %v4340, %v4433
      %v4444 = vsub.f32 %v4343, %v4433
      %v4445 = vsub.f32 %v4345, %v4433
      %v4446 = vsub.f32 %v4348, %v4433
      %v4447 = vsub.f32 %v4350, %v4433
      %v4448 = vsub.f32 %v4353, %v4433
      %v4449 = vsub.f32 %v4355, %v4433
      %v4450 = vsub.f32 %v4358, %v4433
      %v4451 = vsub.f32 %v4360, %v4433
      %v4452 = vsub.f32 %v4363, %v4433
      %v4453 = vsub.f32 %v4365, %v4433
      %v4454 = vsub.f32 %v4368, %v4433
      %v4455 = vsub.f32 %v4370, %v4433
      %v4456 = vsub.f32 %v4373, %v4433
      %v4457 = vsub.f32 %v4375, %v4433
      %v4458 = vsub.f32 %v4378, %v4433
      %v4459 = vsub.f32 %v4380, %v4433
      %v4460 = vsub.f32 %v4383, %v4433
      %v4461 = vsub.f32 %v4385, %v4433
      %v4462 = vsub.f32 %v4388, %v4433
      %v4463 = vsub.f32 %v4390, %v4433
      %v4464 = vsub.f32 %v4393, %v4433
      %v4465 = vsub.f32 %v4395, %v4433
      %v4466 = vmul.f32 %v4434, 1.442695
      %v4467 = vpow.pop %v4466
      %v4468 = vmul.f32 %v4435, 1.442695
      %v4469 = vpow.pop %v4468
      %v4470 = vmul.f32 %v4436, 1.442695
      %v4471 = vpow.pop %v4470
      %v4472 = vmul.f32 %v4437, 1.442695
      %v4473 = vpow.pop %v4472
      %v4474 = vmul.f32 %v4438, 1.442695
      %v4475 = vpow.pop %v4474
      %v4476 = vmul.f32 %v4439, 1.442695
      %v4477 = vpow.pop %v4476
      %v4478 = vmul.f32 %v4440, 1.442695
      %v4479 = vpow.pop %v4478
      %v4480 = vmul.f32 %v4441, 1.442695
      %v4481 = vpow.pop %v4480
      %v4482 = vmul.f32 %v4442, 1.442695
      %v4483 = vpow.pop %v4482
      %v4484 = vmul.f32 %v4443, 1.442695
      %v4485 = vpow.pop %v4484
      %v4486 = vmul.f32 %v4444, 1.442695
      %v4487 = vpow.pop %v4486
      %v4488 = vmul.f32 %v4445, 1.442695
      %v4489 = vpow.pop %v4488
      %v4490 = vmul.f32 %v4446, 1.442695
      %v4491 = vpow.pop %v4490
      %v4492 = vmul.f32 %v4447, 1.442695
      %v4493 = vpow.pop %v4492
      %v4494 = vmul.f32 %v4448, 1.442695
      %v4495 = vpow.pop %v4494
      %v4496 = vmul.f32 %v4449, 1.442695
      %v4497 = vpow.pop %v4496
      %v4498 = vmul.f32 %v4450, 1.442695
      %v4499 = vpow.pop %v4498
      %v4500 = vmul.f32 %v4451, 1.442695
      %v4501 = vpow.pop %v4500
      %v4502 = vmul.f32 %v4452, 1.442695
      %v4503 = vpow.pop %v4502
      %v4504 = vmul.f32 %v4453, 1.442695
      %v4505 = vpow.pop %v4504
      %v4506 = vmul.f32 %v4454, 1.442695
      %v4507 = vpow.pop %v4506
      %v4508 = vmul.f32 %v4455, 1.442695
      %v4509 = vpow.pop %v4508
      %v4510 = vmul.f32 %v4456, 1.442695
      %v4511 = vpow.pop %v4510
      %v4512 = vmul.f32 %v4457, 1.442695
      %v4513 = vpow.pop %v4512
      %v4514 = vmul.f32 %v4458, 1.442695
      %v4515 = vpow.pop %v4514
      %v4516 = vmul.f32 %v4459, 1.442695
      %v4517 = vpow.pop %v4516
      %v4518 = vmul.f32 %v4460, 1.442695
      %v4519 = vpow.pop %v4518
      %v4520 = vmul.f32 %v4461, 1.442695
      %v4521 = vpow.pop %v4520
      %v4522 = vmul.f32 %v4462, 1.442695
      %v4523 = vpow.pop %v4522
      %v4524 = vmul.f32 %v4463, 1.442695
      %v4525 = vpow.pop %v4524
      %v4526 = vmul.f32 %v4464, 1.442695
      %v4527 = vpow.pop %v4526
      %v4528 = vmul.f32 %v4465, 1.442695
      %v4529 = vpow.pop %v4528
      %v4530 = vadd.f32 %v4467, %v4469
      %v4531 = vadd.f32 %v4530, %v4471
      %v4532 = vadd.f32 %v4531, %v4473
      %v4533 = vadd.f32 %v4532, %v4475
      %v4534 = vadd.f32 %v4533, %v4477
      %v4535 = vadd.f32 %v4534, %v4479
      %v4536 = vadd.f32 %v4535, %v4481
      %v4537 = vadd.f32 %v4536, %v4483
      %v4538 = vadd.f32 %v4537, %v4485
      %v4539 = vadd.f32 %v4538, %v4487
      %v4540 = vadd.f32 %v4539, %v4489
      %v4541 = vadd.f32 %v4540, %v4491
      %v4542 = vadd.f32 %v4541, %v4493
      %v4543 = vadd.f32 %v4542, %v4495
      %v4544 = vadd.f32 %v4543, %v4497
      %v4545 = vadd.f32 %v4544, %v4499
      %v4546 = vadd.f32 %v4545, %v4501
      %v4547 = vadd.f32 %v4546, %v4503
      %v4548 = vadd.f32 %v4547, %v4505
      %v4549 = vadd.f32 %v4548, %v4507
      %v4550 = vadd.f32 %v4549, %v4509
      %v4551 = vadd.f32 %v4550, %v4511
      %v4552 = vadd.f32 %v4551, %v4513
      %v4553 = vadd.f32 %v4552, %v4515
      %v4554 = vadd.f32 %v4553, %v4517
      %v4555 = vadd.f32 %v4554, %v4519
      %v4556 = vadd.f32 %v4555, %v4521
      %v4557 = vadd.f32 %v4556, %v4523
      %v4558 = vadd.f32 %v4557, %v4525
      %v4559 = vadd.f32 %v4558, %v4527
      %v4560 = vadd.f32 %v4559, %v4529
      %v4561 = vrot.slane %v4560, 4
      %v4562 = vadd.f32 %v4560, %v4561
      %v4563 = vrot.slane %v4562, 2
      %v4564 = vadd.f32 %v4562, %v4563
      %v4565 = vrot.slane %v4564, 1
      %v4566 = vadd.f32 %v4564, %v4565
      %v4567 = vpack.c.bf16 %v4469, %v4467
      %v4568 = vpack.c.bf16 %v4473, %v4471
      %v4569 = vpack.c.bf16 %v4477, %v4475
      %v4570 = vpack.c.bf16 %v4481, %v4479
      %v4571 = vpack.c.bf16 %v4485, %v4483
      %v4572 = vpack.c.bf16 %v4489, %v4487
      %v4573 = vpack.c.bf16 %v4493, %v4491
      %v4574 = vpack.c.bf16 %v4497, %v4495
      %v4575 = vpack.c.bf16 %v4501, %v4499
      %v4576 = vpack.c.bf16 %v4505, %v4503
      %v4577 = vpack.c.bf16 %v4509, %v4507
      %v4578 = vpack.c.bf16 %v4513, %v4511
      %v4579 = vpack.c.bf16 %v4517, %v4515
      %v4580 = vpack.c.bf16 %v4521, %v4519
      %v4581 = vpack.c.bf16 %v4525, %v4523
      %v4582 = vpack.c.bf16 %v4529, %v4527
      %4583 = vmatpush.bf16.msra.mxu0 %v4574
      %4584 = vmatpush.bf16.msra.mxu0 %v4573
      %4585 = vmatpush.bf16.msra.mxu0 %v4572
      %4586 = vmatpush.bf16.msra.mxu0 %v4571
      %4587 = vmatpush.bf16.msra.mxu0 %v4570
      %4588 = vmatpush.bf16.msra.mxu0 %v4569
      %4589 = vmatpush.bf16.msra.mxu0 %v4568
      %4590 = vmatpush.bf16.msra.mxu0 %v4567
      %4591 = vmatmul.bf16.gmra.mxu0 %v3773
      %v4592 = vpop.f32.mrf.mxu0
      %v4593 = vadd.f32 0.0, %v4592
      %v4594 = vpop.f32.mrf.mxu0
      %v4595 = vadd.f32 0.0, %v4594
      %4596 = vdwg.mxu0
      %4597 = vmatpush.bf16.msra.mxu0 %v4582
      %4598 = vmatpush.bf16.msra.mxu0 %v4581
      %4599 = vmatpush.bf16.msra.mxu0 %v4580
      %4600 = vmatpush.bf16.msra.mxu0 %v4579
      %4601 = vmatpush.bf16.msra.mxu0 %v4578
      %4602 = vmatpush.bf16.msra.mxu0 %v4577
      %4603 = vmatpush.bf16.msra.mxu0 %v4576
      %4604 = vmatpush.bf16.msra.mxu0 %v4575
      %4605 = vmatmul.bf16.gmra.mxu0 %v3774
      %v4606 = vpop.f32.mrf.mxu0
      %v4607 = vadd.f32 %v4593, %v4606
      %v4608 = vpop.f32.mrf.mxu0
      %v4609 = vadd.f32 %v4595, %v4608
      %4610 = vdwg.mxu0
      %v4611 = vrcp.pop %v4566
      %v4612 = vmul.f32 %v4566, %v4611
      %v4613 = vsub.f32 1.0, %v4612
      %v4614 = vmul.f32 %v4611, %v4613
      %v4615 = vadd.f32 %v4611, %v4614
      %vm4616 = vweird.f32 %v4566
      %vm4617 = vweird.f32 %v4611
      %vm4618 = vmor %vm4616, %vm4617
      %v4619 = vsel %vm4618, %v4611, %v4615
      %v4620 = vand.u32 2147483647, %v4566
      %vm4621 = vcmp.eq.f32.partialorder %v4620, 8.507059e+37
      %v4622 = vand.u32 %v4566, 2147483648
      %v4623 = vor.u32 1.1754944e-38, %v4622
      %v4624 = vsel %vm4621, %v4623, %v4619
      %v4625 = vmul.f32 %v4607, %v4624
      %v4626 = vmul.f32 %v4609, %v4624
      %v4627 = vpack.c.bf16 %v4626, %v4625
      %v4628 = vunpack.c.h.b16 %v3393
      %v4629 = vunpack.c.h.b16 %v3394
      %v4630 = vpack.c.b16 %v4629, %v4628
      %4632 = vmatpush.bf16.msra.mxu0 0
      %4633 = vmatpush.bf16.msra.mxu0 0
      %4634 = vmatpush.bf16.msra.mxu0 0
      %4635 = vmatpush.bf16.msra.mxu0 0
      %4636 = vmatpush.bf16.msra.mxu0 0
      %4637 = vmatpush.bf16.msra.mxu0 0
      %4638 = vmatpush.bf16.msra.mxu0 0
      %4639 = vmatpush.bf16.msra.mxu0 %v4630
      %4640 = vmatmul.bf16.gmra.mxu0 %v3863
      %v4641 = vpop.f32.mrf.mxu0
      %v4642 = vadd.f32 0.0, %v4641
      %v4643 = vpop.f32.mrf.mxu0
      %v4644 = vadd.f32 0.0, %v4643
      %4645 = vmatmul.bf16.gmra.mxu0 %v3866
      %v4646 = vpop.f32.mrf.mxu0
      %v4647 = vadd.f32 0.0, %v4646
      %v4648 = vpop.f32.mrf.mxu0
      %v4649 = vadd.f32 0.0, %v4648
      %4650 = vmatmul.bf16.gmra.mxu0 %v3869
      %v4651 = vpop.f32.mrf.mxu0
      %v4652 = vadd.f32 0.0, %v4651
      %v4653 = vpop.f32.mrf.mxu0
      %v4654 = vadd.f32 0.0, %v4653
      %4655 = vmatmul.bf16.gmra.mxu0 %v3872
      %v4656 = vpop.f32.mrf.mxu0
      %v4657 = vadd.f32 0.0, %v4656
      %v4658 = vpop.f32.mrf.mxu0
      %v4659 = vadd.f32 0.0, %v4658
      %4660 = vmatmul.bf16.gmra.mxu0 %v3875
      %v4661 = vpop.f32.mrf.mxu0
      %v4662 = vadd.f32 0.0, %v4661
      %v4663 = vpop.f32.mrf.mxu0
      %v4664 = vadd.f32 0.0, %v4663
      %4665 = vmatmul.bf16.gmra.mxu0 %v3878
      %v4666 = vpop.f32.mrf.mxu0
      %v4667 = vadd.f32 0.0, %v4666
      %v4668 = vpop.f32.mrf.mxu0
      %v4669 = vadd.f32 0.0, %v4668
      %4670 = vmatmul.bf16.gmra.mxu0 %v3881
      %v4671 = vpop.f32.mrf.mxu0
      %v4672 = vadd.f32 0.0, %v4671
      %v4673 = vpop.f32.mrf.mxu0
      %v4674 = vadd.f32 0.0, %v4673
      %4675 = vmatmul.bf16.gmra.mxu0 %v3884
      %v4676 = vpop.f32.mrf.mxu0
      %v4677 = vadd.f32 0.0, %v4676
      %v4678 = vpop.f32.mrf.mxu0
      %v4679 = vadd.f32 0.0, %v4678
      %4680 = vmatmul.bf16.gmra.mxu0 %v3887
      %v4681 = vpop.f32.mrf.mxu0
      %v4682 = vadd.f32 0.0, %v4681
      %v4683 = vpop.f32.mrf.mxu0
      %v4684 = vadd.f32 0.0, %v4683
      %4685 = vmatmul.bf16.gmra.mxu0 %v3890
      %v4686 = vpop.f32.mrf.mxu0
      %v4687 = vadd.f32 0.0, %v4686
      %v4688 = vpop.f32.mrf.mxu0
      %v4689 = vadd.f32 0.0, %v4688
      %4690 = vmatmul.bf16.gmra.mxu0 %v3893
      %v4691 = vpop.f32.mrf.mxu0
      %v4692 = vadd.f32 0.0, %v4691
      %v4693 = vpop.f32.mrf.mxu0
      %v4694 = vadd.f32 0.0, %v4693
      %4695 = vmatmul.bf16.gmra.mxu0 %v3896
      %v4696 = vpop.f32.mrf.mxu0
      %v4697 = vadd.f32 0.0, %v4696
      %v4698 = vpop.f32.mrf.mxu0
      %v4699 = vadd.f32 0.0, %v4698
      %4700 = vmatmul.bf16.gmra.mxu0 %v3899
      %v4701 = vpop.f32.mrf.mxu0
      %v4702 = vadd.f32 0.0, %v4701
      %v4703 = vpop.f32.mrf.mxu0
      %v4704 = vadd.f32 0.0, %v4703
      %4705 = vmatmul.bf16.gmra.mxu0 %v3902
      %v4706 = vpop.f32.mrf.mxu0
      %v4707 = vadd.f32 0.0, %v4706
      %v4708 = vpop.f32.mrf.mxu0
      %v4709 = vadd.f32 0.0, %v4708
      %4710 = vmatmul.bf16.gmra.mxu0 %v3905
      %v4711 = vpop.f32.mrf.mxu0
      %v4712 = vadd.f32 0.0, %v4711
      %v4713 = vpop.f32.mrf.mxu0
      %v4714 = vadd.f32 0.0, %v4713
      %4715 = vmatmul.bf16.gmra.mxu0 %v3908
      %v4716 = vpop.f32.mrf.mxu0
      %v4717 = vadd.f32 0.0, %v4716
      %v4718 = vpop.f32.mrf.mxu0
      %v4719 = vadd.f32 0.0, %v4718
      %4720 = vdwg.mxu0
      %v4721 = vmax.f32 %v4642, %v4652
      %v4722 = vmax.f32 %v4644, %v4654
      %v4723 = vmax.f32 %v4647, %v4657
      %v4724 = vmax.f32 %v4649, %v4659
      %v4725 = vmax.f32 %v4721, %v4662
      %v4726 = vmax.f32 %v4722, %v4664
      %v4727 = vmax.f32 %v4723, %v4667
      %v4728 = vmax.f32 %v4724, %v4669
      %v4729 = vmax.f32 %v4725, %v4672
      %v4730 = vmax.f32 %v4726, %v4674
      %v4731 = vmax.f32 %v4727, %v4677
      %v4732 = vmax.f32 %v4728, %v4679
      %v4733 = vmax.f32 %v4729, %v4682
      %v4734 = vmax.f32 %v4730, %v4684
      %v4735 = vmax.f32 %v4731, %v4687
      %v4736 = vmax.f32 %v4732, %v4689
      %v4737 = vmax.f32 %v4733, %v4692
      %v4738 = vmax.f32 %v4734, %v4694
      %v4739 = vmax.f32 %v4735, %v4697
      %v4740 = vmax.f32 %v4736, %v4699
      %v4741 = vmax.f32 %v4737, %v4702
      %v4742 = vmax.f32 %v4738, %v4704
      %v4743 = vmax.f32 %v4739, %v4707
      %v4744 = vmax.f32 %v4740, %v4709
      %v4745 = vmax.f32 %v4741, %v4712
      %v4746 = vmax.f32 %v4742, %v4714
      %v4747 = vmax.f32 %v4743, %v4717
      %v4748 = vmax.f32 %v4744, %v4719
      %v4749 = vmax.f32 %v4745, %v4746
      %v4750 = vmax.f32 %v4747, %v4748
      %v4751 = vmax.f32 %v4749, %v4750
      %v4752 = vrot.slane %v4751, 4
      %v4753 = vmax.f32 %v4751, %v4752
      %v4754 = vrot.slane %v4753, 2
      %v4755 = vmax.f32 %v4753, %v4754
      %v4756 = vrot.slane %v4755, 1
      %v4757 = vmax.f32 %v4755, %v4756
      %v4758 = vsub.f32 %v4642, %v4757
      %v4759 = vsub.f32 %v4644, %v4757
      %v4760 = vsub.f32 %v4647, %v4757
      %v4761 = vsub.f32 %v4649, %v4757
      %v4762 = vsub.f32 %v4652, %v4757
      %v4763 = vsub.f32 %v4654, %v4757
      %v4764 = vsub.f32 %v4657, %v4757
      %v4765 = vsub.f32 %v4659, %v4757
      %v4766 = vsub.f32 %v4662, %v4757
      %v4767 = vsub.f32 %v4664, %v4757
      %v4768 = vsub.f32 %v4667, %v4757
      %v4769 = vsub.f32 %v4669, %v4757
      %v4770 = vsub.f32 %v4672, %v4757
      %v4771 = vsub.f32 %v4674, %v4757
      %v4772 = vsub.f32 %v4677, %v4757
      %v4773 = vsub.f32 %v4679, %v4757
      %v4774 = vsub.f32 %v4682, %v4757
      %v4775 = vsub.f32 %v4684, %v4757
      %v4776 = vsub.f32 %v4687, %v4757
      %v4777 = vsub.f32 %v4689, %v4757
      %v4778 = vsub.f32 %v4692, %v4757
      %v4779 = vsub.f32 %v4694, %v4757
      %v4780 = vsub.f32 %v4697, %v4757
      %v4781 = vsub.f32 %v4699, %v4757
      %v4782 = vsub.f32 %v4702, %v4757
      %v4783 = vsub.f32 %v4704, %v4757
      %v4784 = vsub.f32 %v4707, %v4757
      %v4785 = vsub.f32 %v4709, %v4757
      %v4786 = vsub.f32 %v4712, %v4757
      %v4787 = vsub.f32 %v4714, %v4757
      %v4788 = vsub.f32 %v4717, %v4757
      %v4789 = vsub.f32 %v4719, %v4757
      %v4790 = vmul.f32 %v4758, 1.442695
      %v4791 = vpow.pop %v4790
      %v4792 = vmul.f32 %v4759, 1.442695
      %v4793 = vpow.pop %v4792
      %v4794 = vmul.f32 %v4760, 1.442695
      %v4795 = vpow.pop %v4794
      %v4796 = vmul.f32 %v4761, 1.442695
      %v4797 = vpow.pop %v4796
      %v4798 = vmul.f32 %v4762, 1.442695
      %v4799 = vpow.pop %v4798
      %v4800 = vmul.f32 %v4763, 1.442695
      %v4801 = vpow.pop %v4800
      %v4802 = vmul.f32 %v4764, 1.442695
      %v4803 = vpow.pop %v4802
      %v4804 = vmul.f32 %v4765, 1.442695
      %v4805 = vpow.pop %v4804
      %v4806 = vmul.f32 %v4766, 1.442695
      %v4807 = vpow.pop %v4806
      %v4808 = vmul.f32 %v4767, 1.442695
      %v4809 = vpow.pop %v4808
      %v4810 = vmul.f32 %v4768, 1.442695
      %v4811 = vpow.pop %v4810
      %v4812 = vmul.f32 %v4769, 1.442695
      %v4813 = vpow.pop %v4812
      %v4814 = vmul.f32 %v4770, 1.442695
      %v4815 = vpow.pop %v4814
      %v4816 = vmul.f32 %v4771, 1.442695
      %v4817 = vpow.pop %v4816
      %v4818 = vmul.f32 %v4772, 1.442695
      %v4819 = vpow.pop %v4818
      %v4820 = vmul.f32 %v4773, 1.442695
      %v4821 = vpow.pop %v4820
      %v4822 = vmul.f32 %v4774, 1.442695
      %v4823 = vpow.pop %v4822
      %v4824 = vmul.f32 %v4775, 1.442695
      %v4825 = vpow.pop %v4824
      %v4826 = vmul.f32 %v4776, 1.442695
      %v4827 = vpow.pop %v4826
      %v4828 = vmul.f32 %v4777, 1.442695
      %v4829 = vpow.pop %v4828
      %v4830 = vmul.f32 %v4778, 1.442695
      %v4831 = vpow.pop %v4830
      %v4832 = vmul.f32 %v4779, 1.442695
      %v4833 = vpow.pop %v4832
      %v4834 = vmul.f32 %v4780, 1.442695
      %v4835 = vpow.pop %v4834
      %v4836 = vmul.f32 %v4781, 1.442695
      %v4837 = vpow.pop %v4836
      %v4838 = vmul.f32 %v4782, 1.442695
      %v4839 = vpow.pop %v4838
      %v4840 = vmul.f32 %v4783, 1.442695
      %v4841 = vpow.pop %v4840
      %v4842 = vmul.f32 %v4784, 1.442695
      %v4843 = vpow.pop %v4842
      %v4844 = vmul.f32 %v4785, 1.442695
      %v4845 = vpow.pop %v4844
      %v4846 = vmul.f32 %v4786, 1.442695
      %v4847 = vpow.pop %v4846
      %v4848 = vmul.f32 %v4787, 1.442695
      %v4849 = vpow.pop %v4848
      %v4850 = vmul.f32 %v4788, 1.442695
      %v4851 = vpow.pop %v4850
      %v4852 = vmul.f32 %v4789, 1.442695
      %v4853 = vpow.pop %v4852
      %v4854 = vadd.f32 %v4791, %v4793
      %v4855 = vadd.f32 %v4854, %v4795
      %v4856 = vadd.f32 %v4855, %v4797
      %v4857 = vadd.f32 %v4856, %v4799
      %v4858 = vadd.f32 %v4857, %v4801
      %v4859 = vadd.f32 %v4858, %v4803
      %v4860 = vadd.f32 %v4859, %v4805
      %v4861 = vadd.f32 %v4860, %v4807
      %v4862 = vadd.f32 %v4861, %v4809
      %v4863 = vadd.f32 %v4862, %v4811
      %v4864 = vadd.f32 %v4863, %v4813
      %v4865 = vadd.f32 %v4864, %v4815
      %v4866 = vadd.f32 %v4865, %v4817
      %v4867 = vadd.f32 %v4866, %v4819
      %v4868 = vadd.f32 %v4867, %v4821
      %v4869 = vadd.f32 %v4868, %v4823
      %v4870 = vadd.f32 %v4869, %v4825
      %v4871 = vadd.f32 %v4870, %v4827
      %v4872 = vadd.f32 %v4871, %v4829
      %v4873 = vadd.f32 %v4872, %v4831
      %v4874 = vadd.f32 %v4873, %v4833
      %v4875 = vadd.f32 %v4874, %v4835
      %v4876 = vadd.f32 %v4875, %v4837
      %v4877 = vadd.f32 %v4876, %v4839
      %v4878 = vadd.f32 %v4877, %v4841
      %v4879 = vadd.f32 %v4878, %v4843
      %v4880 = vadd.f32 %v4879, %v4845
      %v4881 = vadd.f32 %v4880, %v4847
      %v4882 = vadd.f32 %v4881, %v4849
      %v4883 = vadd.f32 %v4882, %v4851
      %v4884 = vadd.f32 %v4883, %v4853
      %v4885 = vrot.slane %v4884, 4
      %v4886 = vadd.f32 %v4884, %v4885
      %v4887 = vrot.slane %v4886, 2
      %v4888 = vadd.f32 %v4886, %v4887
      %v4889 = vrot.slane %v4888, 1
      %v4890 = vadd.f32 %v4888, %v4889
      %v4891 = vpack.c.bf16 %v4793, %v4791
      %v4892 = vpack.c.bf16 %v4797, %v4795
      %v4893 = vpack.c.bf16 %v4801, %v4799
      %v4894 = vpack.c.bf16 %v4805, %v4803
      %v4895 = vpack.c.bf16 %v4809, %v4807
      %v4896 = vpack.c.bf16 %v4813, %v4811
      %v4897 = vpack.c.bf16 %v4817, %v4815
      %v4898 = vpack.c.bf16 %v4821, %v4819
      %v4899 = vpack.c.bf16 %v4825, %v4823
      %v4900 = vpack.c.bf16 %v4829, %v4827
      %v4901 = vpack.c.bf16 %v4833, %v4831
      %v4902 = vpack.c.bf16 %v4837, %v4835
      %v4903 = vpack.c.bf16 %v4841, %v4839
      %v4904 = vpack.c.bf16 %v4845, %v4843
      %v4905 = vpack.c.bf16 %v4849, %v4847
      %v4906 = vpack.c.bf16 %v4853, %v4851
      %4907 = vmatpush.bf16.msra.mxu0 %v4898
      %4908 = vmatpush.bf16.msra.mxu0 %v4897
      %4909 = vmatpush.bf16.msra.mxu0 %v4896
      %4910 = vmatpush.bf16.msra.mxu0 %v4895
      %4911 = vmatpush.bf16.msra.mxu0 %v4894
      %4912 = vmatpush.bf16.msra.mxu0 %v4893
      %4913 = vmatpush.bf16.msra.mxu0 %v4892
      %4914 = vmatpush.bf16.msra.mxu0 %v4891
      %4915 = vmatmul.bf16.gmra.mxu0 %v4191
      %v4916 = vpop.f32.mrf.mxu0
      %v4917 = vadd.f32 0.0, %v4916
      %v4918 = vpop.f32.mrf.mxu0
      %v4919 = vadd.f32 0.0, %v4918
      %4920 = vdwg.mxu0
      %4921 = vmatpush.bf16.msra.mxu0 %v4906
      %4922 = vmatpush.bf16.msra.mxu0 %v4905
      %4923 = vmatpush.bf16.msra.mxu0 %v4904
      %4924 = vmatpush.bf16.msra.mxu0 %v4903
      %4925 = vmatpush.bf16.msra.mxu0 %v4902
      %4926 = vmatpush.bf16.msra.mxu0 %v4901
      %4927 = vmatpush.bf16.msra.mxu0 %v4900
      %4928 = vmatpush.bf16.msra.mxu0 %v4899
      %4929 = vmatmul.bf16.gmra.mxu0 %v4192
      %v4930 = vpop.f32.mrf.mxu0
      %v4931 = vadd.f32 %v4917, %v4930
      %v4932 = vpop.f32.mrf.mxu0
      %v4933 = vadd.f32 %v4919, %v4932
      %4934 = vdwg.mxu0
      %v4935 = vrcp.pop %v4890
      %v4936 = vmul.f32 %v4890, %v4935
      %v4937 = vsub.f32 1.0, %v4936
      %v4938 = vmul.f32 %v4935, %v4937
      %v4939 = vadd.f32 %v4935, %v4938
      %vm4940 = vweird.f32 %v4890
      %vm4941 = vweird.f32 %v4935
      %vm4942 = vmor %vm4940, %vm4941
      %v4943 = vsel %vm4942, %v4935, %v4939
      %v4944 = vand.u32 2147483647, %v4890
      %vm4945 = vcmp.eq.f32.partialorder %v4944, 8.507059e+37
      %v4946 = vand.u32 %v4890, 2147483648
      %v4947 = vor.u32 1.1754944e-38, %v4946
      %v4948 = vsel %vm4945, %v4947, %v4943
      %v4949 = vmul.f32 %v4931, %v4948
      %v4950 = vmul.f32 %v4933, %v4948
      %v4951 = vpack.c.bf16 %v4950, %v4949
      %4952 = vmatpush.bf16.msra.mxu0 0
      %4953 = vmatpush.bf16.msra.mxu0 0
      %4954 = vmatpush.bf16.msra.mxu0 0
      %4955 = vmatpush.bf16.msra.mxu0 0
      %4956 = vmatpush.bf16.msra.mxu0 0
      %4957 = vmatpush.bf16.msra.mxu0 0
      %4958 = vmatpush.bf16.msra.mxu0 0
      %4959 = vmatpush.bf16.msra.mxu0 %v4951
      %4960 = vmatmul.bf16.gmra.mxu0 %v4255
      %v4961 = vpop.f32.mrf.mxu0
      %v4962 = vadd.f32 0.0, %v4961
      %v4963 = vpop.f32.mrf.mxu0
      %v4964 = vadd.f32 0.0, %v4963
      %4965 = vmatmul.bf16.gmra.mxu0 %v4258
      %v4966 = vpop.f32.mrf.mxu0
      %v4967 = vadd.f32 0.0, %v4966
      %v4968 = vpop.f32.mrf.mxu0
      %v4969 = vadd.f32 0.0, %v4968
      %4970 = vdwg.mxu0
      %4971 = vmatpush.bf16.msra.mxu0 0
      %4972 = vmatpush.bf16.msra.mxu0 0
      %4973 = vmatpush.bf16.msra.mxu0 0
      %4974 = vmatpush.bf16.msra.mxu0 0
      %4975 = vmatpush.bf16.msra.mxu0 0
      %4976 = vmatpush.bf16.msra.mxu0 0
      %4977 = vmatpush.bf16.msra.mxu0 0
      %4978 = vmatpush.bf16.msra.mxu0 %v4627
      %4979 = vmatmul.bf16.gmra.mxu0 %v4280
      %v4980 = vpop.f32.mrf.mxu0
      %v4981 = vadd.f32 %v4962, %v4980
      %v4982 = vpop.f32.mrf.mxu0
      %v4983 = vadd.f32 %v4964, %v4982
      %4984 = vmatmul.bf16.gmra.mxu0 %v4283
      %v4985 = vpop.f32.mrf.mxu0
      %v4986 = vadd.f32 %v4967, %v4985
      %v4987 = vpop.f32.mrf.mxu0
      %v4988 = vadd.f32 %v4969, %v4987
      %4989 = vdwg.mxu0
      %4990 = vset.pattern.permute.xlu0 12
      %4991 = vperm.xlu0 %4990, %v715
      %v4992 = vpop.permute.xlu0 %4991
      %4994 = vset.pattern.permute.xlu0 12
      %4995 = vperm.xlu0 %4994, %v716
      %v4996 = vpop.permute.xlu0 %4995
      %4998 = vset.pattern.permute.xlu0 12
      %4999 = vperm.xlu0 %4998, %v717
      %v5000 = vpop.permute.xlu0 %4999
      %5002 = vset.pattern.permute.xlu0 12
      %5003 = vperm.xlu0 %5002, %v718
      %v5004 = vpop.permute.xlu0 %5003
      %v5006 = vadd.f32 %v4295, %v4992
      %v5007 = vadd.f32 %v4981, %v4992
      %v5008 = vadd.f32 %v4297, %v4996
      %v5009 = vadd.f32 %v4983, %v4996
      %v5010 = vadd.f32 %v4300, %v5000
      %v5011 = vadd.f32 %v4986, %v5000
      %v5012 = vadd.f32 %v4302, %v5004
      %v5013 = vadd.f32 %v4988, %v5004
      %v5014 = vadd.f32 %v5006, %v3070
      %v5015 = vadd.f32 %v5007, %v3089
      %v5016 = vadd.f32 %v5008, %v3072
      %v5017 = vadd.f32 %v5009, %v3091
      %v5018 = vadd.f32 %v5010, %v3075
      %v5019 = vadd.f32 %v5011, %v3094
      %v5020 = vadd.f32 %v5012, %v3077
      %v5021 = vadd.f32 %v5013, %v3096
      %v5022 = vadd.f32 %v5014, %v5016
      %v5023 = vadd.f32 %v5022, %v5018
      %v5024 = vadd.f32 %v5023, %v5020
      %v5025 = vrot.slane %v5024, 4
      %v5026 = vadd.f32 %v5024, %v5025
      %v5027 = vrot.slane %v5026, 2
      %v5028 = vadd.f32 %v5026, %v5027
      %v5029 = vrot.slane %v5028, 1
      %v5030 = vadd.f32 %v5028, %v5029
      %v5031 = vadd.f32 %v5015, %v5017
      %v5032 = vadd.f32 %v5031, %v5019
      %v5033 = vadd.f32 %v5032, %v5021
      %v5034 = vrot.slane %v5033, 4
      %v5035 = vadd.f32 %v5033, %v5034
      %v5036 = vrot.slane %v5035, 2
      %v5037 = vadd.f32 %v5035, %v5036
      %v5038 = vrot.slane %v5037, 1
      %v5039 = vadd.f32 %v5037, %v5038
      %v5040 = vmul.f32 %v5030, %v3122
      %v5041 = vmul.f32 %v5039, %v3122
      %v5042 = vsub.f32 %v5014, %v5040
      %v5043 = vsub.f32 %v5015, %v5041
      %v5044 = vsub.f32 %v5016, %v5040
      %v5045 = vsub.f32 %v5017, %v5041
      %v5046 = vsub.f32 %v5018, %v5040
      %v5047 = vsub.f32 %v5019, %v5041
      %v5048 = vsub.f32 %v5020, %v5040
      %v5049 = vsub.f32 %v5021, %v5041
      %v5050 = vmul.f32 %v5042, %v5042
      %v5051 = vmul.f32 %v5043, %v5043
      %v5052 = vmul.f32 %v5044, %v5044
      %v5053 = vmul.f32 %v5045, %v5045
      %v5054 = vmul.f32 %v5046, %v5046
      %v5055 = vmul.f32 %v5047, %v5047
      %v5056 = vmul.f32 %v5048, %v5048
      %v5057 = vmul.f32 %v5049, %v5049
      %v5058 = vadd.f32 %v5050, %v5052
      %v5059 = vadd.f32 %v5058, %v5054
      %v5060 = vadd.f32 %v5059, %v5056
      %v5061 = vrot.slane %v5060, 4
      %v5062 = vadd.f32 %v5060, %v5061
      %v5063 = vrot.slane %v5062, 2
      %v5064 = vadd.f32 %v5062, %v5063
      %v5065 = vrot.slane %v5064, 1
      %v5066 = vadd.f32 %v5064, %v5065
      %v5067 = vadd.f32 %v5051, %v5053
      %v5068 = vadd.f32 %v5067, %v5055
      %v5069 = vadd.f32 %v5068, %v5057
      %v5070 = vrot.slane %v5069, 4
      %v5071 = vadd.f32 %v5069, %v5070
      %v5072 = vrot.slane %v5071, 2
      %v5073 = vadd.f32 %v5071, %v5072
      %v5074 = vrot.slane %v5073, 1
      %v5075 = vadd.f32 %v5073, %v5074
      %v5076 = vmul.f32 %v5066, %v3122
      %v5077 = vmul.f32 %v5075, %v3122
      %v5078 = vadd.f32 %v5076, 1e-05
      %v5079 = vadd.f32 %v5077, 1e-05
      %v5080 = vrsqrt.pop %v5078
      %v5081 = vmul.f32 %v5080, %v5078
      %v5082 = vmul.f32 %v5081, %v5080
      %v5083 = vmul.f32 0.5, %v5082
      %v5084 = vsub.f32 1.5, %v5083
      %v5085 = vmul.f32 %v5080, %v5084
      %vm5086 = vweird.f32 %v5078
      %vm5087 = vweird.f32 %v5080
      %vm5088 = vmor %vm5086, %vm5087
      %v5089 = vsel %vm5088, %v5080, %v5085
      %v5090 = vrsqrt.pop %v5079
      %v5091 = vmul.f32 %v5090, %v5079
      %v5092 = vmul.f32 %v5091, %v5090
      %v5093 = vmul.f32 0.5, %v5092
      %v5094 = vsub.f32 1.5, %v5093
      %v5095 = vmul.f32 %v5090, %v5094
      %vm5096 = vweird.f32 %v5079
      %vm5097 = vweird.f32 %v5090
      %vm5098 = vmor %vm5096, %vm5097
      %v5099 = vsel %vm5098, %v5090, %v5095
      %v5100 = vmul.f32 %v5042, %v5089
      %v5101 = vmul.f32 %v5043, %v5099
      %v5102 = vmul.f32 %v5044, %v5089
      %v5103 = vmul.f32 %v5045, %v5099
      %v5104 = vmul.f32 %v5046, %v5089
      %v5105 = vmul.f32 %v5047, %v5099
      %v5106 = vmul.f32 %v5048, %v5089
      %v5107 = vmul.f32 %v5049, %v5099
      %5108 = vset.pattern.permute.xlu0 13
      %5109 = vperm.xlu0 %5108, %v715
      %v5110 = vpop.permute.xlu0 %5109
      %5112 = vset.pattern.permute.xlu0 13
      %5113 = vperm.xlu0 %5112, %v716
      %v5114 = vpop.permute.xlu0 %5113
      %5116 = vset.pattern.permute.xlu0 13
      %5117 = vperm.xlu0 %5116, %v717
      %v5118 = vpop.permute.xlu0 %5117
      %5120 = vset.pattern.permute.xlu0 13
      %5121 = vperm.xlu0 %5120, %v718
      %v5122 = vpop.permute.xlu0 %5121
      %v5124 = vmul.f32 %v5100, %v5110
      %v5125 = vmul.f32 %v5101, %v5110
      %v5126 = vmul.f32 %v5102, %v5114
      %v5127 = vmul.f32 %v5103, %v5114
      %v5128 = vmul.f32 %v5104, %v5118
      %v5129 = vmul.f32 %v5105, %v5118
      %v5130 = vmul.f32 %v5106, %v5122
      %v5131 = vmul.f32 %v5107, %v5122
      %5132 = vset.pattern.permute.xlu0 14
      %5133 = vperm.xlu0 %5132, %v715
      %v5134 = vpop.permute.xlu0 %5133
      %5136 = vset.pattern.permute.xlu0 14
      %5137 = vperm.xlu0 %5136, %v716
      %v5138 = vpop.permute.xlu0 %5137
      %5140 = vset.pattern.permute.xlu0 14
      %5141 = vperm.xlu0 %5140, %v717
      %v5142 = vpop.permute.xlu0 %5141
      %5144 = vset.pattern.permute.xlu0 14
      %5145 = vperm.xlu0 %5144, %v718
      %v5146 = vpop.permute.xlu0 %5145
      %v5148 = vadd.f32 %v5124, %v5134
      %v5149 = vadd.f32 %v5125, %v5134
      %v5150 = vadd.f32 %v5126, %v5138
      %v5151 = vadd.f32 %v5127, %v5138
      %v5152 = vadd.f32 %v5128, %v5142
      %v5153 = vadd.f32 %v5129, %v5142
      %v5154 = vadd.f32 %v5130, %v5146
      %v5155 = vadd.f32 %v5131, %v5146
      %v5156 = vpack.c.bf16 %v5150, %v5148
      %v5157 = vpack.c.bf16 %v5151, %v5149
      %v5158 = vpack.c.bf16 %v5154, %v5152
      %v5159 = vpack.c.bf16 %v5155, %v5153
      %v5160 = vld [vmem:[%s480] sm:$0xff]
      %v5161 = vpack.c.bf16 %v5160, %v5160
      %5162 = vrot.lane.b32.xlu0 %v4248, 96
      %v5163 = vpop.permute.xlu0 %5162
      %5164 = vrot.lane.b32.xlu0 %v4249, 96
      %v5165 = vpop.permute.xlu0 %5164
      %v5167 = vsel %vm516, %v5163, 0
      %v5170 = vsel %vm516, %v5165, 0
      %5172 = vmatpush.bf16.msra.mxu0 0
      %5173 = vmatpush.bf16.msra.mxu0 0
      %5174 = vmatpush.bf16.msra.mxu0 0
      %5175 = vmatpush.bf16.msra.mxu0 0
      %5176 = vmatpush.bf16.msra.mxu0 0
      %5177 = vmatpush.bf16.msra.mxu0 0
      %5178 = vmatpush.bf16.msra.mxu0 %v5158
      %5179 = vmatpush.bf16.msra.mxu0 %v5156
      %5180 = vmatmul.bf16.gmra.mxu0 %v5167
      %v5181 = vpop.f32.mrf.mxu0
      %v5182 = vadd.f32 0.0, %v5181
      %v5183 = vpop.f32.mrf.mxu0
      %v5184 = vadd.f32 0.0, %v5183
      %5185 = vmatmul.bf16.gmra.mxu0 %v5170
      %v5186 = vpop.f32.mrf.mxu0
      %v5187 = vadd.f32 0.0, %v5186
      %v5188 = vpop.f32.mrf.mxu0
      %v5189 = vadd.f32 0.0, %v5188
      %5190 = vdwg.mxu0
      %5191 = vmatpush.bf16.msra.mxu0 0
      %5192 = vmatpush.bf16.msra.mxu0 0
      %5193 = vmatpush.bf16.msra.mxu0 0
      %5194 = vmatpush.bf16.msra.mxu0 0
      %5195 = vmatpush.bf16.msra.mxu0 0
      %5196 = vmatpush.bf16.msra.mxu0 0
      %5197 = vmatpush.bf16.msra.mxu0 %v5159
      %5198 = vmatpush.bf16.msra.mxu0 %v5157
      %5199 = vmatmul.bf16.gmra.mxu0 %v5167
      %v5200 = vpop.f32.mrf.mxu0
      %v5201 = vadd.f32 0.0, %v5200
      %v5202 = vpop.f32.mrf.mxu0
      %v5203 = vadd.f32 0.0, %v5202
      %5204 = vmatmul.bf16.gmra.mxu0 %v5170
      %v5205 = vpop.f32.mrf.mxu0
      %v5206 = vadd.f32 0.0, %v5205
      %v5207 = vpop.f32.mrf.mxu0
      %v5208 = vadd.f32 0.0, %v5207
      %5209 = vdwg.mxu0
      %5210 = vrot.lane.b32.xlu0 %v4248, 64
      %v5211 = vpop.permute.xlu0 %5210
      %5212 = vrot.lane.b32.xlu0 %v4249, 64
      %v5213 = vpop.permute.xlu0 %5212
      %v5215 = vsel %vm516, %v5211, 0
      %v5218 = vsel %vm516, %v5213, 0
      %v5221 = vsel %vm516, %v5161, 0
      %5223 = vmatpush.bf16.xpose.msra.mxu0 0
      %5224 = vmatpush.bf16.xpose.msra.mxu0 0
      %5225 = vmatpush.bf16.xpose.msra.mxu0 0
      %5226 = vmatpush.bf16.xpose.msra.mxu0 0
      %5227 = vmatpush.bf16.xpose.msra.mxu0 0
      %5228 = vmatpush.bf16.xpose.msra.mxu0 0
      %5229 = vmatpush.bf16.xpose.msra.mxu0 0
      %5230 = vmatpush.bf16.xpose.msra.mxu0 %v5221
      %5231 = vmatmul.bf16.gmra.mxu0 %v5215
      %v5232 = vpop.f32.mrf.mxu0
      %v5233 = vadd.f32 0.0, %v5232
      %v5234 = vpop.f32.mrf.mxu0
      %v5235 = vadd.f32 0.0, %v5234
      %5236 = vmatmul.bf16.gmra.mxu0 %v5218
      %v5237 = vpop.f32.mrf.mxu0
      %v5238 = vadd.f32 0.0, %v5237
      %v5239 = vpop.f32.mrf.mxu0
      %v5240 = vadd.f32 0.0, %v5239
      %5241 = vdwg.mxu0
      %5242 = vrot.lane.b32.xlu0 %v4248, 32
      %v5243 = vpop.permute.xlu0 %5242
      %5244 = vrot.lane.b32.xlu0 %v4249, 32
      %v5245 = vpop.permute.xlu0 %5244
      %v5247 = vsel %vm516, %v5243, 0
      %v5250 = vsel %vm516, %v5245, 0
      %5252 = vmatpush.bf16.xpose.msra.mxu0 0
      %5253 = vmatpush.bf16.xpose.msra.mxu0 0
      %5254 = vmatpush.bf16.xpose.msra.mxu0 0
      %5255 = vmatpush.bf16.xpose.msra.mxu0 0
      %5256 = vmatpush.bf16.xpose.msra.mxu0 0
      %5257 = vmatpush.bf16.xpose.msra.mxu0 0
      %5258 = vmatpush.bf16.xpose.msra.mxu0 0
      %5259 = vmatpush.bf16.xpose.msra.mxu0 %v5221
      %5260 = vmatmul.bf16.gmra.mxu0 %v5247
      %v5261 = vpop.f32.mrf.mxu0
      %v5262 = vadd.f32 0.0, %v5261
      %v5263 = vpop.f32.mrf.mxu0
      %v5264 = vadd.f32 0.0, %v5263
      %5265 = vmatmul.bf16.gmra.mxu0 %v5250
      %v5266 = vpop.f32.mrf.mxu0
      %v5267 = vadd.f32 0.0, %v5266
      %v5268 = vpop.f32.mrf.mxu0
      %v5269 = vadd.f32 0.0, %v5268
      %5270 = vdwg.mxu0
      %v5271 = vld [vmem:[%s8 + $0x8] sm:$0xf]
      %v5272 = vld [vmem:[%s8 + $0x14] sm:$0xf]
      %v5273 = vld [vmem:[%s8 + $0x20] sm:$0xf]
      %v5274 = vld [vmem:[%s8 + $0x2c] sm:$0xf]
      %v5275 = vpack.c.bf16 %v5201, %v5182
      %v5276 = vpack.c.bf16 %v5203, %v5184
      %v5277 = vpack.c.bf16 %v5206, %v5187
      %v5278 = vpack.c.bf16 %v5208, %v5189
      %v5279 = vpack.c.bf16 %v5233, %v5233
      %v5280 = vpack.c.bf16 %v5235, %v5235
      %v5281 = vpack.c.bf16 %v5238, %v5238
      %v5282 = vpack.c.bf16 %v5240, %v5240
      %v5283 = vpack.c.bf16 %v5262, %v5262
      %v5284 = vpack.c.bf16 %v5264, %v5264
      %v5285 = vpack.c.bf16 %v5267, %v5267
      %v5286 = vpack.c.bf16 %v5269, %v5269
      %v5289 = vunpack.c.l.b16 %v5279
      %v5290 = vunpack.c.l.b16 %v5280
      %v5291 = vpack.c.b16 %v5290, %v5289
      %5293 = vxpose.xlu0.c.b16.start [1/8] %v5291, 128
      %5294 = vxpose.xlu0.c.b16.cont [2/8] 0, 128
      %5295 = vxpose.xlu0.c.b16.cont [3/8] 0, 128
      %5296 = vxpose.xlu0.c.b16.cont [4/8] 0, 128
      %5297 = vxpose.xlu0.c.b16.cont [5/8] 0, 128
      %5298 = vxpose.xlu0.c.b16.cont [6/8] 0, 128
      %5299 = vxpose.xlu0.c.b16.cont [7/8] 0, 128
      %5300 = vxpose.xlu0.c.b16.end [8/8] 0, 128
      %v5301 = vpop.trf.xlu0
      %v5302 = vpop.trf.xlu0
      %v5303 = vpop.trf.xlu0
      %v5304 = vpop.trf.xlu0
      %v5305 = vpop.trf.xlu0
      %v5306 = vpop.trf.xlu0
      %v5307 = vpop.trf.xlu0
      %v5308 = vpop.trf.xlu0
      %v5311 = vunpack.c.l.b16 %v5275
      %v5312 = vunpack.c.h.b16 %v5275
      %v5313 = vunpack.c.l.b16 %v5276
      %v5314 = vunpack.c.h.b16 %v5276
      %v5315 = vpack.c.b16 %v5313, %v5311
      %v5316 = vpack.c.b16 %v5314, %v5312
      %v5320 = vsel %vm3443, %v5301, 0
      %5322 = vmatpush.bf16.msra.mxu0 0
      %5323 = vmatpush.bf16.msra.mxu0 0
      %5324 = vmatpush.bf16.msra.mxu0 0
      %5325 = vmatpush.bf16.msra.mxu0 0
      %5326 = vmatpush.bf16.msra.mxu0 0
      %5327 = vmatpush.bf16.msra.mxu0 0
      %5328 = vmatpush.bf16.msra.mxu0 0
      %5329 = vmatpush.bf16.msra.mxu0 %v5315
      %5330 = vmatmul.bf16.gmra.mxu0 %v5320
      %v5331 = vpop.f32.mrf.mxu0
      %v5332 = vadd.f32 0.0, %v5331
      %v5333 = vpop.f32.mrf.mxu0
      %5334 = vdwg.mxu0
      %5335 = vmatpush.bf16.msra.mxu0 0
      %5336 = vmatpush.bf16.msra.mxu0 0
      %5337 = vmatpush.bf16.msra.mxu0 0
      %5338 = vmatpush.bf16.msra.mxu0 0
      %5339 = vmatpush.bf16.msra.mxu0 0
      %5340 = vmatpush.bf16.msra.mxu0 0
      %5341 = vmatpush.bf16.msra.mxu0 0
      %5342 = vmatpush.bf16.msra.mxu0 %v5316
      %5343 = vmatmul.bf16.gmra.mxu0 %v5320
      %v5344 = vpop.f32.mrf.mxu0
      %v5345 = vadd.f32 0.0, %v5344
      %v5346 = vpop.f32.mrf.mxu0
      %5347 = vdwg.mxu0
      %v5348 = vrot.slane %v5332, 4
      %v5349 = vmax.f32 %v5332, %v5348
      %v5350 = vrot.slane %v5349, 2
      %v5351 = vmax.f32 %v5349, %v5350
      %v5352 = vrot.slane %v5351, 1
      %v5353 = vmax.f32 %v5351, %v5352
      %v5354 = vrot.slane %v5345, 4
      %v5355 = vmax.f32 %v5345, %v5354
      %v5356 = vrot.slane %v5355, 2
      %v5357 = vmax.f32 %v5355, %v5356
      %v5358 = vrot.slane %v5357, 1
      %v5359 = vmax.f32 %v5357, %v5358
      %v5360 = vsub.f32 %v5332, %v5353
      %v5361 = vsub.f32 %v5345, %v5359
      %v5362 = vmul.f32 %v5360, 1.442695
      %v5363 = vpow.pop %v5362
      %v5364 = vmul.f32 %v5361, 1.442695
      %v5365 = vpow.pop %v5364
      %v5366 = vrot.slane %v5363, 4
      %v5367 = vadd.f32 %v5363, %v5366
      %v5368 = vrot.slane %v5367, 2
      %v5369 = vadd.f32 %v5367, %v5368
      %v5370 = vrot.slane %v5369, 1
      %v5371 = vadd.f32 %v5369, %v5370
      %v5372 = vrot.slane %v5365, 4
      %v5373 = vadd.f32 %v5365, %v5372
      %v5374 = vrot.slane %v5373, 2
      %v5375 = vadd.f32 %v5373, %v5374
      %v5376 = vrot.slane %v5375, 1
      %v5377 = vadd.f32 %v5375, %v5376
      %v5378 = vpack.c.bf16 %v5363, %v5363
      %v5379 = vpack.c.bf16 %v5365, %v5365
      %v5382 = vunpack.c.l.b16 %v5283
      %v5383 = vunpack.c.l.b16 %v5284
      %v5384 = vpack.c.b16 %v5383, %v5382
      %vm5385 = vcmask 64512
      %v5387 = vsel %vm5385, %v5384, 0
      %vm5389 = vcmask 1043456
      %v5391 = vsel %vm5389, %v5378, 0
      %v5394 = vsel %vm5389, %v5379, 0
      %5396 = vmatpush.bf16.msra.mxu0 0
      %5397 = vmatpush.bf16.msra.mxu0 0
      %5398 = vmatpush.bf16.msra.mxu0 0
      %5399 = vmatpush.bf16.msra.mxu0 0
      %5400 = vmatpush.bf16.msra.mxu0 0
      %5401 = vmatpush.bf16.msra.mxu0 0
      %5402 = vmatpush.bf16.msra.mxu0 0
      %5403 = vmatpush.bf16.msra.mxu0 %v5391
      %5404 = vmatmul.bf16.gmra.mxu0 %v5387
      %v5405 = vpop.f32.mrf.mxu0
      %v5406 = vadd.f32 0.0, %v5405
      %v5407 = vpop.f32.mrf.mxu0
      %v5408 = vadd.f32 0.0, %v5407
      %5409 = vdwg.mxu0
      %5410 = vmatpush.bf16.msra.mxu0 0
      %5411 = vmatpush.bf16.msra.mxu0 0
      %5412 = vmatpush.bf16.msra.mxu0 0
      %5413 = vmatpush.bf16.msra.mxu0 0
      %5414 = vmatpush.bf16.msra.mxu0 0
      %5415 = vmatpush.bf16.msra.mxu0 0
      %5416 = vmatpush.bf16.msra.mxu0 0
      %5417 = vmatpush.bf16.msra.mxu0 %v5394
      %5418 = vmatmul.bf16.gmra.mxu0 %v5387
      %v5419 = vpop.f32.mrf.mxu0
      %v5420 = vadd.f32 0.0, %v5419
      %v5421 = vpop.f32.mrf.mxu0
      %v5422 = vadd.f32 0.0, %v5421
      %5423 = vdwg.mxu0
      %v5424 = vrcp.pop %v5371
      %v5425 = vmul.f32 %v5371, %v5424
      %v5426 = vsub.f32 1.0, %v5425
      %v5427 = vmul.f32 %v5424, %v5426
      %v5428 = vadd.f32 %v5424, %v5427
      %vm5429 = vweird.f32 %v5371
      %vm5430 = vweird.f32 %v5424
      %vm5431 = vmor %vm5429, %vm5430
      %v5432 = vsel %vm5431, %v5424, %v5428
      %v5433 = vand.u32 2147483647, %v5371
      %vm5434 = vcmp.eq.f32.partialorder %v5433, 8.507059e+37
      %v5435 = vand.u32 %v5371, 2147483648
      %v5436 = vor.u32 1.1754944e-38, %v5435
      %v5437 = vsel %vm5434, %v5436, %v5432
      %v5438 = vmul.f32 %v5406, %v5437
      %v5439 = vrcp.pop %v5377
      %v5440 = vmul.f32 %v5377, %v5439
      %v5441 = vsub.f32 1.0, %v5440
      %v5442 = vmul.f32 %v5439, %v5441
      %v5443 = vadd.f32 %v5439, %v5442
      %vm5444 = vweird.f32 %v5377
      %vm5445 = vweird.f32 %v5439
      %vm5446 = vmor %vm5444, %vm5445
      %v5447 = vsel %vm5446, %v5439, %v5443
      %v5448 = vand.u32 2147483647, %v5377
      %vm5449 = vcmp.eq.f32.partialorder %v5448, 8.507059e+37
      %v5450 = vand.u32 %v5377, 2147483648
      %v5451 = vor.u32 1.1754944e-38, %v5450
      %v5452 = vsel %vm5449, %v5451, %v5447
      %v5453 = vmul.f32 %v5420, %v5452
      %v5454 = vmul.f32 %v5408, %v5437
      %v5455 = vmul.f32 %v5422, %v5452
      %v5456 = vpack.c.bf16 %v5454, %v5438
      %v5457 = vpack.c.bf16 %v5455, %v5453
      %v5460 = vunpack.c.l.b16 %v5281
      %v5461 = vunpack.c.l.b16 %v5282
      %v5462 = vpack.c.b16 %v5461, %v5460
      %5464 = vxpose.xlu0.c.b16.start [1/8] %v5462, 128
      %5465 = vxpose.xlu0.c.b16.cont [2/8] 0, 128
      %5466 = vxpose.xlu0.c.b16.cont [3/8] 0, 128
      %5467 = vxpose.xlu0.c.b16.cont [4/8] 0, 128
      %5468 = vxpose.xlu0.c.b16.cont [5/8] 0, 128
      %5469 = vxpose.xlu0.c.b16.cont [6/8] 0, 128
      %5470 = vxpose.xlu0.c.b16.cont [7/8] 0, 128
      %5471 = vxpose.xlu0.c.b16.end [8/8] 0, 128
      %v5472 = vpop.trf.xlu0
      %v5473 = vpop.trf.xlu0
      %v5474 = vpop.trf.xlu0
      %v5475 = vpop.trf.xlu0
      %v5476 = vpop.trf.xlu0
      %v5477 = vpop.trf.xlu0
      %v5478 = vpop.trf.xlu0
      %v5479 = vpop.trf.xlu0
      %v5482 = vunpack.c.l.b16 %v5277
      %v5483 = vunpack.c.h.b16 %v5277
      %v5484 = vunpack.c.l.b16 %v5278
      %v5485 = vunpack.c.h.b16 %v5278
      %v5486 = vpack.c.b16 %v5484, %v5482
      %v5487 = vpack.c.b16 %v5485, %v5483
      %v5491 = vsel %vm3443, %v5472, 0
      %5493 = vmatpush.bf16.msra.mxu0 0
      %5494 = vmatpush.bf16.msra.mxu0 0
      %5495 = vmatpush.bf16.msra.mxu0 0
      %5496 = vmatpush.bf16.msra.mxu0 0
      %5497 = vmatpush.bf16.msra.mxu0 0
      %5498 = vmatpush.bf16.msra.mxu0 0
      %5499 = vmatpush.bf16.msra.mxu0 0
      %5500 = vmatpush.bf16.msra.mxu0 %v5486
      %5501 = vmatmul.bf16.gmra.mxu0 %v5491
      %v5502 = vpop.f32.mrf.mxu0
      %v5503 = vadd.f32 0.0, %v5502
      %v5504 = vpop.f32.mrf.mxu0
      %5505 = vdwg.mxu0
      %5506 = vmatpush.bf16.msra.mxu0 0
      %5507 = vmatpush.bf16.msra.mxu0 0
      %5508 = vmatpush.bf16.msra.mxu0 0
      %5509 = vmatpush.bf16.msra.mxu0 0
      %5510 = vmatpush.bf16.msra.mxu0 0
      %5511 = vmatpush.bf16.msra.mxu0 0
      %5512 = vmatpush.bf16.msra.mxu0 0
      %5513 = vmatpush.bf16.msra.mxu0 %v5487
      %5514 = vmatmul.bf16.gmra.mxu0 %v5491
      %v5515 = vpop.f32.mrf.mxu0
      %v5516 = vadd.f32 0.0, %v5515
      %v5517 = vpop.f32.mrf.mxu0
      %5518 = vdwg.mxu0
      %v5519 = vrot.slane %v5503, 4
      %v5520 = vmax.f32 %v5503, %v5519
      %v5521 = vrot.slane %v5520, 2
      %v5522 = vmax.f32 %v5520, %v5521
      %v5523 = vrot.slane %v5522, 1
      %v5524 = vmax.f32 %v5522, %v5523
      %v5525 = vrot.slane %v5516, 4
      %v5526 = vmax.f32 %v5516, %v5525
      %v5527 = vrot.slane %v5526, 2
      %v5528 = vmax.f32 %v5526, %v5527
      %v5529 = vrot.slane %v5528, 1
      %v5530 = vmax.f32 %v5528, %v5529
      %v5531 = vsub.f32 %v5503, %v5524
      %v5532 = vsub.f32 %v5516, %v5530
      %v5533 = vmul.f32 %v5531, 1.442695
      %v5534 = vpow.pop %v5533
      %v5535 = vmul.f32 %v5532, 1.442695
      %v5536 = vpow.pop %v5535
      %v5537 = vrot.slane %v5534, 4
      %v5538 = vadd.f32 %v5534, %v5537
      %v5539 = vrot.slane %v5538, 2
      %v5540 = vadd.f32 %v5538, %v5539
      %v5541 = vrot.slane %v5540, 1
      %v5542 = vadd.f32 %v5540, %v5541
      %v5543 = vrot.slane %v5536, 4
      %v5544 = vadd.f32 %v5536, %v5543
      %v5545 = vrot.slane %v5544, 2
      %v5546 = vadd.f32 %v5544, %v5545
      %v5547 = vrot.slane %v5546, 1
      %v5548 = vadd.f32 %v5546, %v5547
      %v5549 = vpack.c.bf16 %v5534, %v5534
      %v5550 = vpack.c.bf16 %v5536, %v5536
      %v5553 = vunpack.c.l.b16 %v5285
      %v5554 = vunpack.c.l.b16 %v5286
      %v5555 = vpack.c.b16 %v5554, %v5553
      %v5557 = vsel %vm5385, %v5555, 0
      %v5560 = vsel %vm5389, %v5549, 0
      %v5563 = vsel %vm5389, %v5550, 0
      %5565 = vmatpush.bf16.msra.mxu0 0
      %5566 = vmatpush.bf16.msra.mxu0 0
      %5567 = vmatpush.bf16.msra.mxu0 0
      %5568 = vmatpush.bf16.msra.mxu0 0
      %5569 = vmatpush.bf16.msra.mxu0 0
      %5570 = vmatpush.bf16.msra.mxu0 0
      %5571 = vmatpush.bf16.msra.mxu0 0
      %5572 = vmatpush.bf16.msra.mxu0 %v5560
      %5573 = vmatmul.bf16.gmra.mxu0 %v5557
      %v5574 = vpop.f32.mrf.mxu0
      %v5575 = vadd.f32 0.0, %v5574
      %v5576 = vpop.f32.mrf.mxu0
      %v5577 = vadd.f32 0.0, %v5576
      %5578 = vdwg.mxu0
      %5579 = vmatpush.bf16.msra.mxu0 0
      %5580 = vmatpush.bf16.msra.mxu0 0
      %5581 = vmatpush.bf16.msra.mxu0 0
      %5582 = vmatpush.bf16.msra.mxu0 0
      %5583 = vmatpush.bf16.msra.mxu0 0
      %5584 = vmatpush.bf16.msra.mxu0 0
      %5585 = vmatpush.bf16.msra.mxu0 0
      %5586 = vmatpush.bf16.msra.mxu0 %v5563
      %5587 = vmatmul.bf16.gmra.mxu0 %v5557
      %v5588 = vpop.f32.mrf.mxu0
      %v5589 = vadd.f32 0.0, %v5588
      %v5590 = vpop.f32.mrf.mxu0
      %v5591 = vadd.f32 0.0, %v5590
      %5592 = vdwg.mxu0
      %v5593 = vrcp.pop %v5542
      %v5594 = vmul.f32 %v5542, %v5593
      %v5595 = vsub.f32 1.0, %v5594
      %v5596 = vmul.f32 %v5593, %v5595
      %v5597 = vadd.f32 %v5593, %v5596
      %vm5598 = vweird.f32 %v5542
      %vm5599 = vweird.f32 %v5593
      %vm5600 = vmor %vm5598, %vm5599
      %v5601 = vsel %vm5600, %v5593, %v5597
      %v5602 = vand.u32 2147483647, %v5542
      %vm5603 = vcmp.eq.f32.partialorder %v5602, 8.507059e+37
      %v5604 = vand.u32 %v5542, 2147483648
      %v5605 = vor.u32 1.1754944e-38, %v5604
      %v5606 = vsel %vm5603, %v5605, %v5601
      %v5607 = vmul.f32 %v5575, %v5606
      %v5608 = vrcp.pop %v5548
      %v5609 = vmul.f32 %v5548, %v5608
      %v5610 = vsub.f32 1.0, %v5609
      %v5611 = vmul.f32 %v5608, %v5610
      %v5612 = vadd.f32 %v5608, %v5611
      %vm5613 = vweird.f32 %v5548
      %vm5614 = vweird.f32 %v5608
      %vm5615 = vmor %vm5613, %vm5614
      %v5616 = vsel %vm5615, %v5608, %v5612
      %v5617 = vand.u32 2147483647, %v5548
      %vm5618 = vcmp.eq.f32.partialorder %v5617, 8.507059e+37
      %v5619 = vand.u32 %v5548, 2147483648
      %v5620 = vor.u32 1.1754944e-38, %v5619
      %v5621 = vsel %vm5618, %v5620, %v5616
      %v5622 = vmul.f32 %v5589, %v5621
      %v5623 = vmul.f32 %v5577, %v5606
      %v5624 = vmul.f32 %v5591, %v5621
      %v5625 = vpack.c.bf16 %v5623, %v5607
      %v5626 = vpack.c.bf16 %v5624, %v5622
      %v5631 = vunpack.c.l.b16 %v5271
      %v5632 = vunpack.c.l.b16 %v5272
      %v5633 = vunpack.c.l.b16 %v5273
      %v5634 = vunpack.c.l.b16 %v5274
      %v5635 = vpack.c.b16 %v5632, %v5631
      %v5636 = vpack.c.b16 %v5634, %v5633
      %5637 = vrot.lane.b32.xlu0 %v5635, 112
      %v5638 = vpop.permute.xlu0 %5637
      %5639 = vrot.lane.b32.xlu0 %v5636, 112
      %v5640 = vpop.permute.xlu0 %5639
      %v5642 = vsel %vm3443, %v5638, 0
      %v5645 = vsel %vm3443, %v5640, 0
      %5647 = vmatpush.bf16.msra.mxu0 0
      %5648 = vmatpush.bf16.msra.mxu0 0
      %5649 = vmatpush.bf16.msra.mxu0 0
      %5650 = vmatpush.bf16.msra.mxu0 0
      %5651 = vmatpush.bf16.msra.mxu0 0
      %5652 = vmatpush.bf16.msra.mxu0 0
      %5653 = vmatpush.bf16.msra.mxu0 0
      %5654 = vmatpush.bf16.msra.mxu0 %v5625
      %5655 = vmatmul.bf16.gmra.mxu0 %v5642
      %v5656 = vpop.f32.mrf.mxu0
      %v5657 = vadd.f32 0.0, %v5656
      %v5658 = vpop.f32.mrf.mxu0
      %v5659 = vadd.f32 0.0, %v5658
      %5660 = vmatmul.bf16.gmra.mxu0 %v5645
      %v5661 = vpop.f32.mrf.mxu0
      %v5662 = vadd.f32 0.0, %v5661
      %v5663 = vpop.f32.mrf.mxu0
      %v5664 = vadd.f32 0.0, %v5663
      %5665 = vdwg.mxu0
      %5666 = vmatpush.bf16.msra.mxu0 0
      %5667 = vmatpush.bf16.msra.mxu0 0
      %5668 = vmatpush.bf16.msra.mxu0 0
      %5669 = vmatpush.bf16.msra.mxu0 0
      %5670 = vmatpush.bf16.msra.mxu0 0
      %5671 = vmatpush.bf16.msra.mxu0 0
      %5672 = vmatpush.bf16.msra.mxu0 0
      %5673 = vmatpush.bf16.msra.mxu0 %v5626
      %5674 = vmatmul.bf16.gmra.mxu0 %v5642
      %v5675 = vpop.f32.mrf.mxu0
      %v5676 = vadd.f32 0.0, %v5675
      %v5677 = vpop.f32.mrf.mxu0
      %v5678 = vadd.f32 0.0, %v5677
      %5679 = vmatmul.bf16.gmra.mxu0 %v5645
      %v5680 = vpop.f32.mrf.mxu0
      %v5681 = vadd.f32 0.0, %v5680
      %v5682 = vpop.f32.mrf.mxu0
      %v5683 = vadd.f32 0.0, %v5682
      %5684 = vdwg.mxu0
      %v5686 = vsel %vm3443, %v5635, 0
      %v5689 = vsel %vm3443, %v5636, 0
      %5691 = vmatpush.bf16.msra.mxu0 0
      %5692 = vmatpush.bf16.msra.mxu0 0
      %5693 = vmatpush.bf16.msra.mxu0 0
      %5694 = vmatpush.bf16.msra.mxu0 0
      %5695 = vmatpush.bf16.msra.mxu0 0
      %5696 = vmatpush.bf16.msra.mxu0 0
      %5697 = vmatpush.bf16.msra.mxu0 0
      %5698 = vmatpush.bf16.msra.mxu0 %v5456
      %5699 = vmatmul.bf16.gmra.mxu0 %v5686
      %v5700 = vpop.f32.mrf.mxu0
      %v5701 = vadd.f32 %v5657, %v5700
      %v5702 = vpop.f32.mrf.mxu0
      %v5703 = vadd.f32 %v5659, %v5702
      %5704 = vmatmul.bf16.gmra.mxu0 %v5689
      %v5705 = vpop.f32.mrf.mxu0
      %v5706 = vadd.f32 %v5662, %v5705
      %v5707 = vpop.f32.mrf.mxu0
      %v5708 = vadd.f32 %v5664, %v5707
      %5709 = vdwg.mxu0
      %5710 = vmatpush.bf16.msra.mxu0 0
      %5711 = vmatpush.bf16.msra.mxu0 0
      %5712 = vmatpush.bf16.msra.mxu0 0
      %5713 = vmatpush.bf16.msra.mxu0 0
      %5714 = vmatpush.bf16.msra.mxu0 0
      %5715 = vmatpush.bf16.msra.mxu0 0
      %5716 = vmatpush.bf16.msra.mxu0 0
      %5717 = vmatpush.bf16.msra.mxu0 %v5457
      %5718 = vmatmul.bf16.gmra.mxu0 %v5686
      %v5719 = vpop.f32.mrf.mxu0
      %v5720 = vadd.f32 %v5676, %v5719
      %v5721 = vpop.f32.mrf.mxu0
      %v5722 = vadd.f32 %v5678, %v5721
      %5723 = vmatmul.bf16.gmra.mxu0 %v5689
      %v5724 = vpop.f32.mrf.mxu0
      %v5725 = vadd.f32 %v5681, %v5724
      %v5726 = vpop.f32.mrf.mxu0
      %v5727 = vadd.f32 %v5683, %v5726
      %5728 = vdwg.mxu0
      %5729 = vset.pattern.permute.xlu0 15
      %5730 = vperm.xlu0 %5729, %v715
      %v5731 = vpop.permute.xlu0 %5730
      %5733 = vset.pattern.permute.xlu0 15
      %5734 = vperm.xlu0 %5733, %v716
      %v5735 = vpop.permute.xlu0 %5734
      %5737 = vset.pattern.permute.xlu0 15
      %5738 = vperm.xlu0 %5737, %v717
      %v5739 = vpop.permute.xlu0 %5738
      %5741 = vset.pattern.permute.xlu0 15
      %5742 = vperm.xlu0 %5741, %v718
      %v5743 = vpop.permute.xlu0 %5742
      %v5745 = vadd.f32 %v5701, %v5731
      %v5746 = vadd.f32 %v5720, %v5731
      %v5747 = vadd.f32 %v5703, %v5735
      %v5748 = vadd.f32 %v5722, %v5735
      %v5749 = vadd.f32 %v5706, %v5739
      %v5750 = vadd.f32 %v5725, %v5739
      %v5751 = vadd.f32 %v5708, %v5743
      %v5752 = vadd.f32 %v5727, %v5743
      %v5753 = vadd.f32 %v5745, %v5014
      %v5754 = vadd.f32 %v5746, %v5015
      %v5755 = vadd.f32 %v5747, %v5016
      %v5756 = vadd.f32 %v5748, %v5017
      %v5757 = vadd.f32 %v5749, %v5018
      %v5758 = vadd.f32 %v5750, %v5019
      %v5759 = vadd.f32 %v5751, %v5020
      %v5760 = vadd.f32 %v5752, %v5021
      %v5761 = vadd.f32 %v5753, %v5755
      %v5762 = vadd.f32 %v5761, %v5757
      %v5763 = vadd.f32 %v5762, %v5759
      %v5764 = vrot.slane %v5763, 4
      %v5765 = vadd.f32 %v5763, %v5764
      %v5766 = vrot.slane %v5765, 2
      %v5767 = vadd.f32 %v5765, %v5766
      %v5768 = vrot.slane %v5767, 1
      %v5769 = vadd.f32 %v5767, %v5768
      %v5770 = vadd.f32 %v5754, %v5756
      %v5771 = vadd.f32 %v5770, %v5758
      %v5772 = vadd.f32 %v5771, %v5760
      %v5773 = vrot.slane %v5772, 4
      %v5774 = vadd.f32 %v5772, %v5773
      %v5775 = vrot.slane %v5774, 2
      %v5776 = vadd.f32 %v5774, %v5775
      %v5777 = vrot.slane %v5776, 1
      %v5778 = vadd.f32 %v5776, %v5777
      %v5779 = vmul.f32 %v5769, %v3122
      %v5780 = vmul.f32 %v5778, %v3122
      %v5781 = vsub.f32 %v5753, %v5779
      %v5782 = vsub.f32 %v5754, %v5780
      %v5783 = vsub.f32 %v5755, %v5779
      %v5784 = vsub.f32 %v5756, %v5780
      %v5785 = vsub.f32 %v5757, %v5779
      %v5786 = vsub.f32 %v5758, %v5780
      %v5787 = vsub.f32 %v5759, %v5779
      %v5788 = vsub.f32 %v5760, %v5780
      %v5789 = vmul.f32 %v5781, %v5781
      %v5790 = vmul.f32 %v5782, %v5782
      %v5791 = vmul.f32 %v5783, %v5783
      %v5792 = vmul.f32 %v5784, %v5784
      %v5793 = vmul.f32 %v5785, %v5785
      %v5794 = vmul.f32 %v5786, %v5786
      %v5795 = vmul.f32 %v5787, %v5787
      %v5796 = vmul.f32 %v5788, %v5788
      %v5797 = vadd.f32 %v5789, %v5791
      %v5798 = vadd.f32 %v5797, %v5793
      %v5799 = vadd.f32 %v5798, %v5795
      %v5800 = vrot.slane %v5799, 4
      %v5801 = vadd.f32 %v5799, %v5800
      %v5802 = vrot.slane %v5801, 2
      %v5803 = vadd.f32 %v5801, %v5802
      %v5804 = vrot.slane %v5803, 1
      %v5805 = vadd.f32 %v5803, %v5804
      %v5806 = vadd.f32 %v5790, %v5792
      %v5807 = vadd.f32 %v5806, %v5794
      %v5808 = vadd.f32 %v5807, %v5796
      %v5809 = vrot.slane %v5808, 4
      %v5810 = vadd.f32 %v5808, %v5809
      %v5811 = vrot.slane %v5810, 2
      %v5812 = vadd.f32 %v5810, %v5811
      %v5813 = vrot.slane %v5812, 1
      %v5814 = vadd.f32 %v5812, %v5813
      %v5815 = vmul.f32 %v5805, %v3122
      %v5816 = vmul.f32 %v5814, %v3122
      %v5817 = vadd.f32 %v5815, 1e-05
      %v5818 = vadd.f32 %v5816, 1e-05
      %v5819 = vrsqrt.pop %v5817
      %v5820 = vmul.f32 %v5819, %v5817
      %v5821 = vmul.f32 %v5820, %v5819
      %v5822 = vmul.f32 0.5, %v5821
      %v5823 = vsub.f32 1.5, %v5822
      %v5824 = vmul.f32 %v5819, %v5823
      %vm5825 = vweird.f32 %v5817
      %vm5826 = vweird.f32 %v5819
      %vm5827 = vmor %vm5825, %vm5826
      %v5828 = vsel %vm5827, %v5819, %v5824
      %v5829 = vrsqrt.pop %v5818
      %v5830 = vmul.f32 %v5829, %v5818
      %v5831 = vmul.f32 %v5830, %v5829
      %v5832 = vmul.f32 0.5, %v5831
      %v5833 = vsub.f32 1.5, %v5832
      %v5834 = vmul.f32 %v5829, %v5833
      %vm5835 = vweird.f32 %v5818
      %vm5836 = vweird.f32 %v5829
      %vm5837 = vmor %vm5835, %vm5836
      %v5838 = vsel %vm5837, %v5829, %v5834
      %v5839 = vmul.f32 %v5781, %v5828
      %v5840 = vmul.f32 %v5782, %v5838
      %v5841 = vmul.f32 %v5783, %v5828
      %v5842 = vmul.f32 %v5784, %v5838
      %v5843 = vmul.f32 %v5785, %v5828
      %v5844 = vmul.f32 %v5786, %v5838
      %v5845 = vmul.f32 %v5787, %v5828
      %v5846 = vmul.f32 %v5788, %v5838
      %5847 = vset.pattern.permute.xlu0 16
      %5848 = vperm.xlu0 %5847, %v715
      %v5849 = vpop.permute.xlu0 %5848
      %5851 = vset.pattern.permute.xlu0 16
      %5852 = vperm.xlu0 %5851, %v716
      %v5853 = vpop.permute.xlu0 %5852
      %5855 = vset.pattern.permute.xlu0 16
      %5856 = vperm.xlu0 %5855, %v717
      %v5857 = vpop.permute.xlu0 %5856
      %5859 = vset.pattern.permute.xlu0 16
      %5860 = vperm.xlu0 %5859, %v718
      %v5861 = vpop.permute.xlu0 %5860
      %v5863 = vmul.f32 %v5839, %v5849
      %v5864 = vmul.f32 %v5840, %v5849
      %v5865 = vmul.f32 %v5841, %v5853
      %v5866 = vmul.f32 %v5842, %v5853
      %v5867 = vmul.f32 %v5843, %v5857
      %v5868 = vmul.f32 %v5844, %v5857
      %v5869 = vmul.f32 %v5845, %v5861
      %v5870 = vmul.f32 %v5846, %v5861
      %5871 = vset.pattern.permute.xlu0 17
      %5872 = vperm.xlu0 %5871, %v715
      %v5873 = vpop.permute.xlu0 %5872
      %5875 = vset.pattern.permute.xlu0 17
      %5876 = vperm.xlu0 %5875, %v716
      %v5877 = vpop.permute.xlu0 %5876
      %5879 = vset.pattern.permute.xlu0 17
      %5880 = vperm.xlu0 %5879, %v717
      %v5881 = vpop.permute.xlu0 %5880
      %5883 = vset.pattern.permute.xlu0 17
      %5884 = vperm.xlu0 %5883, %v718
      %v5885 = vpop.permute.xlu0 %5884
      %v5887 = vadd.f32 %v5863, %v5873
      %v5888 = vadd.f32 %v5864, %v5873
      %v5889 = vadd.f32 %v5865, %v5877
      %v5890 = vadd.f32 %v5866, %v5877
      %v5891 = vadd.f32 %v5867, %v5881
      %v5892 = vadd.f32 %v5868, %v5881
      %v5893 = vadd.f32 %v5869, %v5885
      %v5894 = vadd.f32 %v5870, %v5885
      %v5895 = vpack.c.bf16 %v5888, %v5887
      %v5896 = vpack.c.bf16 %v5890, %v5889
      %v5897 = vpack.c.bf16 %v5892, %v5891
      %v5898 = vpack.c.bf16 %v5894, %v5893
      %v5899 = vld [vmem:[%s9] sm:$0xf]
      %v5900 = vld [vmem:[%s9 + $0x4] sm:$0xf]
      %v5901 = vld [vmem:[%s9 + $0x8] sm:$0xf]
      %v5902 = vld [vmem:[%s9 + $0xc] sm:$0xf]
      %v5903 = vld [vmem:[%s9 + $0x10] sm:$0xf]
      %v5904 = vld [vmem:[%s9 + $0x14] sm:$0xf]
      %v5905 = vld [vmem:[%s9 + $0x18] sm:$0xf]
      %v5906 = vld [vmem:[%s9 + $0x1c] sm:$0xf]
      %v5907 = vld [vmem:[%s9 + $0x20] sm:$0xf]
      %v5908 = vld [vmem:[%s9 + $0x24] sm:$0xf]
      %v5909 = vld [vmem:[%s9 + $0x28] sm:$0xf]
      %v5910 = vld [vmem:[%s9 + $0x2c] sm:$0xf]
      %v5911 = vld [vmem:[%s9 + $0x30] sm:$0xf]
      %v5912 = vld [vmem:[%s9 + $0x34] sm:$0xf]
      %v5913 = vld [vmem:[%s9 + $0x38] sm:$0xf]
      %v5914 = vld [vmem:[%s9 + $0x3c] sm:$0xf]
      %v5915 = vld [vmem:[%s9 + $0x40] sm:$0xf]
      %v5916 = vld [vmem:[%s9 + $0x44] sm:$0xf]
      %v5917 = vld [vmem:[%s9 + $0x48] sm:$0xf]
      %v5918 = vld [vmem:[%s9 + $0x4c] sm:$0xf]
      %v5919 = vld [vmem:[%s9 + $0x50] sm:$0xf]
      %v5920 = vld [vmem:[%s9 + $0x54] sm:$0xf]
      %v5921 = vld [vmem:[%s9 + $0x58] sm:$0xf]
      %v5922 = vld [vmem:[%s9 + $0x5c] sm:$0xf]
      %v5923 = vld [vmem:[%s9 + $0x60] sm:$0xf]
      %v5924 = vld [vmem:[%s9 + $0x64] sm:$0xf]
      %v5925 = vld [vmem:[%s9 + $0x68] sm:$0xf]
      %v5926 = vld [vmem:[%s9 + $0x6c] sm:$0xf]
      %v5927 = vld [vmem:[%s9 + $0x70] sm:$0xf]
      %v5928 = vld [vmem:[%s9 + $0x74] sm:$0xf]
      %v5929 = vld [vmem:[%s9 + $0x78] sm:$0xf]
      %v5930 = vld [vmem:[%s9 + $0x7c] sm:$0xf]
      %v5931 = vld [vmem:[%s10] sm:$0xff]
      %v5932 = vld [vmem:[%s10 + $0x8] sm:$0xff]
      %v5933 = vld [vmem:[%s10 + $0x10] sm:$0xff]
      %v5934 = vld [vmem:[%s10 + $0x18] sm:$0xff]
      %v5935 = vld [vmem:[%s10 + $0x20] sm:$0xff]
      %v5936 = vld [vmem:[%s10 + $0x28] sm:$0xff]
      %v5937 = vld [vmem:[%s10 + $0x30] sm:$0xff]
      %v5938 = vld [vmem:[%s10 + $0x38] sm:$0xff]
      %v5939 = vld [vmem:[%s10 + $0x40] sm:$0xff]
      %v5940 = vld [vmem:[%s10 + $0x48] sm:$0xff]
      %v5941 = vld [vmem:[%s10 + $0x50] sm:$0xff]
      %v5942 = vld [vmem:[%s10 + $0x58] sm:$0xff]
      %v5943 = vld [vmem:[%s10 + $0x60] sm:$0xff]
      %v5944 = vld [vmem:[%s10 + $0x68] sm:$0xff]
      %v5945 = vld [vmem:[%s10 + $0x70] sm:$0xff]
      %v5946 = vld [vmem:[%s10 + $0x78] sm:$0xff]
      %v5947 = vld [vmem:[%s10 + $0x80] sm:$0xff]
      %v5948 = vld [vmem:[%s10 + $0x88] sm:$0xff]
      %v5949 = vld [vmem:[%s10 + $0x90] sm:$0xff]
      %v5950 = vld [vmem:[%s10 + $0x98] sm:$0xff]
      %v5951 = vld [vmem:[%s10 + $0xa0] sm:$0xff]
      %v5952 = vld [vmem:[%s10 + $0xa8] sm:$0xff]
      %v5953 = vld [vmem:[%s10 + $0xb0] sm:$0xff]
      %v5954 = vld [vmem:[%s10 + $0xb8] sm:$0xff]
      %v5955 = vld [vmem:[%s10 + $0xc0] sm:$0xff]
      %v5956 = vld [vmem:[%s10 + $0xc8] sm:$0xff]
      %v5957 = vld [vmem:[%s10 + $0xd0] sm:$0xff]
      %v5958 = vld [vmem:[%s10 + $0xd8] sm:$0xff]
      %v5959 = vld [vmem:[%s10 + $0xe0] sm:$0xff]
      %v5960 = vld [vmem:[%s10 + $0xe8] sm:$0xff]
      %v5961 = vld [vmem:[%s10 + $0xf0] sm:$0xff]
      %v5962 = vld [vmem:[%s10 + $0xf8] sm:$0xff]
      %v5963 = vld [vmem:[%s11] sm:$0xf]
      %v5964 = vld [vmem:[%s11 + $0x4] sm:$0xf]
      %v5965 = vld [vmem:[%s11 + $0x8] sm:$0xf]
      %v5966 = vld [vmem:[%s11 + $0xc] sm:$0xf]
      %5968 = vset.pattern.permute.xlu0 0
      %5969 = vperm.xlu0 %5968, %v5931
      %v5970 = vpop.permute.xlu0 %5969
      %5973 = vset.pattern.permute.xlu0 0
      %5974 = vperm.xlu0 %5973, %v5932
      %v5975 = vpop.permute.xlu0 %5974
      %5978 = vset.pattern.permute.xlu0 0
      %5979 = vperm.xlu0 %5978, %v5933
      %v5980 = vpop.permute.xlu0 %5979
      %5983 = vset.pattern.permute.xlu0 0
      %5984 = vperm.xlu0 %5983, %v5934
      %v5985 = vpop.permute.xlu0 %5984
      %5988 = vset.pattern.permute.xlu0 0
      %5989 = vperm.xlu0 %5988, %v5935
      %v5990 = vpop.permute.xlu0 %5989
      %5993 = vset.pattern.permute.xlu0 0
      %5994 = vperm.xlu0 %5993, %v5936
      %v5995 = vpop.permute.xlu0 %5994
      %5998 = vset.pattern.permute.xlu0 0
      %5999 = vperm.xlu0 %5998, %v5937
      %v6000 = vpop.permute.xlu0 %5999
      %6003 = vset.pattern.permute.xlu0 0
      %6004 = vperm.xlu0 %6003, %v5938
      %v6005 = vpop.permute.xlu0 %6004
      %6008 = vset.pattern.permute.xlu0 0
      %6009 = vperm.xlu0 %6008, %v5939
      %v6010 = vpop.permute.xlu0 %6009
      %6013 = vset.pattern.permute.xlu0 0
      %6014 = vperm.xlu0 %6013, %v5940
      %v6015 = vpop.permute.xlu0 %6014
      %6018 = vset.pattern.permute.xlu0 0
      %6019 = vperm.xlu0 %6018, %v5941
      %v6020 = vpop.permute.xlu0 %6019
      %6023 = vset.pattern.permute.xlu0 0
      %6024 = vperm.xlu0 %6023, %v5942
      %v6025 = vpop.permute.xlu0 %6024
      %6028 = vset.pattern.permute.xlu0 0
      %6029 = vperm.xlu0 %6028, %v5943
      %v6030 = vpop.permute.xlu0 %6029
      %6033 = vset.pattern.permute.xlu0 0
      %6034 = vperm.xlu0 %6033, %v5944
      %v6035 = vpop.permute.xlu0 %6034
      %6038 = vset.pattern.permute.xlu0 0
      %6039 = vperm.xlu0 %6038, %v5945
      %v6040 = vpop.permute.xlu0 %6039
      %6043 = vset.pattern.permute.xlu0 0
      %6044 = vperm.xlu0 %6043, %v5946
      %v6045 = vpop.permute.xlu0 %6044
      %6048 = vset.pattern.permute.xlu0 0
      %6049 = vperm.xlu0 %6048, %v5947
      %v6050 = vpop.permute.xlu0 %6049
      %6053 = vset.pattern.permute.xlu0 0
      %6054 = vperm.xlu0 %6053, %v5948
      %v6055 = vpop.permute.xlu0 %6054
      %6058 = vset.pattern.permute.xlu0 0
      %6059 = vperm.xlu0 %6058, %v5949
      %v6060 = vpop.permute.xlu0 %6059
      %6063 = vset.pattern.permute.xlu0 0
      %6064 = vperm.xlu0 %6063, %v5950
      %v6065 = vpop.permute.xlu0 %6064
      %6068 = vset.pattern.permute.xlu0 0
      %6069 = vperm.xlu0 %6068, %v5951
      %v6070 = vpop.permute.xlu0 %6069
      %6073 = vset.pattern.permute.xlu0 0
      %6074 = vperm.xlu0 %6073, %v5952
      %v6075 = vpop.permute.xlu0 %6074
      %6078 = vset.pattern.permute.xlu0 0
      %6079 = vperm.xlu0 %6078, %v5953
      %v6080 = vpop.permute.xlu0 %6079
      %6083 = vset.pattern.permute.xlu0 0
      %6084 = vperm.xlu0 %6083, %v5954
      %v6085 = vpop.permute.xlu0 %6084
      %6088 = vset.pattern.permute.xlu0 0
      %6089 = vperm.xlu0 %6088, %v5955
      %v6090 = vpop.permute.xlu0 %6089
      %6093 = vset.pattern.permute.xlu0 0
      %6094 = vperm.xlu0 %6093, %v5956
      %v6095 = vpop.permute.xlu0 %6094
      %6098 = vset.pattern.permute.xlu0 0
      %6099 = vperm.xlu0 %6098, %v5957
      %v6100 = vpop.permute.xlu0 %6099
      %6103 = vset.pattern.permute.xlu0 0
      %6104 = vperm.xlu0 %6103, %v5958
      %v6105 = vpop.permute.xlu0 %6104
      %6108 = vset.pattern.permute.xlu0 0
      %6109 = vperm.xlu0 %6108, %v5959
      %v6110 = vpop.permute.xlu0 %6109
      %6113 = vset.pattern.permute.xlu0 0
      %6114 = vperm.xlu0 %6113, %v5960
      %v6115 = vpop.permute.xlu0 %6114
      %6118 = vset.pattern.permute.xlu0 0
      %6119 = vperm.xlu0 %6118, %v5961
      %v6120 = vpop.permute.xlu0 %6119
      %6123 = vset.pattern.permute.xlu0 0
      %6124 = vperm.xlu0 %6123, %v5962
      %v6125 = vpop.permute.xlu0 %6124
      %v6159 = vunpack.c.l.b16 %v5899
      %v6160 = vunpack.c.l.b16 %v5900
      %v6161 = vunpack.c.l.b16 %v5901
      %v6162 = vunpack.c.l.b16 %v5902
      %v6163 = vunpack.c.l.b16 %v5903
      %v6164 = vunpack.c.l.b16 %v5904
      %v6165 = vunpack.c.l.b16 %v5905
      %v6166 = vunpack.c.l.b16 %v5906
      %v6167 = vunpack.c.l.b16 %v5907
      %v6168 = vunpack.c.l.b16 %v5908
      %v6169 = vunpack.c.l.b16 %v5909
      %v6170 = vunpack.c.l.b16 %v5910
      %v6171 = vunpack.c.l.b16 %v5911
      %v6172 = vunpack.c.l.b16 %v5912
      %v6173 = vunpack.c.l.b16 %v5913
      %v6174 = vunpack.c.l.b16 %v5914
      %v6175 = vunpack.c.l.b16 %v5915
      %v6176 = vunpack.c.l.b16 %v5916
      %v6177 = vunpack.c.l.b16 %v5917
      %v6178 = vunpack.c.l.b16 %v5918
      %v6179 = vunpack.c.l.b16 %v5919
      %v6180 = vunpack.c.l.b16 %v5920
      %v6181 = vunpack.c.l.b16 %v5921
      %v6182 = vunpack.c.l.b16 %v5922
      %v6183 = vunpack.c.l.b16 %v5923
      %v6184 = vunpack.c.l.b16 %v5924
      %v6185 = vunpack.c.l.b16 %v5925
      %v6186 = vunpack.c.l.b16 %v5926
      %v6187 = vunpack.c.l.b16 %v5927
      %v6188 = vunpack.c.l.b16 %v5928
      %v6189 = vunpack.c.l.b16 %v5929
      %v6190 = vunpack.c.l.b16 %v5930
      %v6191 = vpack.c.b16 %v6160, %v6159
      %v6192 = vpack.c.b16 %v6162, %v6161
      %v6193 = vpack.c.b16 %v6164, %v6163
      %v6194 = vpack.c.b16 %v6166, %v6165
      %v6195 = vpack.c.b16 %v6168, %v6167
      %v6196 = vpack.c.b16 %v6170, %v6169
      %v6197 = vpack.c.b16 %v6172, %v6171
      %v6198 = vpack.c.b16 %v6174, %v6173
      %v6199 = vpack.c.b16 %v6176, %v6175
      %v6200 = vpack.c.b16 %v6178, %v6177
      %v6201 = vpack.c.b16 %v6180, %v6179
      %v6202 = vpack.c.b16 %v6182, %v6181
      %v6203 = vpack.c.b16 %v6184, %v6183
      %v6204 = vpack.c.b16 %v6186, %v6185
      %v6205 = vpack.c.b16 %v6188, %v6187
      %v6206 = vpack.c.b16 %v6190, %v6189
      %v6211 = vunpack.c.l.b16 %v5895
      %v6212 = vunpack.c.l.b16 %v5896
      %v6213 = vunpack.c.l.b16 %v5897
      %v6214 = vunpack.c.l.b16 %v5898
      %v6215 = vpack.c.b16 %v6212, %v6211
      %v6216 = vpack.c.b16 %v6214, %v6213
      %v6220 = vsel %vm516, %v6191, 0
      %v6223 = vsel %vm516, %v6192, 0
      %v6226 = vsel %vm516, %v6193, 0
      %v6229 = vsel %vm516, %v6194, 0
      %v6232 = vsel %vm516, %v6195, 0
      %v6235 = vsel %vm516, %v6196, 0
      %v6238 = vsel %vm516, %v6197, 0
      %v6241 = vsel %vm516, %v6198, 0
      %v6244 = vsel %vm516, %v6199, 0
      %v6247 = vsel %vm516, %v6200, 0
      %v6250 = vsel %vm516, %v6201, 0
      %v6253 = vsel %vm516, %v6202, 0
      %v6256 = vsel %vm516, %v6203, 0
      %v6259 = vsel %vm516, %v6204, 0
      %v6262 = vsel %vm516, %v6205, 0
      %v6265 = vsel %vm516, %v6206, 0
      %6267 = vmatpush.bf16.msra.mxu0 0
      %6268 = vmatpush.bf16.msra.mxu0 0
      %6269 = vmatpush.bf16.msra.mxu0 0
      %6270 = vmatpush.bf16.msra.mxu0 0
      %6271 = vmatpush.bf16.msra.mxu0 0
      %6272 = vmatpush.bf16.msra.mxu0 0
      %6273 = vmatpush.bf16.msra.mxu0 %v6216
      %6274 = vmatpush.bf16.msra.mxu0 %v6215
      %6275 = vmatmul.bf16.gmra.mxu0 %v6220
      %v6276 = vpop.f32.mrf.mxu0
      %v6277 = vadd.f32 %v5970, %v6276
      %v6278 = vpop.f32.mrf.mxu0
      %v6279 = vadd.f32 %v5975, %v6278
      %6280 = vmatmul.bf16.gmra.mxu0 %v6223
      %v6281 = vpop.f32.mrf.mxu0
      %v6282 = vadd.f32 %v5980, %v6281
      %v6283 = vpop.f32.mrf.mxu0
      %v6284 = vadd.f32 %v5985, %v6283
      %6285 = vmatmul.bf16.gmra.mxu0 %v6226
      %v6286 = vpop.f32.mrf.mxu0
      %v6287 = vadd.f32 %v5990, %v6286
      %v6288 = vpop.f32.mrf.mxu0
      %v6289 = vadd.f32 %v5995, %v6288
      %6290 = vmatmul.bf16.gmra.mxu0 %v6229
      %v6291 = vpop.f32.mrf.mxu0
      %v6292 = vadd.f32 %v6000, %v6291
      %v6293 = vpop.f32.mrf.mxu0
      %v6294 = vadd.f32 %v6005, %v6293
      %6295 = vmatmul.bf16.gmra.mxu0 %v6232
      %v6296 = vpop.f32.mrf.mxu0
      %v6297 = vadd.f32 %v6010, %v6296
      %v6298 = vpop.f32.mrf.mxu0
      %v6299 = vadd.f32 %v6015, %v6298
      %6300 = vmatmul.bf16.gmra.mxu0 %v6235
      %v6301 = vpop.f32.mrf.mxu0
      %v6302 = vadd.f32 %v6020, %v6301
      %v6303 = vpop.f32.mrf.mxu0
      %v6304 = vadd.f32 %v6025, %v6303
      %6305 = vmatmul.bf16.gmra.mxu0 %v6238
      %v6306 = vpop.f32.mrf.mxu0
      %v6307 = vadd.f32 %v6030, %v6306
      %v6308 = vpop.f32.mrf.mxu0
      %v6309 = vadd.f32 %v6035, %v6308
      %6310 = vmatmul.bf16.gmra.mxu0 %v6241
      %v6311 = vpop.f32.mrf.mxu0
      %v6312 = vadd.f32 %v6040, %v6311
      %v6313 = vpop.f32.mrf.mxu0
      %v6314 = vadd.f32 %v6045, %v6313
      %6315 = vmatmul.bf16.gmra.mxu0 %v6244
      %v6316 = vpop.f32.mrf.mxu0
      %v6317 = vadd.f32 %v6050, %v6316
      %v6318 = vpop.f32.mrf.mxu0
      %v6319 = vadd.f32 %v6055, %v6318
      %6320 = vmatmul.bf16.gmra.mxu0 %v6247
      %v6321 = vpop.f32.mrf.mxu0
      %v6322 = vadd.f32 %v6060, %v6321
      %v6323 = vpop.f32.mrf.mxu0
      %v6324 = vadd.f32 %v6065, %v6323
      %6325 = vmatmul.bf16.gmra.mxu0 %v6250
      %v6326 = vpop.f32.mrf.mxu0
      %v6327 = vadd.f32 %v6070, %v6326
      %v6328 = vpop.f32.mrf.mxu0
      %v6329 = vadd.f32 %v6075, %v6328
      %6330 = vmatmul.bf16.gmra.mxu0 %v6253
      %v6331 = vpop.f32.mrf.mxu0
      %v6332 = vadd.f32 %v6080, %v6331
      %v6333 = vpop.f32.mrf.mxu0
      %v6334 = vadd.f32 %v6085, %v6333
      %6335 = vmatmul.bf16.gmra.mxu0 %v6256
      %v6336 = vpop.f32.mrf.mxu0
      %v6337 = vadd.f32 %v6090, %v6336
      %v6338 = vpop.f32.mrf.mxu0
      %v6339 = vadd.f32 %v6095, %v6338
      %6340 = vmatmul.bf16.gmra.mxu0 %v6259
      %v6341 = vpop.f32.mrf.mxu0
      %v6342 = vadd.f32 %v6100, %v6341
      %v6343 = vpop.f32.mrf.mxu0
      %v6344 = vadd.f32 %v6105, %v6343
      %6345 = vmatmul.bf16.gmra.mxu0 %v6262
      %v6346 = vpop.f32.mrf.mxu0
      %v6347 = vadd.f32 %v6110, %v6346
      %v6348 = vpop.f32.mrf.mxu0
      %v6349 = vadd.f32 %v6115, %v6348
      %6350 = vmatmul.bf16.gmra.mxu0 %v6265
      %v6351 = vpop.f32.mrf.mxu0
      %v6352 = vadd.f32 %v6120, %v6351
      %v6353 = vpop.f32.mrf.mxu0
      %v6354 = vadd.f32 %v6125, %v6353
      %6355 = vdwg.mxu0
      %v6356 = vmul.f32 %v6317, 0.5
      %v6357 = vmul.f32 %v6319, 0.5
      %v6358 = vmul.f32 %v6322, 0.5
      %v6359 = vmul.f32 %v6324, 0.5
      %v6360 = vmul.f32 %v6327, 0.5
      %v6361 = vmul.f32 %v6329, 0.5
      %v6362 = vmul.f32 %v6332, 0.5
      %v6363 = vmul.f32 %v6334, 0.5
      %v6364 = vmul.f32 %v6337, 0.5
      %v6365 = vmul.f32 %v6339, 0.5
      %v6366 = vmul.f32 %v6342, 0.5
      %v6367 = vmul.f32 %v6344, 0.5
      %v6368 = vmul.f32 %v6347, 0.5
      %v6369 = vmul.f32 %v6349, 0.5
      %v6370 = vmul.f32 %v6352, 0.5
      %v6371 = vmul.f32 %v6354, 0.5
      %v6372 = vmul.f32 %v6317, 0.70710677
      %v6373 = vmul.f32 %v6319, 0.70710677
      %v6374 = vmul.f32 %v6322, 0.70710677
      %v6375 = vmul.f32 %v6324, 0.70710677
      %v6376 = vmul.f32 %v6327, 0.70710677
      %v6377 = vmul.f32 %v6329, 0.70710677
      %v6378 = vmul.f32 %v6332, 0.70710677
      %v6379 = vmul.f32 %v6334, 0.70710677
      %v6380 = vmul.f32 %v6337, 0.70710677
      %v6381 = vmul.f32 %v6339, 0.70710677
      %v6382 = vmul.f32 %v6342, 0.70710677
      %v6383 = vmul.f32 %v6344, 0.70710677
      %v6384 = vmul.f32 %v6347, 0.70710677
      %v6385 = vmul.f32 %v6349, 0.70710677
      %v6386 = vmul.f32 %v6352, 0.70710677
      %v6387 = vmul.f32 %v6354, 0.70710677
      %vm6388 = vcmp.ge.f32.partialorder %v6372, 0.0
      %vm6389 = vcmp.ge.f32.partialorder %v6373, 0.0
      %vm6390 = vcmp.ge.f32.partialorder %v6374, 0.0
      %vm6391 = vcmp.ge.f32.partialorder %v6375, 0.0
      %vm6392 = vcmp.ge.f32.partialorder %v6376, 0.0
      %vm6393 = vcmp.ge.f32.partialorder %v6377, 0.0
      %vm6394 = vcmp.ge.f32.partialorder %v6378, 0.0
      %vm6395 = vcmp.ge.f32.partialorder %v6379, 0.0
      %vm6396 = vcmp.ge.f32.partialorder %v6380, 0.0
      %vm6397 = vcmp.ge.f32.partialorder %v6381, 0.0
      %vm6398 = vcmp.ge.f32.partialorder %v6382, 0.0
      %vm6399 = vcmp.ge.f32.partialorder %v6383, 0.0
      %vm6400 = vcmp.ge.f32.partialorder %v6384, 0.0
      %vm6401 = vcmp.ge.f32.partialorder %v6385, 0.0
      %vm6402 = vcmp.ge.f32.partialorder %v6386, 0.0
      %vm6403 = vcmp.ge.f32.partialorder %v6387, 0.0
      %v6404 = vsel %vm6388, 1.0, -1.0
      %v6405 = vsel %vm6389, 1.0, -1.0
      %v6406 = vsel %vm6390, 1.0, -1.0
      %v6407 = vsel %vm6391, 1.0, -1.0
      %v6408 = vsel %vm6392, 1.0, -1.0
      %v6409 = vsel %vm6393, 1.0, -1.0
      %v6410 = vsel %vm6394, 1.0, -1.0
      %v6411 = vsel %vm6395, 1.0, -1.0
      %v6412 = vsel %vm6396, 1.0, -1.0
      %v6413 = vsel %vm6397, 1.0, -1.0
      %v6414 = vsel %vm6398, 1.0, -1.0
      %v6415 = vsel %vm6399, 1.0, -1.0
      %v6416 = vsel %vm6400, 1.0, -1.0
      %v6417 = vsel %vm6401, 1.0, -1.0
      %v6418 = vsel %vm6402, 1.0, -1.0
      %v6419 = vsel %vm6403, 1.0, -1.0
      %v6420 = vand.u32 2147483647, %v6372
      %v6421 = vand.u32 2147483647, %v6373
      %v6422 = vand.u32 2147483647, %v6374
      %v6423 = vand.u32 2147483647, %v6375
      %v6424 = vand.u32 2147483647, %v6376
      %v6425 = vand.u32 2147483647, %v6377
      %v6426 = vand.u32 2147483647, %v6378
      %v6427 = vand.u32 2147483647, %v6379
      %v6428 = vand.u32 2147483647, %v6380
      %v6429 = vand.u32 2147483647, %v6381
      %v6430 = vand.u32 2147483647, %v6382
      %v6431 = vand.u32 2147483647, %v6383
      %v6432 = vand.u32 2147483647, %v6384
      %v6433 = vand.u32 2147483647, %v6385
      %v6434 = vand.u32 2147483647, %v6386
      %v6435 = vand.u32 2147483647, %v6387
      %v6436 = vmul.f32 %v6420, 0.3275911
      %v6437 = vmul.f32 %v6421, 0.3275911
      %v6438 = vmul.f32 %v6422, 0.3275911
      %v6439 = vmul.f32 %v6423, 0.3275911
      %v6440 = vmul.f32 %v6424, 0.3275911
      %v6441 = vmul.f32 %v6425, 0.3275911
      %v6442 = vmul.f32 %v6426, 0.3275911
      %v6443 = vmul.f32 %v6427, 0.3275911
      %v6444 = vmul.f32 %v6428, 0.3275911
      %v6445 = vmul.f32 %v6429, 0.3275911
      %v6446 = vmul.f32 %v6430, 0.3275911
      %v6447 = vmul.f32 %v6431, 0.3275911
      %v6448 = vmul.f32 %v6432, 0.3275911
      %v6449 = vmul.f32 %v6433, 0.3275911
      %v6450 = vmul.f32 %v6434, 0.3275911
      %v6451 = vmul.f32 %v6435, 0.3275911
      %v6452 = vadd.f32 %v6436, 1.0
      %v6453 = vadd.f32 %v6437, 1.0
      %v6454 = vadd.f32 %v6438, 1.0
      %v6455 = vadd.f32 %v6439, 1.0
      %v6456 = vadd.f32 %v6440, 1.0
      %v6457 = vadd.f32 %v6441, 1.0
      %v6458 = vadd.f32 %v6442, 1.0
      %v6459 = vadd.f32 %v6443, 1.0
      %v6460 = vadd.f32 %v6444, 1.0
      %v6461 = vadd.f32 %v6445, 1.0
      %v6462 = vadd.f32 %v6446, 1.0
      %v6463 = vadd.f32 %v6447, 1.0
      %v6464 = vadd.f32 %v6448, 1.0
      %v6465 = vadd.f32 %v6449, 1.0
      %v6466 = vadd.f32 %v6450, 1.0
      %v6467 = vadd.f32 %v6451, 1.0
      %v6468 = vrcp.pop %v6452
      %v6469 = vmul.f32 %v6452, %v6468
      %v6470 = vsub.f32 1.0, %v6469
      %v6471 = vmul.f32 %v6468, %v6470
      %v6472 = vadd.f32 %v6468, %v6471
      %vm6473 = vweird.f32 %v6452
      %vm6474 = vweird.f32 %v6468
      %vm6475 = vmor %vm6473, %vm6474
      %v6476 = vsel %vm6475, %v6468, %v6472
      %v6477 = vand.u32 2147483647, %v6452
      %vm6478 = vcmp.eq.f32.partialorder %v6477, 8.507059e+37
      %v6479 = vand.u32 %v6452, 2147483648
      %v6480 = vor.u32 1.1754944e-38, %v6479
      %v6481 = vsel %vm6478, %v6480, %v6476
      %v6482 = vmul.f32 1.0, %v6481
      %v6483 = vrcp.pop %v6453
      %v6484 = vmul.f32 %v6453, %v6483
      %v6485 = vsub.f32 1.0, %v6484
      %v6486 = vmul.f32 %v6483, %v6485
      %v6487 = vadd.f32 %v6483, %v6486
      %vm6488 = vweird.f32 %v6453
      %vm6489 = vweird.f32 %v6483
      %vm6490 = vmor %vm6488, %vm6489
      %v6491 = vsel %vm6490, %v6483, %v6487
      %v6492 = vand.u32 2147483647, %v6453
      %vm6493 = vcmp.eq.f32.partialorder %v6492, 8.507059e+37
      %v6494 = vand.u32 %v6453, 2147483648
      %v6495 = vor.u32 1.1754944e-38, %v6494
      %v6496 = vsel %vm6493, %v6495, %v6491
      %v6497 = vmul.f32 1.0, %v6496
      %v6498 = vrcp.pop %v6454
      %v6499 = vmul.f32 %v6454, %v6498
      %v6500 = vsub.f32 1.0, %v6499
      %v6501 = vmul.f32 %v6498, %v6500
      %v6502 = vadd.f32 %v6498, %v6501
      %vm6503 = vweird.f32 %v6454
      %vm6504 = vweird.f32 %v6498
      %vm6505 = vmor %vm6503, %vm6504
      %v6506 = vsel %vm6505, %v6498, %v6502
      %v6507 = vand.u32 2147483647, %v6454
      %vm6508 = vcmp.eq.f32.partialorder %v6507, 8.507059e+37
      %v6509 = vand.u32 %v6454, 2147483648
      %v6510 = vor.u32 1.1754944e-38, %v6509
      %v6511 = vsel %vm6508, %v6510, %v6506
      %v6512 = vmul.f32 1.0, %v6511
      %v6513 = vrcp.pop %v6455
      %v6514 = vmul.f32 %v6455, %v6513
      %v6515 = vsub.f32 1.0, %v6514
      %v6516 = vmul.f32 %v6513, %v6515
      %v6517 = vadd.f32 %v6513, %v6516
      %vm6518 = vweird.f32 %v6455
      %vm6519 = vweird.f32 %v6513
      %vm6520 = vmor %vm6518, %vm6519
      %v6521 = vsel %vm6520, %v6513, %v6517
      %v6522 = vand.u32 2147483647, %v6455
      %vm6523 = vcmp.eq.f32.partialorder %v6522, 8.507059e+37
      %v6524 = vand.u32 %v6455, 2147483648
      %v6525 = vor.u32 1.1754944e-38, %v6524
      %v6526 = vsel %vm6523, %v6525, %v6521
      %v6527 = vmul.f32 1.0, %v6526
      %v6528 = vrcp.pop %v6456
      %v6529 = vmul.f32 %v6456, %v6528
      %v6530 = vsub.f32 1.0, %v6529
      %v6531 = vmul.f32 %v6528, %v6530
      %v6532 = vadd.f32 %v6528, %v6531
      %vm6533 = vweird.f32 %v6456
      %vm6534 = vweird.f32 %v6528
      %vm6535 = vmor %vm6533, %vm6534
      %v6536 = vsel %vm6535, %v6528, %v6532
      %v6537 = vand.u32 2147483647, %v6456
      %vm6538 = vcmp.eq.f32.partialorder %v6537, 8.507059e+37
      %v6539 = vand.u32 %v6456, 2147483648
      %v6540 = vor.u32 1.1754944e-38, %v6539
      %v6541 = vsel %vm6538, %v6540, %v6536
      %v6542 = vmul.f32 1.0, %v6541
      %v6543 = vrcp.pop %v6457
      %v6544 = vmul.f32 %v6457, %v6543
      %v6545 = vsub.f32 1.0, %v6544
      %v6546 = vmul.f32 %v6543, %v6545
      %v6547 = vadd.f32 %v6543, %v6546
      %vm6548 = vweird.f32 %v6457
      %vm6549 = vweird.f32 %v6543
      %vm6550 = vmor %vm6548, %vm6549
      %v6551 = vsel %vm6550, %v6543, %v6547
      %v6552 = vand.u32 2147483647, %v6457
      %vm6553 = vcmp.eq.f32.partialorder %v6552, 8.507059e+37
      %v6554 = vand.u32 %v6457, 2147483648
      %v6555 = vor.u32 1.1754944e-38, %v6554
      %v6556 = vsel %vm6553, %v6555, %v6551
      %v6557 = vmul.f32 1.0, %v6556
      %v6558 = vrcp.pop %v6458
      %v6559 = vmul.f32 %v6458, %v6558
      %v6560 = vsub.f32 1.0, %v6559
      %v6561 = vmul.f32 %v6558, %v6560
      %v6562 = vadd.f32 %v6558, %v6561
      %vm6563 = vweird.f32 %v6458
      %vm6564 = vweird.f32 %v6558
      %vm6565 = vmor %vm6563, %vm6564
      %v6566 = vsel %vm6565, %v6558, %v6562
      %v6567 = vand.u32 2147483647, %v6458
      %vm6568 = vcmp.eq.f32.partialorder %v6567, 8.507059e+37
      %v6569 = vand.u32 %v6458, 2147483648
      %v6570 = vor.u32 1.1754944e-38, %v6569
      %v6571 = vsel %vm6568, %v6570, %v6566
      %v6572 = vmul.f32 1.0, %v6571
      %v6573 = vrcp.pop %v6459
      %v6574 = vmul.f32 %v6459, %v6573
      %v6575 = vsub.f32 1.0, %v6574
      %v6576 = vmul.f32 %v6573, %v6575
      %v6577 = vadd.f32 %v6573, %v6576
      %vm6578 = vweird.f32 %v6459
      %vm6579 = vweird.f32 %v6573
      %vm6580 = vmor %vm6578, %vm6579
      %v6581 = vsel %vm6580, %v6573, %v6577
      %v6582 = vand.u32 2147483647, %v6459
      %vm6583 = vcmp.eq.f32.partialorder %v6582, 8.507059e+37
      %v6584 = vand.u32 %v6459, 2147483648
      %v6585 = vor.u32 1.1754944e-38, %v6584
      %v6586 = vsel %vm6583, %v6585, %v6581
      %v6587 = vmul.f32 1.0, %v6586
      %v6588 = vrcp.pop %v6460
      %v6589 = vmul.f32 %v6460, %v6588
      %v6590 = vsub.f32 1.0, %v6589
      %v6591 = vmul.f32 %v6588, %v6590
      %v6592 = vadd.f32 %v6588, %v6591
      %vm6593 = vweird.f32 %v6460
      %vm6594 = vweird.f32 %v6588
      %vm6595 = vmor %vm6593, %vm6594
      %v6596 = vsel %vm6595, %v6588, %v6592
      %v6597 = vand.u32 2147483647, %v6460
      %vm6598 = vcmp.eq.f32.partialorder %v6597, 8.507059e+37
      %v6599 = vand.u32 %v6460, 2147483648
      %v6600 = vor.u32 1.1754944e-38, %v6599
      %v6601 = vsel %vm6598, %v6600, %v6596
      %v6602 = vmul.f32 1.0, %v6601
      %v6603 = vrcp.pop %v6461
      %v6604 = vmul.f32 %v6461, %v6603
      %v6605 = vsub.f32 1.0, %v6604
      %v6606 = vmul.f32 %v6603, %v6605
      %v6607 = vadd.f32 %v6603, %v6606
      %vm6608 = vweird.f32 %v6461
      %vm6609 = vweird.f32 %v6603
      %vm6610 = vmor %vm6608, %vm6609
      %v6611 = vsel %vm6610, %v6603, %v6607
      %v6612 = vand.u32 2147483647, %v6461
      %vm6613 = vcmp.eq.f32.partialorder %v6612, 8.507059e+37
      %v6614 = vand.u32 %v6461, 2147483648
      %v6615 = vor.u32 1.1754944e-38, %v6614
      %v6616 = vsel %vm6613, %v6615, %v6611
      %v6617 = vmul.f32 1.0, %v6616
      %v6618 = vrcp.pop %v6462
      %v6619 = vmul.f32 %v6462, %v6618
      %v6620 = vsub.f32 1.0, %v6619
      %v6621 = vmul.f32 %v6618, %v6620
      %v6622 = vadd.f32 %v6618, %v6621
      %vm6623 = vweird.f32 %v6462
      %vm6624 = vweird.f32 %v6618
      %vm6625 = vmor %vm6623, %vm6624
      %v6626 = vsel %vm6625, %v6618, %v6622
      %v6627 = vand.u32 2147483647, %v6462
      %vm6628 = vcmp.eq.f32.partialorder %v6627, 8.507059e+37
      %v6629 = vand.u32 %v6462, 2147483648
      %v6630 = vor.u32 1.1754944e-38, %v6629
      %v6631 = vsel %vm6628, %v6630, %v6626
      %v6632 = vmul.f32 1.0, %v6631
      %v6633 = vrcp.pop %v6463
      %v6634 = vmul.f32 %v6463, %v6633
      %v6635 = vsub.f32 1.0, %v6634
      %v6636 = vmul.f32 %v6633, %v6635
      %v6637 = vadd.f32 %v6633, %v6636
      %vm6638 = vweird.f32 %v6463
      %vm6639 = vweird.f32 %v6633
      %vm6640 = vmor %vm6638, %vm6639
      %v6641 = vsel %vm6640, %v6633, %v6637
      %v6642 = vand.u32 2147483647, %v6463
      %vm6643 = vcmp.eq.f32.partialorder %v6642, 8.507059e+37
      %v6644 = vand.u32 %v6463, 2147483648
      %v6645 = vor.u32 1.1754944e-38, %v6644
      %v6646 = vsel %vm6643, %v6645, %v6641
      %v6647 = vmul.f32 1.0, %v6646
      %v6648 = vrcp.pop %v6464
      %v6649 = vmul.f32 %v6464, %v6648
      %v6650 = vsub.f32 1.0, %v6649
      %v6651 = vmul.f32 %v6648, %v6650
      %v6652 = vadd.f32 %v6648, %v6651
      %vm6653 = vweird.f32 %v6464
      %vm6654 = vweird.f32 %v6648
      %vm6655 = vmor %vm6653, %vm6654
      %v6656 = vsel %vm6655, %v6648, %v6652
      %v6657 = vand.u32 2147483647, %v6464
      %vm6658 = vcmp.eq.f32.partialorder %v6657, 8.507059e+37
      %v6659 = vand.u32 %v6464, 2147483648
      %v6660 = vor.u32 1.1754944e-38, %v6659
      %v6661 = vsel %vm6658, %v6660, %v6656
      %v6662 = vmul.f32 1.0, %v6661
      %v6663 = vrcp.pop %v6465
      %v6664 = vmul.f32 %v6465, %v6663
      %v6665 = vsub.f32 1.0, %v6664
      %v6666 = vmul.f32 %v6663, %v6665
      %v6667 = vadd.f32 %v6663, %v6666
      %vm6668 = vweird.f32 %v6465
      %vm6669 = vweird.f32 %v6663
      %vm6670 = vmor %vm6668, %vm6669
      %v6671 = vsel %vm6670, %v6663, %v6667
      %v6672 = vand.u32 2147483647, %v6465
      %vm6673 = vcmp.eq.f32.partialorder %v6672, 8.507059e+37
      %v6674 = vand.u32 %v6465, 2147483648
      %v6675 = vor.u32 1.1754944e-38, %v6674
      %v6676 = vsel %vm6673, %v6675, %v6671
      %v6677 = vmul.f32 1.0, %v6676
      %v6678 = vrcp.pop %v6466
      %v6679 = vmul.f32 %v6466, %v6678
      %v6680 = vsub.f32 1.0, %v6679
      %v6681 = vmul.f32 %v6678, %v6680
      %v6682 = vadd.f32 %v6678, %v6681
      %vm6683 = vweird.f32 %v6466
      %vm6684 = vweird.f32 %v6678
      %vm6685 = vmor %vm6683, %vm6684
      %v6686 = vsel %vm6685, %v6678, %v6682
      %v6687 = vand.u32 2147483647, %v6466
      %vm6688 = vcmp.eq.f32.partialorder %v6687, 8.507059e+37
      %v6689 = vand.u32 %v6466, 2147483648
      %v6690 = vor.u32 1.1754944e-38, %v6689
      %v6691 = vsel %vm6688, %v6690, %v6686
      %v6692 = vmul.f32 1.0, %v6691
      %v6693 = vrcp.pop %v6467
      %v6694 = vmul.f32 %v6467, %v6693
      %v6695 = vsub.f32 1.0, %v6694
      %v6696 = vmul.f32 %v6693, %v6695
      %v6697 = vadd.f32 %v6693, %v6696
      %vm6698 = vweird.f32 %v6467
      %vm6699 = vweird.f32 %v6693
      %vm6700 = vmor %vm6698, %vm6699
      %v6701 = vsel %vm6700, %v6693, %v6697
      %v6702 = vand.u32 2147483647, %v6467
      %vm6703 = vcmp.eq.f32.partialorder %v6702, 8.507059e+37
      %v6704 = vand.u32 %v6467, 2147483648
      %v6705 = vor.u32 1.1754944e-38, %v6704
      %v6706 = vsel %vm6703, %v6705, %v6701
      %v6707 = vmul.f32 1.0, %v6706
      %v6708 = vmul.f32 %v6482, 1.0614054
      %v6709 = vmul.f32 %v6497, 1.0614054
      %v6710 = vmul.f32 %v6512, 1.0614054
      %v6711 = vmul.f32 %v6527, 1.0614054
      %v6712 = vmul.f32 %v6542, 1.0614054
      %v6713 = vmul.f32 %v6557, 1.0614054
      %v6714 = vmul.f32 %v6572, 1.0614054
      %v6715 = vmul.f32 %v6587, 1.0614054
      %v6716 = vmul.f32 %v6602, 1.0614054
      %v6717 = vmul.f32 %v6617, 1.0614054
      %v6718 = vmul.f32 %v6632, 1.0614054
      %v6719 = vmul.f32 %v6647, 1.0614054
      %v6720 = vmul.f32 %v6662, 1.0614054
      %v6721 = vmul.f32 %v6677, 1.0614054
      %v6722 = vmul.f32 %v6692, 1.0614054
      %v6723 = vmul.f32 %v6707, 1.0614054
      %v6724 = vadd.f32 %v6708, -1.4531521
      %v6725 = vadd.f32 %v6709, -1.4531521
      %v6726 = vadd.f32 %v6710, -1.4531521
      %v6727 = vadd.f32 %v6711, -1.4531521
      %v6728 = vadd.f32 %v6712, -1.4531521
      %v6729 = vadd.f32 %v6713, -1.4531521
      %v6730 = vadd.f32 %v6714, -1.4531521
      %v6731 = vadd.f32 %v6715, -1.4531521
      %v6732 = vadd.f32 %v6716, -1.4531521
      %v6733 = vadd.f32 %v6717, -1.4531521
      %v6734 = vadd.f32 %v6718, -1.4531521
      %v6735 = vadd.f32 %v6719, -1.4531521
      %v6736 = vadd.f32 %v6720, -1.4531521
      %v6737 = vadd.f32 %v6721, -1.4531521
      %v6738 = vadd.f32 %v6722, -1.4531521
      %v6739 = vadd.f32 %v6723, -1.4531521
      %v6740 = vmul.f32 %v6724, %v6482
      %v6741 = vmul.f32 %v6725, %v6497
      %v6742 = vmul.f32 %v6726, %v6512
      %v6743 = vmul.f32 %v6727, %v6527
      %v6744 = vmul.f32 %v6728, %v6542
      %v6745 = vmul.f32 %v6729, %v6557
      %v6746 = vmul.f32 %v6730, %v6572
      %v6747 = vmul.f32 %v6731, %v6587
      %v6748 = vmul.f32 %v6732, %v6602
      %v6749 = vmul.f32 %v6733, %v6617
      %v6750 = vmul.f32 %v6734, %v6632
      %v6751 = vmul.f32 %v6735, %v6647
      %v6752 = vmul.f32 %v6736, %v6662
      %v6753 = vmul.f32 %v6737, %v6677
      %v6754 = vmul.f32 %v6738, %v6692
      %v6755 = vmul.f32 %v6739, %v6707
      %v6756 = vadd.f32 %v6740, 1.4214138
      %v6757 = vadd.f32 %v6741, 1.4214138
      %v6758 = vadd.f32 %v6742, 1.4214138
      %v6759 = vadd.f32 %v6743, 1.4214138
      %v6760 = vadd.f32 %v6744, 1.4214138
      %v6761 = vadd.f32 %v6745, 1.4214138
      %v6762 = vadd.f32 %v6746, 1.4214138
      %v6763 = vadd.f32 %v6747, 1.4214138
      %v6764 = vadd.f32 %v6748, 1.4214138
      %v6765 = vadd.f32 %v6749, 1.4214138
      %v6766 = vadd.f32 %v6750, 1.4214138
      %v6767 = vadd.f32 %v6751, 1.4214138
      %v6768 = vadd.f32 %v6752, 1.4214138
      %v6769 = vadd.f32 %v6753, 1.4214138
      %v6770 = vadd.f32 %v6754, 1.4214138
      %v6771 = vadd.f32 %v6755, 1.4214138
      %v6772 = vmul.f32 %v6756, %v6482
      %v6773 = vmul.f32 %v6757, %v6497
      %v6774 = vmul.f32 %v6758, %v6512
      %v6775 = vmul.f32 %v6759, %v6527
      %v6776 = vmul.f32 %v6760, %v6542
      %v6777 = vmul.f32 %v6761, %v6557
      %v6778 = vmul.f32 %v6762, %v6572
      %v6779 = vmul.f32 %v6763, %v6587
      %v6780 = vmul.f32 %v6764, %v6602
      %v6781 = vmul.f32 %v6765, %v6617
      %v6782 = vmul.f32 %v6766, %v6632
      %v6783 = vmul.f32 %v6767, %v6647
      %v6784 = vmul.f32 %v6768, %v6662
      %v6785 = vmul.f32 %v6769, %v6677
      %v6786 = vmul.f32 %v6770, %v6692
      %v6787 = vmul.f32 %v6771, %v6707
      %v6788 = vadd.f32 %v6772, -0.28449672
      %v6789 = vadd.f32 %v6773, -0.28449672
      %v6790 = vadd.f32 %v6774, -0.28449672
      %v6791 = vadd.f32 %v6775, -0.28449672
      %v6792 = vadd.f32 %v6776, -0.28449672
      %v6793 = vadd.f32 %v6777, -0.28449672
      %v6794 = vadd.f32 %v6778, -0.28449672
      %v6795 = vadd.f32 %v6779, -0.28449672
      %v6796 = vadd.f32 %v6780, -0.28449672
      %v6797 = vadd.f32 %v6781, -0.28449672
      %v6798 = vadd.f32 %v6782, -0.28449672
      %v6799 = vadd.f32 %v6783, -0.28449672
      %v6800 = vadd.f32 %v6784, -0.28449672
      %v6801 = vadd.f32 %v6785, -0.28449672
      %v6802 = vadd.f32 %v6786, -0.28449672
      %v6803 = vadd.f32 %v6787, -0.28449672
      %v6804 = vmul.f32 %v6788, %v6482
      %v6805 = vmul.f32 %v6789, %v6497
      %v6806 = vmul.f32 %v6790, %v6512
      %v6807 = vmul.f32 %v6791, %v6527
      %v6808 = vmul.f32 %v6792, %v6542
      %v6809 = vmul.f32 %v6793, %v6557
      %v6810 = vmul.f32 %v6794, %v6572
      %v6811 = vmul.f32 %v6795, %v6587
      %v6812 = vmul.f32 %v6796, %v6602
      %v6813 = vmul.f32 %v6797, %v6617
      %v6814 = vmul.f32 %v6798, %v6632
      %v6815 = vmul.f32 %v6799, %v6647
      %v6816 = vmul.f32 %v6800, %v6662
      %v6817 = vmul.f32 %v6801, %v6677
      %v6818 = vmul.f32 %v6802, %v6692
      %v6819 = vmul.f32 %v6803, %v6707
      %v6820 = vadd.f32 %v6804, 0.2548296
      %v6821 = vadd.f32 %v6805, 0.2548296
      %v6822 = vadd.f32 %v6806, 0.2548296
      %v6823 = vadd.f32 %v6807, 0.2548296
      %v6824 = vadd.f32 %v6808, 0.2548296
      %v6825 = vadd.f32 %v6809, 0.2548296
      %v6826 = vadd.f32 %v6810, 0.2548296
      %v6827 = vadd.f32 %v6811, 0.2548296
      %v6828 = vadd.f32 %v6812, 0.2548296
      %v6829 = vadd.f32 %v6813, 0.2548296
      %v6830 = vadd.f32 %v6814, 0.2548296
      %v6831 = vadd.f32 %v6815, 0.2548296
      %v6832 = vadd.f32 %v6816, 0.2548296
      %v6833 = vadd.f32 %v6817, 0.2548296
      %v6834 = vadd.f32 %v6818, 0.2548296
      %v6835 = vadd.f32 %v6819, 0.2548296
      %v6836 = vmul.f32 %v6820, %v6482
      %v6837 = vmul.f32 %v6821, %v6497
      %v6838 = vmul.f32 %v6822, %v6512
      %v6839 = vmul.f32 %v6823, %v6527
      %v6840 = vmul.f32 %v6824, %v6542
      %v6841 = vmul.f32 %v6825, %v6557
      %v6842 = vmul.f32 %v6826, %v6572
      %v6843 = vmul.f32 %v6827, %v6587
      %v6844 = vmul.f32 %v6828, %v6602
      %v6845 = vmul.f32 %v6829, %v6617
      %v6846 = vmul.f32 %v6830, %v6632
      %v6847 = vmul.f32 %v6831, %v6647
      %v6848 = vmul.f32 %v6832, %v6662
      %v6849 = vmul.f32 %v6833, %v6677
      %v6850 = vmul.f32 %v6834, %v6692
      %v6851 = vmul.f32 %v6835, %v6707
      %v6852 = vsub.f32 0.0, %v6420
      %v6853 = vsub.f32 0.0, %v6421
      %v6854 = vsub.f32 0.0, %v6422
      %v6855 = vsub.f32 0.0, %v6423
      %v6856 = vsub.f32 0.0, %v6424
      %v6857 = vsub.f32 0.0, %v6425
      %v6858 = vsub.f32 0.0, %v6426
      %v6859 = vsub.f32 0.0, %v6427
      %v6860 = vsub.f32 0.0, %v6428
      %v6861 = vsub.f32 0.0, %v6429
      %v6862 = vsub.f32 0.0, %v6430
      %v6863 = vsub.f32 0.0, %v6431
      %v6864 = vsub.f32 0.0, %v6432
      %v6865 = vsub.f32 0.0, %v6433
      %v6866 = vsub.f32 0.0, %v6434
      %v6867 = vsub.f32 0.0, %v6435
      %v6868 = vmul.f32 %v6852, %v6420
      %v6869 = vmul.f32 %v6853, %v6421
      %v6870 = vmul.f32 %v6854, %v6422
      %v6871 = vmul.f32 %v6855, %v6423
      %v6872 = vmul.f32 %v6856, %v6424
      %v6873 = vmul.f32 %v6857, %v6425
      %v6874 = vmul.f32 %v6858, %v6426
      %v6875 = vmul.f32 %v6859, %v6427
      %v6876 = vmul.f32 %v6860, %v6428
      %v6877 = vmul.f32 %v6861, %v6429
      %v6878 = vmul.f32 %v6862, %v6430
      %v6879 = vmul.f32 %v6863, %v6431
      %v6880 = vmul.f32 %v6864, %v6432
      %v6881 = vmul.f32 %v6865, %v6433
      %v6882 = vmul.f32 %v6866, %v6434
      %v6883 = vmul.f32 %v6867, %v6435
      %v6884 = vmul.f32 %v6868, 1.442695
      %v6885 = vpow.pop %v6884
      %v6886 = vmul.f32 %v6869, 1.442695
      %v6887 = vpow.pop %v6886
      %v6888 = vmul.f32 %v6870, 1.442695
      %v6889 = vpow.pop %v6888
      %v6890 = vmul.f32 %v6871, 1.442695
      %v6891 = vpow.pop %v6890
      %v6892 = vmul.f32 %v6872, 1.442695
      %v6893 = vpow.pop %v6892
      %v6894 = vmul.f32 %v6873, 1.442695
      %v6895 = vpow.pop %v6894
      %v6896 = vmul.f32 %v6874, 1.442695
      %v6897 = vpow.pop %v6896
      %v6898 = vmul.f32 %v6875, 1.442695
      %v6899 = vpow.pop %v6898
      %v6900 = vmul.f32 %v6876, 1.442695
      %v6901 = vpow.pop %v6900
      %v6902 = vmul.f32 %v6877, 1.442695
      %v6903 = vpow.pop %v6902
      %v6904 = vmul.f32 %v6878, 1.442695
      %v6905 = vpow.pop %v6904
      %v6906 = vmul.f32 %v6879, 1.442695
      %v6907 = vpow.pop %v6906
      %v6908 = vmul.f32 %v6880, 1.442695
      %v6909 = vpow.pop %v6908
      %v6910 = vmul.f32 %v6881, 1.442695
      %v6911 = vpow.pop %v6910
      %v6912 = vmul.f32 %v6882, 1.442695
      %v6913 = vpow.pop %v6912
      %v6914 = vmul.f32 %v6883, 1.442695
      %v6915 = vpow.pop %v6914
      %v6916 = vmul.f32 %v6836, %v6885
      %v6917 = vmul.f32 %v6837, %v6887
      %v6918 = vmul.f32 %v6838, %v6889
      %v6919 = vmul.f32 %v6839, %v6891
      %v6920 = vmul.f32 %v6840, %v6893
      %v6921 = vmul.f32 %v6841, %v6895
      %v6922 = vmul.f32 %v6842, %v6897
      %v6923 = vmul.f32 %v6843, %v6899
      %v6924 = vmul.f32 %v6844, %v6901
      %v6925 = vmul.f32 %v6845, %v6903
      %v6926 = vmul.f32 %v6846, %v6905
      %v6927 = vmul.f32 %v6847, %v6907
      %v6928 = vmul.f32 %v6848, %v6909
      %v6929 = vmul.f32 %v6849, %v6911
      %v6930 = vmul.f32 %v6850, %v6913
      %v6931 = vmul.f32 %v6851, %v6915
      %v6932 = vsub.f32 1.0, %v6916
      %v6933 = vsub.f32 1.0, %v6917
      %v6934 = vsub.f32 1.0, %v6918
      %v6935 = vsub.f32 1.0, %v6919
      %v6936 = vsub.f32 1.0, %v6920
      %v6937 = vsub.f32 1.0, %v6921
      %v6938 = vsub.f32 1.0, %v6922
      %v6939 = vsub.f32 1.0, %v6923
      %v6940 = vsub.f32 1.0, %v6924
      %v6941 = vsub.f32 1.0, %v6925
      %v6942 = vsub.f32 1.0, %v6926
      %v6943 = vsub.f32 1.0, %v6927
      %v6944 = vsub.f32 1.0, %v6928
      %v6945 = vsub.f32 1.0, %v6929
      %v6946 = vsub.f32 1.0, %v6930
      %v6947 = vsub.f32 1.0, %v6931
      %v6948 = vmul.f32 %v6404, %v6932
      %v6949 = vmul.f32 %v6405, %v6933
      %v6950 = vmul.f32 %v6406, %v6934
      %v6951 = vmul.f32 %v6407, %v6935
      %v6952 = vmul.f32 %v6408, %v6936
      %v6953 = vmul.f32 %v6409, %v6937
      %v6954 = vmul.f32 %v6410, %v6938
      %v6955 = vmul.f32 %v6411, %v6939
      %v6956 = vmul.f32 %v6412, %v6940
      %v6957 = vmul.f32 %v6413, %v6941
      %v6958 = vmul.f32 %v6414, %v6942
      %v6959 = vmul.f32 %v6415, %v6943
      %v6960 = vmul.f32 %v6416, %v6944
      %v6961 = vmul.f32 %v6417, %v6945
      %v6962 = vmul.f32 %v6418, %v6946
      %v6963 = vmul.f32 %v6419, %v6947
      %v6964 = vadd.f32 %v6948, 1.0
      %v6965 = vadd.f32 %v6949, 1.0
      %v6966 = vadd.f32 %v6950, 1.0
      %v6967 = vadd.f32 %v6951, 1.0
      %v6968 = vadd.f32 %v6952, 1.0
      %v6969 = vadd.f32 %v6953, 1.0
      %v6970 = vadd.f32 %v6954, 1.0
      %v6971 = vadd.f32 %v6955, 1.0
      %v6972 = vadd.f32 %v6956, 1.0
      %v6973 = vadd.f32 %v6957, 1.0
      %v6974 = vadd.f32 %v6958, 1.0
      %v6975 = vadd.f32 %v6959, 1.0
      %v6976 = vadd.f32 %v6960, 1.0
      %v6977 = vadd.f32 %v6961, 1.0
      %v6978 = vadd.f32 %v6962, 1.0
      %v6979 = vadd.f32 %v6963, 1.0
      %v6980 = vmul.f32 %v6356, %v6964
      %v6981 = vmul.f32 %v6357, %v6965
      %v6982 = vmul.f32 %v6358, %v6966
      %v6983 = vmul.f32 %v6359, %v6967
      %v6984 = vmul.f32 %v6360, %v6968
      %v6985 = vmul.f32 %v6361, %v6969
      %v6986 = vmul.f32 %v6362, %v6970
      %v6987 = vmul.f32 %v6363, %v6971
      %v6988 = vmul.f32 %v6364, %v6972
      %v6989 = vmul.f32 %v6365, %v6973
      %v6990 = vmul.f32 %v6366, %v6974
      %v6991 = vmul.f32 %v6367, %v6975
      %v6992 = vmul.f32 %v6368, %v6976
      %v6993 = vmul.f32 %v6369, %v6977
      %v6994 = vmul.f32 %v6370, %v6978
      %v6995 = vmul.f32 %v6371, %v6979
      %v6996 = vmul.f32 %v6277, %v6980
      %v6997 = vmul.f32 %v6279, %v6981
      %v6998 = vmul.f32 %v6282, %v6982
      %v6999 = vmul.f32 %v6284, %v6983
      %v7000 = vmul.f32 %v6287, %v6984
      %v7001 = vmul.f32 %v6289, %v6985
      %v7002 = vmul.f32 %v6292, %v6986
      %v7003 = vmul.f32 %v6294, %v6987
      %v7004 = vmul.f32 %v6297, %v6988
      %v7005 = vmul.f32 %v6299, %v6989
      %v7006 = vmul.f32 %v6302, %v6990
      %v7007 = vmul.f32 %v6304, %v6991
      %v7008 = vmul.f32 %v6307, %v6992
      %v7009 = vmul.f32 %v6309, %v6993
      %v7010 = vmul.f32 %v6312, %v6994
      %v7011 = vmul.f32 %v6314, %v6995
      %v7012 = vpack.c.bf16 %v6997, %v6996
      %v7013 = vpack.c.bf16 %v6999, %v6998
      %v7014 = vpack.c.bf16 %v7001, %v7000
      %v7015 = vpack.c.bf16 %v7003, %v7002
      %v7016 = vpack.c.bf16 %v7005, %v7004
      %v7017 = vpack.c.bf16 %v7007, %v7006
      %v7018 = vpack.c.bf16 %v7009, %v7008
      %v7019 = vpack.c.bf16 %v7011, %v7010
      %v7024 = vunpack.c.l.b16 %v5963
      %v7025 = vunpack.c.l.b16 %v5964
      %v7026 = vunpack.c.l.b16 %v5965
      %v7027 = vunpack.c.l.b16 %v5966
      %v7028 = vpack.c.b16 %v7025, %v7024
      %v7029 = vpack.c.b16 %v7027, %v7026
      %7032 = vmatpush.bf16.msra.mxu0 %v7019
      %7033 = vmatpush.bf16.msra.mxu0 %v7018
      %7034 = vmatpush.bf16.msra.mxu0 %v7017
      %7035 = vmatpush.bf16.msra.mxu0 %v7016
      %7036 = vmatpush.bf16.msra.mxu0 %v7015
      %7037 = vmatpush.bf16.msra.mxu0 %v7014
      %7038 = vmatpush.bf16.msra.mxu0 %v7013
      %7039 = vmatpush.bf16.msra.mxu0 %v7012
      %7040 = vmatmul.bf16.gmra.mxu0 %v7028
      %v7041 = vpop.f32.mrf.mxu0
      %v7042 = vadd.f32 0.0, %v7041
      %v7043 = vpop.f32.mrf.mxu0
      %v7044 = vadd.f32 0.0, %v7043
      %7045 = vmatmul.bf16.gmra.mxu0 %v7029
      %v7046 = vpop.f32.mrf.mxu0
      %v7047 = vadd.f32 0.0, %v7046
      %v7048 = vpop.f32.mrf.mxu0
      %v7049 = vadd.f32 0.0, %v7048
      %7050 = vdwg.mxu0
      %v7051 = vunpack.c.h.b16 %v5895
      %v7052 = vunpack.c.h.b16 %v5896
      %v7053 = vunpack.c.h.b16 %v5897
      %v7054 = vunpack.c.h.b16 %v5898
      %v7055 = vpack.c.b16 %v7052, %v7051
      %v7056 = vpack.c.b16 %v7054, %v7053
      %7059 = vmatpush.bf16.msra.mxu0 0
      %7060 = vmatpush.bf16.msra.mxu0 0
      %7061 = vmatpush.bf16.msra.mxu0 0
      %7062 = vmatpush.bf16.msra.mxu0 0
      %7063 = vmatpush.bf16.msra.mxu0 0
      %7064 = vmatpush.bf16.msra.mxu0 0
      %7065 = vmatpush.bf16.msra.mxu0 %v7056
      %7066 = vmatpush.bf16.msra.mxu0 %v7055
      %7067 = vmatmul.bf16.gmra.mxu0 %v6220
      %v7068 = vpop.f32.mrf.mxu0
      %v7069 = vadd.f32 %v5970, %v7068
      %v7070 = vpop.f32.mrf.mxu0
      %v7071 = vadd.f32 %v5975, %v7070
      %7072 = vmatmul.bf16.gmra.mxu0 %v6223
      %v7073 = vpop.f32.mrf.mxu0
      %v7074 = vadd.f32 %v5980, %v7073
      %v7075 = vpop.f32.mrf.mxu0
      %v7076 = vadd.f32 %v5985, %v7075
      %7077 = vmatmul.bf16.gmra.mxu0 %v6226
      %v7078 = vpop.f32.mrf.mxu0
      %v7079 = vadd.f32 %v5990, %v7078
      %v7080 = vpop.f32.mrf.mxu0
      %v7081 = vadd.f32 %v5995, %v7080
      %7082 = vmatmul.bf16.gmra.mxu0 %v6229
      %v7083 = vpop.f32.mrf.mxu0
      %v7084 = vadd.f32 %v6000, %v7083
      %v7085 = vpop.f32.mrf.mxu0
      %v7086 = vadd.f32 %v6005, %v7085
      %7087 = vmatmul.bf16.gmra.mxu0 %v6232
      %v7088 = vpop.f32.mrf.mxu0
      %v7089 = vadd.f32 %v6010, %v7088
      %v7090 = vpop.f32.mrf.mxu0
      %v7091 = vadd.f32 %v6015, %v7090
      %7092 = vmatmul.bf16.gmra.mxu0 %v6235
      %v7093 = vpop.f32.mrf.mxu0
      %v7094 = vadd.f32 %v6020, %v7093
      %v7095 = vpop.f32.mrf.mxu0
      %v7096 = vadd.f32 %v6025, %v7095
      %7097 = vmatmul.bf16.gmra.mxu0 %v6238
      %v7098 = vpop.f32.mrf.mxu0
      %v7099 = vadd.f32 %v6030, %v7098
      %v7100 = vpop.f32.mrf.mxu0
      %v7101 = vadd.f32 %v6035, %v7100
      %7102 = vmatmul.bf16.gmra.mxu0 %v6241
      %v7103 = vpop.f32.mrf.mxu0
      %v7104 = vadd.f32 %v6040, %v7103
      %v7105 = vpop.f32.mrf.mxu0
      %v7106 = vadd.f32 %v6045, %v7105
      %7107 = vmatmul.bf16.gmra.mxu0 %v6244
      %v7108 = vpop.f32.mrf.mxu0
      %v7109 = vadd.f32 %v6050, %v7108
      %v7110 = vpop.f32.mrf.mxu0
      %v7111 = vadd.f32 %v6055, %v7110
      %7112 = vmatmul.bf16.gmra.mxu0 %v6247
      %v7113 = vpop.f32.mrf.mxu0
      %v7114 = vadd.f32 %v6060, %v7113
      %v7115 = vpop.f32.mrf.mxu0
      %v7116 = vadd.f32 %v6065, %v7115
      %7117 = vmatmul.bf16.gmra.mxu0 %v6250
      %v7118 = vpop.f32.mrf.mxu0
      %v7119 = vadd.f32 %v6070, %v7118
      %v7120 = vpop.f32.mrf.mxu0
      %v7121 = vadd.f32 %v6075, %v7120
      %7122 = vmatmul.bf16.gmra.mxu0 %v6253
      %v7123 = vpop.f32.mrf.mxu0
      %v7124 = vadd.f32 %v6080, %v7123
      %v7125 = vpop.f32.mrf.mxu0
      %v7126 = vadd.f32 %v6085, %v7125
      %7127 = vmatmul.bf16.gmra.mxu0 %v6256
      %v7128 = vpop.f32.mrf.mxu0
      %v7129 = vadd.f32 %v6090, %v7128
      %v7130 = vpop.f32.mrf.mxu0
      %v7131 = vadd.f32 %v6095, %v7130
      %7132 = vmatmul.bf16.gmra.mxu0 %v6259
      %v7133 = vpop.f32.mrf.mxu0
      %v7134 = vadd.f32 %v6100, %v7133
      %v7135 = vpop.f32.mrf.mxu0
      %v7136 = vadd.f32 %v6105, %v7135
      %7137 = vmatmul.bf16.gmra.mxu0 %v6262
      %v7138 = vpop.f32.mrf.mxu0
      %v7139 = vadd.f32 %v6110, %v7138
      %v7140 = vpop.f32.mrf.mxu0
      %v7141 = vadd.f32 %v6115, %v7140
      %7142 = vmatmul.bf16.gmra.mxu0 %v6265
      %v7143 = vpop.f32.mrf.mxu0
      %v7144 = vadd.f32 %v6120, %v7143
      %v7145 = vpop.f32.mrf.mxu0
      %v7146 = vadd.f32 %v6125, %v7145
      %7147 = vdwg.mxu0
      %v7148 = vmul.f32 %v7109, 0.5
      %v7149 = vmul.f32 %v7111, 0.5
      %v7150 = vmul.f32 %v7114, 0.5
      %v7151 = vmul.f32 %v7116, 0.5
      %v7152 = vmul.f32 %v7119, 0.5
      %v7153 = vmul.f32 %v7121, 0.5
      %v7154 = vmul.f32 %v7124, 0.5
      %v7155 = vmul.f32 %v7126, 0.5
      %v7156 = vmul.f32 %v7129, 0.5
      %v7157 = vmul.f32 %v7131, 0.5
      %v7158 = vmul.f32 %v7134, 0.5
      %v7159 = vmul.f32 %v7136, 0.5
      %v7160 = vmul.f32 %v7139, 0.5
      %v7161 = vmul.f32 %v7141, 0.5
      %v7162 = vmul.f32 %v7144, 0.5
      %v7163 = vmul.f32 %v7146, 0.5
      %v7164 = vmul.f32 %v7109, 0.70710677
      %v7165 = vmul.f32 %v7111, 0.70710677
      %v7166 = vmul.f32 %v7114, 0.70710677
      %v7167 = vmul.f32 %v7116, 0.70710677
      %v7168 = vmul.f32 %v7119, 0.70710677
      %v7169 = vmul.f32 %v7121, 0.70710677
      %v7170 = vmul.f32 %v7124, 0.70710677
      %v7171 = vmul.f32 %v7126, 0.70710677
      %v7172 = vmul.f32 %v7129, 0.70710677
      %v7173 = vmul.f32 %v7131, 0.70710677
      %v7174 = vmul.f32 %v7134, 0.70710677
      %v7175 = vmul.f32 %v7136, 0.70710677
      %v7176 = vmul.f32 %v7139, 0.70710677
      %v7177 = vmul.f32 %v7141, 0.70710677
      %v7178 = vmul.f32 %v7144, 0.70710677
      %v7179 = vmul.f32 %v7146, 0.70710677
      %vm7180 = vcmp.ge.f32.partialorder %v7164, 0.0
      %vm7181 = vcmp.ge.f32.partialorder %v7165, 0.0
      %vm7182 = vcmp.ge.f32.partialorder %v7166, 0.0
      %vm7183 = vcmp.ge.f32.partialorder %v7167, 0.0
      %vm7184 = vcmp.ge.f32.partialorder %v7168, 0.0
      %vm7185 = vcmp.ge.f32.partialorder %v7169, 0.0
      %vm7186 = vcmp.ge.f32.partialorder %v7170, 0.0
      %vm7187 = vcmp.ge.f32.partialorder %v7171, 0.0
      %vm7188 = vcmp.ge.f32.partialorder %v7172, 0.0
      %vm7189 = vcmp.ge.f32.partialorder %v7173, 0.0
      %vm7190 = vcmp.ge.f32.partialorder %v7174, 0.0
      %vm7191 = vcmp.ge.f32.partialorder %v7175, 0.0
      %vm7192 = vcmp.ge.f32.partialorder %v7176, 0.0
      %vm7193 = vcmp.ge.f32.partialorder %v7177, 0.0
      %vm7194 = vcmp.ge.f32.partialorder %v7178, 0.0
      %vm7195 = vcmp.ge.f32.partialorder %v7179, 0.0
      %v7196 = vsel %vm7180, 1.0, -1.0
      %v7197 = vsel %vm7181, 1.0, -1.0
      %v7198 = vsel %vm7182, 1.0, -1.0
      %v7199 = vsel %vm7183, 1.0, -1.0
      %v7200 = vsel %vm7184, 1.0, -1.0
      %v7201 = vsel %vm7185, 1.0, -1.0
      %v7202 = vsel %vm7186, 1.0, -1.0
      %v7203 = vsel %vm7187, 1.0, -1.0
      %v7204 = vsel %vm7188, 1.0, -1.0
      %v7205 = vsel %vm7189, 1.0, -1.0
      %v7206 = vsel %vm7190, 1.0, -1.0
      %v7207 = vsel %vm7191, 1.0, -1.0
      %v7208 = vsel %vm7192, 1.0, -1.0
      %v7209 = vsel %vm7193, 1.0, -1.0
      %v7210 = vsel %vm7194, 1.0, -1.0
      %v7211 = vsel %vm7195, 1.0, -1.0
      %v7212 = vand.u32 2147483647, %v7164
      %v7213 = vand.u32 2147483647, %v7165
      %v7214 = vand.u32 2147483647, %v7166
      %v7215 = vand.u32 2147483647, %v7167
      %v7216 = vand.u32 2147483647, %v7168
      %v7217 = vand.u32 2147483647, %v7169
      %v7218 = vand.u32 2147483647, %v7170
      %v7219 = vand.u32 2147483647, %v7171
      %v7220 = vand.u32 2147483647, %v7172
      %v7221 = vand.u32 2147483647, %v7173
      %v7222 = vand.u32 2147483647, %v7174
      %v7223 = vand.u32 2147483647, %v7175
      %v7224 = vand.u32 2147483647, %v7176
      %v7225 = vand.u32 2147483647, %v7177
      %v7226 = vand.u32 2147483647, %v7178
      %v7227 = vand.u32 2147483647, %v7179
      %v7228 = vmul.f32 %v7212, 0.3275911
      %v7229 = vmul.f32 %v7213, 0.3275911
      %v7230 = vmul.f32 %v7214, 0.3275911
      %v7231 = vmul.f32 %v7215, 0.3275911
      %v7232 = vmul.f32 %v7216, 0.3275911
      %v7233 = vmul.f32 %v7217, 0.3275911
      %v7234 = vmul.f32 %v7218, 0.3275911
      %v7235 = vmul.f32 %v7219, 0.3275911
      %v7236 = vmul.f32 %v7220, 0.3275911
      %v7237 = vmul.f32 %v7221, 0.3275911
      %v7238 = vmul.f32 %v7222, 0.3275911
      %v7239 = vmul.f32 %v7223, 0.3275911
      %v7240 = vmul.f32 %v7224, 0.3275911
      %v7241 = vmul.f32 %v7225, 0.3275911
      %v7242 = vmul.f32 %v7226, 0.3275911
      %v7243 = vmul.f32 %v7227, 0.3275911
      %v7244 = vadd.f32 %v7228, 1.0
      %v7245 = vadd.f32 %v7229, 1.0
      %v7246 = vadd.f32 %v7230, 1.0
      %v7247 = vadd.f32 %v7231, 1.0
      %v7248 = vadd.f32 %v7232, 1.0
      %v7249 = vadd.f32 %v7233, 1.0
      %v7250 = vadd.f32 %v7234, 1.0
      %v7251 = vadd.f32 %v7235, 1.0
      %v7252 = vadd.f32 %v7236, 1.0
      %v7253 = vadd.f32 %v7237, 1.0
      %v7254 = vadd.f32 %v7238, 1.0
      %v7255 = vadd.f32 %v7239, 1.0
      %v7256 = vadd.f32 %v7240, 1.0
      %v7257 = vadd.f32 %v7241, 1.0
      %v7258 = vadd.f32 %v7242, 1.0
      %v7259 = vadd.f32 %v7243, 1.0
      %v7260 = vrcp.pop %v7244
      %v7261 = vmul.f32 %v7244, %v7260
      %v7262 = vsub.f32 1.0, %v7261
      %v7263 = vmul.f32 %v7260, %v7262
      %v7264 = vadd.f32 %v7260, %v7263
      %vm7265 = vweird.f32 %v7244
      %vm7266 = vweird.f32 %v7260
      %vm7267 = vmor %vm7265, %vm7266
      %v7268 = vsel %vm7267, %v7260, %v7264
      %v7269 = vand.u32 2147483647, %v7244
      %vm7270 = vcmp.eq.f32.partialorder %v7269, 8.507059e+37
      %v7271 = vand.u32 %v7244, 2147483648
      %v7272 = vor.u32 1.1754944e-38, %v7271
      %v7273 = vsel %vm7270, %v7272, %v7268
      %v7274 = vmul.f32 1.0, %v7273
      %v7275 = vrcp.pop %v7245
      %v7276 = vmul.f32 %v7245, %v7275
      %v7277 = vsub.f32 1.0, %v7276
      %v7278 = vmul.f32 %v7275, %v7277
      %v7279 = vadd.f32 %v7275, %v7278
      %vm7280 = vweird.f32 %v7245
      %vm7281 = vweird.f32 %v7275
      %vm7282 = vmor %vm7280, %vm7281
      %v7283 = vsel %vm7282, %v7275, %v7279
      %v7284 = vand.u32 2147483647, %v7245
      %vm7285 = vcmp.eq.f32.partialorder %v7284, 8.507059e+37
      %v7286 = vand.u32 %v7245, 2147483648
      %v7287 = vor.u32 1.1754944e-38, %v7286
      %v7288 = vsel %vm7285, %v7287, %v7283
      %v7289 = vmul.f32 1.0, %v7288
      %v7290 = vrcp.pop %v7246
      %v7291 = vmul.f32 %v7246, %v7290
      %v7292 = vsub.f32 1.0, %v7291
      %v7293 = vmul.f32 %v7290, %v7292
      %v7294 = vadd.f32 %v7290, %v7293
      %vm7295 = vweird.f32 %v7246
      %vm7296 = vweird.f32 %v7290
      %vm7297 = vmor %vm7295, %vm7296
      %v7298 = vsel %vm7297, %v7290, %v7294
      %v7299 = vand.u32 2147483647, %v7246
      %vm7300 = vcmp.eq.f32.partialorder %v7299, 8.507059e+37
      %v7301 = vand.u32 %v7246, 2147483648
      %v7302 = vor.u32 1.1754944e-38, %v7301
      %v7303 = vsel %vm7300, %v7302, %v7298
      %v7304 = vmul.f32 1.0, %v7303
      %v7305 = vrcp.pop %v7247
      %v7306 = vmul.f32 %v7247, %v7305
      %v7307 = vsub.f32 1.0, %v7306
      %v7308 = vmul.f32 %v7305, %v7307
      %v7309 = vadd.f32 %v7305, %v7308
      %vm7310 = vweird.f32 %v7247
      %vm7311 = vweird.f32 %v7305
      %vm7312 = vmor %vm7310, %vm7311
      %v7313 = vsel %vm7312, %v7305, %v7309
      %v7314 = vand.u32 2147483647, %v7247
      %vm7315 = vcmp.eq.f32.partialorder %v7314, 8.507059e+37
      %v7316 = vand.u32 %v7247, 2147483648
      %v7317 = vor.u32 1.1754944e-38, %v7316
      %v7318 = vsel %vm7315, %v7317, %v7313
      %v7319 = vmul.f32 1.0, %v7318
      %v7320 = vrcp.pop %v7248
      %v7321 = vmul.f32 %v7248, %v7320
      %v7322 = vsub.f32 1.0, %v7321
      %v7323 = vmul.f32 %v7320, %v7322
      %v7324 = vadd.f32 %v7320, %v7323
      %vm7325 = vweird.f32 %v7248
      %vm7326 = vweird.f32 %v7320
      %vm7327 = vmor %vm7325, %vm7326
      %v7328 = vsel %vm7327, %v7320, %v7324
      %v7329 = vand.u32 2147483647, %v7248
      %vm7330 = vcmp.eq.f32.partialorder %v7329, 8.507059e+37
      %v7331 = vand.u32 %v7248, 2147483648
      %v7332 = vor.u32 1.1754944e-38, %v7331
      %v7333 = vsel %vm7330, %v7332, %v7328
      %v7334 = vmul.f32 1.0, %v7333
      %v7335 = vrcp.pop %v7249
      %v7336 = vmul.f32 %v7249, %v7335
      %v7337 = vsub.f32 1.0, %v7336
      %v7338 = vmul.f32 %v7335, %v7337
      %v7339 = vadd.f32 %v7335, %v7338
      %vm7340 = vweird.f32 %v7249
      %vm7341 = vweird.f32 %v7335
      %vm7342 = vmor %vm7340, %vm7341
      %v7343 = vsel %vm7342, %v7335, %v7339
      %v7344 = vand.u32 2147483647, %v7249
      %vm7345 = vcmp.eq.f32.partialorder %v7344, 8.507059e+37
      %v7346 = vand.u32 %v7249, 2147483648
      %v7347 = vor.u32 1.1754944e-38, %v7346
      %v7348 = vsel %vm7345, %v7347, %v7343
      %v7349 = vmul.f32 1.0, %v7348
      %v7350 = vrcp.pop %v7250
      %v7351 = vmul.f32 %v7250, %v7350
      %v7352 = vsub.f32 1.0, %v7351
      %v7353 = vmul.f32 %v7350, %v7352
      %v7354 = vadd.f32 %v7350, %v7353
      %vm7355 = vweird.f32 %v7250
      %vm7356 = vweird.f32 %v7350
      %vm7357 = vmor %vm7355, %vm7356
      %v7358 = vsel %vm7357, %v7350, %v7354
      %v7359 = vand.u32 2147483647, %v7250
      %vm7360 = vcmp.eq.f32.partialorder %v7359, 8.507059e+37
      %v7361 = vand.u32 %v7250, 2147483648
      %v7362 = vor.u32 1.1754944e-38, %v7361
      %v7363 = vsel %vm7360, %v7362, %v7358
      %v7364 = vmul.f32 1.0, %v7363
      %v7365 = vrcp.pop %v7251
      %v7366 = vmul.f32 %v7251, %v7365
      %v7367 = vsub.f32 1.0, %v7366
      %v7368 = vmul.f32 %v7365, %v7367
      %v7369 = vadd.f32 %v7365, %v7368
      %vm7370 = vweird.f32 %v7251
      %vm7371 = vweird.f32 %v7365
      %vm7372 = vmor %vm7370, %vm7371
      %v7373 = vsel %vm7372, %v7365, %v7369
      %v7374 = vand.u32 2147483647, %v7251
      %vm7375 = vcmp.eq.f32.partialorder %v7374, 8.507059e+37
      %v7376 = vand.u32 %v7251, 2147483648
      %v7377 = vor.u32 1.1754944e-38, %v7376
      %v7378 = vsel %vm7375, %v7377, %v7373
      %v7379 = vmul.f32 1.0, %v7378
      %v7380 = vrcp.pop %v7252
      %v7381 = vmul.f32 %v7252, %v7380
      %v7382 = vsub.f32 1.0, %v7381
      %v7383 = vmul.f32 %v7380, %v7382
      %v7384 = vadd.f32 %v7380, %v7383
      %vm7385 = vweird.f32 %v7252
      %vm7386 = vweird.f32 %v7380
      %vm7387 = vmor %vm7385, %vm7386
      %v7388 = vsel %vm7387, %v7380, %v7384
      %v7389 = vand.u32 2147483647, %v7252
      %vm7390 = vcmp.eq.f32.partialorder %v7389, 8.507059e+37
      %v7391 = vand.u32 %v7252, 2147483648
      %v7392 = vor.u32 1.1754944e-38, %v7391
      %v7393 = vsel %vm7390, %v7392, %v7388
      %v7394 = vmul.f32 1.0, %v7393
      %v7395 = vrcp.pop %v7253
      %v7396 = vmul.f32 %v7253, %v7395
      %v7397 = vsub.f32 1.0, %v7396
      %v7398 = vmul.f32 %v7395, %v7397
      %v7399 = vadd.f32 %v7395, %v7398
      %vm7400 = vweird.f32 %v7253
      %vm7401 = vweird.f32 %v7395
      %vm7402 = vmor %vm7400, %vm7401
      %v7403 = vsel %vm7402, %v7395, %v7399
      %v7404 = vand.u32 2147483647, %v7253
      %vm7405 = vcmp.eq.f32.partialorder %v7404, 8.507059e+37
      %v7406 = vand.u32 %v7253, 2147483648
      %v7407 = vor.u32 1.1754944e-38, %v7406
      %v7408 = vsel %vm7405, %v7407, %v7403
      %v7409 = vmul.f32 1.0, %v7408
      %v7410 = vrcp.pop %v7254
      %v7411 = vmul.f32 %v7254, %v7410
      %v7412 = vsub.f32 1.0, %v7411
      %v7413 = vmul.f32 %v7410, %v7412
      %v7414 = vadd.f32 %v7410, %v7413
      %vm7415 = vweird.f32 %v7254
      %vm7416 = vweird.f32 %v7410
      %vm7417 = vmor %vm7415, %vm7416
      %v7418 = vsel %vm7417, %v7410, %v7414
      %v7419 = vand.u32 2147483647, %v7254
      %vm7420 = vcmp.eq.f32.partialorder %v7419, 8.507059e+37
      %v7421 = vand.u32 %v7254, 2147483648
      %v7422 = vor.u32 1.1754944e-38, %v7421
      %v7423 = vsel %vm7420, %v7422, %v7418
      %v7424 = vmul.f32 1.0, %v7423
      %v7425 = vrcp.pop %v7255
      %v7426 = vmul.f32 %v7255, %v7425
      %v7427 = vsub.f32 1.0, %v7426
      %v7428 = vmul.f32 %v7425, %v7427
      %v7429 = vadd.f32 %v7425, %v7428
      %vm7430 = vweird.f32 %v7255
      %vm7431 = vweird.f32 %v7425
      %vm7432 = vmor %vm7430, %vm7431
      %v7433 = vsel %vm7432, %v7425, %v7429
      %v7434 = vand.u32 2147483647, %v7255
      %vm7435 = vcmp.eq.f32.partialorder %v7434, 8.507059e+37
      %v7436 = vand.u32 %v7255, 2147483648
      %v7437 = vor.u32 1.1754944e-38, %v7436
      %v7438 = vsel %vm7435, %v7437, %v7433
      %v7439 = vmul.f32 1.0, %v7438
      %v7440 = vrcp.pop %v7256
      %v7441 = vmul.f32 %v7256, %v7440
      %v7442 = vsub.f32 1.0, %v7441
      %v7443 = vmul.f32 %v7440, %v7442
      %v7444 = vadd.f32 %v7440, %v7443
      %vm7445 = vweird.f32 %v7256
      %vm7446 = vweird.f32 %v7440
      %vm7447 = vmor %vm7445, %vm7446
      %v7448 = vsel %vm7447, %v7440, %v7444
      %v7449 = vand.u32 2147483647, %v7256
      %vm7450 = vcmp.eq.f32.partialorder %v7449, 8.507059e+37
      %v7451 = vand.u32 %v7256, 2147483648
      %v7452 = vor.u32 1.1754944e-38, %v7451
      %v7453 = vsel %vm7450, %v7452, %v7448
      %v7454 = vmul.f32 1.0, %v7453
      %v7455 = vrcp.pop %v7257
      %v7456 = vmul.f32 %v7257, %v7455
      %v7457 = vsub.f32 1.0, %v7456
      %v7458 = vmul.f32 %v7455, %v7457
      %v7459 = vadd.f32 %v7455, %v7458
      %vm7460 = vweird.f32 %v7257
      %vm7461 = vweird.f32 %v7455
      %vm7462 = vmor %vm7460, %vm7461
      %v7463 = vsel %vm7462, %v7455, %v7459
      %v7464 = vand.u32 2147483647, %v7257
      %vm7465 = vcmp.eq.f32.partialorder %v7464, 8.507059e+37
      %v7466 = vand.u32 %v7257, 2147483648
      %v7467 = vor.u32 1.1754944e-38, %v7466
      %v7468 = vsel %vm7465, %v7467, %v7463
      %v7469 = vmul.f32 1.0, %v7468
      %v7470 = vrcp.pop %v7258
      %v7471 = vmul.f32 %v7258, %v7470
      %v7472 = vsub.f32 1.0, %v7471
      %v7473 = vmul.f32 %v7470, %v7472
      %v7474 = vadd.f32 %v7470, %v7473
      %vm7475 = vweird.f32 %v7258
      %vm7476 = vweird.f32 %v7470
      %vm7477 = vmor %vm7475, %vm7476
      %v7478 = vsel %vm7477, %v7470, %v7474
      %v7479 = vand.u32 2147483647, %v7258
      %vm7480 = vcmp.eq.f32.partialorder %v7479, 8.507059e+37
      %v7481 = vand.u32 %v7258, 2147483648
      %v7482 = vor.u32 1.1754944e-38, %v7481
      %v7483 = vsel %vm7480, %v7482, %v7478
      %v7484 = vmul.f32 1.0, %v7483
      %v7485 = vrcp.pop %v7259
      %v7486 = vmul.f32 %v7259, %v7485
      %v7487 = vsub.f32 1.0, %v7486
      %v7488 = vmul.f32 %v7485, %v7487
      %v7489 = vadd.f32 %v7485, %v7488
      %vm7490 = vweird.f32 %v7259
      %vm7491 = vweird.f32 %v7485
      %vm7492 = vmor %vm7490, %vm7491
      %v7493 = vsel %vm7492, %v7485, %v7489
      %v7494 = vand.u32 2147483647, %v7259
      %vm7495 = vcmp.eq.f32.partialorder %v7494, 8.507059e+37
      %v7496 = vand.u32 %v7259, 2147483648
      %v7497 = vor.u32 1.1754944e-38, %v7496
      %v7498 = vsel %vm7495, %v7497, %v7493
      %v7499 = vmul.f32 1.0, %v7498
      %v7500 = vmul.f32 %v7274, 1.0614054
      %v7501 = vmul.f32 %v7289, 1.0614054
      %v7502 = vmul.f32 %v7304, 1.0614054
      %v7503 = vmul.f32 %v7319, 1.0614054
      %v7504 = vmul.f32 %v7334, 1.0614054
      %v7505 = vmul.f32 %v7349, 1.0614054
      %v7506 = vmul.f32 %v7364, 1.0614054
      %v7507 = vmul.f32 %v7379, 1.0614054
      %v7508 = vmul.f32 %v7394, 1.0614054
      %v7509 = vmul.f32 %v7409, 1.0614054
      %v7510 = vmul.f32 %v7424, 1.0614054
      %v7511 = vmul.f32 %v7439, 1.0614054
      %v7512 = vmul.f32 %v7454, 1.0614054
      %v7513 = vmul.f32 %v7469, 1.0614054
      %v7514 = vmul.f32 %v7484, 1.0614054
      %v7515 = vmul.f32 %v7499, 1.0614054
      %v7516 = vadd.f32 %v7500, -1.4531521
      %v7517 = vadd.f32 %v7501, -1.4531521
      %v7518 = vadd.f32 %v7502, -1.4531521
      %v7519 = vadd.f32 %v7503, -1.4531521
      %v7520 = vadd.f32 %v7504, -1.4531521
      %v7521 = vadd.f32 %v7505, -1.4531521
      %v7522 = vadd.f32 %v7506, -1.4531521
      %v7523 = vadd.f32 %v7507, -1.4531521
      %v7524 = vadd.f32 %v7508, -1.4531521
      %v7525 = vadd.f32 %v7509, -1.4531521
      %v7526 = vadd.f32 %v7510, -1.4531521
      %v7527 = vadd.f32 %v7511, -1.4531521
      %v7528 = vadd.f32 %v7512, -1.4531521
      %v7529 = vadd.f32 %v7513, -1.4531521
      %v7530 = vadd.f32 %v7514, -1.4531521
      %v7531 = vadd.f32 %v7515, -1.4531521
      %v7532 = vmul.f32 %v7516, %v7274
      %v7533 = vmul.f32 %v7517, %v7289
      %v7534 = vmul.f32 %v7518, %v7304
      %v7535 = vmul.f32 %v7519, %v7319
      %v7536 = vmul.f32 %v7520, %v7334
      %v7537 = vmul.f32 %v7521, %v7349
      %v7538 = vmul.f32 %v7522, %v7364
      %v7539 = vmul.f32 %v7523, %v7379
      %v7540 = vmul.f32 %v7524, %v7394
      %v7541 = vmul.f32 %v7525, %v7409
      %v7542 = vmul.f32 %v7526, %v7424
      %v7543 = vmul.f32 %v7527, %v7439
      %v7544 = vmul.f32 %v7528, %v7454
      %v7545 = vmul.f32 %v7529, %v7469
      %v7546 = vmul.f32 %v7530, %v7484
      %v7547 = vmul.f32 %v7531, %v7499
      %v7548 = vadd.f32 %v7532, 1.4214138
      %v7549 = vadd.f32 %v7533, 1.4214138
      %v7550 = vadd.f32 %v7534, 1.4214138
      %v7551 = vadd.f32 %v7535, 1.4214138
      %v7552 = vadd.f32 %v7536, 1.4214138
      %v7553 = vadd.f32 %v7537, 1.4214138
      %v7554 = vadd.f32 %v7538, 1.4214138
      %v7555 = vadd.f32 %v7539, 1.4214138
      %v7556 = vadd.f32 %v7540, 1.4214138
      %v7557 = vadd.f32 %v7541, 1.4214138
      %v7558 = vadd.f32 %v7542, 1.4214138
      %v7559 = vadd.f32 %v7543, 1.4214138
      %v7560 = vadd.f32 %v7544, 1.4214138
      %v7561 = vadd.f32 %v7545, 1.4214138
      %v7562 = vadd.f32 %v7546, 1.4214138
      %v7563 = vadd.f32 %v7547, 1.4214138
      %v7564 = vmul.f32 %v7548, %v7274
      %v7565 = vmul.f32 %v7549, %v7289
      %v7566 = vmul.f32 %v7550, %v7304
      %v7567 = vmul.f32 %v7551, %v7319
      %v7568 = vmul.f32 %v7552, %v7334
      %v7569 = vmul.f32 %v7553, %v7349
      %v7570 = vmul.f32 %v7554, %v7364
      %v7571 = vmul.f32 %v7555, %v7379
      %v7572 = vmul.f32 %v7556, %v7394
      %v7573 = vmul.f32 %v7557, %v7409
      %v7574 = vmul.f32 %v7558, %v7424
      %v7575 = vmul.f32 %v7559, %v7439
      %v7576 = vmul.f32 %v7560, %v7454
      %v7577 = vmul.f32 %v7561, %v7469
      %v7578 = vmul.f32 %v7562, %v7484
      %v7579 = vmul.f32 %v7563, %v7499
      %v7580 = vadd.f32 %v7564, -0.28449672
      %v7581 = vadd.f32 %v7565, -0.28449672
      %v7582 = vadd.f32 %v7566, -0.28449672
      %v7583 = vadd.f32 %v7567, -0.28449672
      %v7584 = vadd.f32 %v7568, -0.28449672
      %v7585 = vadd.f32 %v7569, -0.28449672
      %v7586 = vadd.f32 %v7570, -0.28449672
      %v7587 = vadd.f32 %v7571, -0.28449672
      %v7588 = vadd.f32 %v7572, -0.28449672
      %v7589 = vadd.f32 %v7573, -0.28449672
      %v7590 = vadd.f32 %v7574, -0.28449672
      %v7591 = vadd.f32 %v7575, -0.28449672
      %v7592 = vadd.f32 %v7576, -0.28449672
      %v7593 = vadd.f32 %v7577, -0.28449672
      %v7594 = vadd.f32 %v7578, -0.28449672
      %v7595 = vadd.f32 %v7579, -0.28449672
      %v7596 = vmul.f32 %v7580, %v7274
      %v7597 = vmul.f32 %v7581, %v7289
      %v7598 = vmul.f32 %v7582, %v7304
      %v7599 = vmul.f32 %v7583, %v7319
      %v7600 = vmul.f32 %v7584, %v7334
      %v7601 = vmul.f32 %v7585, %v7349
      %v7602 = vmul.f32 %v7586, %v7364
      %v7603 = vmul.f32 %v7587, %v7379
      %v7604 = vmul.f32 %v7588, %v7394
      %v7605 = vmul.f32 %v7589, %v7409
      %v7606 = vmul.f32 %v7590, %v7424
      %v7607 = vmul.f32 %v7591, %v7439
      %v7608 = vmul.f32 %v7592, %v7454
      %v7609 = vmul.f32 %v7593, %v7469
      %v7610 = vmul.f32 %v7594, %v7484
      %v7611 = vmul.f32 %v7595, %v7499
      %v7612 = vadd.f32 %v7596, 0.2548296
      %v7613 = vadd.f32 %v7597, 0.2548296
      %v7614 = vadd.f32 %v7598, 0.2548296
      %v7615 = vadd.f32 %v7599, 0.2548296
      %v7616 = vadd.f32 %v7600, 0.2548296
      %v7617 = vadd.f32 %v7601, 0.2548296
      %v7618 = vadd.f32 %v7602, 0.2548296
      %v7619 = vadd.f32 %v7603, 0.2548296
      %v7620 = vadd.f32 %v7604, 0.2548296
      %v7621 = vadd.f32 %v7605, 0.2548296
      %v7622 = vadd.f32 %v7606, 0.2548296
      %v7623 = vadd.f32 %v7607, 0.2548296
      %v7624 = vadd.f32 %v7608, 0.2548296
      %v7625 = vadd.f32 %v7609, 0.2548296
      %v7626 = vadd.f32 %v7610, 0.2548296
      %v7627 = vadd.f32 %v7611, 0.2548296
      %v7628 = vmul.f32 %v7612, %v7274
      %v7629 = vmul.f32 %v7613, %v7289
      %v7630 = vmul.f32 %v7614, %v7304
      %v7631 = vmul.f32 %v7615, %v7319
      %v7632 = vmul.f32 %v7616, %v7334
      %v7633 = vmul.f32 %v7617, %v7349
      %v7634 = vmul.f32 %v7618, %v7364
      %v7635 = vmul.f32 %v7619, %v7379
      %v7636 = vmul.f32 %v7620, %v7394
      %v7637 = vmul.f32 %v7621, %v7409
      %v7638 = vmul.f32 %v7622, %v7424
      %v7639 = vmul.f32 %v7623, %v7439
      %v7640 = vmul.f32 %v7624, %v7454
      %v7641 = vmul.f32 %v7625, %v7469
      %v7642 = vmul.f32 %v7626, %v7484
      %v7643 = vmul.f32 %v7627, %v7499
      %v7644 = vsub.f32 0.0, %v7212
      %v7645 = vsub.f32 0.0, %v7213
      %v7646 = vsub.f32 0.0, %v7214
      %v7647 = vsub.f32 0.0, %v7215
      %v7648 = vsub.f32 0.0, %v7216
      %v7649 = vsub.f32 0.0, %v7217
      %v7650 = vsub.f32 0.0, %v7218
      %v7651 = vsub.f32 0.0, %v7219
      %v7652 = vsub.f32 0.0, %v7220
      %v7653 = vsub.f32 0.0, %v7221
      %v7654 = vsub.f32 0.0, %v7222
      %v7655 = vsub.f32 0.0, %v7223
      %v7656 = vsub.f32 0.0, %v7224
      %v7657 = vsub.f32 0.0, %v7225
      %v7658 = vsub.f32 0.0, %v7226
      %v7659 = vsub.f32 0.0, %v7227
      %v7660 = vmul.f32 %v7644, %v7212
      %v7661 = vmul.f32 %v7645, %v7213
      %v7662 = vmul.f32 %v7646, %v7214
      %v7663 = vmul.f32 %v7647, %v7215
      %v7664 = vmul.f32 %v7648, %v7216
      %v7665 = vmul.f32 %v7649, %v7217
      %v7666 = vmul.f32 %v7650, %v7218
      %v7667 = vmul.f32 %v7651, %v7219
      %v7668 = vmul.f32 %v7652, %v7220
      %v7669 = vmul.f32 %v7653, %v7221
      %v7670 = vmul.f32 %v7654, %v7222
      %v7671 = vmul.f32 %v7655, %v7223
      %v7672 = vmul.f32 %v7656, %v7224
      %v7673 = vmul.f32 %v7657, %v7225
      %v7674 = vmul.f32 %v7658, %v7226
      %v7675 = vmul.f32 %v7659, %v7227
      %v7676 = vmul.f32 %v7660, 1.442695
      %v7677 = vpow.pop %v7676
      %v7678 = vmul.f32 %v7661, 1.442695
      %v7679 = vpow.pop %v7678
      %v7680 = vmul.f32 %v7662, 1.442695
      %v7681 = vpow.pop %v7680
      %v7682 = vmul.f32 %v7663, 1.442695
      %v7683 = vpow.pop %v7682
      %v7684 = vmul.f32 %v7664, 1.442695
      %v7685 = vpow.pop %v7684
      %v7686 = vmul.f32 %v7665, 1.442695
      %v7687 = vpow.pop %v7686
      %v7688 = vmul.f32 %v7666, 1.442695
      %v7689 = vpow.pop %v7688
      %v7690 = vmul.f32 %v7667, 1.442695
      %v7691 = vpow.pop %v7690
      %v7692 = vmul.f32 %v7668, 1.442695
      %v7693 = vpow.pop %v7692
      %v7694 = vmul.f32 %v7669, 1.442695
      %v7695 = vpow.pop %v7694
      %v7696 = vmul.f32 %v7670, 1.442695
      %v7697 = vpow.pop %v7696
      %v7698 = vmul.f32 %v7671, 1.442695
      %v7699 = vpow.pop %v7698
      %v7700 = vmul.f32 %v7672, 1.442695
      %v7701 = vpow.pop %v7700
      %v7702 = vmul.f32 %v7673, 1.442695
      %v7703 = vpow.pop %v7702
      %v7704 = vmul.f32 %v7674, 1.442695
      %v7705 = vpow.pop %v7704
      %v7706 = vmul.f32 %v7675, 1.442695
      %v7707 = vpow.pop %v7706
      %v7708 = vmul.f32 %v7628, %v7677
      %v7709 = vmul.f32 %v7629, %v7679
      %v7710 = vmul.f32 %v7630, %v7681
      %v7711 = vmul.f32 %v7631, %v7683
      %v7712 = vmul.f32 %v7632, %v7685
      %v7713 = vmul.f32 %v7633, %v7687
      %v7714 = vmul.f32 %v7634, %v7689
      %v7715 = vmul.f32 %v7635, %v7691
      %v7716 = vmul.f32 %v7636, %v7693
      %v7717 = vmul.f32 %v7637, %v7695
      %v7718 = vmul.f32 %v7638, %v7697
      %v7719 = vmul.f32 %v7639, %v7699
      %v7720 = vmul.f32 %v7640, %v7701
      %v7721 = vmul.f32 %v7641, %v7703
      %v7722 = vmul.f32 %v7642, %v7705
      %v7723 = vmul.f32 %v7643, %v7707
      %v7724 = vsub.f32 1.0, %v7708
      %v7725 = vsub.f32 1.0, %v7709
      %v7726 = vsub.f32 1.0, %v7710
      %v7727 = vsub.f32 1.0, %v7711
      %v7728 = vsub.f32 1.0, %v7712
      %v7729 = vsub.f32 1.0, %v7713
      %v7730 = vsub.f32 1.0, %v7714
      %v7731 = vsub.f32 1.0, %v7715
      %v7732 = vsub.f32 1.0, %v7716
      %v7733 = vsub.f32 1.0, %v7717
      %v7734 = vsub.f32 1.0, %v7718
      %v7735 = vsub.f32 1.0, %v7719
      %v7736 = vsub.f32 1.0, %v7720
      %v7737 = vsub.f32 1.0, %v7721
      %v7738 = vsub.f32 1.0, %v7722
      %v7739 = vsub.f32 1.0, %v7723
      %v7740 = vmul.f32 %v7196, %v7724
      %v7741 = vmul.f32 %v7197, %v7725
      %v7742 = vmul.f32 %v7198, %v7726
      %v7743 = vmul.f32 %v7199, %v7727
      %v7744 = vmul.f32 %v7200, %v7728
      %v7745 = vmul.f32 %v7201, %v7729
      %v7746 = vmul.f32 %v7202, %v7730
      %v7747 = vmul.f32 %v7203, %v7731
      %v7748 = vmul.f32 %v7204, %v7732
      %v7749 = vmul.f32 %v7205, %v7733
      %v7750 = vmul.f32 %v7206, %v7734
      %v7751 = vmul.f32 %v7207, %v7735
      %v7752 = vmul.f32 %v7208, %v7736
      %v7753 = vmul.f32 %v7209, %v7737
      %v7754 = vmul.f32 %v7210, %v7738
      %v7755 = vmul.f32 %v7211, %v7739
      %v7756 = vadd.f32 %v7740, 1.0
      %v7757 = vadd.f32 %v7741, 1.0
      %v7758 = vadd.f32 %v7742, 1.0
      %v7759 = vadd.f32 %v7743, 1.0
      %v7760 = vadd.f32 %v7744, 1.0
      %v7761 = vadd.f32 %v7745, 1.0
      %v7762 = vadd.f32 %v7746, 1.0
      %v7763 = vadd.f32 %v7747, 1.0
      %v7764 = vadd.f32 %v7748, 1.0
      %v7765 = vadd.f32 %v7749, 1.0
      %v7766 = vadd.f32 %v7750, 1.0
      %v7767 = vadd.f32 %v7751, 1.0
      %v7768 = vadd.f32 %v7752, 1.0
      %v7769 = vadd.f32 %v7753, 1.0
      %v7770 = vadd.f32 %v7754, 1.0
      %v7771 = vadd.f32 %v7755, 1.0
      %v7772 = vmul.f32 %v7148, %v7756
      %v7773 = vmul.f32 %v7149, %v7757
      %v7774 = vmul.f32 %v7150, %v7758
      %v7775 = vmul.f32 %v7151, %v7759
      %v7776 = vmul.f32 %v7152, %v7760
      %v7777 = vmul.f32 %v7153, %v7761
      %v7778 = vmul.f32 %v7154, %v7762
      %v7779 = vmul.f32 %v7155, %v7763
      %v7780 = vmul.f32 %v7156, %v7764
      %v7781 = vmul.f32 %v7157, %v7765
      %v7782 = vmul.f32 %v7158, %v7766
      %v7783 = vmul.f32 %v7159, %v7767
      %v7784 = vmul.f32 %v7160, %v7768
      %v7785 = vmul.f32 %v7161, %v7769
      %v7786 = vmul.f32 %v7162, %v7770
      %v7787 = vmul.f32 %v7163, %v7771
      %v7788 = vmul.f32 %v7069, %v7772
      %v7789 = vmul.f32 %v7071, %v7773
      %v7790 = vmul.f32 %v7074, %v7774
      %v7791 = vmul.f32 %v7076, %v7775
      %v7792 = vmul.f32 %v7079, %v7776
      %v7793 = vmul.f32 %v7081, %v7777
      %v7794 = vmul.f32 %v7084, %v7778
      %v7795 = vmul.f32 %v7086, %v7779
      %v7796 = vmul.f32 %v7089, %v7780
      %v7797 = vmul.f32 %v7091, %v7781
      %v7798 = vmul.f32 %v7094, %v7782
      %v7799 = vmul.f32 %v7096, %v7783
      %v7800 = vmul.f32 %v7099, %v7784
      %v7801 = vmul.f32 %v7101, %v7785
      %v7802 = vmul.f32 %v7104, %v7786
      %v7803 = vmul.f32 %v7106, %v7787
      %v7804 = vpack.c.bf16 %v7789, %v7788
      %v7805 = vpack.c.bf16 %v7791, %v7790
      %v7806 = vpack.c.bf16 %v7793, %v7792
      %v7807 = vpack.c.bf16 %v7795, %v7794
      %v7808 = vpack.c.bf16 %v7797, %v7796
      %v7809 = vpack.c.bf16 %v7799, %v7798
      %v7810 = vpack.c.bf16 %v7801, %v7800
      %v7811 = vpack.c.bf16 %v7803, %v7802
      %7812 = vmatpush.bf16.msra.mxu0 %v7811
      %7813 = vmatpush.bf16.msra.mxu0 %v7810
      %7814 = vmatpush.bf16.msra.mxu0 %v7809
      %7815 = vmatpush.bf16.msra.mxu0 %v7808
      %7816 = vmatpush.bf16.msra.mxu0 %v7807
      %7817 = vmatpush.bf16.msra.mxu0 %v7806
      %7818 = vmatpush.bf16.msra.mxu0 %v7805
      %7819 = vmatpush.bf16.msra.mxu0 %v7804
      %7820 = vmatmul.bf16.gmra.mxu0 %v7028
      %v7821 = vpop.f32.mrf.mxu0
      %v7822 = vadd.f32 0.0, %v7821
      %v7823 = vpop.f32.mrf.mxu0
      %v7824 = vadd.f32 0.0, %v7823
      %7825 = vmatmul.bf16.gmra.mxu0 %v7029
      %v7826 = vpop.f32.mrf.mxu0
      %v7827 = vadd.f32 0.0, %v7826
      %v7828 = vpop.f32.mrf.mxu0
      %v7829 = vadd.f32 0.0, %v7828
      %7830 = vdwg.mxu0
      %7831 = vset.pattern.permute.xlu0 18
      %7832 = vperm.xlu0 %7831, %v715
      %v7833 = vpop.permute.xlu0 %7832
      %7835 = vset.pattern.permute.xlu0 18
      %7836 = vperm.xlu0 %7835, %v716
      %v7837 = vpop.permute.xlu0 %7836
      %7839 = vset.pattern.permute.xlu0 18
      %7840 = vperm.xlu0 %7839, %v717
      %v7841 = vpop.permute.xlu0 %7840
      %7843 = vset.pattern.permute.xlu0 18
      %7844 = vperm.xlu0 %7843, %v718
      %v7845 = vpop.permute.xlu0 %7844
      %v7847 = vadd.f32 %v7042, %v7833
      %v7848 = vadd.f32 %v7822, %v7833
      %v7849 = vadd.f32 %v7044, %v7837
      %v7850 = vadd.f32 %v7824, %v7837
      %v7851 = vadd.f32 %v7047, %v7841
      %v7852 = vadd.f32 %v7827, %v7841
      %v7853 = vadd.f32 %v7049, %v7845
      %v7854 = vadd.f32 %v7829, %v7845
      %v7855 = vadd.f32 %v7847, %v5753
      %v7856 = vadd.f32 %v7848, %v5754
      %v7857 = vadd.f32 %v7849, %v5755
      %v7858 = vadd.f32 %v7850, %v5756
      %v7859 = vadd.f32 %v7851, %v5757
      %v7860 = vadd.f32 %v7852, %v5758
      %v7861 = vadd.f32 %v7853, %v5759
      %v7862 = vadd.f32 %v7854, %v5760
      %v7863 = vpack.c.bf16 %v7857, %v7855
      %v7864 = vpack.c.bf16 %v7858, %v7856
      %v7865 = vpack.c.bf16 %v7861, %v7859
      %v7866 = vpack.c.bf16 %v7862, %v7860
      %7867 = vset.pattern.permute.xlu0 19
      %7868 = vperm.xlu0 %7867, %v715
      %v7869 = vpop.permute.xlu0 %7868
      %7871 = vset.pattern.permute.xlu0 19
      %7872 = vperm.xlu0 %7871, %v716
      %v7873 = vpop.permute.xlu0 %7872
      %7875 = vset.pattern.permute.xlu0 19
      %7876 = vperm.xlu0 %7875, %v717
      %v7877 = vpop.permute.xlu0 %7876
      %7879 = vset.pattern.permute.xlu0 19
      %7880 = vperm.xlu0 %7879, %v718
      %v7881 = vpop.permute.xlu0 %7880
      %7883 = vrot.lane.b32.xlu0 %v5635, 96
      %v7884 = vpop.permute.xlu0 %7883
      %7885 = vrot.lane.b32.xlu0 %v5636, 96
      %v7886 = vpop.permute.xlu0 %7885
      %v7888 = vsel %vm516, %v7884, 0
      %v7891 = vsel %vm516, %v7886, 0
      %7893 = vmatpush.bf16.msra.mxu0 0
      %7894 = vmatpush.bf16.msra.mxu0 0
      %7895 = vmatpush.bf16.msra.mxu0 0
      %7896 = vmatpush.bf16.msra.mxu0 0
      %7897 = vmatpush.bf16.msra.mxu0 0
      %7898 = vmatpush.bf16.msra.mxu0 0
      %7899 = vmatpush.bf16.msra.mxu0 %v7865
      %7900 = vmatpush.bf16.msra.mxu0 %v7863
      %7901 = vmatmul.bf16.gmra.mxu0 %v7888
      %v7902 = vpop.f32.mrf.mxu0
      %v7903 = vadd.f32 %v7869, %v7902
      %v7904 = vpop.f32.mrf.mxu0
      %v7905 = vadd.f32 %v7873, %v7904
      %7906 = vmatmul.bf16.gmra.mxu0 %v7891
      %v7907 = vpop.f32.mrf.mxu0
      %v7908 = vadd.f32 %v7877, %v7907
      %v7909 = vpop.f32.mrf.mxu0
      %v7910 = vadd.f32 %v7881, %v7909
      %7911 = vdwg.mxu0
      %7912 = vmatpush.bf16.msra.mxu0 0
      %7913 = vmatpush.bf16.msra.mxu0 0
      %7914 = vmatpush.bf16.msra.mxu0 0
      %7915 = vmatpush.bf16.msra.mxu0 0
      %7916 = vmatpush.bf16.msra.mxu0 0
      %7917 = vmatpush.bf16.msra.mxu0 0
      %7918 = vmatpush.bf16.msra.mxu0 %v7866
      %7919 = vmatpush.bf16.msra.mxu0 %v7864
      %7920 = vmatmul.bf16.gmra.mxu0 %v7888
      %v7921 = vpop.f32.mrf.mxu0
      %v7922 = vadd.f32 %v7869, %v7921
      %v7923 = vpop.f32.mrf.mxu0
      %v7924 = vadd.f32 %v7873, %v7923
      %7925 = vmatmul.bf16.gmra.mxu0 %v7891
      %v7926 = vpop.f32.mrf.mxu0
      %v7927 = vadd.f32 %v7877, %v7926
      %v7928 = vpop.f32.mrf.mxu0
      %v7929 = vadd.f32 %v7881, %v7928
      %7930 = vdwg.mxu0
      %v7931 = vadd.f32 %v7903, %v2766
      %v7932 = vadd.f32 %v7922, %v2767
      %v7933 = vadd.f32 %v7905, %v2768
      %v7934 = vadd.f32 %v7924, %v2769
      %v7935 = vadd.f32 %v7908, %v2770
      %v7936 = vadd.f32 %v7927, %v2771
      %v7937 = vadd.f32 %v7910, %v2772
      %v7938 = vadd.f32 %v7929, %v2773
      %7939 = vst [vmem:[%s485] sm:$0xff] %v7931
      %7940 = vst [vmem:[%s485 + $0x8] sm:$0xff] %v7932
      %7941 = vst [vmem:[%s485 + $0x10] sm:$0xff] %v7933
      %7942 = vst [vmem:[%s485 + $0x18] sm:$0xff] %v7934
      %7943 = vst [vmem:[%s485 + $0x20] sm:$0xff] %v7935
      %7944 = vst [vmem:[%s485 + $0x28] sm:$0xff] %v7936
      %7945 = vst [vmem:[%s485 + $0x30] sm:$0xff] %v7937
      %7946 = vst [vmem:[%s485 + $0x38] sm:$0xff] %v7938
      %v7947 = vld [vmem:[%s7 + $0x10] sm:$0xff]
      %v7948 = vld [vmem:[%s7 + $0x18] sm:$0xf]
      %v7949 = vld [vmem:[%s7 + $0x2c] sm:$0xff]
      %v7950 = vld [vmem:[%s7 + $0x34] sm:$0xf]
      %v7951 = vld [vmem:[%s7 + $0x48] sm:$0xff]
      %v7952 = vld [vmem:[%s7 + $0x50] sm:$0xf]
      %v7953 = vld [vmem:[%s7 + $0x64] sm:$0xff]
      %v7954 = vld [vmem:[%s7 + $0x6c] sm:$0xf]
      %7955 = vrot.lane.b32.xlu0 %v7931, 17
      %v7956 = vpop.permute.xlu0 %7955
      %7957 = vrot.lane.b32.xlu0 %v7933, 17
      %v7958 = vpop.permute.xlu0 %7957
      %7959 = vrot.lane.b32.xlu0 %v7935, 17
      %v7960 = vpop.permute.xlu0 %7959
      %7961 = vrot.lane.b32.xlu0 %v7937, 17
      %v7962 = vpop.permute.xlu0 %7961
      %7963 = vrot.lane.b32.xlu0 %v7932, 17
      %v7964 = vpop.permute.xlu0 %7963
      %7965 = vrot.lane.b32.xlu0 %v7934, 17
      %v7966 = vpop.permute.xlu0 %7965
      %7967 = vrot.lane.b32.xlu0 %v7936, 17
      %v7968 = vpop.permute.xlu0 %7967
      %7969 = vrot.lane.b32.xlu0 %v7938, 17
      %v7970 = vpop.permute.xlu0 %7969
      %v7971 = vsel %vm957, %v7956, %v7964
      %v7972 = vsel %vm957, %v7958, %v7966
      %v7973 = vsel %vm957, %v7960, %v7968
      %v7974 = vsel %vm957, %v7962, %v7970
      %v7975 = vsel %vm957, %v7964, %v7956
      %v7976 = vsel %vm957, %v7966, %v7958
      %v7977 = vsel %vm957, %v7968, %v7960
      %v7978 = vsel %vm957, %v7970, %v7962
      %v7979 = vld [vmem:[%s4] sm:$0x3]
      %v7981 = vperm.slane %v7979, 0
      %v7982 = vperm.slane %v7979, 1
      %v7985 = vmul.f32 %v7975, %v7981
      %v7986 = vmul.f32 %v7971, %v7982
      %v7987 = vmul.f32 %v7976, %v7981
      %v7988 = vmul.f32 %v7972, %v7982
      %v7989 = vmul.f32 %v7977, %v7981
      %v7990 = vmul.f32 %v7973, %v7982
      %v7991 = vmul.f32 %v7978, %v7981
      %v7992 = vmul.f32 %v7974, %v7982
      %v7993 = vpack.c.bf16 %v7986, %v7985
      %v7994 = vpack.c.bf16 %v7988, %v7987
      %v7995 = vpack.c.bf16 %v7990, %v7989
      %v7996 = vpack.c.bf16 %v7992, %v7991
      %7997 = vrot.lane.b32.xlu0 %v7931, 16
      %v7998 = vpop.permute.xlu0 %7997
      %7999 = vrot.lane.b32.xlu0 %v7933, 16
      %v8000 = vpop.permute.xlu0 %7999
      %8001 = vrot.lane.b32.xlu0 %v7935, 16
      %v8002 = vpop.permute.xlu0 %8001
      %8003 = vrot.lane.b32.xlu0 %v7937, 16
      %v8004 = vpop.permute.xlu0 %8003
      %8005 = vrot.lane.b32.xlu0 %v7932, 16
      %v8006 = vpop.permute.xlu0 %8005
      %8007 = vrot.lane.b32.xlu0 %v7934, 16
      %v8008 = vpop.permute.xlu0 %8007
      %8009 = vrot.lane.b32.xlu0 %v7936, 16
      %v8010 = vpop.permute.xlu0 %8009
      %8011 = vrot.lane.b32.xlu0 %v7938, 16
      %v8012 = vpop.permute.xlu0 %8011
      %v8013 = vsel %vm1000, %v7998, %v8006
      %v8014 = vsel %vm1000, %v8000, %v8008
      %v8015 = vsel %vm1000, %v8002, %v8010
      %v8016 = vsel %vm1000, %v8004, %v8012
      %v8017 = vsel %vm1000, %v8006, %v7998
      %v8018 = vsel %vm1000, %v8008, %v8000
      %v8019 = vsel %vm1000, %v8010, %v8002
      %v8020 = vsel %vm1000, %v8012, %v8004
      %v8021 = vld [vmem:[%s1009] sm:$0x3]
      %v8023 = vperm.slane %v8021, 0
      %v8024 = vperm.slane %v8021, 1
      %v8027 = vmul.f32 %v8017, %v8023
      %v8028 = vmul.f32 %v8013, %v8024
      %v8029 = vmul.f32 %v8018, %v8023
      %v8030 = vmul.f32 %v8014, %v8024
      %v8031 = vmul.f32 %v8019, %v8023
      %v8032 = vmul.f32 %v8015, %v8024
      %v8033 = vmul.f32 %v8020, %v8023
      %v8034 = vmul.f32 %v8016, %v8024
      %v8035 = vpack.c.bf16 %v8028, %v8027
      %v8036 = vpack.c.bf16 %v8030, %v8029
      %v8037 = vpack.c.bf16 %v8032, %v8031
      %v8038 = vpack.c.bf16 %v8034, %v8033
      %8039 = vrot.lane.b32.xlu0 %v7931, 15
      %v8040 = vpop.permute.xlu0 %8039
      %8041 = vrot.lane.b32.xlu0 %v7933, 15
      %v8042 = vpop.permute.xlu0 %8041
      %8043 = vrot.lane.b32.xlu0 %v7935, 15
      %v8044 = vpop.permute.xlu0 %8043
      %8045 = vrot.lane.b32.xlu0 %v7937, 15
      %v8046 = vpop.permute.xlu0 %8045
      %8047 = vrot.lane.b32.xlu0 %v7932, 15
      %v8048 = vpop.permute.xlu0 %8047
      %8049 = vrot.lane.b32.xlu0 %v7934, 15
      %v8050 = vpop.permute.xlu0 %8049
      %8051 = vrot.lane.b32.xlu0 %v7936, 15
      %v8052 = vpop.permute.xlu0 %8051
      %8053 = vrot.lane.b32.xlu0 %v7938, 15
      %v8054 = vpop.permute.xlu0 %8053
      %v8055 = vsel %vm1044, %v8040, %v8048
      %v8056 = vsel %vm1044, %v8042, %v8050
      %v8057 = vsel %vm1044, %v8044, %v8052
      %v8058 = vsel %vm1044, %v8046, %v8054
      %v8059 = vsel %vm1044, %v8048, %v8040
      %v8060 = vsel %vm1044, %v8050, %v8042
      %v8061 = vsel %vm1044, %v8052, %v8044
      %v8062 = vsel %vm1044, %v8054, %v8046
      %v8063 = vld [vmem:[%s1053] sm:$0x3]
      %v8065 = vperm.slane %v8063, 0
      %v8066 = vperm.slane %v8063, 1
      %v8069 = vmul.f32 %v8059, %v8065
      %v8070 = vmul.f32 %v8055, %v8066
      %v8071 = vmul.f32 %v8060, %v8065
      %v8072 = vmul.f32 %v8056, %v8066
      %v8073 = vmul.f32 %v8061, %v8065
      %v8074 = vmul.f32 %v8057, %v8066
      %v8075 = vmul.f32 %v8062, %v8065
      %v8076 = vmul.f32 %v8058, %v8066
      %v8077 = vpack.c.bf16 %v8070, %v8069
      %v8078 = vpack.c.bf16 %v8072, %v8071
      %v8079 = vpack.c.bf16 %v8074, %v8073
      %v8080 = vpack.c.bf16 %v8076, %v8075
      %8081 = vrot.lane.b32.xlu0 %v7931, 1
      %v8082 = vpop.permute.xlu0 %8081
      %8083 = vrot.lane.b32.xlu0 %v7933, 1
      %v8084 = vpop.permute.xlu0 %8083
      %8085 = vrot.lane.b32.xlu0 %v7935, 1
      %v8086 = vpop.permute.xlu0 %8085
      %8087 = vrot.lane.b32.xlu0 %v7937, 1
      %v8088 = vpop.permute.xlu0 %8087
      %8089 = vrot.lane.b32.xlu0 %v7932, 1
      %v8090 = vpop.permute.xlu0 %8089
      %8091 = vrot.lane.b32.xlu0 %v7934, 1
      %v8092 = vpop.permute.xlu0 %8091
      %8093 = vrot.lane.b32.xlu0 %v7936, 1
      %v8094 = vpop.permute.xlu0 %8093
      %8095 = vrot.lane.b32.xlu0 %v7938, 1
      %v8096 = vpop.permute.xlu0 %8095
      %v8097 = vsel %vm1088, %v8082, %v8090
      %v8098 = vsel %vm1088, %v8084, %v8092
      %v8099 = vsel %vm1088, %v8086, %v8094
      %v8100 = vsel %vm1088, %v8088, %v8096
      %v8101 = vsel %vm1088, %v8090, %v8082
      %v8102 = vsel %vm1088, %v8092, %v8084
      %v8103 = vsel %vm1088, %v8094, %v8086
      %v8104 = vsel %vm1088, %v8096, %v8088
      %v8105 = vld [vmem:[%s1097] sm:$0x3]
      %v8107 = vperm.slane %v8105, 0
      %v8108 = vperm.slane %v8105, 1
      %v8111 = vmul.f32 %v8101, %v8107
      %v8112 = vmul.f32 %v8097, %v8108
      %v8113 = vmul.f32 %v8102, %v8107
      %v8114 = vmul.f32 %v8098, %v8108
      %v8115 = vmul.f32 %v8103, %v8107
      %v8116 = vmul.f32 %v8099, %v8108
      %v8117 = vmul.f32 %v8104, %v8107
      %v8118 = vmul.f32 %v8100, %v8108
      %v8119 = vpack.c.bf16 %v8112, %v8111
      %v8120 = vpack.c.bf16 %v8114, %v8113
      %v8121 = vpack.c.bf16 %v8116, %v8115
      %v8122 = vpack.c.bf16 %v8118, %v8117
      %v8123 = vld [vmem:[%s1116] sm:$0x3]
      %v8125 = vperm.slane %v8123, 0
      %v8126 = vperm.slane %v8123, 1
      %v8129 = vmul.f32 %v7931, %v8125
      %v8130 = vmul.f32 %v7932, %v8126
      %v8131 = vmul.f32 %v7933, %v8125
      %v8132 = vmul.f32 %v7934, %v8126
      %v8133 = vmul.f32 %v7935, %v8125
      %v8134 = vmul.f32 %v7936, %v8126
      %v8135 = vmul.f32 %v7937, %v8125
      %v8136 = vmul.f32 %v7938, %v8126
      %v8137 = vpack.c.bf16 %v8130, %v8129
      %v8138 = vpack.c.bf16 %v8132, %v8131
      %v8139 = vpack.c.bf16 %v8134, %v8133
      %v8140 = vpack.c.bf16 %v8136, %v8135
      %8141 = vrot.lane.b32.xlu0 %v7931, 127
      %v8142 = vpop.permute.xlu0 %8141
      %8143 = vrot.lane.b32.xlu0 %v7933, 127
      %v8144 = vpop.permute.xlu0 %8143
      %8145 = vrot.lane.b32.xlu0 %v7935, 127
      %v8146 = vpop.permute.xlu0 %8145
      %8147 = vrot.lane.b32.xlu0 %v7937, 127
      %v8148 = vpop.permute.xlu0 %8147
      %8149 = vrot.lane.b32.xlu0 %v7932, 127
      %v8150 = vpop.permute.xlu0 %8149
      %8151 = vrot.lane.b32.xlu0 %v7934, 127
      %v8152 = vpop.permute.xlu0 %8151
      %8153 = vrot.lane.b32.xlu0 %v7936, 127
      %v8154 = vpop.permute.xlu0 %8153
      %8155 = vrot.lane.b32.xlu0 %v7938, 127
      %v8156 = vpop.permute.xlu0 %8155
      %v8157 = vsel %vm1151, %v8142, %v8150
      %v8158 = vsel %vm1151, %v8144, %v8152
      %v8159 = vsel %vm1151, %v8146, %v8154
      %v8160 = vsel %vm1151, %v8148, %v8156
      %v8161 = vsel %vm1151, %v8150, %v8142
      %v8162 = vsel %vm1151, %v8152, %v8144
      %v8163 = vsel %vm1151, %v8154, %v8146
      %v8164 = vsel %vm1151, %v8156, %v8148
      %v8165 = vld [vmem:[%s1160] sm:$0x3]
      %v8167 = vperm.slane %v8165, 0
      %v8168 = vperm.slane %v8165, 1
      %v8171 = vmul.f32 %v8157, %v8167
      %v8172 = vmul.f32 %v8161, %v8168
      %v8173 = vmul.f32 %v8158, %v8167
      %v8174 = vmul.f32 %v8162, %v8168
      %v8175 = vmul.f32 %v8159, %v8167
      %v8176 = vmul.f32 %v8163, %v8168
      %v8177 = vmul.f32 %v8160, %v8167
      %v8178 = vmul.f32 %v8164, %v8168
      %v8179 = vpack.c.bf16 %v8172, %v8171
      %v8180 = vpack.c.bf16 %v8174, %v8173
      %v8181 = vpack.c.bf16 %v8176, %v8175
      %v8182 = vpack.c.bf16 %v8178, %v8177
      %8183 = vrot.lane.b32.xlu0 %v7931, 113
      %v8184 = vpop.permute.xlu0 %8183
      %8185 = vrot.lane.b32.xlu0 %v7933, 113
      %v8186 = vpop.permute.xlu0 %8185
      %8187 = vrot.lane.b32.xlu0 %v7935, 113
      %v8188 = vpop.permute.xlu0 %8187
      %8189 = vrot.lane.b32.xlu0 %v7937, 113
      %v8190 = vpop.permute.xlu0 %8189
      %8191 = vrot.lane.b32.xlu0 %v7932, 113
      %v8192 = vpop.permute.xlu0 %8191
      %8193 = vrot.lane.b32.xlu0 %v7934, 113
      %v8194 = vpop.permute.xlu0 %8193
      %8195 = vrot.lane.b32.xlu0 %v7936, 113
      %v8196 = vpop.permute.xlu0 %8195
      %8197 = vrot.lane.b32.xlu0 %v7938, 113
      %v8198 = vpop.permute.xlu0 %8197
      %v8199 = vsel %vm1195, %v8184, %v8192
      %v8200 = vsel %vm1195, %v8186, %v8194
      %v8201 = vsel %vm1195, %v8188, %v8196
      %v8202 = vsel %vm1195, %v8190, %v8198
      %v8203 = vsel %vm1195, %v8192, %v8184
      %v8204 = vsel %vm1195, %v8194, %v8186
      %v8205 = vsel %vm1195, %v8196, %v8188
      %v8206 = vsel %vm1195, %v8198, %v8190
      %v8207 = vld [vmem:[%s1204] sm:$0x3]
      %v8209 = vperm.slane %v8207, 0
      %v8210 = vperm.slane %v8207, 1
      %v8213 = vmul.f32 %v8199, %v8209
      %v8214 = vmul.f32 %v8203, %v8210
      %v8215 = vmul.f32 %v8200, %v8209
      %v8216 = vmul.f32 %v8204, %v8210
      %v8217 = vmul.f32 %v8201, %v8209
      %v8218 = vmul.f32 %v8205, %v8210
      %v8219 = vmul.f32 %v8202, %v8209
      %v8220 = vmul.f32 %v8206, %v8210
      %v8221 = vpack.c.bf16 %v8214, %v8213
      %v8222 = vpack.c.bf16 %v8216, %v8215
      %v8223 = vpack.c.bf16 %v8218, %v8217
      %v8224 = vpack.c.bf16 %v8220, %v8219
      %8225 = vrot.lane.b32.xlu0 %v7931, 112
      %v8226 = vpop.permute.xlu0 %8225
      %8227 = vrot.lane.b32.xlu0 %v7933, 112
      %v8228 = vpop.permute.xlu0 %8227
      %8229 = vrot.lane.b32.xlu0 %v7935, 112
      %v8230 = vpop.permute.xlu0 %8229
      %8231 = vrot.lane.b32.xlu0 %v7937, 112
      %v8232 = vpop.permute.xlu0 %8231
      %8233 = vrot.lane.b32.xlu0 %v7932, 112
      %v8234 = vpop.permute.xlu0 %8233
      %8235 = vrot.lane.b32.xlu0 %v7934, 112
      %v8236 = vpop.permute.xlu0 %8235
      %8237 = vrot.lane.b32.xlu0 %v7936, 112
      %v8238 = vpop.permute.xlu0 %8237
      %8239 = vrot.lane.b32.xlu0 %v7938, 112
      %v8240 = vpop.permute.xlu0 %8239
      %v8241 = vsel %vm1239, %v8226, %v8234
      %v8242 = vsel %vm1239, %v8228, %v8236
      %v8243 = vsel %vm1239, %v8230, %v8238
      %v8244 = vsel %vm1239, %v8232, %v8240
      %v8245 = vsel %vm1239, %v8234, %v8226
      %v8246 = vsel %vm1239, %v8236, %v8228
      %v8247 = vsel %vm1239, %v8238, %v8230
      %v8248 = vsel %vm1239, %v8240, %v8232
      %v8249 = vld [vmem:[%s1248] sm:$0x3]
      %v8251 = vperm.slane %v8249, 0
      %v8252 = vperm.slane %v8249, 1
      %v8255 = vmul.f32 %v8241, %v8251
      %v8256 = vmul.f32 %v8245, %v8252
      %v8257 = vmul.f32 %v8242, %v8251
      %v8258 = vmul.f32 %v8246, %v8252
      %v8259 = vmul.f32 %v8243, %v8251
      %v8260 = vmul.f32 %v8247, %v8252
      %v8261 = vmul.f32 %v8244, %v8251
      %v8262 = vmul.f32 %v8248, %v8252
      %v8263 = vpack.c.bf16 %v8256, %v8255
      %v8264 = vpack.c.bf16 %v8258, %v8257
      %v8265 = vpack.c.bf16 %v8260, %v8259
      %v8266 = vpack.c.bf16 %v8262, %v8261
      %8267 = vrot.lane.b32.xlu0 %v7931, 111
      %v8268 = vpop.permute.xlu0 %8267
      %8269 = vrot.lane.b32.xlu0 %v7933, 111
      %v8270 = vpop.permute.xlu0 %8269
      %8271 = vrot.lane.b32.xlu0 %v7935, 111
      %v8272 = vpop.permute.xlu0 %8271
      %8273 = vrot.lane.b32.xlu0 %v7937, 111
      %v8274 = vpop.permute.xlu0 %8273
      %8275 = vrot.lane.b32.xlu0 %v7932, 111
      %v8276 = vpop.permute.xlu0 %8275
      %8277 = vrot.lane.b32.xlu0 %v7934, 111
      %v8278 = vpop.permute.xlu0 %8277
      %8279 = vrot.lane.b32.xlu0 %v7936, 111
      %v8280 = vpop.permute.xlu0 %8279
      %8281 = vrot.lane.b32.xlu0 %v7938, 111
      %v8282 = vpop.permute.xlu0 %8281
      %v8283 = vsel %vm1283, %v8268, %v8276
      %v8284 = vsel %vm1283, %v8270, %v8278
      %v8285 = vsel %vm1283, %v8272, %v8280
      %v8286 = vsel %vm1283, %v8274, %v8282
      %v8287 = vsel %vm1283, %v8276, %v8268
      %v8288 = vsel %vm1283, %v8278, %v8270
      %v8289 = vsel %vm1283, %v8280, %v8272
      %v8290 = vsel %vm1283, %v8282, %v8274
      %v8291 = vld [vmem:[%s1292] sm:$0x3]
      %v8293 = vperm.slane %v8291, 0
      %v8294 = vperm.slane %v8291, 1
      %v8297 = vmul.f32 %v8283, %v8293
      %v8298 = vmul.f32 %v8287, %v8294
      %v8299 = vmul.f32 %v8284, %v8293
      %v8300 = vmul.f32 %v8288, %v8294
      %v8301 = vmul.f32 %v8285, %v8293
      %v8302 = vmul.f32 %v8289, %v8294
      %v8303 = vmul.f32 %v8286, %v8293
      %v8304 = vmul.f32 %v8290, %v8294
      %v8305 = vpack.c.bf16 %v8298, %v8297
      %v8306 = vpack.c.bf16 %v8300, %v8299
      %v8307 = vpack.c.bf16 %v8302, %v8301
      %v8308 = vpack.c.bf16 %v8304, %v8303
      %v8313 = vunpack.c.l.b16 %v7993
      %v8314 = vunpack.c.h.b16 %v7993
      %v8315 = vunpack.c.l.b16 %v7994
      %v8316 = vunpack.c.h.b16 %v7994
      %v8317 = vunpack.c.l.b16 %v7995
      %v8318 = vunpack.c.h.b16 %v7995
      %v8319 = vunpack.c.l.b16 %v7996
      %v8320 = vunpack.c.h.b16 %v7996
      %v8321 = vpack.c.b16 %v8315, %v8313
      %v8322 = vpack.c.b16 %v8316, %v8314
      %v8323 = vpack.c.b16 %v8319, %v8317
      %v8324 = vpack.c.b16 %v8320, %v8318
      %v8333 = vunpack.c.l.b16 %v8035
      %v8334 = vunpack.c.h.b16 %v8035
      %v8335 = vunpack.c.l.b16 %v8036
      %v8336 = vunpack.c.h.b16 %v8036
      %v8337 = vunpack.c.l.b16 %v8037
      %v8338 = vunpack.c.h.b16 %v8037
      %v8339 = vunpack.c.l.b16 %v8038
      %v8340 = vunpack.c.h.b16 %v8038
      %v8341 = vpack.c.b16 %v8335, %v8333
      %v8342 = vpack.c.b16 %v8336, %v8334
      %v8343 = vpack.c.b16 %v8339, %v8337
      %v8344 = vpack.c.b16 %v8340, %v8338
      %v8353 = vunpack.c.l.b16 %v8077
      %v8354 = vunpack.c.h.b16 %v8077
      %v8355 = vunpack.c.l.b16 %v8078
      %v8356 = vunpack.c.h.b16 %v8078
      %v8357 = vunpack.c.l.b16 %v8079
      %v8358 = vunpack.c.h.b16 %v8079
      %v8359 = vunpack.c.l.b16 %v8080
      %v8360 = vunpack.c.h.b16 %v8080
      %v8361 = vpack.c.b16 %v8355, %v8353
      %v8362 = vpack.c.b16 %v8356, %v8354
      %v8363 = vpack.c.b16 %v8359, %v8357
      %v8364 = vpack.c.b16 %v8360, %v8358
      %v8373 = vunpack.c.l.b16 %v8119
      %v8374 = vunpack.c.h.b16 %v8119
      %v8375 = vunpack.c.l.b16 %v8120
      %v8376 = vunpack.c.h.b16 %v8120
      %v8377 = vunpack.c.l.b16 %v8121
      %v8378 = vunpack.c.h.b16 %v8121
      %v8379 = vunpack.c.l.b16 %v8122
      %v8380 = vunpack.c.h.b16 %v8122
      %v8381 = vpack.c.b16 %v8375, %v8373
      %v8382 = vpack.c.b16 %v8376, %v8374
      %v8383 = vpack.c.b16 %v8379, %v8377
      %v8384 = vpack.c.b16 %v8380, %v8378
      %v8393 = vunpack.c.l.b16 %v8137
      %v8394 = vunpack.c.h.b16 %v8137
      %v8395 = vunpack.c.l.b16 %v8138
      %v8396 = vunpack.c.h.b16 %v8138
      %v8397 = vunpack.c.l.b16 %v8139
      %v8398 = vunpack.c.h.b16 %v8139
      %v8399 = vunpack.c.l.b16 %v8140
      %v8400 = vunpack.c.h.b16 %v8140
      %v8401 = vpack.c.b16 %v8395, %v8393
      %v8402 = vpack.c.b16 %v8396, %v8394
      %v8403 = vpack.c.b16 %v8399, %v8397
      %v8404 = vpack.c.b16 %v8400, %v8398
      %v8413 = vunpack.c.l.b16 %v8179
      %v8414 = vunpack.c.h.b16 %v8179
      %v8415 = vunpack.c.l.b16 %v8180
      %v8416 = vunpack.c.h.b16 %v8180
      %v8417 = vunpack.c.l.b16 %v8181
      %v8418 = vunpack.c.h.b16 %v8181
      %v8419 = vunpack.c.l.b16 %v8182
      %v8420 = vunpack.c.h.b16 %v8182
      %v8421 = vpack.c.b16 %v8415, %v8413
      %v8422 = vpack.c.b16 %v8416, %v8414
      %v8423 = vpack.c.b16 %v8419, %v8417
      %v8424 = vpack.c.b16 %v8420, %v8418
      %v8433 = vunpack.c.l.b16 %v8221
      %v8434 = vunpack.c.h.b16 %v8221
      %v8435 = vunpack.c.l.b16 %v8222
      %v8436 = vunpack.c.h.b16 %v8222
      %v8437 = vunpack.c.l.b16 %v8223
      %v8438 = vunpack.c.h.b16 %v8223
      %v8439 = vunpack.c.l.b16 %v8224
      %v8440 = vunpack.c.h.b16 %v8224
      %v8441 = vpack.c.b16 %v8435, %v8433
      %v8442 = vpack.c.b16 %v8436, %v8434
      %v8443 = vpack.c.b16 %v8439, %v8437
      %v8444 = vpack.c.b16 %v8440, %v8438
      %v8453 = vunpack.c.l.b16 %v8263
      %v8454 = vunpack.c.h.b16 %v8263
      %v8455 = vunpack.c.l.b16 %v8264
      %v8456 = vunpack.c.h.b16 %v8264
      %v8457 = vunpack.c.l.b16 %v8265
      %v8458 = vunpack.c.h.b16 %v8265
      %v8459 = vunpack.c.l.b16 %v8266
      %v8460 = vunpack.c.h.b16 %v8266
      %v8461 = vpack.c.b16 %v8455, %v8453
      %v8462 = vpack.c.b16 %v8456, %v8454
      %v8463 = vpack.c.b16 %v8459, %v8457
      %v8464 = vpack.c.b16 %v8460, %v8458
      %v8473 = vunpack.c.l.b16 %v8305
      %v8474 = vunpack.c.h.b16 %v8305
      %v8475 = vunpack.c.l.b16 %v8306
      %v8476 = vunpack.c.h.b16 %v8306
      %v8477 = vunpack.c.l.b16 %v8307
      %v8478 = vunpack.c.h.b16 %v8307
      %v8479 = vunpack.c.l.b16 %v8308
      %v8480 = vunpack.c.h.b16 %v8308
      %v8481 = vpack.c.b16 %v8475, %v8473
      %v8482 = vpack.c.b16 %v8476, %v8474
      %v8483 = vpack.c.b16 %v8479, %v8477
      %v8484 = vpack.c.b16 %v8480, %v8478
      %v8497 = vunpack.c.l.b16 %v7947
      %v8498 = vunpack.c.h.b16 %v7947
      %v8499 = vunpack.c.l.b16 %v7948
      %v8500 = vunpack.c.l.b16 %v7949
      %v8501 = vunpack.c.h.b16 %v7949
      %v8502 = vunpack.c.l.b16 %v7950
      %v8503 = vunpack.c.l.b16 %v7951
      %v8504 = vunpack.c.h.b16 %v7951
      %v8505 = vunpack.c.l.b16 %v7952
      %v8506 = vunpack.c.l.b16 %v7953
      %v8507 = vunpack.c.h.b16 %v7953
      %v8508 = vunpack.c.l.b16 %v7954
      %v8509 = vpack.c.b16 %v8500, %v8497
      %v8510 = vpack.c.b16 %v8501, %v8498
      %v8511 = vpack.c.b16 %v8502, %v8499
      %v8512 = vpack.c.b16 %v8506, %v8503
      %v8513 = vpack.c.b16 %v8507, %v8504
      %v8514 = vpack.c.b16 %v8508, %v8505
      %8515 = vrot.lane.b32.xlu0 %v8509, 64
      %v8516 = vpop.permute.xlu0 %8515
      %8517 = vrot.lane.b32.xlu0 %v8510, 64
      %v8518 = vpop.permute.xlu0 %8517
      %8519 = vrot.lane.b32.xlu0 %v8511, 64
      %v8520 = vpop.permute.xlu0 %8519
      %8521 = vrot.lane.b32.xlu0 %v8512, 64
      %v8522 = vpop.permute.xlu0 %8521
      %8523 = vrot.lane.b32.xlu0 %v8513, 64
      %v8524 = vpop.permute.xlu0 %8523
      %8525 = vrot.lane.b32.xlu0 %v8514, 64
      %v8526 = vpop.permute.xlu0 %8525
      %vm8527 = vcmask 523264
      %v8528 = vsel %vm8527, %v8516, %v8518
      %v8529 = vsel %vm8527, %v8518, %v8520
      %v8530 = vsel %vm8527, %v8522, %v8524
      %v8531 = vsel %vm8527, %v8524, %v8526
      %v8537 = vsel %vm516, %v8520, 0
      %v8540 = vsel %vm516, %v8526, 0
      %8542 = vmatpush.bf16.msra.mxu0 %v8383
      %8543 = vmatpush.bf16.msra.mxu0 %v8381
      %8544 = vmatpush.bf16.msra.mxu0 %v8363
      %8545 = vmatpush.bf16.msra.mxu0 %v8361
      %8546 = vmatpush.bf16.msra.mxu0 %v8343
      %8547 = vmatpush.bf16.msra.mxu0 %v8341
      %8548 = vmatpush.bf16.msra.mxu0 %v8323
      %8549 = vmatpush.bf16.msra.mxu0 %v8321
      %8550 = vmatmul.bf16.gmra.mxu0 %v8528
      %v8551 = vpop.f32.mrf.mxu0
      %v8552 = vadd.f32 0.0, %v8551
      %v8553 = vpop.f32.mrf.mxu0
      %v8554 = vadd.f32 0.0, %v8553
      %8555 = vmatmul.bf16.gmra.mxu0 %v8530
      %v8556 = vpop.f32.mrf.mxu0
      %v8557 = vadd.f32 0.0, %v8556
      %v8558 = vpop.f32.mrf.mxu0
      %v8559 = vadd.f32 0.0, %v8558
      %8560 = vdwg.mxu0
      %8561 = vmatpush.bf16.msra.mxu0 %v8463
      %8562 = vmatpush.bf16.msra.mxu0 %v8461
      %8563 = vmatpush.bf16.msra.mxu0 %v8443
      %8564 = vmatpush.bf16.msra.mxu0 %v8441
      %8565 = vmatpush.bf16.msra.mxu0 %v8423
      %8566 = vmatpush.bf16.msra.mxu0 %v8421
      %8567 = vmatpush.bf16.msra.mxu0 %v8403
      %8568 = vmatpush.bf16.msra.mxu0 %v8401
      %8569 = vmatmul.bf16.gmra.mxu0 %v8529
      %v8570 = vpop.f32.mrf.mxu0
      %v8571 = vadd.f32 %v8552, %v8570
      %v8572 = vpop.f32.mrf.mxu0
      %v8573 = vadd.f32 %v8554, %v8572
      %8574 = vmatmul.bf16.gmra.mxu0 %v8531
      %v8575 = vpop.f32.mrf.mxu0
      %v8576 = vadd.f32 %v8557, %v8575
      %v8577 = vpop.f32.mrf.mxu0
      %v8578 = vadd.f32 %v8559, %v8577
      %8579 = vdwg.mxu0
      %8580 = vmatpush.bf16.msra.mxu0 0
      %8581 = vmatpush.bf16.msra.mxu0 0
      %8582 = vmatpush.bf16.msra.mxu0 0
      %8583 = vmatpush.bf16.msra.mxu0 0
      %8584 = vmatpush.bf16.msra.mxu0 0
      %8585 = vmatpush.bf16.msra.mxu0 0
      %8586 = vmatpush.bf16.msra.mxu0 %v8483
      %8587 = vmatpush.bf16.msra.mxu0 %v8481
      %8588 = vmatmul.bf16.gmra.mxu0 %v8537
      %v8589 = vpop.f32.mrf.mxu0
      %v8590 = vadd.f32 %v8571, %v8589
      %v8591 = vpop.f32.mrf.mxu0
      %v8592 = vadd.f32 %v8573, %v8591
      %8593 = vmatmul.bf16.gmra.mxu0 %v8540
      %v8594 = vpop.f32.mrf.mxu0
      %v8595 = vadd.f32 %v8576, %v8594
      %v8596 = vpop.f32.mrf.mxu0
      %v8597 = vadd.f32 %v8578, %v8596
      %8598 = vdwg.mxu0
      %8599 = vmatpush.bf16.msra.mxu0 %v8384
      %8600 = vmatpush.bf16.msra.mxu0 %v8382
      %8601 = vmatpush.bf16.msra.mxu0 %v8364
      %8602 = vmatpush.bf16.msra.mxu0 %v8362
      %8603 = vmatpush.bf16.msra.mxu0 %v8344
      %8604 = vmatpush.bf16.msra.mxu0 %v8342
      %8605 = vmatpush.bf16.msra.mxu0 %v8324
      %8606 = vmatpush.bf16.msra.mxu0 %v8322
      %8607 = vmatmul.bf16.gmra.mxu0 %v8528
      %v8608 = vpop.f32.mrf.mxu0
      %v8609 = vadd.f32 0.0, %v8608
      %v8610 = vpop.f32.mrf.mxu0
      %v8611 = vadd.f32 0.0, %v8610
      %8612 = vmatmul.bf16.gmra.mxu0 %v8530
      %v8613 = vpop.f32.mrf.mxu0
      %v8614 = vadd.f32 0.0, %v8613
      %v8615 = vpop.f32.mrf.mxu0
      %v8616 = vadd.f32 0.0, %v8615
      %8617 = vdwg.mxu0
      %8618 = vmatpush.bf16.msra.mxu0 %v8464
      %8619 = vmatpush.bf16.msra.mxu0 %v8462
      %8620 = vmatpush.bf16.msra.mxu0 %v8444
      %8621 = vmatpush.bf16.msra.mxu0 %v8442
      %8622 = vmatpush.bf16.msra.mxu0 %v8424
      %8623 = vmatpush.bf16.msra.mxu0 %v8422
      %8624 = vmatpush.bf16.msra.mxu0 %v8404
      %8625 = vmatpush.bf16.msra.mxu0 %v8402
      %8626 = vmatmul.bf16.gmra.mxu0 %v8529
      %v8627 = vpop.f32.mrf.mxu0
      %v8628 = vadd.f32 %v8609, %v8627
      %v8629 = vpop.f32.mrf.mxu0
      %v8630 = vadd.f32 %v8611, %v8629
      %8631 = vmatmul.bf16.gmra.mxu0 %v8531
      %v8632 = vpop.f32.mrf.mxu0
      %v8633 = vadd.f32 %v8614, %v8632
      %v8634 = vpop.f32.mrf.mxu0
      %v8635 = vadd.f32 %v8616, %v8634
      %8636 = vdwg.mxu0
      %8637 = vmatpush.bf16.msra.mxu0 0
      %8638 = vmatpush.bf16.msra.mxu0 0
      %8639 = vmatpush.bf16.msra.mxu0 0
      %8640 = vmatpush.bf16.msra.mxu0 0
      %8641 = vmatpush.bf16.msra.mxu0 0
      %8642 = vmatpush.bf16.msra.mxu0 0
      %8643 = vmatpush.bf16.msra.mxu0 %v8484
      %8644 = vmatpush.bf16.msra.mxu0 %v8482
      %8645 = vmatmul.bf16.gmra.mxu0 %v8537
      %v8646 = vpop.f32.mrf.mxu0
      %v8647 = vadd.f32 %v8628, %v8646
      %v8648 = vpop.f32.mrf.mxu0
      %v8649 = vadd.f32 %v8630, %v8648
      %8650 = vmatmul.bf16.gmra.mxu0 %v8540
      %v8651 = vpop.f32.mrf.mxu0
      %v8652 = vadd.f32 %v8633, %v8651
      %v8653 = vpop.f32.mrf.mxu0
      %v8654 = vadd.f32 %v8635, %v8653
      %8655 = vdwg.mxu0
      %v8656 = vld [vmem:[%s5] sm:$0xff]
      %v8657 = vld [vmem:[%s5 + $0x8] sm:$0xff]
      %v8658 = vld [vmem:[%s5 + $0x10] sm:$0xff]
      %v8659 = vld [vmem:[%s5 + $0x18] sm:$0xff]
      %v8660 = vld [vmem:[%s5 + $0x20] sm:$0xff]
      %v8661 = vld [vmem:[%s5 + $0x28] sm:$0xff]
      %v8662 = vld [vmem:[%s5 + $0x30] sm:$0xff]
      %v8663 = vld [vmem:[%s5 + $0x38] sm:$0xff]
      %v8664 = vld [vmem:[%s5 + $0x40] sm:$0xff]
      %v8665 = vld [vmem:[%s5 + $0x48] sm:$0xff]
      %v8666 = vld [vmem:[%s5 + $0x50] sm:$0xff]
      %v8667 = vld [vmem:[%s5 + $0x58] sm:$0xff]
      %v8668 = vld [vmem:[%s5 + $0x60] sm:$0xff]
      %v8669 = vld [vmem:[%s5 + $0x68] sm:$0xff]
      %v8670 = vld [vmem:[%s5 + $0x70] sm:$0xff]
      %v8671 = vld [vmem:[%s5 + $0x78] sm:$0xff]
      %v8672 = vld [vmem:[%s5 + $0x80] sm:$0xff]
      %v8673 = vld [vmem:[%s5 + $0x88] sm:$0xff]
      %v8674 = vld [vmem:[%s5 + $0x90] sm:$0xff]
      %v8675 = vld [vmem:[%s5 + $0x98] sm:$0xff]
      %v8676 = vld [vmem:[%s5 + $0xa0] sm:$0xff]
      %v8677 = vld [vmem:[%s5 + $0xa8] sm:$0xff]
      %v8678 = vld [vmem:[%s5 + $0xb0] sm:$0xff]
      %v8679 = vld [vmem:[%s5 + $0xb8] sm:$0xff]
      %v8680 = vld [vmem:[%s5 + $0xc0] sm:$0xff]
      %v8681 = vld [vmem:[%s5 + $0xc8] sm:$0xff]
      %v8682 = vld [vmem:[%s5 + $0xd0] sm:$0xff]
      %v8683 = vld [vmem:[%s5 + $0xd8] sm:$0xff]
      %v8684 = vld [vmem:[%s5 + $0xe0] sm:$0xff]
      %v8685 = vld [vmem:[%s5 + $0xe8] sm:$0xff]
      %v8686 = vld [vmem:[%s5 + $0xf0] sm:$0xff]
      %v8687 = vld [vmem:[%s5 + $0xf8] sm:$0xff]
      %v8688 = vld [vmem:[%s6] sm:$0xff]
      %v8689 = vld [vmem:[%s6 + $0x8] sm:$0xff]
      %v8690 = vld [vmem:[%s6 + $0x10] sm:$0xff]
      %v8691 = vld [vmem:[%s6 + $0x18] sm:$0xff]
      %8693 = vset.pattern.permute.xlu0 6
      %8694 = vperm.xlu0 %8693, %v8688
      %v8695 = vpop.permute.xlu0 %8694
      %8698 = vset.pattern.permute.xlu0 6
      %8699 = vperm.xlu0 %8698, %v8689
      %v8700 = vpop.permute.xlu0 %8699
      %8703 = vset.pattern.permute.xlu0 6
      %8704 = vperm.xlu0 %8703, %v8690
      %v8705 = vpop.permute.xlu0 %8704
      %8708 = vset.pattern.permute.xlu0 6
      %8709 = vperm.xlu0 %8708, %v8691
      %v8710 = vpop.permute.xlu0 %8709
      %8712 = vmatpush.msra.mxu0 %v8671
      %8713 = vmatpush.msra.mxu0 %v8670
      %8714 = vmatpush.msra.mxu0 %v8669
      %8715 = vmatpush.msra.mxu0 %v8668
      %8716 = vmatpush.msra.mxu0 %v8667
      %8717 = vmatpush.msra.mxu0 %v8666
      %8718 = vmatpush.msra.mxu0 %v8665
      %8719 = vmatpush.msra.mxu0 %v8664
      %8720 = vmatpush.msra.mxu0 %v8663
      %8721 = vmatpush.msra.mxu0 %v8662
      %8722 = vmatpush.msra.mxu0 %v8661
      %8723 = vmatpush.msra.mxu0 %v8660
      %8724 = vmatpush.msra.mxu0 %v8659
      %8725 = vmatpush.msra.mxu0 %v8658
      %8726 = vmatpush.msra.mxu0 %v8657
      %8727 = vmatpush.msra.mxu0 %v8656
      %8728 = vmatmul.f32.gmra.mxu0 %v8590
      %v8729 = vpop.f32.mrf.mxu0
      %v8730 = vadd.f32 %v8695, %v8729
      %8731 = vmatmul.f32.gmra.mxu0 %v8592
      %v8732 = vpop.f32.mrf.mxu0
      %v8733 = vadd.f32 %v8700, %v8732
      %8734 = vmatmul.f32.gmra.mxu0 %v8595
      %v8735 = vpop.f32.mrf.mxu0
      %v8736 = vadd.f32 %v8705, %v8735
      %8737 = vmatmul.f32.gmra.mxu0 %v8597
      %v8738 = vpop.f32.mrf.mxu0
      %v8739 = vadd.f32 %v8710, %v8738
      %8740 = vdwg.mxu0
      %8741 = vmatpush.msra.mxu0 %v8687
      %8742 = vmatpush.msra.mxu0 %v8686
      %8743 = vmatpush.msra.mxu0 %v8685
      %8744 = vmatpush.msra.mxu0 %v8684
      %8745 = vmatpush.msra.mxu0 %v8683
      %8746 = vmatpush.msra.mxu0 %v8682
      %8747 = vmatpush.msra.mxu0 %v8681
      %8748 = vmatpush.msra.mxu0 %v8680
      %8749 = vmatpush.msra.mxu0 %v8679
      %8750 = vmatpush.msra.mxu0 %v8678
      %8751 = vmatpush.msra.mxu0 %v8677
      %8752 = vmatpush.msra.mxu0 %v8676
      %8753 = vmatpush.msra.mxu0 %v8675
      %8754 = vmatpush.msra.mxu0 %v8674
      %8755 = vmatpush.msra.mxu0 %v8673
      %8756 = vmatpush.msra.mxu0 %v8672
      %8757 = vmatmul.f32.gmra.mxu0 %v8647
      %v8758 = vpop.f32.mrf.mxu0
      %v8759 = vadd.f32 %v8730, %v8758
      %8760 = vmatmul.f32.gmra.mxu0 %v8649
      %v8761 = vpop.f32.mrf.mxu0
      %v8762 = vadd.f32 %v8733, %v8761
      %8763 = vmatmul.f32.gmra.mxu0 %v8652
      %v8764 = vpop.f32.mrf.mxu0
      %v8765 = vadd.f32 %v8736, %v8764
      %8766 = vmatmul.f32.gmra.mxu0 %v8654
      %v8767 = vpop.f32.mrf.mxu0
      %v8768 = vadd.f32 %v8739, %v8767
      %8769 = vdwg.mxu0
      %vm8770 = vcmask 523264
      %8771 = vst.msk [vmem:[%s490] sm:$0xff] %vm8770, %v8759
      %8772 = vst.msk [vmem:[%s490 + $0x8] sm:$0xff] %vm8770, %v8762
      %8773 = vst.msk [vmem:[%s490 + $0x10] sm:$0xff] %vm8770, %v8765
      %8774 = vst.msk [vmem:[%s490 + $0x18] sm:$0xff] %vm8770, %v8768
      %p8775 = scmp.lt.s32.totalorder %s25, 1
      %s8776 = scalar_select %p8775, %s25, 1
      %s8777 = smul.addr %s8776, 8
      %s8778 = smul.addr %s8777, 8
      %s8779 = scalar_lea.vmem %s12, %s8778
      %p8780 = scmp.lt.s32.totalorder %s25, 1
      %s8781 = scalar_select %p8780, %s25, 1
      %s8782 = smul.addr %s8781, 4
      %s8783 = smul.addr %s8782, 8
      %s8784 = scalar_lea.vmem %s13, %s8783
      // Predicated region
      $region69: #{cross_attn_down_block_forward.1} parent=67 // pred_check
        %p8785 = pneg %p310
      $region70: #{cross_attn_down_block_forward.1} parent=67 // pred_check_branch
        %8787 = sbr.rel (%p8785) target = $region72
      $region71: #{cross_attn_down_block_forward.1} parent=67 // pred_region
        _
      $region72: #{cross_attn_down_block_forward.1} parent=67 // pred_fallthru
        _
      // Predicated region
      $region73: #{cross_attn_down_block_forward.1} parent=67 // pred_check
        %p8788 = pneg %p336
      $region74: #{cross_attn_down_block_forward.1} parent=67 // pred_check_branch
        %8790 = sbr.rel (%p8788) target = $region76
      $region75: #{cross_attn_down_block_forward.1} parent=67 // pred_region
        _
      $region76: #{cross_attn_down_block_forward.1} parent=67 // pred_fallthru
        _
    $region68: #{cross_attn_down_block_forward.1} parent=5 // pred_fallthru
      _
    %p8791 = scmp.le.s32.totalorder 2, %s20
    // Predicated region
    $region77: #{cross_attn_down_block_forward.1} parent=5 // pred_check
      %p8792 = pneg %p8791
    $region78: #{cross_attn_down_block_forward.1} parent=5 // pred_check_branch
      %8794 = sbr.rel (%p8792) target = $region80
    $region79: #{cross_attn_down_block_forward.1} parent=5 // pred_region
      %s8795 = ssub.s32 %s20, 2
      // Predicated region
      $region81: #{cross_attn_down_block_forward.1} parent=79 // pred_check
        %p8796 = pneg %p316
      $region82: #{cross_attn_down_block_forward.1} parent=79 // pred_check_branch
        %8798 = sbr.rel (%p8796) target = $region84
      $region83: #{cross_attn_down_block_forward.1} parent=79 // pred_region
        %p8799 = scmp.lt.s32.totalorder %s26, 1
        %s8800 = scalar_select %p8799, %s26, 1
        %s8801 = smul.addr %s8800, 8
        %s8802 = smul.addr %s8801, 8
        %s8803 = scalar_lea.vmem %s12, %s8802
      $region84: #{cross_attn_down_block_forward.1} parent=79 // pred_fallthru
        _
      // Predicated region
      $region85: #{cross_attn_down_block_forward.1} parent=79 // pred_check
        %p8804 = pneg %p342
      $region86: #{cross_attn_down_block_forward.1} parent=79 // pred_check_branch
        %8806 = sbr.rel (%p8804) target = $region88
      $region87: #{cross_attn_down_block_forward.1} parent=79 // pred_region
        %p8807 = scmp.lt.s32.totalorder %s26, 1
        %s8808 = scalar_select %p8807, %s26, 1
        %s8809 = smul.addr %s8808, 4
        %s8810 = smul.addr %s8809, 8
        %s8811 = scalar_lea.vmem %s13, %s8810
      $region88: #{cross_attn_down_block_forward.1} parent=79 // pred_fallthru
        _
    $region80: #{cross_attn_down_block_forward.1} parent=5 // pred_fallthru
      _
  $region6: #{cross_attn_down_block_forward.1} parent=0 // loop_footer
    %s24 = sadd.s32 1, %s20
  $region7: #{cross_attn_down_block_forward.1} parent=0 // loop_footer_branch
    %19 = sbr.rel target = $region3
  $region8: #{cross_attn_down_block_forward.1} parent=0 // loop_exit
    _

</llo_original>
